<compile_context>
chip_gen: v7x
topology: tpu7x:2x2x1
jax: 0.10.0
libtpu: 0.0.40
codegen_flags: <defaults>
</compile_context>

<pallas_src>
import functools

import numpy as np
import jax
import jax.numpy as jnp
from jax.experimental import pallas as pl
from jax.experimental.pallas import tpu as pltpu

EPS = 1e-5     # BatchNorm eps (torch default)
LANE = 128


# ----------------------- conv3x3 + BN(eval) + ReLU ---------------------------

def _conv3x3_bn_relu_kernel(x_ref, w_ref, b_ref, o_ref, *, H, W):
    # x_ref: (1, H+2, W+2, Cin) f32   w_ref: (3, 3, Cin, Cout) bf16
    # b_ref: (1, Cout) f32            o_ref: (1, H*W, Cout) f32
    Cin = x_ref.shape[-1]
    Cout = o_ref.shape[-1]
    acc = jnp.zeros((H * W, Cout), jnp.float32)
    for ky in range(3):                      # 9 shifted-slice matmuls (no im2col)
        for kx in range(3):
            patch = x_ref[0, ky:ky + H, kx:kx + W, :]          # (H, W, Cin) f32
            patch = patch.reshape(H * W, Cin).astype(jnp.bfloat16)
            acc = acc + jnp.dot(patch, w_ref[ky, kx],
                                preferred_element_type=jnp.float32)
    o_ref[0] = jnp.maximum(acc + b_ref[...], 0.0)


def conv3x3_bn_relu(x_hwc, w_oihw, gamma, beta_bn, mean, var):
    """Conv2d(3x3, pad=1, no bias) + BatchNorm(eval, folded) + ReLU."""
    B, H, W, Cin = x_hwc.shape
    Cout = w_oihw.shape[0]
    scale = gamma / jnp.sqrt(var + EPS)
    bias = (beta_bn - mean * scale).reshape(1, Cout)
    # (Cout, Cin, ky, kx) -> (ky, kx, Cin, Cout), BN scale folded in, bf16 MXU operand
    w = (jnp.transpose(w_oihw, (2, 3, 1, 0)) * scale[None, None, None, :]
         ).astype(jnp.bfloat16)
    xp = jnp.pad(x_hwc, ((0, 0), (1, 1), (1, 1), (0, 0)))       # halo only (+2 rows/cols)
    # TODO(synk): for very large H*W add a row-tile grid axis with halo; per-batch
    # blocks are plenty small at DAHead resolutions.
    out = pl.pallas_call(
        functools.partial(_conv3x3_bn_relu_kernel, H=H, W=W),
        out_shape=jax.ShapeDtypeStruct((B, H * W, Cout), jnp.float32),
        grid=(B,),
        in_specs=[
            pl.BlockSpec((1, H + 2, W + 2, Cin), lambda b: (b, 0, 0, 0)),
            pl.BlockSpec((3, 3, Cin, Cout), lambda b: (0, 0, 0, 0)),
            pl.BlockSpec((1, Cout), lambda b: (0, 0)),
        ],
        out_specs=pl.BlockSpec((1, H * W, Cout), lambda b: (b, 0, 0)),
        compiler_params=pltpu.CompilerParams(
            dimension_semantics=("parallel",),
            vmem_limit_bytes=48 * 1024 * 1024),
    )(xp, w, bias)
    return out.reshape(B, H, W, Cout)


# ------------------ PAM: flash-style position attention ----------------------

def _pam_flash_kernel(xq_ref, xk_ref, wb_ref, bb_ref, wc_ref, bc_ref,
                      wd_ref, bd_ref, alpha_ref, o_ref, m_sc, l_sc, acc_sc):
    ki = pl.program_id(2)

    @pl.when(ki == 0)
    def _():
        m_sc[...] = jnp.full_like(m_sc, -jnp.inf)
        l_sc[...] = jnp.zeros_like(l_sc)
        acc_sc[...] = jnp.zeros_like(acc_sc)

    xq = xq_ref[0]                                        # (tq, C) f32 (residual)
    xq_b = xq.astype(jnp.bfloat16)
    xk_b = xk_ref[0].astype(jnp.bfloat16)                 # (tk, C) bf16

    # fused 1x1 projections (conv_b / conv_c / conv_d)
    q = jnp.dot(xq_b, wb_ref[...], preferred_element_type=jnp.float32) + bb_ref[...]
    k = jnp.dot(xk_b, wc_ref[...], preferred_element_type=jnp.float32) + bc_ref[...]
    v = jnp.dot(xk_b, wd_ref[...], preferred_element_type=jnp.float32) + bd_ref[...]

    # energy tile: (tq, tk) — full (HW, HW) never materialized
    s = jax.lax.dot_general(q.astype(jnp.bfloat16), k.astype(jnp.bfloat16),
                            (((1,), (1,)), ((), ())),
                            preferred_element_type=jnp.float32)

    m_prev = m_sc[...]
    m_new = jnp.maximum(m_prev, jnp.max(s, axis=-1, keepdims=True))
    corr = jnp.exp(m_prev - m_new)
    p = jnp.exp(s - m_new)
    l_sc[...] = corr * l_sc[...] + jnp.sum(p, axis=-1, keepdims=True)
    acc_sc[...] = corr * acc_sc[...] + jnp.dot(
        p.astype(jnp.bfloat16), v.astype(jnp.bfloat16),
        preferred_element_type=jnp.float32)
    m_sc[...] = m_new

    @pl.when(ki == pl.num_programs(2) - 1)
    def _():
        inv_l = pl.reciprocal(l_sc[...], approx=True)
        o_ref[0] = alpha_ref[0, 0] * (acc_sc[...] * inv_l) + xq


def pam_forward(x_hwc, wb, bb, wc, bc, wd, bd, alpha):
    B, H, W, C = x_hwc.shape
    HW = H * W
    C8 = wb.shape[1]
    tile = 128 if HW % 128 == 0 else HW   # TODO(synk): pad HW for odd spatial sizes
    x2 = x_hwc.reshape(B, HW, C)
    wb_b, wc_b, wd_b = (w.astype(jnp.bfloat16) for w in (wb, wc, wd))
    out = pl.pallas_call(
        _pam_flash_kernel,
        out_shape=jax.ShapeDtypeStruct((B, HW, C), jnp.float32),
        grid=(B, HW // tile, HW // tile),
        in_specs=[
            pl.BlockSpec((1, tile, C), lambda b, qi, ki: (b, qi, 0)),   # x (query tile)
            pl.BlockSpec((1, tile, C), lambda b, qi, ki: (b, ki, 0)),   # x (key tile)
            pl.BlockSpec((C, C8), lambda b, qi, ki: (0, 0)),
            pl.BlockSpec((1, C8), lambda b, qi, ki: (0, 0)),
            pl.BlockSpec((C, C8), lambda b, qi, ki: (0, 0)),
            pl.BlockSpec((1, C8), lambda b, qi, ki: (0, 0)),
            pl.BlockSpec((C, C), lambda b, qi, ki: (0, 0)),
            pl.BlockSpec((1, C), lambda b, qi, ki: (0, 0)),
            pl.BlockSpec((1, 1), lambda b, qi, ki: (0, 0)),
        ],
        out_specs=pl.BlockSpec((1, tile, C), lambda b, qi, ki: (b, qi, 0)),
        scratch_shapes=[
            pltpu.VMEM((tile, 1), jnp.float32),     # m (running max)
            pltpu.VMEM((tile, 1), jnp.float32),     # l (running denom)
            pltpu.VMEM((tile, C), jnp.float32),     # acc
        ],
        compiler_params=pltpu.CompilerParams(
            dimension_semantics=("parallel", "parallel", "arbitrary")),
    )(x2, x2, wb_b, bb, wc_b, bc, wd_b, bd, alpha)
    return out.reshape(B, H, W, C)


# ----------------------- CAM: channel attention -------------------------------

def _cam_kernel(x_ref, beta_ref, o_ref):
    x = x_ref[0]                                                      # (HW, C) f32
    # energy logits are O(HW): keep this small contraction in f32 so the softmax
    # exponents are not perturbed; the big attn @ x matmul below runs in bf16.
    energy = jax.lax.dot_general(x, x, (((0,), (0,)), ((), ())),
                                 preferred_element_type=jnp.float32)  # (C, C)
    energy_new = jnp.max(energy, axis=-1, keepdims=True) - energy
    m = jnp.max(energy_new, axis=-1, keepdims=True)
    e = jnp.exp(energy_new - m)
    attn = e * pl.reciprocal(jnp.sum(e, axis=-1, keepdims=True), approx=True)
    # feat_e (channels-last) = x @ attn^T
    fe = jax.lax.dot_general(x.astype(jnp.bfloat16), attn.astype(jnp.bfloat16),
                             (((1,), (1,)), ((), ())),
                             preferred_element_type=jnp.float32)      # (HW, C)
    o_ref[0] = beta_ref[0, 0] * fe + x


def cam_forward(x_hwc, beta):
    B, H, W, C = x_hwc.shape
    HW = H * W
    x2 = x_hwc.reshape(B, HW, C)
    out = pl.pallas_call(
        _cam_kernel,
        out_shape=jax.ShapeDtypeStruct((B, HW, C), jnp.float32),
        grid=(B,),
        in_specs=[
            pl.BlockSpec((1, HW, C), lambda b: (b, 0, 0)),
            pl.BlockSpec((1, 1), lambda b: (0, 0)),
        ],
        out_specs=pl.BlockSpec((1, HW, C), lambda b: (b, 0, 0)),
        compiler_params=pltpu.CompilerParams(dimension_semantics=("parallel",)),
    )(x2, beta)
    return out.reshape(B, H, W, C)


# ---------------- fused 1x1 heads: out(p+c), conv_p3(p), conv_c3(c) ----------

def _fused_heads_kernel(p_ref, c_ref, wo_ref, bo_ref, wp_ref, bp_ref,
                        w3_ref, b3_ref, fo_ref, po_ref, co_ref):
    p = p_ref[...]
    c = c_ref[...]
    sb = (p + c).astype(jnp.bfloat16)
    pb = p.astype(jnp.bfloat16)
    cb = c.astype(jnp.bfloat16)
    fo_ref[...] = jnp.dot(sb, wo_ref[...], preferred_element_type=jnp.float32) + bo_ref[...]
    po_ref[...] = jnp.dot(pb, wp_ref[...], preferred_element_type=jnp.float32) + bp_ref[...]
    co_ref[...] = jnp.dot(cb, w3_ref[...], preferred_element_type=jnp.float32) + b3_ref[...]


def fused_heads(p2, c2, w_out, b_out, w_p3, b_p3, w_c3, b_c3, nclass, tm=256):
    """Read feat_p/feat_c once; three 1x1 heads with lane-dense (padded) outputs."""
    M, C = p2.shape
    n_pad = pl.cdiv(nclass, LANE) * LANE

    def pad_w(w):
        return jnp.pad(w, ((0, 0), (0, n_pad - w.shape[1]))).astype(jnp.bfloat16)

    def pad_b(b):
        return jnp.pad(b, ((0, 0), (0, n_pad - b.shape[1])))

    m_pad = pl.cdiv(M, tm) * tm                 # handle M not a multiple of tm
    if m_pad != M:
        p2 = jnp.pad(p2, ((0, m_pad - M), (0, 0)))
        c2 = jnp.pad(c2, ((0, m_pad - M), (0, 0)))

    outs = pl.pallas_call(
        _fused_heads_kernel,
        out_shape=tuple(jax.ShapeDtypeStruct((m_pad, n_pad), jnp.float32)
                        for _ in range(3)),
        grid=(m_pad // tm,),
        in_specs=[
            pl.BlockSpec((tm, C), lambda i: (i, 0)),
            pl.BlockSpec((tm, C), lambda i: (i, 0)),
            pl.BlockSpec((C, n_pad), lambda i: (0, 0)),
            pl.BlockSpec((1, n_pad), lambda i: (0, 0)),
            pl.BlockSpec((C, n_pad), lambda i: (0, 0)),
            pl.BlockSpec((1, n_pad), lambda i: (0, 0)),
            pl.BlockSpec((C, n_pad), lambda i: (0, 0)),
            pl.BlockSpec((1, n_pad), lambda i: (0, 0)),
        ],
        out_specs=tuple(pl.BlockSpec((tm, n_pad), lambda i: (i, 0))
                        for _ in range(3)),
        compiler_params=pltpu.CompilerParams(dimension_semantics=("parallel",)),
    )(p2, c2, pad_w(w_out), pad_b(b_out), pad_w(w_p3), pad_b(b_p3),
      pad_w(w_c3), pad_b(b_c3))
    return tuple(o[:M, :nclass] for o in outs)


# ------------------------------- forward --------------------------------------

def da_head_forward(x_nchw, P):
    B, _, H, W = x_nchw.shape
    x = jnp.transpose(x_nchw, (0, 2, 3, 1)).astype(jnp.float32)   # NCHW -> NHWC

    feat_p = conv3x3_bn_relu(x, *P["conv_p1"])
    feat_p = pam_forward(feat_p, *P["pam"])
    feat_p = conv3x3_bn_relu(feat_p, *P["conv_p2"])

    feat_c = conv3x3_bn_relu(x, *P["conv_c1"])
    feat_c = cam_forward(feat_c, P["cam_beta"])
    feat_c = conv3x3_bn_relu(feat_c, *P["conv_c2"])

    Ci = feat_p.shape[-1]
    p2 = feat_p.reshape(B * H * W, Ci)
    c2 = feat_c.reshape(B * H * W, Ci)

    # TODO(synk): nn.Dropout(0.1) is identity at inference; stochastic masking not implemented.
    w_out, b_out = P["out"]
    w_p3, b_p3 = P["conv_p3"]
    w_c3, b_c3 = P["conv_c3"]
    nclass = w_out.shape[1]
    fusion_out, p_out, c_out = fused_heads(
        p2, c2, w_out, b_out, w_p3, b_p3, w_c3, b_c3, nclass)

    def to_nchw(y):
        return jnp.transpose(y.reshape(B, H, W, nclass), (0, 3, 1, 2))

    return to_nchw(fusion_out), to_nchw(p_out), to_nchw(c_out)


# -------------------------- deterministic params ------------------------------

def init_params(key, in_channels, nclass):
    inter = in_channels // 4
    keys = iter(jax.random.split(key, 32))

    def conv3x3_params(cin, cout):
        w = jax.random.normal(next(keys), (cout, cin, 3, 3), jnp.float32) * (0.5 / np.sqrt(9 * cin))
        gamma = 1.0 + 0.1 * jax.random.normal(next(keys), (cout,), jnp.float32)
        beta = 0.1 * jax.random.normal(next(keys), (cout,), jnp.float32)
        mean = 0.1 * jax.random.normal(next(keys), (cout,), jnp.float32)
        var = 1.0 + 0.1 * jnp.abs(jax.random.normal(next(keys), (cout,), jnp.float32))
        return (w, gamma, beta, mean, var)

    def conv1x1_params(cin, cout):
        # stored directly in matmul layout (cin, cout); equals torch weight[:, :, 0, 0].T
        w = jax.random.normal(next(keys), (cin, cout), jnp.float32) * (0.5 / np.sqrt(cin))
        b = 0.1 * jax.random.normal(next(keys), (1, cout), jnp.float32)
        return (w, b)

    P = {}
    P["conv_p1"] = conv3x3_params(in_channels, inter)
    P["conv_c1"] = conv3x3_params(in_channels, inter)
    P["conv_p2"] = conv3x3_params(inter, inter)
    P["conv_c2"] = conv3x3_params(inter, inter)
    wb, bb = conv1x1_params(inter, inter // 8)
    wc, bc = conv1x1_params(inter, inter // 8)
    wd, bd = conv1x1_params(inter, inter)
    # torch initializes alpha/beta to 0 (attention path would be a no-op); use a
    # deterministic nonzero value so the attention kernels are actually exercised.
    alpha = jnp.full((1, 1), 0.2, jnp.float32)
    P["pam"] = (wb, bb, wc, bc, wd, bd, alpha)
    P["cam_beta"] = jnp.full((1, 1), 0.2, jnp.float32)
    P["out"] = conv1x1_params(inter, nclass)
    P["conv_p3"] = conv1x1_params(inter, nclass)
    P["conv_c3"] = conv1x1_params(inter, nclass)
    return P


# ----------------------- plain-JAX reference (check) --------------------------

def ref_da_head(x_nchw, P):
    x = jnp.transpose(x_nchw, (0, 2, 3, 1)).astype(jnp.float32)
    B, H, W, _ = x.shape

    def cbr(h, p):
        w, g, be, mu, var = p
        y = jax.lax.conv_general_dilated(
            h, jnp.transpose(w, (2, 3, 1, 0)), (1, 1), "SAME",
            dimension_numbers=("NHWC", "HWIO", "NHWC"))
        s = g / jnp.sqrt(var + EPS)
        return jax.nn.relu(y * s + (be - mu * s))

    def pam(h, wb, bb, wc, bc, wd, bd, alpha):
        h2 = h.reshape(B, H * W, -1)
        fb = h2 @ wb + bb
        fc = h2 @ wc + bc
        attn = jax.nn.softmax(jnp.einsum("bic,bjc->bij", fb, fc), axis=-1)
        fd = h2 @ wd + bd
        fe = jnp.einsum("bij,bjc->bic", attn, fd)
        return (alpha[0, 0] * fe + h2).reshape(h.shape)

    def cam(h, beta):
        h2 = h.reshape(B, H * W, -1)
        energy = jnp.einsum("bic,bid->bcd", h2, h2)
        energy_new = jnp.max(energy, axis=-1, keepdims=True) - energy
        attn = jax.nn.softmax(energy_new, axis=-1)
        fe = jnp.einsum("bcd,bid->bic", attn, h2)
        return (beta[0, 0] * fe + h2).reshape(h.shape)

    feat_p = cbr(x, P["conv_p1"])
    feat_p = pam(feat_p, *P["pam"])
    feat_p = cbr(feat_p, P["conv_p2"])
    feat_c = cbr(x, P["conv_c1"])
    feat_c = cam(feat_c, P["cam_beta"])
    feat_c = cbr(feat_c, P["conv_c2"])
    fusion = feat_p + feat_c

    def head(h, p):
        w, b = p
        y = h.reshape(B * H * W, -1) @ w + b
        return jnp.transpose(y.reshape(B, H, W, -1), (0, 3, 1, 2))

    return head(fusion, P["out"]), head(feat_p, P["conv_p3"]), head(feat_c, P["conv_c3"])


# ---------------------------------- main ---------------------------------------

if __name__ == "__main__":
    key = jax.random.PRNGKey(0)
    k_x, k_p = jax.random.split(key)

    B, Cin, H, W = 2, 64, 16, 16          # inter = 16, pam bottleneck = inter//8 = 2
    nclass = 3
    x = jax.random.normal(k_x, (B, Cin, H, W), jnp.float32)
    P = init_params(k_p, Cin, nclass)

    outs = jax.jit(da_head_forward)(x, P)
    outs = jax.block_until_ready(outs)

    refs = jax.block_until_ready(jax.jit(ref_da_head)(x, P))
    for o, r in zip(outs, refs):
        assert o.shape == r.shape == (B, nclass, H, W)
        assert bool(jnp.all(jnp.isfinite(o)))
        # bf16 MXU operands (f32 accumulation) -> slightly looser tolerance than f32
        np.testing.assert_allclose(np.asarray(o), np.asarray(r), rtol=5e-2, atol=5e-2)

    print("KERNEL_OK")
</pallas_src>

<mosaic_0001>
module attributes {stable_mosaic.version = 11 : i64} {
  func.func @_conv3x3_bn_relu_kernel(%arg0: i32, %arg1: memref<1x18x18x64xf32, #tpu.memory_space<vmem>>, %arg2: memref<3x3x64x16xbf16, #tpu.memory_space<vmem>>, %arg3: memref<1x16xf32, #tpu.memory_space<vmem>>, %arg4: memref<1x256x16xf32, #tpu.memory_space<vmem>>) attributes {dimension_semantics = [#tpu.dimension_semantics<parallel>], iteration_bounds = array<i64: 2>, scalar_prefetch = 0 : i64, scratch_operands = 0 : i64, tpu.core_type = #tpu.core_type<tc>, window_params = [{transform_indices = @transform_0, window_bounds = array<i64: 1, 18, 18, 64>}, {pipeline_mode = #tpu.pipeline_mode<synchronous>, transform_indices = @transform_1, window_bounds = array<i64: 3, 3, 64, 16>}, {pipeline_mode = #tpu.pipeline_mode<synchronous>, transform_indices = @transform_2, window_bounds = array<i64: 1, 16>}, {transform_indices = @transform_3, window_bounds = array<i64: 1, 256, 16>}]} {
    %cst = arith.constant 0.000000e+00 : f32
    %0 = vector.broadcast %cst : f32 to vector<256x16xf32>
    %c0 = arith.constant 0 : index
    %c0_0 = arith.constant 0 : index
    %c0_1 = arith.constant 0 : index
    %c0_2 = arith.constant 0 : index
    %1 = vector.load %arg1[%c0, %c0_0, %c0_1, %c0_2] : memref<1x18x18x64xf32, #tpu.memory_space<vmem>>, vector<1x16x16x64xf32>
    %2 = vector.shape_cast %1 : vector<1x16x16x64xf32> to vector<16x16x64xf32>
    %3 = vector.shape_cast %2 : vector<16x16x64xf32> to vector<256x64xf32>
    %4 = arith.truncf %3 : vector<256x64xf32> to vector<256x64xbf16>
    %c0_3 = arith.constant 0 : index
    %c0_4 = arith.constant 0 : index
    %c0_5 = arith.constant 0 : index
    %c0_6 = arith.constant 0 : index
    %5 = vector.load %arg2[%c0_3, %c0_4, %c0_5, %c0_6] : memref<3x3x64x16xbf16, #tpu.memory_space<vmem>>, vector<1x1x64x16xbf16>
    %6 = vector.shape_cast %5 : vector<1x1x64x16xbf16> to vector<64x16xbf16>
    %cst_7 = arith.constant dense<0.000000e+00> : vector<256x16xf32>
    %7 = tpu.matmul %4, %6, %cst_7 {dimension_numbers = #tpu.dot_dimension_numbers<[1], [0], [0], [1], [0, 0, 1, 1], [], []>} : vector<256x64xbf16>, vector<64x16xbf16>, vector<256x16xf32> -> vector<256x16xf32>
    %8 = arith.addf %0, %7 : vector<256x16xf32>
    %c0_8 = arith.constant 0 : index
    %c0_9 = arith.constant 0 : index
    %c1 = arith.constant 1 : index
    %c0_10 = arith.constant 0 : index
    %9 = vector.load %arg1[%c0_8, %c0_9, %c1, %c0_10] : memref<1x18x18x64xf32, #tpu.memory_space<vmem>>, vector<1x16x16x64xf32>
    %10 = vector.shape_cast %9 : vector<1x16x16x64xf32> to vector<16x16x64xf32>
    %11 = vector.shape_cast %10 : vector<16x16x64xf32> to vector<256x64xf32>
    %12 = arith.truncf %11 : vector<256x64xf32> to vector<256x64xbf16>
    %c0_11 = arith.constant 0 : index
    %c1_12 = arith.constant 1 : index
    %c0_13 = arith.constant 0 : index
    %c0_14 = arith.constant 0 : index
    %13 = vector.load %arg2[%c0_11, %c1_12, %c0_13, %c0_14] : memref<3x3x64x16xbf16, #tpu.memory_space<vmem>>, vector<1x1x64x16xbf16>
    %14 = vector.shape_cast %13 : vector<1x1x64x16xbf16> to vector<64x16xbf16>
    %cst_15 = arith.constant dense<0.000000e+00> : vector<256x16xf32>
    %15 = tpu.matmul %12, %14, %cst_15 {dimension_numbers = #tpu.dot_dimension_numbers<[1], [0], [0], [1], [0, 0, 1, 1], [], []>} : vector<256x64xbf16>, vector<64x16xbf16>, vector<256x16xf32> -> vector<256x16xf32>
    %16 = arith.addf %8, %15 : vector<256x16xf32>
    %c0_16 = arith.constant 0 : index
    %c0_17 = arith.constant 0 : index
    %c2 = arith.constant 2 : index
    %c0_18 = arith.constant 0 : index
    %17 = vector.load %arg1[%c0_16, %c0_17, %c2, %c0_18] : memref<1x18x18x64xf32, #tpu.memory_space<vmem>>, vector<1x16x16x64xf32>
    %18 = vector.shape_cast %17 : vector<1x16x16x64xf32> to vector<16x16x64xf32>
    %19 = vector.shape_cast %18 : vector<16x16x64xf32> to vector<256x64xf32>
    %20 = arith.truncf %19 : vector<256x64xf32> to vector<256x64xbf16>
    %c0_19 = arith.constant 0 : index
    %c2_20 = arith.constant 2 : index
    %c0_21 = arith.constant 0 : index
    %c0_22 = arith.constant 0 : index
    %21 = vector.load %arg2[%c0_19, %c2_20, %c0_21, %c0_22] : memref<3x3x64x16xbf16, #tpu.memory_space<vmem>>, vector<1x1x64x16xbf16>
    %22 = vector.shape_cast %21 : vector<1x1x64x16xbf16> to vector<64x16xbf16>
    %cst_23 = arith.constant dense<0.000000e+00> : vector<256x16xf32>
    %23 = tpu.matmul %20, %22, %cst_23 {dimension_numbers = #tpu.dot_dimension_numbers<[1], [0], [0], [1], [0, 0, 1, 1], [], []>} : vector<256x64xbf16>, vector<64x16xbf16>, vector<256x16xf32> -> vector<256x16xf32>
    %24 = arith.addf %16, %23 : vector<256x16xf32>
    %c0_24 = arith.constant 0 : index
    %c1_25 = arith.constant 1 : index
    %c0_26 = arith.constant 0 : index
    %c0_27 = arith.constant 0 : index
    %25 = vector.load %arg1[%c0_24, %c1_25, %c0_26, %c0_27] : memref<1x18x18x64xf32, #tpu.memory_space<vmem>>, vector<1x16x16x64xf32>
    %26 = vector.shape_cast %25 : vector<1x16x16x64xf32> to vector<16x16x64xf32>
    %27 = vector.shape_cast %26 : vector<16x16x64xf32> to vector<256x64xf32>
    %28 = arith.truncf %27 : vector<256x64xf32> to vector<256x64xbf16>
    %c1_28 = arith.constant 1 : index
    %c0_29 = arith.constant 0 : index
    %c0_30 = arith.constant 0 : index
    %c0_31 = arith.constant 0 : index
    %29 = vector.load %arg2[%c1_28, %c0_29, %c0_30, %c0_31] : memref<3x3x64x16xbf16, #tpu.memory_space<vmem>>, vector<1x1x64x16xbf16>
    %30 = vector.shape_cast %29 : vector<1x1x64x16xbf16> to vector<64x16xbf16>
    %cst_32 = arith.constant dense<0.000000e+00> : vector<256x16xf32>
    %31 = tpu.matmul %28, %30, %cst_32 {dimension_numbers = #tpu.dot_dimension_numbers<[1], [0], [0], [1], [0, 0, 1, 1], [], []>} : vector<256x64xbf16>, vector<64x16xbf16>, vector<256x16xf32> -> vector<256x16xf32>
    %32 = arith.addf %24, %31 : vector<256x16xf32>
    %c0_33 = arith.constant 0 : index
    %c1_34 = arith.constant 1 : index
    %c1_35 = arith.constant 1 : index
    %c0_36 = arith.constant 0 : index
    %33 = vector.load %arg1[%c0_33, %c1_34, %c1_35, %c0_36] : memref<1x18x18x64xf32, #tpu.memory_space<vmem>>, vector<1x16x16x64xf32>
    %34 = vector.shape_cast %33 : vector<1x16x16x64xf32> to vector<16x16x64xf32>
    %35 = vector.shape_cast %34 : vector<16x16x64xf32> to vector<256x64xf32>
    %36 = arith.truncf %35 : vector<256x64xf32> to vector<256x64xbf16>
    %c1_37 = arith.constant 1 : index
    %c1_38 = arith.constant 1 : index
    %c0_39 = arith.constant 0 : index
    %c0_40 = arith.constant 0 : index
    %37 = vector.load %arg2[%c1_37, %c1_38, %c0_39, %c0_40] : memref<3x3x64x16xbf16, #tpu.memory_space<vmem>>, vector<1x1x64x16xbf16>
    %38 = vector.shape_cast %37 : vector<1x1x64x16xbf16> to vector<64x16xbf16>
    %cst_41 = arith.constant dense<0.000000e+00> : vector<256x16xf32>
    %39 = tpu.matmul %36, %38, %cst_41 {dimension_numbers = #tpu.dot_dimension_numbers<[1], [0], [0], [1], [0, 0, 1, 1], [], []>} : vector<256x64xbf16>, vector<64x16xbf16>, vector<256x16xf32> -> vector<256x16xf32>
    %40 = arith.addf %32, %39 : vector<256x16xf32>
    %c0_42 = arith.constant 0 : index
    %c1_43 = arith.constant 1 : index
    %c2_44 = arith.constant 2 : index
    %c0_45 = arith.constant 0 : index
    %41 = vector.load %arg1[%c0_42, %c1_43, %c2_44, %c0_45] : memref<1x18x18x64xf32, #tpu.memory_space<vmem>>, vector<1x16x16x64xf32>
    %42 = vector.shape_cast %41 : vector<1x16x16x64xf32> to vector<16x16x64xf32>
    %43 = vector.shape_cast %42 : vector<16x16x64xf32> to vector<256x64xf32>
    %44 = arith.truncf %43 : vector<256x64xf32> to vector<256x64xbf16>
    %c1_46 = arith.constant 1 : index
    %c2_47 = arith.constant 2 : index
    %c0_48 = arith.constant 0 : index
    %c0_49 = arith.constant 0 : index
    %45 = vector.load %arg2[%c1_46, %c2_47, %c0_48, %c0_49] : memref<3x3x64x16xbf16, #tpu.memory_space<vmem>>, vector<1x1x64x16xbf16>
    %46 = vector.shape_cast %45 : vector<1x1x64x16xbf16> to vector<64x16xbf16>
    %cst_50 = arith.constant dense<0.000000e+00> : vector<256x16xf32>
    %47 = tpu.matmul %44, %46, %cst_50 {dimension_numbers = #tpu.dot_dimension_numbers<[1], [0], [0], [1], [0, 0, 1, 1], [], []>} : vector<256x64xbf16>, vector<64x16xbf16>, vector<256x16xf32> -> vector<256x16xf32>
    %48 = arith.addf %40, %47 : vector<256x16xf32>
    %c0_51 = arith.constant 0 : index
    %c2_52 = arith.constant 2 : index
    %c0_53 = arith.constant 0 : index
    %c0_54 = arith.constant 0 : index
    %49 = vector.load %arg1[%c0_51, %c2_52, %c0_53, %c0_54] : memref<1x18x18x64xf32, #tpu.memory_space<vmem>>, vector<1x16x16x64xf32>
    %50 = vector.shape_cast %49 : vector<1x16x16x64xf32> to vector<16x16x64xf32>
    %51 = vector.shape_cast %50 : vector<16x16x64xf32> to vector<256x64xf32>
    %52 = arith.truncf %51 : vector<256x64xf32> to vector<256x64xbf16>
    %c2_55 = arith.constant 2 : index
    %c0_56 = arith.constant 0 : index
    %c0_57 = arith.constant 0 : index
    %c0_58 = arith.constant 0 : index
    %53 = vector.load %arg2[%c2_55, %c0_56, %c0_57, %c0_58] : memref<3x3x64x16xbf16, #tpu.memory_space<vmem>>, vector<1x1x64x16xbf16>
    %54 = vector.shape_cast %53 : vector<1x1x64x16xbf16> to vector<64x16xbf16>
    %cst_59 = arith.constant dense<0.000000e+00> : vector<256x16xf32>
    %55 = tpu.matmul %52, %54, %cst_59 {dimension_numbers = #tpu.dot_dimension_numbers<[1], [0], [0], [1], [0, 0, 1, 1], [], []>} : vector<256x64xbf16>, vector<64x16xbf16>, vector<256x16xf32> -> vector<256x16xf32>
    %56 = arith.addf %48, %55 : vector<256x16xf32>
    %c0_60 = arith.constant 0 : index
    %c2_61 = arith.constant 2 : index
    %c1_62 = arith.constant 1 : index
    %c0_63 = arith.constant 0 : index
    %57 = vector.load %arg1[%c0_60, %c2_61, %c1_62, %c0_63] : memref<1x18x18x64xf32, #tpu.memory_space<vmem>>, vector<1x16x16x64xf32>
    %58 = vector.shape_cast %57 : vector<1x16x16x64xf32> to vector<16x16x64xf32>
    %59 = vector.shape_cast %58 : vector<16x16x64xf32> to vector<256x64xf32>
    %60 = arith.truncf %59 : vector<256x64xf32> to vector<256x64xbf16>
    %c2_64 = arith.constant 2 : index
    %c1_65 = arith.constant 1 : index
    %c0_66 = arith.constant 0 : index
    %c0_67 = arith.constant 0 : index
    %61 = vector.load %arg2[%c2_64, %c1_65, %c0_66, %c0_67] : memref<3x3x64x16xbf16, #tpu.memory_space<vmem>>, vector<1x1x64x16xbf16>
    %62 = vector.shape_cast %61 : vector<1x1x64x16xbf16> to vector<64x16xbf16>
    %cst_68 = arith.constant dense<0.000000e+00> : vector<256x16xf32>
    %63 = tpu.matmul %60, %62, %cst_68 {dimension_numbers = #tpu.dot_dimension_numbers<[1], [0], [0], [1], [0, 0, 1, 1], [], []>} : vector<256x64xbf16>, vector<64x16xbf16>, vector<256x16xf32> -> vector<256x16xf32>
    %64 = arith.addf %56, %63 : vector<256x16xf32>
    %c0_69 = arith.constant 0 : index
    %c2_70 = arith.constant 2 : index
    %c2_71 = arith.constant 2 : index
    %c0_72 = arith.constant 0 : index
    %65 = vector.load %arg1[%c0_69, %c2_70, %c2_71, %c0_72] : memref<1x18x18x64xf32, #tpu.memory_space<vmem>>, vector<1x16x16x64xf32>
    %66 = vector.shape_cast %65 : vector<1x16x16x64xf32> to vector<16x16x64xf32>
    %67 = vector.shape_cast %66 : vector<16x16x64xf32> to vector<256x64xf32>
    %68 = arith.truncf %67 : vector<256x64xf32> to vector<256x64xbf16>
    %c2_73 = arith.constant 2 : index
    %c2_74 = arith.constant 2 : index
    %c0_75 = arith.constant 0 : index
    %c0_76 = arith.constant 0 : index
    %69 = vector.load %arg2[%c2_73, %c2_74, %c0_75, %c0_76] : memref<3x3x64x16xbf16, #tpu.memory_space<vmem>>, vector<1x1x64x16xbf16>
    %70 = vector.shape_cast %69 : vector<1x1x64x16xbf16> to vector<64x16xbf16>
    %cst_77 = arith.constant dense<0.000000e+00> : vector<256x16xf32>
    %71 = tpu.matmul %68, %70, %cst_77 {dimension_numbers = #tpu.dot_dimension_numbers<[1], [0], [0], [1], [0, 0, 1, 1], [], []>} : vector<256x64xbf16>, vector<64x16xbf16>, vector<256x16xf32> -> vector<256x16xf32>
    %72 = arith.addf %64, %71 : vector<256x16xf32>
    %c0_78 = arith.constant 0 : index
    %c0_79 = arith.constant 0 : index
    %73 = vector.load %arg3[%c0_78, %c0_79] : memref<1x16xf32, #tpu.memory_space<vmem>>, vector<1x16xf32>
    %74 = vector.broadcast %73 : vector<1x16xf32> to vector<256x16xf32>
    %75 = arith.addf %72, %74 : vector<256x16xf32>
    %cst_80 = arith.constant 0.000000e+00 : f32
    %76 = vector.broadcast %cst_80 : f32 to vector<256x16xf32>
    %77 = arith.maximumf %75, %76 : vector<256x16xf32>
    %c0_81 = arith.constant 0 : index
    %c0_82 = arith.constant 0 : index
    %c0_83 = arith.constant 0 : index
    %78 = vector.load %arg4[%c0_81, %c0_82, %c0_83] : memref<1x256x16xf32, #tpu.memory_space<vmem>>, vector<1x256x16xf32>
    %79 = vector.shape_cast %78 : vector<1x256x16xf32> to vector<256x16xf32>
    %80 = vector.shape_cast %77 : vector<256x16xf32> to vector<1x256x16xf32>
    tpu.vector_store %arg4[%c0_81, %c0_82, %c0_83], %80 {strides = array<i32>} : memref<1x256x16xf32, #tpu.memory_space<vmem>>, vector<1x256x16xf32>,
    return
  }
  func.func @transform_0(%arg0: i32) -> (i32, i32, i32, i32) {
    %c0_i32 = arith.constant 0 : i32
    %c0_i32_0 = arith.constant 0 : i32
    %c0_i32_1 = arith.constant 0 : i32
    %c0_i32_2 = arith.constant 0 : i32
    return %arg0, %c0_i32, %c0_i32_0, %c0_i32_1 : i32, i32, i32, i32
  }
  func.func @transform_1(%arg0: i32) -> (i32, i32, i32, i32) {
    %c0_i32 = arith.constant 0 : i32
    %c0_i32_0 = arith.constant 0 : i32
    %c0_i32_1 = arith.constant 0 : i32
    %c0_i32_2 = arith.constant 0 : i32
    %c0_i32_3 = arith.constant 0 : i32
    return %c0_i32, %c0_i32_0, %c0_i32_1, %c0_i32_2 : i32, i32, i32, i32
  }
  func.func @transform_2(%arg0: i32) -> (i32, i32) {
    %c0_i32 = arith.constant 0 : i32
    %c0_i32_0 = arith.constant 0 : i32
    %c0_i32_1 = arith.constant 0 : i32
    return %c0_i32, %c0_i32_0 : i32, i32
  }
  func.func @transform_3(%arg0: i32) -> (i32, i32, i32) {
    %c0_i32 = arith.constant 0 : i32
    %c0_i32_0 = arith.constant 0 : i32
    %c0_i32_1 = arith.constant 0 : i32
    return %arg0, %c0_i32, %c0_i32_0 : i32, i32, i32
  }
}

module attributes {stable_mosaic.version = 11 : i64} {
  func.func @_pam_flash_kernel(%arg0: i32, %arg1: i32, %arg2: i32, %arg3: memref<1x128x16xf32, #tpu.memory_space<vmem>>, %arg4: memref<1x128x16xf32, #tpu.memory_space<vmem>>, %arg5: memref<16x2xbf16, #tpu.memory_space<vmem>>, %arg6: memref<1x2xf32, #tpu.memory_space<vmem>>, %arg7: memref<16x2xbf16, #tpu.memory_space<vmem>>, %arg8: memref<1x2xf32, #tpu.memory_space<vmem>>, %arg9: memref<16x16xbf16, #tpu.memory_space<vmem>>, %arg10: memref<1x16xf32, #tpu.memory_space<vmem>>, %arg11: memref<1x1xf32, #tpu.memory_space<vmem>>, %arg12: memref<1x128x16xf32, #tpu.memory_space<vmem>>, %arg13: memref<128x1xf32, #tpu.memory_space<vmem>>, %arg14: memref<128x1xf32, #tpu.memory_space<vmem>>, %arg15: memref<128x16xf32, #tpu.memory_space<vmem>>) attributes {dimension_semantics = [#tpu.dimension_semantics<parallel>, #tpu.dimension_semantics<parallel>, #tpu.dimension_semantics<arbitrary>], iteration_bounds = array<i64: 2, 2, 2>, scalar_prefetch = 0 : i64, scratch_operands = 3 : i64, tpu.core_type = #tpu.core_type<tc>, window_params = [{transform_indices = @transform_0, window_bounds = array<i64: 1, 128, 16>}, {transform_indices = @transform_1, window_bounds = array<i64: 1, 128, 16>}, {pipeline_mode = #tpu.pipeline_mode<synchronous>, transform_indices = @transform_2, window_bounds = array<i64: 16, 2>}, {pipeline_mode = #tpu.pipeline_mode<synchronous>, transform_indices = @transform_3, window_bounds = array<i64: 1, 2>}, {pipeline_mode = #tpu.pipeline_mode<synchronous>, transform_indices = @transform_4, window_bounds = array<i64: 16, 2>}, {pipeline_mode = #tpu.pipeline_mode<synchronous>, transform_indices = @transform_5, window_bounds = array<i64: 1, 2>}, {pipeline_mode = #tpu.pipeline_mode<synchronous>, transform_indices = @transform_6, window_bounds = array<i64: 16, 16>}, {pipeline_mode = #tpu.pipeline_mode<synchronous>, transform_indices = @transform_7, window_bounds = array<i64: 1, 16>}, {pipeline_mode = #tpu.pipeline_mode<synchronous>, transform_indices = @transform_8, window_bounds = array<i64: 1, 1>}, {transform_indices = @transform_9, window_bounds = array<i64: 1, 128, 16>}]} {
    %c0_i32 = arith.constant 0 : i32
    %0 = arith.cmpi eq, %arg2, %c0_i32 : i32
    %1 = arith.extui %0 : i1 to i32
    %c0_i32_0 = arith.constant 0 : i32
    %2 = arith.cmpi ne, %1, %c0_i32_0 : i32
    scf.if %2 {
      %cst_37 = arith.constant 0xFF800000 : f32
      %54 = vector.broadcast %cst_37 : f32 to vector<128x1xf32>
      %c0_38 = arith.constant 0 : index
      %c0_39 = arith.constant 0 : index
      %55 = vector.load %arg13[%c0_38, %c0_39] : memref<128x1xf32, #tpu.memory_space<vmem>>, vector<128x1xf32>
      tpu.vector_store %arg13[%c0_38, %c0_39], %54 {strides = array<i32>} : memref<128x1xf32, #tpu.memory_space<vmem>>, vector<128x1xf32>,
      %cst_40 = arith.constant 0.000000e+00 : f32
      %56 = vector.broadcast %cst_40 : f32 to vector<128x1xf32>
      %c0_41 = arith.constant 0 : index
      %c0_42 = arith.constant 0 : index
      %57 = vector.load %arg14[%c0_41, %c0_42] : memref<128x1xf32, #tpu.memory_space<vmem>>, vector<128x1xf32>
      tpu.vector_store %arg14[%c0_41, %c0_42], %56 {strides = array<i32>} : memref<128x1xf32, #tpu.memory_space<vmem>>, vector<128x1xf32>,
      %cst_43 = arith.constant 0.000000e+00 : f32
      %58 = vector.broadcast %cst_43 : f32 to vector<128x16xf32>
      %c0_44 = arith.constant 0 : index
      %c0_45 = arith.constant 0 : index
      %59 = vector.load %arg15[%c0_44, %c0_45] : memref<128x16xf32, #tpu.memory_space<vmem>>, vector<128x16xf32>
      tpu.vector_store %arg15[%c0_44, %c0_45], %58 {strides = array<i32>} : memref<128x16xf32, #tpu.memory_space<vmem>>, vector<128x16xf32>,
    } else {
    }
    %c0 = arith.constant 0 : index
    %c0_1 = arith.constant 0 : index
    %c0_2 = arith.constant 0 : index
    %3 = vector.load %arg3[%c0, %c0_1, %c0_2] : memref<1x128x16xf32, #tpu.memory_space<vmem>>, vector<1x128x16xf32>
    %4 = vector.shape_cast %3 : vector<1x128x16xf32> to vector<128x16xf32>
    %5 = arith.truncf %4 : vector<128x16xf32> to vector<128x16xbf16>
    %c0_3 = arith.constant 0 : index
    %c0_4 = arith.constant 0 : index
    %c0_5 = arith.constant 0 : index
    %6 = vector.load %arg4[%c0_3, %c0_4, %c0_5] : memref<1x128x16xf32, #tpu.memory_space<vmem>>, vector<1x128x16xf32>
    %7 = vector.shape_cast %6 : vector<1x128x16xf32> to vector<128x16xf32>
    %8 = arith.truncf %7 : vector<128x16xf32> to vector<128x16xbf16>
    %c0_6 = arith.constant 0 : index
    %c0_7 = arith.constant 0 : index
    %9 = vector.load %arg5[%c0_6, %c0_7] : memref<16x2xbf16, #tpu.memory_space<vmem>>, vector<16x2xbf16>
    %cst = arith.constant dense<0.000000e+00> : vector<128x2xf32>
    %10 = tpu.matmul %5, %9, %cst {dimension_numbers = #tpu.dot_dimension_numbers<[1], [0], [0], [1], [0, 0, 1, 1], [], []>} : vector<128x16xbf16>, vector<16x2xbf16>, vector<128x2xf32> -> vector<128x2xf32>
    %c0_8 = arith.constant 0 : index
    %c0_9 = arith.constant 0 : index
    %11 = vector.load %arg6[%c0_8, %c0_9] : memref<1x2xf32, #tpu.memory_space<vmem>>, vector<1x2xf32>
    %12 = vector.broadcast %11 : vector<1x2xf32> to vector<128x2xf32>
    %13 = arith.addf %10, %12 : vector<128x2xf32>
    %c0_10 = arith.constant 0 : index
    %c0_11 = arith.constant 0 : index
    %14 = vector.load %arg7[%c0_10, %c0_11] : memref<16x2xbf16, #tpu.memory_space<vmem>>, vector<16x2xbf16>
    %cst_12 = arith.constant dense<0.000000e+00> : vector<128x2xf32>
    %15 = tpu.matmul %8, %14, %cst_12 {dimension_numbers = #tpu.dot_dimension_numbers<[1], [0], [0], [1], [0, 0, 1, 1], [], []>} : vector<128x16xbf16>, vector<16x2xbf16>, vector<128x2xf32> -> vector<128x2xf32>
    %c0_13 = arith.constant 0 : index
    %c0_14 = arith.constant 0 : index
    %16 = vector.load %arg8[%c0_13, %c0_14] : memref<1x2xf32, #tpu.memory_space<vmem>>, vector<1x2xf32>
    %17 = vector.broadcast %16 : vector<1x2xf32> to vector<128x2xf32>
    %18 = arith.addf %15, %17 : vector<128x2xf32>
    %c0_15 = arith.constant 0 : index
    %c0_16 = arith.constant 0 : index
    %19 = vector.load %arg9[%c0_15, %c0_16] : memref<16x16xbf16, #tpu.memory_space<vmem>>, vector<16x16xbf16>
    %cst_17 = arith.constant dense<0.000000e+00> : vector<128x16xf32>
    %20 = tpu.matmul %8, %19, %cst_17 {dimension_numbers = #tpu.dot_dimension_numbers<[1], [0], [0], [1], [0, 0, 1, 1], [], []>} : vector<128x16xbf16>, vector<16x16xbf16>, vector<128x16xf32> -> vector<128x16xf32>
    %c0_18 = arith.constant 0 : index
    %c0_19 = arith.constant 0 : index
    %21 = vector.load %arg10[%c0_18, %c0_19] : memref<1x16xf32, #tpu.memory_space<vmem>>, vector<1x16xf32>
    %22 = vector.broadcast %21 : vector<1x16xf32> to vector<128x16xf32>
    %23 = arith.addf %20, %22 : vector<128x16xf32>
    %24 = arith.truncf %13 : vector<128x2xf32> to vector<128x2xbf16>
    %25 = arith.truncf %18 : vector<128x2xf32> to vector<128x2xbf16>
    %cst_20 = arith.constant dense<0.000000e+00> : vector<128x128xf32>
    %26 = tpu.matmul %24, %25, %cst_20 {dimension_numbers = #tpu.dot_dimension_numbers<[1], [1], [0], [0], [0, 0, 1, 0], [], []>} : vector<128x2xbf16>, vector<128x2xbf16>, vector<128x128xf32> -> vector<128x128xf32>
    %c0_21 = arith.constant 0 : index
    %c0_22 = arith.constant 0 : index
    %27 = vector.load %arg13[%c0_21, %c0_22] : memref<128x1xf32, #tpu.memory_space<vmem>>, vector<128x1xf32>
    %cst_23 = arith.constant dense<0xFF800000> : vector<128xf32>
    %28 = vector.multi_reduction <maximumf>, %26, %cst_23 [1] : vector<128x128xf32> to vector<128xf32>
    %29 = vector.shape_cast %28 : vector<128xf32> to vector<128x1xf32>
    %30 = arith.maximumf %27, %29 : vector<128x1xf32>
    %31 = arith.subf %27, %30 : vector<128x1xf32>
    %32 = math.exp %31 : vector<128x1xf32>
    %33 = vector.broadcast %30 : vector<128x1xf32> to vector<128x128xf32>
    %34 = arith.subf %26, %33 : vector<128x128xf32>
    %35 = math.exp %34 : vector<128x128xf32>
    %c0_24 = arith.constant 0 : index
    %c0_25 = arith.constant 0 : index
    %36 = vector.load %arg14[%c0_24, %c0_25] : memref<128x1xf32, #tpu.memory_space<vmem>>, vector<128x1xf32>
    %37 = arith.mulf %32, %36 : vector<128x1xf32>
    %cst_26 = arith.constant dense<0.000000e+00> : vector<128xf32>
    %38 = vector.multi_reduction <add>, %35, %cst_26 [1] : vector<128x128xf32> to vector<128xf32>
    %39 = vector.shape_cast %38 : vector<128xf32> to vector<128x1xf32>
    %40 = arith.addf %37, %39 : vector<128x1xf32>
    %c0_27 = arith.constant 0 : index
    %c0_28 = arith.constant 0 : index
    %41 = vector.load %arg14[%c0_27, %c0_28] : memref<128x1xf32, #tpu.memory_space<vmem>>, vector<128x1xf32>
    tpu.vector_store %arg14[%c0_27, %c0_28], %40 {strides = array<i32>} : memref<128x1xf32, #tpu.memory_space<vmem>>, vector<128x1xf32>,
    %c0_29 = arith.constant 0 : index
    %c0_30 = arith.constant 0 : index
    %42 = vector.load %arg15[%c0_29, %c0_30] : memref<128x16xf32, #tpu.memory_space<vmem>>, vector<128x16xf32>
    %43 = vector.broadcast %32 : vector<128x1xf32> to vector<128x16xf32>
    %44 = arith.mulf %43, %42 : vector<128x16xf32>
    %45 = arith.truncf %35 : vector<128x128xf32> to vector<128x128xbf16>
    %46 = arith.truncf %23 : vector<128x16xf32> to vector<128x16xbf16>
    %cst_31 = arith.constant dense<0.000000e+00> : vector<128x16xf32>
    %47 = tpu.matmul %45, %46, %cst_31 {dimension_numbers = #tpu.dot_dimension_numbers<[1], [0], [0], [1], [0, 0, 1, 1], [], []>} : vector<128x128xbf16>, vector<128x16xbf16>, vector<128x16xf32> -> vector<128x16xf32>
    %48 = arith.addf %44, %47 : vector<128x16xf32>
    %c0_32 = arith.constant 0 : index
    %c0_33 = arith.constant 0 : index
    %49 = vector.load %arg15[%c0_32, %c0_33] : memref<128x16xf32, #tpu.memory_space<vmem>>, vector<128x16xf32>
    tpu.vector_store %arg15[%c0_32, %c0_33], %48 {strides = array<i32>} : memref<128x16xf32, #tpu.memory_space<vmem>>, vector<128x16xf32>,
    %c0_34 = arith.constant 0 : index
    %c0_35 = arith.constant 0 : index
    %50 = vector.load %arg13[%c0_34, %c0_35] : memref<128x1xf32, #tpu.memory_space<vmem>>, vector<128x1xf32>
    tpu.vector_store %arg13[%c0_34, %c0_35], %30 {strides = array<i32>} : memref<128x1xf32, #tpu.memory_space<vmem>>, vector<128x1xf32>,
    %c1_i32 = arith.constant 1 : i32
    %51 = arith.cmpi eq, %arg2, %c1_i32 : i32
    %52 = arith.extui %51 : i1 to i32
    %c0_i32_36 = arith.constant 0 : i32
    %53 = arith.cmpi ne, %52, %c0_i32_36 : i32
    scf.if %53 {
      %c0_37 = arith.constant 0 : index
      %c0_38 = arith.constant 0 : index
      %54 = vector.load %arg14[%c0_37, %c0_38] : memref<128x1xf32, #tpu.memory_space<vmem>>, vector<128x1xf32>
      %55 = tpu.reciprocal %54 {approx = true} : vector<128x1xf32> -> vector<128x1xf32>
      %c0_39 = arith.constant 0 : index
      %c0_40 = arith.constant 0 : index
      %56 = vector.load %arg11[%c0_39, %c0_40] : memref<1x1xf32, #tpu.memory_space<vmem>>, vector<1x1xf32>
      %57 = vector.extract %56[0, 0] : f32 from vector<1x1xf32>
      %c0_41 = arith.constant 0 : index
      %c0_42 = arith.constant 0 : index
      %58 = vector.load %arg15[%c0_41, %c0_42] : memref<128x16xf32, #tpu.memory_space<vmem>>, vector<128x16xf32>
      %59 = vector.broadcast %55 : vector<128x1xf32> to vector<128x16xf32>
      %60 = arith.mulf %58, %59 : vector<128x16xf32>
      %61 = vector.broadcast %57 : f32 to vector<128x16xf32>
      %62 = arith.mulf %61, %60 : vector<128x16xf32>
      %63 = arith.addf %62, %4 : vector<128x16xf32>
      %c0_43 = arith.constant 0 : index
      %c0_44 = arith.constant 0 : index
      %c0_45 = arith.constant 0 : index
      %64 = vector.load %arg12[%c0_43, %c0_44, %c0_45] : memref<1x128x16xf32, #tpu.memory_space<vmem>>, vector<1x128x16xf32>
      %65 = vector.shape_cast %64 : vector<1x128x16xf32> to vector<128x16xf32>
      %66 = vector.shape_cast %63 : vector<128x16xf32> to vector<1x128x16xf32>
      tpu.vector_store %arg12[%c0_43, %c0_44, %c0_45], %66 {strides = array<i32>} : memref<1x128x16xf32, #tpu.memory_space<vmem>>, vector<1x128x16xf32>,
    } else {
    }
    return
  }
  func.func @transform_0(%arg0: i32, %arg1: i32, %arg2: i32) -> (i32, i32, i32) {
    %c0_i32 = arith.constant 0 : i32
    %c0_i32_0 = arith.constant 0 : i32
    return %arg0, %arg1, %c0_i32 : i32, i32, i32
  }
  func.func @transform_1(%arg0: i32, %arg1: i32, %arg2: i32) -> (i32, i32, i32) {
    %c0_i32 = arith.constant 0 : i32
    %c0_i32_0 = arith.constant 0 : i32
    return %arg0, %arg2, %c0_i32 : i32, i32, i32
  }
  func.func @transform_2(%arg0: i32, %arg1: i32, %arg2: i32) -> (i32, i32) {
    %c0_i32 = arith.constant 0 : i32
    %c0_i32_0 = arith.constant 0 : i32
    %c0_i32_1 = arith.constant 0 : i32
    return %c0_i32, %c0_i32_0 : i32, i32
  }
  func.func @transform_3(%arg0: i32, %arg1: i32, %arg2: i32) -> (i32, i32) {
    %c0_i32 = arith.constant 0 : i32
    %c0_i32_0 = arith.constant 0 : i32
    %c0_i32_1 = arith.constant 0 : i32
    return %c0_i32, %c0_i32_0 : i32, i32
  }
  func.func @transform_4(%arg0: i32, %arg1: i32, %arg2: i32) -> (i32, i32) {
    %c0_i32 = arith.constant 0 : i32
    %c0_i32_0 = arith.constant 0 : i32
    %c0_i32_1 = arith.constant 0 : i32
    return %c0_i32, %c0_i32_0 : i32, i32
  }
  func.func @transform_5(%arg0: i32, %arg1: i32, %arg2: i32) -> (i32, i32) {
    %c0_i32 = arith.constant 0 : i32
    %c0_i32_0 = arith.constant 0 : i32
    %c0_i32_1 = arith.constant 0 : i32
    return %c0_i32, %c0_i32_0 : i32, i32
  }
  func.func @transform_6(%arg0: i32, %arg1: i32, %arg2: i32) -> (i32, i32) {
    %c0_i32 = arith.constant 0 : i32
    %c0_i32_0 = arith.constant 0 : i32
    %c0_i32_1 = arith.constant 0 : i32
    return %c0_i32, %c0_i32_0 : i32, i32
  }
  func.func @transform_7(%arg0: i32, %arg1: i32, %arg2: i32) -> (i32, i32) {
    %c0_i32 = arith.constant 0 : i32
    %c0_i32_0 = arith.constant 0 : i32
    %c0_i32_1 = arith.constant 0 : i32
    return %c0_i32, %c0_i32_0 : i32, i32
  }
  func.func @transform_8(%arg0: i32, %arg1: i32, %arg2: i32) -> (i32, i32) {
    %c0_i32 = arith.constant 0 : i32
    %c0_i32_0 = arith.constant 0 : i32
    %c0_i32_1 = arith.constant 0 : i32
    return %c0_i32, %c0_i32_0 : i32, i32
  }
  func.func @transform_9(%arg0: i32, %arg1: i32, %arg2: i32) -> (i32, i32, i32) {
    %c0_i32 = arith.constant 0 : i32
    %c0_i32_0 = arith.constant 0 : i32
    return %arg0, %arg1, %c0_i32 : i32, i32, i32
  }
}

module attributes {stable_mosaic.version = 11 : i64} {
  func.func @_cam_kernel(%arg0: i32, %arg1: memref<1x256x16xf32, #tpu.memory_space<vmem>>, %arg2: memref<1x1xf32, #tpu.memory_space<vmem>>, %arg3: memref<1x256x16xf32, #tpu.memory_space<vmem>>) attributes {dimension_semantics = [#tpu.dimension_semantics<parallel>], iteration_bounds = array<i64: 2>, scalar_prefetch = 0 : i64, scratch_operands = 0 : i64, tpu.core_type = #tpu.core_type<tc>, window_params = [{transform_indices = @transform_0, window_bounds = array<i64: 1, 256, 16>}, {pipeline_mode = #tpu.pipeline_mode<synchronous>, transform_indices = @transform_1, window_bounds = array<i64: 1, 1>}, {transform_indices = @transform_2, window_bounds = array<i64: 1, 256, 16>}]} {
    %c0 = arith.constant 0 : index
    %c0_0 = arith.constant 0 : index
    %c0_1 = arith.constant 0 : index
    %0 = vector.load %arg1[%c0, %c0_0, %c0_1] : memref<1x256x16xf32, #tpu.memory_space<vmem>>, vector<1x256x16xf32>
    %1 = vector.shape_cast %0 : vector<1x256x16xf32> to vector<256x16xf32>
    %cst = arith.constant dense<0.000000e+00> : vector<16x16xf32>
    %2 = tpu.matmul %1, %1, %cst {dimension_numbers = #tpu.dot_dimension_numbers<[0], [0], [1], [1], [0, 1, 1, 1], [], []>} : vector<256x16xf32>, vector<256x16xf32>, vector<16x16xf32> -> vector<16x16xf32>
    %cst_2 = arith.constant dense<0xFF800000> : vector<16xf32>
    %3 = vector.multi_reduction <maximumf>, %2, %cst_2 [1] : vector<16x16xf32> to vector<16xf32>
    %4 = vector.shape_cast %3 : vector<16xf32> to vector<16x1xf32>
    %5 = vector.broadcast %4 : vector<16x1xf32> to vector<16x16xf32>
    %6 = arith.subf %5, %2 : vector<16x16xf32>
    %cst_3 = arith.constant dense<0xFF800000> : vector<16xf32>
    %7 = vector.multi_reduction <maximumf>, %6, %cst_3 [1] : vector<16x16xf32> to vector<16xf32>
    %8 = vector.shape_cast %7 : vector<16xf32> to vector<16x1xf32>
    %9 = vector.broadcast %8 : vector<16x1xf32> to vector<16x16xf32>
    %10 = arith.subf %6, %9 : vector<16x16xf32>
    %11 = math.exp %10 : vector<16x16xf32>
    %cst_4 = arith.constant dense<0.000000e+00> : vector<16xf32>
    %12 = vector.multi_reduction <add>, %11, %cst_4 [1] : vector<16x16xf32> to vector<16xf32>
    %13 = vector.shape_cast %12 : vector<16xf32> to vector<16x1xf32>
    %14 = tpu.reciprocal %13 {approx = true} : vector<16x1xf32> -> vector<16x1xf32>
    %15 = vector.broadcast %14 : vector<16x1xf32> to vector<16x16xf32>
    %16 = arith.mulf %11, %15 : vector<16x16xf32>
    %17 = arith.truncf %1 : vector<256x16xf32> to vector<256x16xbf16>
    %18 = arith.truncf %16 : vector<16x16xf32> to vector<16x16xbf16>
    %cst_5 = arith.constant dense<0.000000e+00> : vector<256x16xf32>
    %19 = tpu.matmul %17, %18, %cst_5 {dimension_numbers = #tpu.dot_dimension_numbers<[1], [1], [0], [0], [0, 0, 1, 0], [], []>} : vector<256x16xbf16>, vector<16x16xbf16>, vector<256x16xf32> -> vector<256x16xf32>
    %c0_6 = arith.constant 0 : index
    %c0_7 = arith.constant 0 : index
    %20 = vector.load %arg2[%c0_6, %c0_7] : memref<1x1xf32, #tpu.memory_space<vmem>>, vector<1x1xf32>
    %21 = vector.extract %20[0, 0] : f32 from vector<1x1xf32>
    %22 = vector.broadcast %21 : f32 to vector<256x16xf32>
    %23 = arith.mulf %22, %19 : vector<256x16xf32>
    %24 = arith.addf %23, %1 : vector<256x16xf32>
    %c0_8 = arith.constant 0 : index
    %c0_9 = arith.constant 0 : index
    %c0_10 = arith.constant 0 : index
    %25 = vector.load %arg3[%c0_8, %c0_9, %c0_10] : memref<1x256x16xf32, #tpu.memory_space<vmem>>, vector<1x256x16xf32>
    %26 = vector.shape_cast %25 : vector<1x256x16xf32> to vector<256x16xf32>
    %27 = vector.shape_cast %24 : vector<256x16xf32> to vector<1x256x16xf32>
    tpu.vector_store %arg3[%c0_8, %c0_9, %c0_10], %27 {strides = array<i32>} : memref<1x256x16xf32, #tpu.memory_space<vmem>>, vector<1x256x16xf32>,
    return
  }
  func.func @transform_0(%arg0: i32) -> (i32, i32, i32) {
    %c0_i32 = arith.constant 0 : i32
    %c0_i32_0 = arith.constant 0 : i32
    %c0_i32_1 = arith.constant 0 : i32
    return %arg0, %c0_i32, %c0_i32_0 : i32, i32, i32
  }
  func.func @transform_1(%arg0: i32) -> (i32, i32) {
    %c0_i32 = arith.constant 0 : i32
    %c0_i32_0 = arith.constant 0 : i32
    %c0_i32_1 = arith.constant 0 : i32
    return %c0_i32, %c0_i32_0 : i32, i32
  }
  func.func @transform_2(%arg0: i32) -> (i32, i32, i32) {
    %c0_i32 = arith.constant 0 : i32
    %c0_i32_0 = arith.constant 0 : i32
    %c0_i32_1 = arith.constant 0 : i32
    return %arg0, %c0_i32, %c0_i32_0 : i32, i32, i32
  }
}

module attributes {stable_mosaic.version = 11 : i64} {
  func.func @_conv3x3_bn_relu_kernel(%arg0: i32, %arg1: memref<1x18x18x16xf32, #tpu.memory_space<vmem>>, %arg2: memref<3x3x16x16xbf16, #tpu.memory_space<vmem>>, %arg3: memref<1x16xf32, #tpu.memory_space<vmem>>, %arg4: memref<1x256x16xf32, #tpu.memory_space<vmem>>) attributes {dimension_semantics = [#tpu.dimension_semantics<parallel>], iteration_bounds = array<i64: 2>, scalar_prefetch = 0 : i64, scratch_operands = 0 : i64, tpu.core_type = #tpu.core_type<tc>, window_params = [{transform_indices = @transform_0, window_bounds = array<i64: 1, 18, 18, 16>}, {pipeline_mode = #tpu.pipeline_mode<synchronous>, transform_indices = @transform_1, window_bounds = array<i64: 3, 3, 16, 16>}, {pipeline_mode = #tpu.pipeline_mode<synchronous>, transform_indices = @transform_2, window_bounds = array<i64: 1, 16>}, {transform_indices = @transform_3, window_bounds = array<i64: 1, 256, 16>}]} {
    %cst = arith.constant 0.000000e+00 : f32
    %0 = vector.broadcast %cst : f32 to vector<256x16xf32>
    %c0 = arith.constant 0 : index
    %c0_0 = arith.constant 0 : index
    %c0_1 = arith.constant 0 : index
    %c0_2 = arith.constant 0 : index
    %1 = vector.load %arg1[%c0, %c0_0, %c0_1, %c0_2] : memref<1x18x18x16xf32, #tpu.memory_space<vmem>>, vector<1x16x16x16xf32>
    %2 = vector.shape_cast %1 : vector<1x16x16x16xf32> to vector<16x16x16xf32>
    %3 = vector.shape_cast %2 : vector<16x16x16xf32> to vector<256x16xf32>
    %4 = arith.truncf %3 : vector<256x16xf32> to vector<256x16xbf16>
    %c0_3 = arith.constant 0 : index
    %c0_4 = arith.constant 0 : index
    %c0_5 = arith.constant 0 : index
    %c0_6 = arith.constant 0 : index
    %5 = vector.load %arg2[%c0_3, %c0_4, %c0_5, %c0_6] : memref<3x3x16x16xbf16, #tpu.memory_space<vmem>>, vector<1x1x16x16xbf16>
    %6 = vector.shape_cast %5 : vector<1x1x16x16xbf16> to vector<16x16xbf16>
    %cst_7 = arith.constant dense<0.000000e+00> : vector<256x16xf32>
    %7 = tpu.matmul %4, %6, %cst_7 {dimension_numbers = #tpu.dot_dimension_numbers<[1], [0], [0], [1], [0, 0, 1, 1], [], []>} : vector<256x16xbf16>, vector<16x16xbf16>, vector<256x16xf32> -> vector<256x16xf32>
    %8 = arith.addf %0, %7 : vector<256x16xf32>
    %c0_8 = arith.constant 0 : index
    %c0_9 = arith.constant 0 : index
    %c1 = arith.constant 1 : index
    %c0_10 = arith.constant 0 : index
    %9 = vector.load %arg1[%c0_8, %c0_9, %c1, %c0_10] : memref<1x18x18x16xf32, #tpu.memory_space<vmem>>, vector<1x16x16x16xf32>
    %10 = vector.shape_cast %9 : vector<1x16x16x16xf32> to vector<16x16x16xf32>
    %11 = vector.shape_cast %10 : vector<16x16x16xf32> to vector<256x16xf32>
    %12 = arith.truncf %11 : vector<256x16xf32> to vector<256x16xbf16>
    %c0_11 = arith.constant 0 : index
    %c1_12 = arith.constant 1 : index
    %c0_13 = arith.constant 0 : index
    %c0_14 = arith.constant 0 : index
    %13 = vector.load %arg2[%c0_11, %c1_12, %c0_13, %c0_14] : memref<3x3x16x16xbf16, #tpu.memory_space<vmem>>, vector<1x1x16x16xbf16>
    %14 = vector.shape_cast %13 : vector<1x1x16x16xbf16> to vector<16x16xbf16>
    %cst_15 = arith.constant dense<0.000000e+00> : vector<256x16xf32>
    %15 = tpu.matmul %12, %14, %cst_15 {dimension_numbers = #tpu.dot_dimension_numbers<[1], [0], [0], [1], [0, 0, 1, 1], [], []>} : vector<256x16xbf16>, vector<16x16xbf16>, vector<256x16xf32> -> vector<256x16xf32>
    %16 = arith.addf %8, %15 : vector<256x16xf32>
    %c0_16 = arith.constant 0 : index
    %c0_17 = arith.constant 0 : index
    %c2 = arith.constant 2 : index
    %c0_18 = arith.constant 0 : index
    %17 = vector.load %arg1[%c0_16, %c0_17, %c2, %c0_18] : memref<1x18x18x16xf32, #tpu.memory_space<vmem>>, vector<1x16x16x16xf32>
    %18 = vector.shape_cast %17 : vector<1x16x16x16xf32> to vector<16x16x16xf32>
    %19 = vector.shape_cast %18 : vector<16x16x16xf32> to vector<256x16xf32>
    %20 = arith.truncf %19 : vector<256x16xf32> to vector<256x16xbf16>
    %c0_19 = arith.constant 0 : index
    %c2_20 = arith.constant 2 : index
    %c0_21 = arith.constant 0 : index
    %c0_22 = arith.constant 0 : index
    %21 = vector.load %arg2[%c0_19, %c2_20, %c0_21, %c0_22] : memref<3x3x16x16xbf16, #tpu.memory_space<vmem>>, vector<1x1x16x16xbf16>
    %22 = vector.shape_cast %21 : vector<1x1x16x16xbf16> to vector<16x16xbf16>
    %cst_23 = arith.constant dense<0.000000e+00> : vector<256x16xf32>
    %23 = tpu.matmul %20, %22, %cst_23 {dimension_numbers = #tpu.dot_dimension_numbers<[1], [0], [0], [1], [0, 0, 1, 1], [], []>} : vector<256x16xbf16>, vector<16x16xbf16>, vector<256x16xf32> -> vector<256x16xf32>
    %24 = arith.addf %16, %23 : vector<256x16xf32>
    %c0_24 = arith.constant 0 : index
    %c1_25 = arith.constant 1 : index
    %c0_26 = arith.constant 0 : index
    %c0_27 = arith.constant 0 : index
    %25 = vector.load %arg1[%c0_24, %c1_25, %c0_26, %c0_27] : memref<1x18x18x16xf32, #tpu.memory_space<vmem>>, vector<1x16x16x16xf32>
    %26 = vector.shape_cast %25 : vector<1x16x16x16xf32> to vector<16x16x16xf32>
    %27 = vector.shape_cast %26 : vector<16x16x16xf32> to vector<256x16xf32>
    %28 = arith.truncf %27 : vector<256x16xf32> to vector<256x16xbf16>
    %c1_28 = arith.constant 1 : index
    %c0_29 = arith.constant 0 : index
    %c0_30 = arith.constant 0 : index
    %c0_31 = arith.constant 0 : index
    %29 = vector.load %arg2[%c1_28, %c0_29, %c0_30, %c0_31] : memref<3x3x16x16xbf16, #tpu.memory_space<vmem>>, vector<1x1x16x16xbf16>
    %30 = vector.shape_cast %29 : vector<1x1x16x16xbf16> to vector<16x16xbf16>
    %cst_32 = arith.constant dense<0.000000e+00> : vector<256x16xf32>
    %31 = tpu.matmul %28, %30, %cst_32 {dimension_numbers = #tpu.dot_dimension_numbers<[1], [0], [0], [1], [0, 0, 1, 1], [], []>} : vector<256x16xbf16>, vector<16x16xbf16>, vector<256x16xf32> -> vector<256x16xf32>
    %32 = arith.addf %24, %31 : vector<256x16xf32>
    %c0_33 = arith.constant 0 : index
    %c1_34 = arith.constant 1 : index
    %c1_35 = arith.constant 1 : index
    %c0_36 = arith.constant 0 : index
    %33 = vector.load %arg1[%c0_33, %c1_34, %c1_35, %c0_36] : memref<1x18x18x16xf32, #tpu.memory_space<vmem>>, vector<1x16x16x16xf32>
    %34 = vector.shape_cast %33 : vector<1x16x16x16xf32> to vector<16x16x16xf32>
    %35 = vector.shape_cast %34 : vector<16x16x16xf32> to vector<256x16xf32>
    %36 = arith.truncf %35 : vector<256x16xf32> to vector<256x16xbf16>
    %c1_37 = arith.constant 1 : index
    %c1_38 = arith.constant 1 : index
    %c0_39 = arith.constant 0 : index
    %c0_40 = arith.constant 0 : index
    %37 = vector.load %arg2[%c1_37, %c1_38, %c0_39, %c0_40] : memref<3x3x16x16xbf16, #tpu.memory_space<vmem>>, vector<1x1x16x16xbf16>
    %38 = vector.shape_cast %37 : vector<1x1x16x16xbf16> to vector<16x16xbf16>
    %cst_41 = arith.constant dense<0.000000e+00> : vector<256x16xf32>
    %39 = tpu.matmul %36, %38, %cst_41 {dimension_numbers = #tpu.dot_dimension_numbers<[1], [0], [0], [1], [0, 0, 1, 1], [], []>} : vector<256x16xbf16>, vector<16x16xbf16>, vector<256x16xf32> -> vector<256x16xf32>
    %40 = arith.addf %32, %39 : vector<256x16xf32>
    %c0_42 = arith.constant 0 : index
    %c1_43 = arith.constant 1 : index
    %c2_44 = arith.constant 2 : index
    %c0_45 = arith.constant 0 : index
    %41 = vector.load %arg1[%c0_42, %c1_43, %c2_44, %c0_45] : memref<1x18x18x16xf32, #tpu.memory_space<vmem>>, vector<1x16x16x16xf32>
    %42 = vector.shape_cast %41 : vector<1x16x16x16xf32> to vector<16x16x16xf32>
    %43 = vector.shape_cast %42 : vector<16x16x16xf32> to vector<256x16xf32>
    %44 = arith.truncf %43 : vector<256x16xf32> to vector<256x16xbf16>
    %c1_46 = arith.constant 1 : index
    %c2_47 = arith.constant 2 : index
    %c0_48 = arith.constant 0 : index
    %c0_49 = arith.constant 0 : index
    %45 = vector.load %arg2[%c1_46, %c2_47, %c0_48, %c0_49] : memref<3x3x16x16xbf16, #tpu.memory_space<vmem>>, vector<1x1x16x16xbf16>
    %46 = vector.shape_cast %45 : vector<1x1x16x16xbf16> to vector<16x16xbf16>
    %cst_50 = arith.constant dense<0.000000e+00> : vector<256x16xf32>
    %47 = tpu.matmul %44, %46, %cst_50 {dimension_numbers = #tpu.dot_dimension_numbers<[1], [0], [0], [1], [0, 0, 1, 1], [], []>} : vector<256x16xbf16>, vector<16x16xbf16>, vector<256x16xf32> -> vector<256x16xf32>
    %48 = arith.addf %40, %47 : vector<256x16xf32>
    %c0_51 = arith.constant 0 : index
    %c2_52 = arith.constant 2 : index
    %c0_53 = arith.constant 0 : index
    %c0_54 = arith.constant 0 : index
    %49 = vector.load %arg1[%c0_51, %c2_52, %c0_53, %c0_54] : memref<1x18x18x16xf32, #tpu.memory_space<vmem>>, vector<1x16x16x16xf32>
    %50 = vector.shape_cast %49 : vector<1x16x16x16xf32> to vector<16x16x16xf32>
    %51 = vector.shape_cast %50 : vector<16x16x16xf32> to vector<256x16xf32>
    %52 = arith.truncf %51 : vector<256x16xf32> to vector<256x16xbf16>
    %c2_55 = arith.constant 2 : index
    %c0_56 = arith.constant 0 : index
    %c0_57 = arith.constant 0 : index
    %c0_58 = arith.constant 0 : index
    %53 = vector.load %arg2[%c2_55, %c0_56, %c0_57, %c0_58] : memref<3x3x16x16xbf16, #tpu.memory_space<vmem>>, vector<1x1x16x16xbf16>
    %54 = vector.shape_cast %53 : vector<1x1x16x16xbf16> to vector<16x16xbf16>
    %cst_59 = arith.constant dense<0.000000e+00> : vector<256x16xf32>
    %55 = tpu.matmul %52, %54, %cst_59 {dimension_numbers = #tpu.dot_dimension_numbers<[1], [0], [0], [1], [0, 0, 1, 1], [], []>} : vector<256x16xbf16>, vector<16x16xbf16>, vector<256x16xf32> -> vector<256x16xf32>
    %56 = arith.addf %48, %55 : vector<256x16xf32>
    %c0_60 = arith.constant 0 : index
    %c2_61 = arith.constant 2 : index
    %c1_62 = arith.constant 1 : index
    %c0_63 = arith.constant 0 : index
    %57 = vector.load %arg1[%c0_60, %c2_61, %c1_62, %c0_63] : memref<1x18x18x16xf32, #tpu.memory_space<vmem>>, vector<1x16x16x16xf32>
    %58 = vector.shape_cast %57 : vector<1x16x16x16xf32> to vector<16x16x16xf32>
    %59 = vector.shape_cast %58 : vector<16x16x16xf32> to vector<256x16xf32>
    %60 = arith.truncf %59 : vector<256x16xf32> to vector<256x16xbf16>
    %c2_64 = arith.constant 2 : index
    %c1_65 = arith.constant 1 : index
    %c0_66 = arith.constant 0 : index
    %c0_67 = arith.constant 0 : index
    %61 = vector.load %arg2[%c2_64, %c1_65, %c0_66, %c0_67] : memref<3x3x16x16xbf16, #tpu.memory_space<vmem>>, vector<1x1x16x16xbf16>
    %62 = vector.shape_cast %61 : vector<1x1x16x16xbf16> to vector<16x16xbf16>
    %cst_68 = arith.constant dense<0.000000e+00> : vector<256x16xf32>
    %63 = tpu.matmul %60, %62, %cst_68 {dimension_numbers = #tpu.dot_dimension_numbers<[1], [0], [0], [1], [0, 0, 1, 1], [], []>} : vector<256x16xbf16>, vector<16x16xbf16>, vector<256x16xf32> -> vector<256x16xf32>
    %64 = arith.addf %56, %63 : vector<256x16xf32>
    %c0_69 = arith.constant 0 : index
    %c2_70 = arith.constant 2 : index
    %c2_71 = arith.constant 2 : index
    %c0_72 = arith.constant 0 : index
    %65 = vector.load %arg1[%c0_69, %c2_70, %c2_71, %c0_72] : memref<1x18x18x16xf32, #tpu.memory_space<vmem>>, vector<1x16x16x16xf32>
    %66 = vector.shape_cast %65 : vector<1x16x16x16xf32> to vector<16x16x16xf32>
    %67 = vector.shape_cast %66 : vector<16x16x16xf32> to vector<256x16xf32>
    %68 = arith.truncf %67 : vector<256x16xf32> to vector<256x16xbf16>
    %c2_73 = arith.constant 2 : index
    %c2_74 = arith.constant 2 : index
    %c0_75 = arith.constant 0 : index
    %c0_76 = arith.constant 0 : index
    %69 = vector.load %arg2[%c2_73, %c2_74, %c0_75, %c0_76] : memref<3x3x16x16xbf16, #tpu.memory_space<vmem>>, vector<1x1x16x16xbf16>
    %70 = vector.shape_cast %69 : vector<1x1x16x16xbf16> to vector<16x16xbf16>
    %cst_77 = arith.constant dense<0.000000e+00> : vector<256x16xf32>
    %71 = tpu.matmul %68, %70, %cst_77 {dimension_numbers = #tpu.dot_dimension_numbers<[1], [0], [0], [1], [0, 0, 1, 1], [], []>} : vector<256x16xbf16>, vector<16x16xbf16>, vector<256x16xf32> -> vector<256x16xf32>
    %72 = arith.addf %64, %71 : vector<256x16xf32>
    %c0_78 = arith.constant 0 : index
    %c0_79 = arith.constant 0 : index
    %73 = vector.load %arg3[%c0_78, %c0_79] : memref<1x16xf32, #tpu.memory_space<vmem>>, vector<1x16xf32>
    %74 = vector.broadcast %73 : vector<1x16xf32> to vector<256x16xf32>
    %75 = arith.addf %72, %74 : vector<256x16xf32>
    %cst_80 = arith.constant 0.000000e+00 : f32
    %76 = vector.broadcast %cst_80 : f32 to vector<256x16xf32>
    %77 = arith.maximumf %75, %76 : vector<256x16xf32>
    %c0_81 = arith.constant 0 : index
    %c0_82 = arith.constant 0 : index
    %c0_83 = arith.constant 0 : index
    %78 = vector.load %arg4[%c0_81, %c0_82, %c0_83] : memref<1x256x16xf32, #tpu.memory_space<vmem>>, vector<1x256x16xf32>
    %79 = vector.shape_cast %78 : vector<1x256x16xf32> to vector<256x16xf32>
    %80 = vector.shape_cast %77 : vector<256x16xf32> to vector<1x256x16xf32>
    tpu.vector_store %arg4[%c0_81, %c0_82, %c0_83], %80 {strides = array<i32>} : memref<1x256x16xf32, #tpu.memory_space<vmem>>, vector<1x256x16xf32>,
    return
  }
  func.func @transform_0(%arg0: i32) -> (i32, i32, i32, i32) {
    %c0_i32 = arith.constant 0 : i32
    %c0_i32_0 = arith.constant 0 : i32
    %c0_i32_1 = arith.constant 0 : i32
    %c0_i32_2 = arith.constant 0 : i32
    return %arg0, %c0_i32, %c0_i32_0, %c0_i32_1 : i32, i32, i32, i32
  }
  func.func @transform_1(%arg0: i32) -> (i32, i32, i32, i32) {
    %c0_i32 = arith.constant 0 : i32
    %c0_i32_0 = arith.constant 0 : i32
    %c0_i32_1 = arith.constant 0 : i32
    %c0_i32_2 = arith.constant 0 : i32
    %c0_i32_3 = arith.constant 0 : i32
    return %c0_i32, %c0_i32_0, %c0_i32_1, %c0_i32_2 : i32, i32, i32, i32
  }
  func.func @transform_2(%arg0: i32) -> (i32, i32) {
    %c0_i32 = arith.constant 0 : i32
    %c0_i32_0 = arith.constant 0 : i32
    %c0_i32_1 = arith.constant 0 : i32
    return %c0_i32, %c0_i32_0 : i32, i32
  }
  func.func @transform_3(%arg0: i32) -> (i32, i32, i32) {
    %c0_i32 = arith.constant 0 : i32
    %c0_i32_0 = arith.constant 0 : i32
    %c0_i32_1 = arith.constant 0 : i32
    return %arg0, %c0_i32, %c0_i32_0 : i32, i32, i32
  }
}

module attributes {stable_mosaic.version = 11 : i64} {
  func.func @_fused_heads_kernel(%arg0: i32, %arg1: memref<256x16xf32, #tpu.memory_space<vmem>>, %arg2: memref<256x16xf32, #tpu.memory_space<vmem>>, %arg3: memref<16x128xbf16, #tpu.memory_space<vmem>>, %arg4: memref<1x128xf32, #tpu.memory_space<vmem>>, %arg5: memref<16x128xbf16, #tpu.memory_space<vmem>>, %arg6: memref<1x128xf32, #tpu.memory_space<vmem>>, %arg7: memref<16x128xbf16, #tpu.memory_space<vmem>>, %arg8: memref<1x128xf32, #tpu.memory_space<vmem>>, %arg9: memref<256x128xf32, #tpu.memory_space<vmem>>, %arg10: memref<256x128xf32, #tpu.memory_space<vmem>>, %arg11: memref<256x128xf32, #tpu.memory_space<vmem>>) attributes {dimension_semantics = [#tpu.dimension_semantics<parallel>], iteration_bounds = array<i64: 2>, scalar_prefetch = 0 : i64, scratch_operands = 0 : i64, tpu.core_type = #tpu.core_type<tc>, window_params = [{transform_indices = @transform_0, window_bounds = array<i64: 256, 16>}, {transform_indices = @transform_1, window_bounds = array<i64: 256, 16>}, {pipeline_mode = #tpu.pipeline_mode<synchronous>, transform_indices = @transform_2, window_bounds = array<i64: 16, 128>}, {pipeline_mode = #tpu.pipeline_mode<synchronous>, transform_indices = @transform_3, window_bounds = array<i64: 1, 128>}, {pipeline_mode = #tpu.pipeline_mode<synchronous>, transform_indices = @transform_4, window_bounds = array<i64: 16, 128>}, {pipeline_mode = #tpu.pipeline_mode<synchronous>, transform_indices = @transform_5, window_bounds = array<i64: 1, 128>}, {pipeline_mode = #tpu.pipeline_mode<synchronous>, transform_indices = @transform_6, window_bounds = array<i64: 16, 128>}, {pipeline_mode = #tpu.pipeline_mode<synchronous>, transform_indices = @transform_7, window_bounds = array<i64: 1, 128>}, {transform_indices = @transform_8, window_bounds = array<i64: 256, 128>}, {transform_indices = @transform_9, window_bounds = array<i64: 256, 128>}, {transform_indices = @transform_10, window_bounds = array<i64: 256, 128>}]} {
    %c0 = arith.constant 0 : index
    %c0_0 = arith.constant 0 : index
    %0 = vector.load %arg1[%c0, %c0_0] : memref<256x16xf32, #tpu.memory_space<vmem>>, vector<256x16xf32>
    %c0_1 = arith.constant 0 : index
    %c0_2 = arith.constant 0 : index
    %1 = vector.load %arg2[%c0_1, %c0_2] : memref<256x16xf32, #tpu.memory_space<vmem>>, vector<256x16xf32>
    %2 = arith.addf %0, %1 : vector<256x16xf32>
    %3 = arith.truncf %2 : vector<256x16xf32> to vector<256x16xbf16>
    %4 = arith.truncf %0 : vector<256x16xf32> to vector<256x16xbf16>
    %5 = arith.truncf %1 : vector<256x16xf32> to vector<256x16xbf16>
    %c0_3 = arith.constant 0 : index
    %c0_4 = arith.constant 0 : index
    %6 = vector.load %arg3[%c0_3, %c0_4] : memref<16x128xbf16, #tpu.memory_space<vmem>>, vector<16x128xbf16>
    %cst = arith.constant dense<0.000000e+00> : vector<256x128xf32>
    %7 = tpu.matmul %3, %6, %cst {dimension_numbers = #tpu.dot_dimension_numbers<[1], [0], [0], [1], [0, 0, 1, 1], [], []>} : vector<256x16xbf16>, vector<16x128xbf16>, vector<256x128xf32> -> vector<256x128xf32>
    %c0_5 = arith.constant 0 : index
    %c0_6 = arith.constant 0 : index
    %8 = vector.load %arg4[%c0_5, %c0_6] : memref<1x128xf32, #tpu.memory_space<vmem>>, vector<1x128xf32>
    %9 = vector.broadcast %8 : vector<1x128xf32> to vector<256x128xf32>
    %10 = arith.addf %7, %9 : vector<256x128xf32>
    %c0_7 = arith.constant 0 : index
    %c0_8 = arith.constant 0 : index
    %11 = vector.load %arg9[%c0_7, %c0_8] : memref<256x128xf32, #tpu.memory_space<vmem>>, vector<256x128xf32>
    tpu.vector_store %arg9[%c0_7, %c0_8], %10 {strides = array<i32>} : memref<256x128xf32, #tpu.memory_space<vmem>>, vector<256x128xf32>,
    %c0_9 = arith.constant 0 : index
    %c0_10 = arith.constant 0 : index
    %12 = vector.load %arg5[%c0_9, %c0_10] : memref<16x128xbf16, #tpu.memory_space<vmem>>, vector<16x128xbf16>
    %cst_11 = arith.constant dense<0.000000e+00> : vector<256x128xf32>
    %13 = tpu.matmul %4, %12, %cst_11 {dimension_numbers = #tpu.dot_dimension_numbers<[1], [0], [0], [1], [0, 0, 1, 1], [], []>} : vector<256x16xbf16>, vector<16x128xbf16>, vector<256x128xf32> -> vector<256x128xf32>
    %c0_12 = arith.constant 0 : index
    %c0_13 = arith.constant 0 : index
    %14 = vector.load %arg6[%c0_12, %c0_13] : memref<1x128xf32, #tpu.memory_space<vmem>>, vector<1x128xf32>
    %15 = vector.broadcast %14 : vector<1x128xf32> to vector<256x128xf32>
    %16 = arith.addf %13, %15 : vector<256x128xf32>
    %c0_14 = arith.constant 0 : index
    %c0_15 = arith.constant 0 : index
    %17 = vector.load %arg10[%c0_14, %c0_15] : memref<256x128xf32, #tpu.memory_space<vmem>>, vector<256x128xf32>
    tpu.vector_store %arg10[%c0_14, %c0_15], %16 {strides = array<i32>} : memref<256x128xf32, #tpu.memory_space<vmem>>, vector<256x128xf32>,
    %c0_16 = arith.constant 0 : index
    %c0_17 = arith.constant 0 : index
    %18 = vector.load %arg7[%c0_16, %c0_17] : memref<16x128xbf16, #tpu.memory_space<vmem>>, vector<16x128xbf16>
    %cst_18 = arith.constant dense<0.000000e+00> : vector<256x128xf32>
    %19 = tpu.matmul %5, %18, %cst_18 {dimension_numbers = #tpu.dot_dimension_numbers<[1], [0], [0], [1], [0, 0, 1, 1], [], []>} : vector<256x16xbf16>, vector<16x128xbf16>, vector<256x128xf32> -> vector<256x128xf32>
    %c0_19 = arith.constant 0 : index
    %c0_20 = arith.constant 0 : index
    %20 = vector.load %arg8[%c0_19, %c0_20] : memref<1x128xf32, #tpu.memory_space<vmem>>, vector<1x128xf32>
    %21 = vector.broadcast %20 : vector<1x128xf32> to vector<256x128xf32>
    %22 = arith.addf %19, %21 : vector<256x128xf32>
    %c0_21 = arith.constant 0 : index
    %c0_22 = arith.constant 0 : index
    %23 = vector.load %arg11[%c0_21, %c0_22] : memref<256x128xf32, #tpu.memory_space<vmem>>, vector<256x128xf32>
    tpu.vector_store %arg11[%c0_21, %c0_22], %22 {strides = array<i32>} : memref<256x128xf32, #tpu.memory_space<vmem>>, vector<256x128xf32>,
    return
  }
  func.func @transform_0(%arg0: i32) -> (i32, i32) {
    %c0_i32 = arith.constant 0 : i32
    %c0_i32_0 = arith.constant 0 : i32
    return %arg0, %c0_i32 : i32, i32
  }
  func.func @transform_1(%arg0: i32) -> (i32, i32) {
    %c0_i32 = arith.constant 0 : i32
    %c0_i32_0 = arith.constant 0 : i32
    return %arg0, %c0_i32 : i32, i32
  }
  func.func @transform_2(%arg0: i32) -> (i32, i32) {
    %c0_i32 = arith.constant 0 : i32
    %c0_i32_0 = arith.constant 0 : i32
    %c0_i32_1 = arith.constant 0 : i32
    return %c0_i32, %c0_i32_0 : i32, i32
  }
  func.func @transform_3(%arg0: i32) -> (i32, i32) {
    %c0_i32 = arith.constant 0 : i32
    %c0_i32_0 = arith.constant 0 : i32
    %c0_i32_1 = arith.constant 0 : i32
    return %c0_i32, %c0_i32_0 : i32, i32
  }
  func.func @transform_4(%arg0: i32) -> (i32, i32) {
    %c0_i32 = arith.constant 0 : i32
    %c0_i32_0 = arith.constant 0 : i32
    %c0_i32_1 = arith.constant 0 : i32
    return %c0_i32, %c0_i32_0 : i32, i32
  }
  func.func @transform_5(%arg0: i32) -> (i32, i32) {
    %c0_i32 = arith.constant 0 : i32
    %c0_i32_0 = arith.constant 0 : i32
    %c0_i32_1 = arith.constant 0 : i32
    return %c0_i32, %c0_i32_0 : i32, i32
  }
  func.func @transform_6(%arg0: i32) -> (i32, i32) {
    %c0_i32 = arith.constant 0 : i32
    %c0_i32_0 = arith.constant 0 : i32
    %c0_i32_1 = arith.constant 0 : i32
    return %c0_i32, %c0_i32_0 : i32, i32
  }
  func.func @transform_7(%arg0: i32) -> (i32, i32) {
    %c0_i32 = arith.constant 0 : i32
    %c0_i32_0 = arith.constant 0 : i32
    %c0_i32_1 = arith.constant 0 : i32
    return %c0_i32, %c0_i32_0 : i32, i32
  }
  func.func @transform_8(%arg0: i32) -> (i32, i32) {
    %c0_i32 = arith.constant 0 : i32
    %c0_i32_0 = arith.constant 0 : i32
    return %arg0, %c0_i32 : i32, i32
  }
  func.func @transform_9(%arg0: i32) -> (i32, i32) {
    %c0_i32 = arith.constant 0 : i32
    %c0_i32_0 = arith.constant 0 : i32
    return %arg0, %c0_i32 : i32, i32
  }
  func.func @transform_10(%arg0: i32) -> (i32, i32) {
    %c0_i32 = arith.constant 0 : i32
    %c0_i32_0 = arith.constant 0 : i32
    return %arg0, %c0_i32 : i32, i32
  }
}

</mosaic_0001>

<llo_original>
// kernel: da_head_forward.11
$region0: #{da_head_forward.11}
  #allocation0 [shape = 'u32[]', space=smem, size = 0x4, offset = 0x4, fixed_abs, tag = 'smem constant byte address 0x4 - core index']
  #allocation1 [shape = 'u32[144,128]{1,0:T(1,128)}', space=vmem, size = 0x12000, scoped, tag = 'internal scratch']
  #allocation2 [shape = 'f32[1,1]{1,0:T(1,128)S(1)}', space=vmem, size = 0x200, scoped, tag = 'scoped memory for da_head_forward.11']
  %s0 = inlined_call_operand.vmem [shape: f32[2,256,16], index: 0, kind: input, shape index: {}]
  %s1 = inlined_call_operand.<no memory space> [shape: f32[1,1], index: 1, kind: input, shape index: {}]
  %s2 = inlined_call_operand.vmem [shape: f32[2,256,16], index: 2, kind: output, shape index: {}]
  %s3 = sld [smem:[#allocation0]]
  $region41: #{da_head_forward.11} parent=0
    _
  %s5 = ssub.s32 1, %s3
  %s6 = scalar_select 0, %s5, %s3
  %v7 = vstv %s1
  %8 = vst [vmem:[#allocation2] sm:$0x1] %v7
  loop: start=0, step=1, limit=4
  $region2: #{da_head_forward.11} parent=0 // loop_pre_header
    _
  $region3: #{da_head_forward.11} parent=0 // loop_header
    %s10 = sphi 0, %s14
    %p11 = scmp.ge.s32.totalorder %s10, 4
    %s20 = sphi 0, %s22
    %s23 = sphi 0, %s20
    %s24 = sphi 0, %s23
    %s40 = sphi 0, %s24
    %s44 = sphi 0, %s44
    %s46 = sphi 0, %s44
    %s47 = sphi 0, %s46
    %s61 = sphi 0, %s47
    %s67 = sphi 0, %s69
    %s70 = sphi 0, %s67
    %s71 = sphi 0, %s70
    %s87 = sphi 0, %s71
  $region4: #{da_head_forward.11} parent=0 // loop_header_branch
    %13 = sbr.rel (%p11) target = $region8
  $region5: #{da_head_forward.11} parent=0 // loop_body
    %s15 = ssub.s32 %s10, 1
    %s16 = ssub.s32 %s10, 2
    %s17 = sadd.s32 %s10, 1
    %s18 = ssub.s32 %s10, %s17
    %p19 = scmp.eq.s32.totalorder %s18, 0
    %s21 = sadd.s32 %s20, 1
    %s22 = scalar_select %p19, %s20, %s21
    %p25 = pneg %p19
    %p26 = scmp.eq.s32.totalorder %s10, 1
    %p27 = por %p25, %p26
    %p28 = scmp.ne.s32.totalorder %s20, %s23
    %p29 = scmp.eq.s32.totalorder %s10, 0
    %p30 = por %p28, %p29
    %p31 = scmp.ne.s32.totalorder %s20, %s23
    %p32 = scmp.eq.s32.totalorder %s15, 1
    %p33 = por %p31, %p32
    %p34 = scmp.ne.s32.totalorder %s23, %s24
    %p35 = scmp.eq.s32.totalorder %s15, 0
    %p36 = por %p34, %p35
    %p37 = scmp.ne.s32.totalorder %s23, %s24
    %p38 = scmp.eq.s32.totalorder %s16, 1
    %p39 = por %p37, %p38
    %p41 = scmp.ne.s32.totalorder %s24, %s40
    %p42 = scmp.eq.s32.totalorder %s16, 0
    %p43 = por %p41, %p42
    %s45 = sadd.s32 %s44, 1
    %p48 = scmp.eq.s32.totalorder %s10, 1
    %p49 = scmp.ne.s32.totalorder %s44, %s46
    %p50 = scmp.eq.s32.totalorder %s10, 0
    %p51 = por %p49, %p50
    %p52 = scmp.ne.s32.totalorder %s44, %s46
    %p53 = scmp.eq.s32.totalorder %s15, 1
    %p54 = por %p52, %p53
    %p55 = scmp.ne.s32.totalorder %s46, %s47
    %p56 = scmp.eq.s32.totalorder %s15, 0
    %p57 = por %p55, %p56
    %p58 = scmp.ne.s32.totalorder %s46, %s47
    %p59 = scmp.eq.s32.totalorder %s16, 1
    %p60 = por %p58, %p59
    %p62 = scmp.ne.s32.totalorder %s47, %s61
    %p63 = scmp.eq.s32.totalorder %s16, 0
    %p64 = por %p62, %p63
    %s65 = ssub.s32 %s10, %s17
    %p66 = scmp.eq.s32.totalorder %s65, 0
    %s68 = sadd.s32 %s67, 1
    %s69 = scalar_select %p66, %s67, %s68
    %p72 = pneg %p66
    %p73 = scmp.eq.s32.totalorder %s10, 1
    %p74 = por %p72, %p73
    %p75 = scmp.ne.s32.totalorder %s67, %s70
    %p76 = scmp.eq.s32.totalorder %s10, 0
    %p77 = por %p75, %p76
    %p78 = scmp.ne.s32.totalorder %s67, %s70
    %p79 = scmp.eq.s32.totalorder %s15, 1
    %p80 = por %p78, %p79
    %p81 = scmp.ne.s32.totalorder %s70, %s71
    %p82 = scmp.eq.s32.totalorder %s15, 0
    %p83 = por %p81, %p82
    %p84 = scmp.ne.s32.totalorder %s70, %s71
    %p85 = scmp.eq.s32.totalorder %s16, 1
    %p86 = por %p84, %p85
    %p88 = scmp.ne.s32.totalorder %s71, %s87
    %p89 = scmp.eq.s32.totalorder %s16, 0
    %p90 = por %p88, %p89
    %p91 = scmp.le.s32.totalorder 1, %s10
    %p92 = scmp.lt.s32.totalorder %s10, 3
    %p93 = pnand %p91, %p92
    %p94 = pneg %p93
    // Predicated region
    $region9: #{da_head_forward.11} parent=5 // pred_check
      _
    $region10: #{da_head_forward.11} parent=5 // pred_check_branch
      %96 = sbr.rel (%p93) target = $region12
    $region11: #{da_head_forward.11} parent=5 // pred_region
      %s97 = ssub.s32 %s10, 1
      // Predicated region
      $region13: #{da_head_forward.11} parent=11 // pred_check
        %p98 = pneg %p57
      $region14: #{da_head_forward.11} parent=11 // pred_check_branch
        %100 = sbr.rel (%p98) target = $region16
      $region15: #{da_head_forward.11} parent=11 // pred_region
        _
      $region16: #{da_head_forward.11} parent=11 // pred_fallthru
        _
    $region12: #{da_head_forward.11} parent=5 // pred_fallthru
      _
    %p101 = scmp.lt.s32.totalorder %s10, 2
    // Predicated region
    $region17: #{da_head_forward.11} parent=5 // pred_check
      %p102 = pneg %p101
    $region18: #{da_head_forward.11} parent=5 // pred_check_branch
      %104 = sbr.rel (%p102) target = $region20
    $region19: #{da_head_forward.11} parent=5 // pred_region
      // Predicated region
      $region21: #{da_head_forward.11} parent=19 // pred_check
        %p105 = pneg %p30
      $region22: #{da_head_forward.11} parent=19 // pred_check_branch
        %107 = sbr.rel (%p105) target = $region24
      $region23: #{da_head_forward.11} parent=19 // pred_region
        %p108 = scmp.lt.s32.totalorder %s10, 1
        %s109 = scalar_select %p108, %s10, 1
        %s110 = smul.addr %s109, 32
        %s111 = smul.addr %s110, 8
        %s112 = scalar_lea.vmem %s0, %s111
      $region24: #{da_head_forward.11} parent=19 // pred_fallthru
        _
    $region20: #{da_head_forward.11} parent=5 // pred_fallthru
      _
    %p113 = scmp.le.s32.totalorder 1, %s10
    %p114 = scmp.lt.s32.totalorder %s10, 3
    %p115 = pnand %p113, %p114
    %p116 = pneg %p115
    // Predicated region
    $region25: #{da_head_forward.11} parent=5 // pred_check
      _
    $region26: #{da_head_forward.11} parent=5 // pred_check_branch
      %118 = sbr.rel (%p115) target = $region28
    $region27: #{da_head_forward.11} parent=5 // pred_region
      %s119 = ssub.s32 %s10, 1
      %p120 = scmp.lt.s32.totalorder %s15, 1
      %s121 = scalar_select %p120, %s15, 1
      %s122 = smul.addr %s121, 32
      %s123 = smul.addr %s122, 8
      %s124 = scalar_lea.vmem %s0, %s123
      %p125 = pneg %p36
      %p126 = pneg %p33
      %p127 = pneg %p57
      %p128 = pneg %p54
      %p129 = pneg %p83
      %p130 = pneg %p80
      %p131 = scmp.lt.s32.totalorder %s15, 1
      %s132 = scalar_select %p131, %s15, 1
      %s133 = smul.addr %s132, 32
      %s134 = smul.addr %s133, 8
      %s135 = scalar_lea.vmem %s2, %s134
      %p136 = scmp.lt.s32.totalorder %s15, 1
      %s137 = scalar_select %p136, %s15, 1
      %s138 = smul.addr %s137, 32
      %s139 = smul.addr %s138, 8
      %s140 = scalar_lea.vmem %s0, %s139
      %p141 = scmp.lt.s32.totalorder %s15, 1
      %s142 = scalar_select %p141, %s15, 1
      %s143 = smul.addr %s142, 32
      %s144 = smul.addr %s143, 8
      %s145 = scalar_lea.vmem %s2, %s144
      %v147 = vld [vmem:[%s140] sm:$0xff]
      %v148 = vld [vmem:[%s140 + $0x8] sm:$0xff]
      %v149 = vld [vmem:[%s140 + $0x10] sm:$0xff]
      %v150 = vld [vmem:[%s140 + $0x18] sm:$0xff]
      %v151 = vld [vmem:[%s140 + $0x20] sm:$0xff]
      %v152 = vld [vmem:[%s140 + $0x28] sm:$0xff]
      %v153 = vld [vmem:[%s140 + $0x30] sm:$0xff]
      %v154 = vld [vmem:[%s140 + $0x38] sm:$0xff]
      %v155 = vld [vmem:[%s140 + $0x40] sm:$0xff]
      %v156 = vld [vmem:[%s140 + $0x48] sm:$0xff]
      %v157 = vld [vmem:[%s140 + $0x50] sm:$0xff]
      %v158 = vld [vmem:[%s140 + $0x58] sm:$0xff]
      %v159 = vld [vmem:[%s140 + $0x60] sm:$0xff]
      %v160 = vld [vmem:[%s140 + $0x68] sm:$0xff]
      %v161 = vld [vmem:[%s140 + $0x70] sm:$0xff]
      %v162 = vld [vmem:[%s140 + $0x78] sm:$0xff]
      %v163 = vld [vmem:[%s140 + $0x80] sm:$0xff]
      %v164 = vld [vmem:[%s140 + $0x88] sm:$0xff]
      %v165 = vld [vmem:[%s140 + $0x90] sm:$0xff]
      %v166 = vld [vmem:[%s140 + $0x98] sm:$0xff]
      %v167 = vld [vmem:[%s140 + $0xa0] sm:$0xff]
      %v168 = vld [vmem:[%s140 + $0xa8] sm:$0xff]
      %v169 = vld [vmem:[%s140 + $0xb0] sm:$0xff]
      %v170 = vld [vmem:[%s140 + $0xb8] sm:$0xff]
      %v171 = vld [vmem:[%s140 + $0xc0] sm:$0xff]
      %v172 = vld [vmem:[%s140 + $0xc8] sm:$0xff]
      %v173 = vld [vmem:[%s140 + $0xd0] sm:$0xff]
      %v174 = vld [vmem:[%s140 + $0xd8] sm:$0xff]
      %v175 = vld [vmem:[%s140 + $0xe0] sm:$0xff]
      %v176 = vld [vmem:[%s140 + $0xe8] sm:$0xff]
      %v177 = vld [vmem:[%s140 + $0xf0] sm:$0xff]
      %v178 = vld [vmem:[%s140 + $0xf8] sm:$0xff]
      %179 = vxpose.xlu0.b32.start [1/16] %v147, 128
      %180 = vxpose.xlu0.b32.cont [2/16] %v148, 128
      %181 = vxpose.xlu0.b32.cont [3/16] %v149, 128
      %182 = vxpose.xlu0.b32.cont [4/16] %v150, 128
      %183 = vxpose.xlu0.b32.cont [5/16] %v151, 128
      %184 = vxpose.xlu0.b32.cont [6/16] %v152, 128
      %185 = vxpose.xlu0.b32.cont [7/16] %v153, 128
      %186 = vxpose.xlu0.b32.cont [8/16] %v154, 128
      %187 = vxpose.xlu0.b32.cont [9/16] %v155, 128
      %188 = vxpose.xlu0.b32.cont [10/16] %v156, 128
      %189 = vxpose.xlu0.b32.cont [11/16] %v157, 128
      %190 = vxpose.xlu0.b32.cont [12/16] %v158, 128
      %191 = vxpose.xlu0.b32.cont [13/16] %v159, 128
      %192 = vxpose.xlu0.b32.cont [14/16] %v160, 128
      %193 = vxpose.xlu0.b32.cont [15/16] %v161, 128
      %194 = vxpose.xlu0.b32.end [16/16] %v162, 128
      %v195 = vpop.trf.xlu0
      %v196 = vpop.trf.xlu0
      %v197 = vpop.trf.xlu0
      %v198 = vpop.trf.xlu0
      %v199 = vpop.trf.xlu0
      %v200 = vpop.trf.xlu0
      %v201 = vpop.trf.xlu0
      %v202 = vpop.trf.xlu0
      %v203 = vpop.trf.xlu0
      %v204 = vpop.trf.xlu0
      %v205 = vpop.trf.xlu0
      %v206 = vpop.trf.xlu0
      %v207 = vpop.trf.xlu0
      %v208 = vpop.trf.xlu0
      %v209 = vpop.trf.xlu0
      %v210 = vpop.trf.xlu0
      %211 = vxpose.xlu0.b32.start [1/16] %v163, 128
      %212 = vxpose.xlu0.b32.cont [2/16] %v164, 128
      %213 = vxpose.xlu0.b32.cont [3/16] %v165, 128
      %214 = vxpose.xlu0.b32.cont [4/16] %v166, 128
      %215 = vxpose.xlu0.b32.cont [5/16] %v167, 128
      %216 = vxpose.xlu0.b32.cont [6/16] %v168, 128
      %217 = vxpose.xlu0.b32.cont [7/16] %v169, 128
      %218 = vxpose.xlu0.b32.cont [8/16] %v170, 128
      %219 = vxpose.xlu0.b32.cont [9/16] %v171, 128
      %220 = vxpose.xlu0.b32.cont [10/16] %v172, 128
      %221 = vxpose.xlu0.b32.cont [11/16] %v173, 128
      %222 = vxpose.xlu0.b32.cont [12/16] %v174, 128
      %223 = vxpose.xlu0.b32.cont [13/16] %v175, 128
      %224 = vxpose.xlu0.b32.cont [14/16] %v176, 128
      %225 = vxpose.xlu0.b32.cont [15/16] %v177, 128
      %226 = vxpose.xlu0.b32.end [16/16] %v178, 128
      %v227 = vpop.trf.xlu0
      %v228 = vpop.trf.xlu0
      %v229 = vpop.trf.xlu0
      %v230 = vpop.trf.xlu0
      %v231 = vpop.trf.xlu0
      %v232 = vpop.trf.xlu0
      %v233 = vpop.trf.xlu0
      %v234 = vpop.trf.xlu0
      %v235 = vpop.trf.xlu0
      %v236 = vpop.trf.xlu0
      %v237 = vpop.trf.xlu0
      %v238 = vpop.trf.xlu0
      %v239 = vpop.trf.xlu0
      %v240 = vpop.trf.xlu0
      %v241 = vpop.trf.xlu0
      %v242 = vpop.trf.xlu0
      %243 = vmatprep.subr.mxu0 0.0
      %244 = vmatpush1.msra.mxu0 %v147
      %245 = vmatprep.subr.mxu0 0.0
      %246 = vmatpush1.msra.mxu0 %v148
      %247 = vmatprep.subr.mxu0 0.0
      %248 = vmatpush1.msra.mxu0 %v149
      %249 = vmatprep.subr.mxu0 0.0
      %250 = vmatpush1.msra.mxu0 %v150
      %251 = vmatprep.subr.mxu0 0.0
      %252 = vmatpush1.msra.mxu0 %v151
      %253 = vmatprep.subr.mxu0 0.0
      %254 = vmatpush1.msra.mxu0 %v152
      %255 = vmatprep.subr.mxu0 0.0
      %256 = vmatpush1.msra.mxu0 %v153
      %257 = vmatprep.subr.mxu0 0.0
      %258 = vmatpush1.msra.mxu0 %v154
      %259 = vmatprep.subr.mxu0 0.0
      %260 = vmatpush1.msra.mxu0 %v155
      %261 = vmatprep.subr.mxu0 0.0
      %262 = vmatpush1.msra.mxu0 %v156
      %263 = vmatprep.subr.mxu0 0.0
      %264 = vmatpush1.msra.mxu0 %v157
      %265 = vmatprep.subr.mxu0 0.0
      %266 = vmatpush1.msra.mxu0 %v158
      %267 = vmatprep.subr.mxu0 0.0
      %268 = vmatpush1.msra.mxu0 %v159
      %269 = vmatprep.subr.mxu0 0.0
      %270 = vmatpush1.msra.mxu0 %v160
      %271 = vmatprep.subr.mxu0 0.0
      %272 = vmatpush1.msra.mxu0 %v161
      %273 = vmatprep.subr.mxu0 0.0
      %274 = vmatpush1.msra.mxu0 %v162
      %275 = vmatprep.subr.mxu0 0.0
      %276 = vmatpush1.msra.mxu0 %v163
      %277 = vmatprep.subr.mxu0 0.0
      %278 = vmatpush1.msra.mxu0 %v164
      %279 = vmatprep.subr.mxu0 0.0
      %280 = vmatpush1.msra.mxu0 %v165
      %281 = vmatprep.subr.mxu0 0.0
      %282 = vmatpush1.msra.mxu0 %v166
      %283 = vmatprep.subr.mxu0 0.0
      %284 = vmatpush1.msra.mxu0 %v167
      %285 = vmatprep.subr.mxu0 0.0
      %286 = vmatpush1.msra.mxu0 %v168
      %287 = vmatprep.subr.mxu0 0.0
      %288 = vmatpush1.msra.mxu0 %v169
      %289 = vmatprep.subr.mxu0 0.0
      %290 = vmatpush1.msra.mxu0 %v170
      %291 = vmatprep.subr.mxu0 0.0
      %292 = vmatpush1.msra.mxu0 %v171
      %293 = vmatprep.subr.mxu0 0.0
      %294 = vmatpush1.msra.mxu0 %v172
      %295 = vmatprep.subr.mxu0 0.0
      %296 = vmatpush1.msra.mxu0 %v173
      %297 = vmatprep.subr.mxu0 0.0
      %298 = vmatpush1.msra.mxu0 %v174
      %299 = vmatprep.subr.mxu0 0.0
      %300 = vmatpush1.msra.mxu0 %v175
      %301 = vmatprep.subr.mxu0 0.0
      %302 = vmatpush1.msra.mxu0 %v176
      %303 = vmatprep.subr.mxu0 0.0
      %304 = vmatpush1.msra.mxu0 %v177
      %305 = vmatprep.subr.mxu0 0.0
      %306 = vmatpush1.msra.mxu0 %v178
      %307 = vmatprep.mubr.f32.mxu0 %v227
      %308 = vmatmul.mubr.f32.gmra.mrb[0].mxu0 %v195
      %v309 = vpop.f32.mrb[0].mxu0
      %v310 = vadd.f32 0.0, %v309
      %v311 = vpop.f32.mrb[0].mxu0
      %312 = vmatprep.mubr.f32.mxu0 %v228
      %313 = vmatmul.mubr.f32.gmra.mrb[0].mxu0 %v196
      %v314 = vpop.f32.mrb[0].mxu0
      %v315 = vadd.f32 0.0, %v314
      %v316 = vpop.f32.mrb[0].mxu0
      %317 = vdwg.mxu0
      %vm318 = vcmask 130048
      %v319 = vsel %vm318, %v310, -inf
      %320 = vmax.xlane.f32.xlu0 %v319
      %v321 = vpop.xlane.xlu0 %320
      %v322 = vsel %vm318, %v315, -inf
      %323 = vmax.xlane.f32.xlu0 %v322
      %v324 = vpop.xlane.xlu0 %323
      %v325 = vsub.f32 %v321, %v310
      %v326 = vsub.f32 %v324, %v315
      %v327 = vsel %vm318, %v325, -inf
      %328 = vmax.xlane.f32.xlu0 %v327
      %v329 = vpop.xlane.xlu0 %328
      %v330 = vsel %vm318, %v326, -inf
      %331 = vmax.xlane.f32.xlu0 %v330
      %v332 = vpop.xlane.xlu0 %331
      %v333 = vsub.f32 %v325, %v329
      %v334 = vsub.f32 %v326, %v332
      %v335 = vmul.f32 %v333, 1.442695
      %v336 = vpow.pop %v335
      %v337 = vmul.f32 %v334, 1.442695
      %v338 = vpow.pop %v337
      %v339 = vsel %vm318, %v336, 0.0
      %340 = vadd.xlane.f32.xlu0 %v339
      %v341 = vpop.xlane.xlu0 %340
      %v342 = vsel %vm318, %v338, 0.0
      %343 = vadd.xlane.f32.xlu0 %v342
      %v344 = vpop.xlane.xlu0 %343
      %v345 = vrcp.pop %v341
      %v346 = vrcp.pop %v344
      %v347 = vmul.f32 %v336, %v345
      %v348 = vmul.f32 %v338, %v346
      %v349 = vpack.c.bf16 %v148, %v147
      %v350 = vpack.c.bf16 %v150, %v149
      %v351 = vpack.c.bf16 %v152, %v151
      %v352 = vpack.c.bf16 %v154, %v153
      %v353 = vpack.c.bf16 %v156, %v155
      %v354 = vpack.c.bf16 %v158, %v157
      %v355 = vpack.c.bf16 %v160, %v159
      %v356 = vpack.c.bf16 %v162, %v161
      %v357 = vpack.c.bf16 %v164, %v163
      %v358 = vpack.c.bf16 %v166, %v165
      %v359 = vpack.c.bf16 %v168, %v167
      %v360 = vpack.c.bf16 %v170, %v169
      %v361 = vpack.c.bf16 %v172, %v171
      %v362 = vpack.c.bf16 %v174, %v173
      %v363 = vpack.c.bf16 %v176, %v175
      %v364 = vpack.c.bf16 %v178, %v177
      %v365 = vpack.c.bf16 %v348, %v347
      %v367 = vsel %vm318, %v349, 0
      %v370 = vsel %vm318, %v350, 0
      %v373 = vsel %vm318, %v351, 0
      %v376 = vsel %vm318, %v352, 0
      %v379 = vsel %vm318, %v353, 0
      %v382 = vsel %vm318, %v354, 0
      %v385 = vsel %vm318, %v355, 0
      %v388 = vsel %vm318, %v356, 0
      %v391 = vsel %vm318, %v357, 0
      %v394 = vsel %vm318, %v358, 0
      %v397 = vsel %vm318, %v359, 0
      %v400 = vsel %vm318, %v360, 0
      %v403 = vsel %vm318, %v361, 0
      %v406 = vsel %vm318, %v362, 0
      %v409 = vsel %vm318, %v363, 0
      %v412 = vsel %vm318, %v364, 0
      %v415 = vsel %vm318, %v365, 0
      %417 = vmatprep.subr.bf16.mxu0 0
      %418 = vmatpush1.bf16.xpose.msra.mxu0 %v415
      %419 = vmatprep.subr.bf16.mxu0 0
      %420 = vmatpush1.bf16.xpose.msra.mxu0 0
      %421 = vmatprep.subr.bf16.mxu0 0
      %422 = vmatpush1.bf16.xpose.msra.mxu0 0
      %423 = vmatprep.subr.bf16.mxu0 0
      %424 = vmatpush1.bf16.xpose.msra.mxu0 0
      %425 = vmatprep.subr.bf16.mxu0 0
      %426 = vmatpush1.bf16.xpose.msra.mxu0 0
      %427 = vmatprep.subr.bf16.mxu0 0
      %428 = vmatpush1.bf16.xpose.msra.mxu0 0
      %429 = vmatprep.subr.bf16.mxu0 0
      %430 = vmatpush1.bf16.xpose.msra.mxu0 0
      %431 = vmatprep.subr.bf16.mxu0 0
      %432 = vmatpush1.bf16.xpose.msra.mxu0 0
      %433 = vmatprep.subr.bf16.mxu0 0
      %434 = vmatpush1.bf16.xpose.msra.mxu0 0
      %435 = vmatprep.subr.bf16.mxu0 0
      %436 = vmatpush1.bf16.xpose.msra.mxu0 0
      %437 = vmatprep.subr.bf16.mxu0 0
      %438 = vmatpush1.bf16.xpose.msra.mxu0 0
      %439 = vmatprep.subr.bf16.mxu0 0
      %440 = vmatpush1.bf16.xpose.msra.mxu0 0
      %441 = vmatprep.subr.bf16.mxu0 0
      %442 = vmatpush1.bf16.xpose.msra.mxu0 0
      %443 = vmatprep.subr.bf16.mxu0 0
      %444 = vmatpush1.bf16.xpose.msra.mxu0 0
      %445 = vmatprep.subr.bf16.mxu0 0
      %446 = vmatpush1.bf16.xpose.msra.mxu0 0
      %447 = vmatprep.subr.bf16.mxu0 0
      %448 = vmatpush1.bf16.xpose.msra.mxu0 0
      %449 = vmatprep.mubr.bf16.mxu0 0
      %450 = vmatmul.mubr.bf16.gmra.mrb[0].mxu0 %v367
      %v451 = vpop.f32.mrb[0].mxu0
      %v452 = vadd.f32 0.0, %v451
      %v453 = vpop.f32.mrb[0].mxu0
      %v454 = vpop.f32.mrb[0].mxu0
      %v455 = vadd.f32 0.0, %v454
      %v456 = vpop.f32.mrb[0].mxu0
      %457 = vmatprep.mubr.bf16.mxu0 0
      %458 = vmatmul.mubr.bf16.gmra.mrb[0].mxu0 %v370
      %v459 = vpop.f32.mrb[0].mxu0
      %v460 = vadd.f32 0.0, %v459
      %v461 = vpop.f32.mrb[0].mxu0
      %v462 = vpop.f32.mrb[0].mxu0
      %v463 = vadd.f32 0.0, %v462
      %v464 = vpop.f32.mrb[0].mxu0
      %465 = vmatprep.mubr.bf16.mxu0 0
      %466 = vmatmul.mubr.bf16.gmra.mrb[0].mxu0 %v373
      %v467 = vpop.f32.mrb[0].mxu0
      %v468 = vadd.f32 0.0, %v467
      %v469 = vpop.f32.mrb[0].mxu0
      %v470 = vpop.f32.mrb[0].mxu0
      %v471 = vadd.f32 0.0, %v470
      %v472 = vpop.f32.mrb[0].mxu0
      %473 = vmatprep.mubr.bf16.mxu0 0
      %474 = vmatmul.mubr.bf16.gmra.mrb[0].mxu0 %v376
      %v475 = vpop.f32.mrb[0].mxu0
      %v476 = vadd.f32 0.0, %v475
      %v477 = vpop.f32.mrb[0].mxu0
      %v478 = vpop.f32.mrb[0].mxu0
      %v479 = vadd.f32 0.0, %v478
      %v480 = vpop.f32.mrb[0].mxu0
      %481 = vmatprep.mubr.bf16.mxu0 0
      %482 = vmatmul.mubr.bf16.gmra.mrb[0].mxu0 %v379
      %v483 = vpop.f32.mrb[0].mxu0
      %v484 = vadd.f32 0.0, %v483
      %v485 = vpop.f32.mrb[0].mxu0
      %v486 = vpop.f32.mrb[0].mxu0
      %v487 = vadd.f32 0.0, %v486
      %v488 = vpop.f32.mrb[0].mxu0
      %489 = vmatprep.mubr.bf16.mxu0 0
      %490 = vmatmul.mubr.bf16.gmra.mrb[0].mxu0 %v382
      %v491 = vpop.f32.mrb[0].mxu0
      %v492 = vadd.f32 0.0, %v491
      %v493 = vpop.f32.mrb[0].mxu0
      %v494 = vpop.f32.mrb[0].mxu0
      %v495 = vadd.f32 0.0, %v494
      %v496 = vpop.f32.mrb[0].mxu0
      %497 = vmatprep.mubr.bf16.mxu0 0
      %498 = vmatmul.mubr.bf16.gmra.mrb[0].mxu0 %v385
      %v499 = vpop.f32.mrb[0].mxu0
      %v500 = vadd.f32 0.0, %v499
      %v501 = vpop.f32.mrb[0].mxu0
      %v502 = vpop.f32.mrb[0].mxu0
      %v503 = vadd.f32 0.0, %v502
      %v504 = vpop.f32.mrb[0].mxu0
      %505 = vmatprep.mubr.bf16.mxu0 0
      %506 = vmatmul.mubr.bf16.gmra.mrb[0].mxu0 %v388
      %v507 = vpop.f32.mrb[0].mxu0
      %v508 = vadd.f32 0.0, %v507
      %v509 = vpop.f32.mrb[0].mxu0
      %v510 = vpop.f32.mrb[0].mxu0
      %v511 = vadd.f32 0.0, %v510
      %v512 = vpop.f32.mrb[0].mxu0
      %513 = vmatprep.mubr.bf16.mxu0 0
      %514 = vmatmul.mubr.bf16.gmra.mrb[0].mxu0 %v391
      %v515 = vpop.f32.mrb[0].mxu0
      %v516 = vadd.f32 0.0, %v515
      %v517 = vpop.f32.mrb[0].mxu0
      %v518 = vpop.f32.mrb[0].mxu0
      %v519 = vadd.f32 0.0, %v518
      %v520 = vpop.f32.mrb[0].mxu0
      %521 = vmatprep.mubr.bf16.mxu0 0
      %522 = vmatmul.mubr.bf16.gmra.mrb[0].mxu0 %v394
      %v523 = vpop.f32.mrb[0].mxu0
      %v524 = vadd.f32 0.0, %v523
      %v525 = vpop.f32.mrb[0].mxu0
      %v526 = vpop.f32.mrb[0].mxu0
      %v527 = vadd.f32 0.0, %v526
      %v528 = vpop.f32.mrb[0].mxu0
      %529 = vmatprep.mubr.bf16.mxu0 0
      %530 = vmatmul.mubr.bf16.gmra.mrb[0].mxu0 %v397
      %v531 = vpop.f32.mrb[0].mxu0
      %v532 = vadd.f32 0.0, %v531
      %v533 = vpop.f32.mrb[0].mxu0
      %v534 = vpop.f32.mrb[0].mxu0
      %v535 = vadd.f32 0.0, %v534
      %v536 = vpop.f32.mrb[0].mxu0
      %537 = vmatprep.mubr.bf16.mxu0 0
      %538 = vmatmul.mubr.bf16.gmra.mrb[0].mxu0 %v400
      %v539 = vpop.f32.mrb[0].mxu0
      %v540 = vadd.f32 0.0, %v539
      %v541 = vpop.f32.mrb[0].mxu0
      %v542 = vpop.f32.mrb[0].mxu0
      %v543 = vadd.f32 0.0, %v542
      %v544 = vpop.f32.mrb[0].mxu0
      %545 = vmatprep.mubr.bf16.mxu0 0
      %546 = vmatmul.mubr.bf16.gmra.mrb[0].mxu0 %v403
      %v547 = vpop.f32.mrb[0].mxu0
      %v548 = vadd.f32 0.0, %v547
      %v549 = vpop.f32.mrb[0].mxu0
      %v550 = vpop.f32.mrb[0].mxu0
      %v551 = vadd.f32 0.0, %v550
      %v552 = vpop.f32.mrb[0].mxu0
      %553 = vmatprep.mubr.bf16.mxu0 0
      %554 = vmatmul.mubr.bf16.gmra.mrb[0].mxu0 %v406
      %v555 = vpop.f32.mrb[0].mxu0
      %v556 = vadd.f32 0.0, %v555
      %v557 = vpop.f32.mrb[0].mxu0
      %v558 = vpop.f32.mrb[0].mxu0
      %v559 = vadd.f32 0.0, %v558
      %v560 = vpop.f32.mrb[0].mxu0
      %561 = vmatprep.mubr.bf16.mxu0 0
      %562 = vmatmul.mubr.bf16.gmra.mrb[0].mxu0 %v409
      %v563 = vpop.f32.mrb[0].mxu0
      %v564 = vadd.f32 0.0, %v563
      %v565 = vpop.f32.mrb[0].mxu0
      %v566 = vpop.f32.mrb[0].mxu0
      %v567 = vadd.f32 0.0, %v566
      %v568 = vpop.f32.mrb[0].mxu0
      %569 = vmatprep.mubr.bf16.mxu0 0
      %570 = vmatmul.mubr.bf16.gmra.mrb[0].mxu0 %v412
      %v571 = vpop.f32.mrb[0].mxu0
      %v572 = vadd.f32 0.0, %v571
      %v573 = vpop.f32.mrb[0].mxu0
      %v574 = vpop.f32.mrb[0].mxu0
      %v575 = vadd.f32 0.0, %v574
      %v576 = vpop.f32.mrb[0].mxu0
      %577 = vdwg.mxu0
      %v578 = vld [vmem:[#allocation2] sm:$0x1]
      %s579 = vtos %v578
      %v580 = vstv %s579
      %v581 = vmul.f32 %v580, %v452
      %v582 = vmul.f32 %v580, %v455
      %v583 = vmul.f32 %v580, %v460
      %v584 = vmul.f32 %v580, %v463
      %v585 = vmul.f32 %v580, %v468
      %v586 = vmul.f32 %v580, %v471
      %v587 = vmul.f32 %v580, %v476
      %v588 = vmul.f32 %v580, %v479
      %v589 = vmul.f32 %v580, %v484
      %v590 = vmul.f32 %v580, %v487
      %v591 = vmul.f32 %v580, %v492
      %v592 = vmul.f32 %v580, %v495
      %v593 = vmul.f32 %v580, %v500
      %v594 = vmul.f32 %v580, %v503
      %v595 = vmul.f32 %v580, %v508
      %v596 = vmul.f32 %v580, %v511
      %v597 = vmul.f32 %v580, %v516
      %v598 = vmul.f32 %v580, %v519
      %v599 = vmul.f32 %v580, %v524
      %v600 = vmul.f32 %v580, %v527
      %v601 = vmul.f32 %v580, %v532
      %v602 = vmul.f32 %v580, %v535
      %v603 = vmul.f32 %v580, %v540
      %v604 = vmul.f32 %v580, %v543
      %v605 = vmul.f32 %v580, %v548
      %v606 = vmul.f32 %v580, %v551
      %v607 = vmul.f32 %v580, %v556
      %v608 = vmul.f32 %v580, %v559
      %v609 = vmul.f32 %v580, %v564
      %v610 = vmul.f32 %v580, %v567
      %v611 = vmul.f32 %v580, %v572
      %v612 = vmul.f32 %v580, %v575
      %v613 = vadd.f32 %v581, %v147
      %v614 = vadd.f32 %v582, %v148
      %v615 = vadd.f32 %v583, %v149
      %v616 = vadd.f32 %v584, %v150
      %v617 = vadd.f32 %v585, %v151
      %v618 = vadd.f32 %v586, %v152
      %v619 = vadd.f32 %v587, %v153
      %v620 = vadd.f32 %v588, %v154
      %v621 = vadd.f32 %v589, %v155
      %v622 = vadd.f32 %v590, %v156
      %v623 = vadd.f32 %v591, %v157
      %v624 = vadd.f32 %v592, %v158
      %v625 = vadd.f32 %v593, %v159
      %v626 = vadd.f32 %v594, %v160
      %v627 = vadd.f32 %v595, %v161
      %v628 = vadd.f32 %v596, %v162
      %v629 = vadd.f32 %v597, %v163
      %v630 = vadd.f32 %v598, %v164
      %v631 = vadd.f32 %v599, %v165
      %v632 = vadd.f32 %v600, %v166
      %v633 = vadd.f32 %v601, %v167
      %v634 = vadd.f32 %v602, %v168
      %v635 = vadd.f32 %v603, %v169
      %v636 = vadd.f32 %v604, %v170
      %v637 = vadd.f32 %v605, %v171
      %v638 = vadd.f32 %v606, %v172
      %v639 = vadd.f32 %v607, %v173
      %v640 = vadd.f32 %v608, %v174
      %v641 = vadd.f32 %v609, %v175
      %v642 = vadd.f32 %v610, %v176
      %v643 = vadd.f32 %v611, %v177
      %v644 = vadd.f32 %v612, %v178
      %645 = vst.msk [vmem:[%s145] sm:$0xff] %vm318, %v613
      %646 = vst.msk [vmem:[%s145 + $0x8] sm:$0xff] %vm318, %v614
      %647 = vst.msk [vmem:[%s145 + $0x10] sm:$0xff] %vm318, %v615
      %648 = vst.msk [vmem:[%s145 + $0x18] sm:$0xff] %vm318, %v616
      %649 = vst.msk [vmem:[%s145 + $0x20] sm:$0xff] %vm318, %v617
      %650 = vst.msk [vmem:[%s145 + $0x28] sm:$0xff] %vm318, %v618
      %651 = vst.msk [vmem:[%s145 + $0x30] sm:$0xff] %vm318, %v619
      %652 = vst.msk [vmem:[%s145 + $0x38] sm:$0xff] %vm318, %v620
      %653 = vst.msk [vmem:[%s145 + $0x40] sm:$0xff] %vm318, %v621
      %654 = vst.msk [vmem:[%s145 + $0x48] sm:$0xff] %vm318, %v622
      %655 = vst.msk [vmem:[%s145 + $0x50] sm:$0xff] %vm318, %v623
      %656 = vst.msk [vmem:[%s145 + $0x58] sm:$0xff] %vm318, %v624
      %657 = vst.msk [vmem:[%s145 + $0x60] sm:$0xff] %vm318, %v625
      %658 = vst.msk [vmem:[%s145 + $0x68] sm:$0xff] %vm318, %v626
      %659 = vst.msk [vmem:[%s145 + $0x70] sm:$0xff] %vm318, %v627
      %660 = vst.msk [vmem:[%s145 + $0x78] sm:$0xff] %vm318, %v628
      %661 = vst.msk [vmem:[%s145 + $0x80] sm:$0xff] %vm318, %v629
      %662 = vst.msk [vmem:[%s145 + $0x88] sm:$0xff] %vm318, %v630
      %663 = vst.msk [vmem:[%s145 + $0x90] sm:$0xff] %vm318, %v631
      %664 = vst.msk [vmem:[%s145 + $0x98] sm:$0xff] %vm318, %v632
      %665 = vst.msk [vmem:[%s145 + $0xa0] sm:$0xff] %vm318, %v633
      %666 = vst.msk [vmem:[%s145 + $0xa8] sm:$0xff] %vm318, %v634
      %667 = vst.msk [vmem:[%s145 + $0xb0] sm:$0xff] %vm318, %v635
      %668 = vst.msk [vmem:[%s145 + $0xb8] sm:$0xff] %vm318, %v636
      %669 = vst.msk [vmem:[%s145 + $0xc0] sm:$0xff] %vm318, %v637
      %670 = vst.msk [vmem:[%s145 + $0xc8] sm:$0xff] %vm318, %v638
      %671 = vst.msk [vmem:[%s145 + $0xd0] sm:$0xff] %vm318, %v639
      %672 = vst.msk [vmem:[%s145 + $0xd8] sm:$0xff] %vm318, %v640
      %673 = vst.msk [vmem:[%s145 + $0xe0] sm:$0xff] %vm318, %v641
      %674 = vst.msk [vmem:[%s145 + $0xe8] sm:$0xff] %vm318, %v642
      %675 = vst.msk [vmem:[%s145 + $0xf0] sm:$0xff] %vm318, %v643
      %676 = vst.msk [vmem:[%s145 + $0xf8] sm:$0xff] %vm318, %v644
      %p677 = scmp.lt.s32.totalorder %s15, 1
      %s678 = scalar_select %p677, %s15, 1
      %s679 = smul.addr %s678, 32
      %s680 = smul.addr %s679, 8
      %s681 = scalar_lea.vmem %s2, %s680
      // Predicated region
      $region29: #{da_head_forward.11} parent=27 // pred_check
        %p682 = pneg %p80
      $region30: #{da_head_forward.11} parent=27 // pred_check_branch
        %684 = sbr.rel (%p682) target = $region32
      $region31: #{da_head_forward.11} parent=27 // pred_region
        _
      $region32: #{da_head_forward.11} parent=27 // pred_fallthru
        _
    $region28: #{da_head_forward.11} parent=5 // pred_fallthru
      _
    %p685 = scmp.le.s32.totalorder 2, %s10
    // Predicated region
    $region33: #{da_head_forward.11} parent=5 // pred_check
      %p686 = pneg %p685
    $region34: #{da_head_forward.11} parent=5 // pred_check_branch
      %688 = sbr.rel (%p686) target = $region36
    $region35: #{da_head_forward.11} parent=5 // pred_region
      %s689 = ssub.s32 %s10, 2
      // Predicated region
      $region37: #{da_head_forward.11} parent=35 // pred_check
        %p690 = pneg %p86
      $region38: #{da_head_forward.11} parent=35 // pred_check_branch
        %692 = sbr.rel (%p690) target = $region40
      $region39: #{da_head_forward.11} parent=35 // pred_region
        %p693 = scmp.lt.s32.totalorder %s16, 1
        %s694 = scalar_select %p693, %s16, 1
        %s695 = smul.addr %s694, 32
        %s696 = smul.addr %s695, 8
        %s697 = scalar_lea.vmem %s2, %s696
      $region40: #{da_head_forward.11} parent=35 // pred_fallthru
        _
    $region36: #{da_head_forward.11} parent=5 // pred_fallthru
      _
  $region6: #{da_head_forward.11} parent=0 // loop_footer
    %s14 = sadd.s32 1, %s10
  $region7: #{da_head_forward.11} parent=0 // loop_footer_branch
    %9 = sbr.rel target = $region3
  $region8: #{da_head_forward.11} parent=0 // loop_exit
    _

// kernel: da_head_forward.8
$region0: #{da_head_forward.8}
  #allocation0 [shape = 'u32[]', space=smem, size = 0x4, offset = 0x4, fixed_abs, tag = 'smem constant byte address 0x4 - core index']
  #allocation1 [shape = 'u32[144,128]{1,0:T(1,128)}', space=vmem, size = 0x12000, scoped, tag = 'internal scratch']
  #allocation2 [shape = 'f32[128,1]{1,0:T(8,128)}', space=vmem, size = 0x10000, scoped, tag = 'scratch operand']
  #allocation3 [shape = 'f32[128,1]{1,0:T(8,128)}', space=vmem, size = 0x10000, scoped, tag = 'scratch operand']
  #allocation4 [shape = 'f32[128,16]{1,0:T(8,128)}', space=vmem, size = 0x10000, scoped, tag = 'scratch operand']
  #allocation5 [shape = 'f32[1,1]{1,0:T(1,128)S(1)}', space=vmem, size = 0x200, scoped, tag = 'scoped memory for da_head_forward.8']
  %s0 = inlined_call_operand.vmem [shape: f32[2,256,16], index: 0, kind: input, shape index: {}, may-alias: {0,1}]
  %s1 = inlined_call_operand.vmem [shape: f32[2,256,16], index: 1, kind: input, shape index: {}, may-alias: {0,1}]
  %s2 = inlined_call_operand.vmem [shape: bf16[16,2], index: 2, kind: input, shape index: {}]
  %s3 = inlined_call_operand.vmem [shape: f32[1,2], index: 3, kind: input, shape index: {}]
  %s4 = inlined_call_operand.vmem [shape: bf16[16,2], index: 4, kind: input, shape index: {}]
  %s5 = inlined_call_operand.vmem [shape: f32[1,2], index: 5, kind: input, shape index: {}]
  %s6 = inlined_call_operand.vmem [shape: bf16[16,16], index: 6, kind: input, shape index: {}]
  %s7 = inlined_call_operand.vmem [shape: f32[1,16], index: 7, kind: input, shape index: {}]
  %s8 = inlined_call_operand.<no memory space> [shape: f32[1,1], index: 8, kind: input, shape index: {}]
  %s9 = inlined_call_operand.vmem [shape: f32[2,256,16], index: 9, kind: output, shape index: {}]
  %s10 = sld [smem:[#allocation0]]
  $region77: #{da_head_forward.8} parent=0
    _
  %s12 = ssub.s32 1, %s10
  %s13 = scalar_select 0, %s12, %s10
  %v14 = vstv %s8
  %15 = vst [vmem:[#allocation5] sm:$0x1] %v14
  loop: start=0, step=1, limit=10
  $region2: #{da_head_forward.8} parent=0 // loop_pre_header
    _
  $region3: #{da_head_forward.8} parent=0 // loop_header
    %s17 = sphi 0, %s21
    %p18 = scmp.ge.s32.totalorder %s17, 10
    %s24 = sphi 0, %s43
    %s25 = sphi 0, %s39
    %s26 = sphi 0, %s35
    %s27 = sphi 0, %s24
    %s28 = sphi 0, %s25
    %s29 = sphi 0, %s26
    %s30 = sphi 0, %s27
    %s31 = sphi 0, %s28
    %s32 = sphi 0, %s29
    %s48 = sphi 0, %s50
    %s51 = sphi 0, %s48
    %s52 = sphi 0, %s51
    %s68 = sphi 0, %s52
    %s76 = sphi 0, %s78
    %s79 = sphi 0, %s76
    %s80 = sphi 0, %s79
    %s96 = sphi 0, %s80
    %s100 = sphi 0, %s100
    %s102 = sphi 0, %s100
    %s103 = sphi 0, %s102
    %s117 = sphi 0, %s103
    %s121 = sphi 0, %s121
    %s123 = sphi 0, %s121
    %s124 = sphi 0, %s123
    %s138 = sphi 0, %s124
    %s142 = sphi 0, %s142
    %s144 = sphi 0, %s142
    %s145 = sphi 0, %s144
    %s159 = sphi 0, %s145
    %s163 = sphi 0, %s163
    %s165 = sphi 0, %s163
    %s166 = sphi 0, %s165
    %s180 = sphi 0, %s166
    %s184 = sphi 0, %s184
    %s186 = sphi 0, %s184
    %s187 = sphi 0, %s186
    %s201 = sphi 0, %s187
    %s205 = sphi 0, %s205
    %s207 = sphi 0, %s205
    %s208 = sphi 0, %s207
    %s222 = sphi 0, %s208
    %s226 = sphi 0, %s226
    %s228 = sphi 0, %s226
    %s229 = sphi 0, %s228
    %s243 = sphi 0, %s229
    %s251 = sphi 0, %s253
    %s254 = sphi 0, %s251
    %s255 = sphi 0, %s254
    %s271 = sphi 0, %s255
  $region4: #{da_head_forward.8} parent=0 // loop_header_branch
    %20 = sbr.rel (%p18) target = $region8
  $region5: #{da_head_forward.8} parent=0 // loop_body
    %s22 = ssub.s32 %s17, 1
    %s23 = ssub.s32 %s17, 2
    %s33 = sadd.s32 1, %s26
    %p34 = scmp.ge.s32.totalorder %s33, 2
    %s35 = scalar_select %p34, 0, %s33
    %s36 = sadd.s32 1, %s25
    %s37 = scalar_select %p34, %s36, %s25
    %p38 = scmp.ge.s32.totalorder %s37, 2
    %s39 = scalar_select %p38, 0, %s37
    %s40 = sadd.s32 1, %s24
    %s41 = scalar_select %p38, %s40, %s24
    %p42 = scmp.ge.s32.totalorder %s41, 2
    %s43 = scalar_select %p42, 0, %s41
    %s44 = ssub.s32 %s24, %s43
    %s45 = ssub.s32 %s25, %s39
    %s46 = sor.u32 %s44, %s45
    %p47 = scmp.eq.s32.totalorder %s46, 0
    %s49 = sadd.s32 %s48, 1
    %s50 = scalar_select %p47, %s48, %s49
    %p53 = pneg %p47
    %p54 = scmp.eq.s32.totalorder %s17, 7
    %p55 = por %p53, %p54
    %p56 = scmp.ne.s32.totalorder %s48, %s51
    %p57 = scmp.eq.s32.totalorder %s17, 0
    %p58 = por %p56, %p57
    %p59 = scmp.ne.s32.totalorder %s48, %s51
    %p60 = scmp.eq.s32.totalorder %s22, 7
    %p61 = por %p59, %p60
    %p62 = scmp.ne.s32.totalorder %s51, %s52
    %p63 = scmp.eq.s32.totalorder %s22, 0
    %p64 = por %p62, %p63
    %p65 = scmp.ne.s32.totalorder %s51, %s52
    %p66 = scmp.eq.s32.totalorder %s23, 7
    %p67 = por %p65, %p66
    %p69 = scmp.ne.s32.totalorder %s52, %s68
    %p70 = scmp.eq.s32.totalorder %s23, 0
    %p71 = por %p69, %p70
    %s72 = ssub.s32 %s24, %s43
    %s73 = ssub.s32 %s26, %s35
    %s74 = sor.u32 %s72, %s73
    %p75 = scmp.eq.s32.totalorder %s74, 0
    %s77 = sadd.s32 %s76, 1
    %s78 = scalar_select %p75, %s76, %s77
    %p81 = pneg %p75
    %p82 = scmp.eq.s32.totalorder %s17, 7
    %p83 = por %p81, %p82
    %p84 = scmp.ne.s32.totalorder %s76, %s79
    %p85 = scmp.eq.s32.totalorder %s17, 0
    %p86 = por %p84, %p85
    %p87 = scmp.ne.s32.totalorder %s76, %s79
    %p88 = scmp.eq.s32.totalorder %s22, 7
    %p89 = por %p87, %p88
    %p90 = scmp.ne.s32.totalorder %s79, %s80
    %p91 = scmp.eq.s32.totalorder %s22, 0
    %p92 = por %p90, %p91
    %p93 = scmp.ne.s32.totalorder %s79, %s80
    %p94 = scmp.eq.s32.totalorder %s23, 7
    %p95 = por %p93, %p94
    %p97 = scmp.ne.s32.totalorder %s80, %s96
    %p98 = scmp.eq.s32.totalorder %s23, 0
    %p99 = por %p97, %p98
    %s101 = sadd.s32 %s100, 1
    %p104 = scmp.eq.s32.totalorder %s17, 7
    %p105 = scmp.ne.s32.totalorder %s100, %s102
    %p106 = scmp.eq.s32.totalorder %s17, 0
    %p107 = por %p105, %p106
    %p108 = scmp.ne.s32.totalorder %s100, %s102
    %p109 = scmp.eq.s32.totalorder %s22, 7
    %p110 = por %p108, %p109
    %p111 = scmp.ne.s32.totalorder %s102, %s103
    %p112 = scmp.eq.s32.totalorder %s22, 0
    %p113 = por %p111, %p112
    %p114 = scmp.ne.s32.totalorder %s102, %s103
    %p115 = scmp.eq.s32.totalorder %s23, 7
    %p116 = por %p114, %p115
    %p118 = scmp.ne.s32.totalorder %s103, %s117
    %p119 = scmp.eq.s32.totalorder %s23, 0
    %p120 = por %p118, %p119
    %s122 = sadd.s32 %s121, 1
    %p125 = scmp.eq.s32.totalorder %s17, 7
    %p126 = scmp.ne.s32.totalorder %s121, %s123
    %p127 = scmp.eq.s32.totalorder %s17, 0
    %p128 = por %p126, %p127
    %p129 = scmp.ne.s32.totalorder %s121, %s123
    %p130 = scmp.eq.s32.totalorder %s22, 7
    %p131 = por %p129, %p130
    %p132 = scmp.ne.s32.totalorder %s123, %s124
    %p133 = scmp.eq.s32.totalorder %s22, 0
    %p134 = por %p132, %p133
    %p135 = scmp.ne.s32.totalorder %s123, %s124
    %p136 = scmp.eq.s32.totalorder %s23, 7
    %p137 = por %p135, %p136
    %p139 = scmp.ne.s32.totalorder %s124, %s138
    %p140 = scmp.eq.s32.totalorder %s23, 0
    %p141 = por %p139, %p140
    %s143 = sadd.s32 %s142, 1
    %p146 = scmp.eq.s32.totalorder %s17, 7
    %p147 = scmp.ne.s32.totalorder %s142, %s144
    %p148 = scmp.eq.s32.totalorder %s17, 0
    %p149 = por %p147, %p148
    %p150 = scmp.ne.s32.totalorder %s142, %s144
    %p151 = scmp.eq.s32.totalorder %s22, 7
    %p152 = por %p150, %p151
    %p153 = scmp.ne.s32.totalorder %s144, %s145
    %p154 = scmp.eq.s32.totalorder %s22, 0
    %p155 = por %p153, %p154
    %p156 = scmp.ne.s32.totalorder %s144, %s145
    %p157 = scmp.eq.s32.totalorder %s23, 7
    %p158 = por %p156, %p157
    %p160 = scmp.ne.s32.totalorder %s145, %s159
    %p161 = scmp.eq.s32.totalorder %s23, 0
    %p162 = por %p160, %p161
    %s164 = sadd.s32 %s163, 1
    %p167 = scmp.eq.s32.totalorder %s17, 7
    %p168 = scmp.ne.s32.totalorder %s163, %s165
    %p169 = scmp.eq.s32.totalorder %s17, 0
    %p170 = por %p168, %p169
    %p171 = scmp.ne.s32.totalorder %s163, %s165
    %p172 = scmp.eq.s32.totalorder %s22, 7
    %p173 = por %p171, %p172
    %p174 = scmp.ne.s32.totalorder %s165, %s166
    %p175 = scmp.eq.s32.totalorder %s22, 0
    %p176 = por %p174, %p175
    %p177 = scmp.ne.s32.totalorder %s165, %s166
    %p178 = scmp.eq.s32.totalorder %s23, 7
    %p179 = por %p177, %p178
    %p181 = scmp.ne.s32.totalorder %s166, %s180
    %p182 = scmp.eq.s32.totalorder %s23, 0
    %p183 = por %p181, %p182
    %s185 = sadd.s32 %s184, 1
    %p188 = scmp.eq.s32.totalorder %s17, 7
    %p189 = scmp.ne.s32.totalorder %s184, %s186
    %p190 = scmp.eq.s32.totalorder %s17, 0
    %p191 = por %p189, %p190
    %p192 = scmp.ne.s32.totalorder %s184, %s186
    %p193 = scmp.eq.s32.totalorder %s22, 7
    %p194 = por %p192, %p193
    %p195 = scmp.ne.s32.totalorder %s186, %s187
    %p196 = scmp.eq.s32.totalorder %s22, 0
    %p197 = por %p195, %p196
    %p198 = scmp.ne.s32.totalorder %s186, %s187
    %p199 = scmp.eq.s32.totalorder %s23, 7
    %p200 = por %p198, %p199
    %p202 = scmp.ne.s32.totalorder %s187, %s201
    %p203 = scmp.eq.s32.totalorder %s23, 0
    %p204 = por %p202, %p203
    %s206 = sadd.s32 %s205, 1
    %p209 = scmp.eq.s32.totalorder %s17, 7
    %p210 = scmp.ne.s32.totalorder %s205, %s207
    %p211 = scmp.eq.s32.totalorder %s17, 0
    %p212 = por %p210, %p211
    %p213 = scmp.ne.s32.totalorder %s205, %s207
    %p214 = scmp.eq.s32.totalorder %s22, 7
    %p215 = por %p213, %p214
    %p216 = scmp.ne.s32.totalorder %s207, %s208
    %p217 = scmp.eq.s32.totalorder %s22, 0
    %p218 = por %p216, %p217
    %p219 = scmp.ne.s32.totalorder %s207, %s208
    %p220 = scmp.eq.s32.totalorder %s23, 7
    %p221 = por %p219, %p220
    %p223 = scmp.ne.s32.totalorder %s208, %s222
    %p224 = scmp.eq.s32.totalorder %s23, 0
    %p225 = por %p223, %p224
    %s227 = sadd.s32 %s226, 1
    %p230 = scmp.eq.s32.totalorder %s17, 7
    %p231 = scmp.ne.s32.totalorder %s226, %s228
    %p232 = scmp.eq.s32.totalorder %s17, 0
    %p233 = por %p231, %p232
    %p234 = scmp.ne.s32.totalorder %s226, %s228
    %p235 = scmp.eq.s32.totalorder %s22, 7
    %p236 = por %p234, %p235
    %p237 = scmp.ne.s32.totalorder %s228, %s229
    %p238 = scmp.eq.s32.totalorder %s22, 0
    %p239 = por %p237, %p238
    %p240 = scmp.ne.s32.totalorder %s228, %s229
    %p241 = scmp.eq.s32.totalorder %s23, 7
    %p242 = por %p240, %p241
    %p244 = scmp.ne.s32.totalorder %s229, %s243
    %p245 = scmp.eq.s32.totalorder %s23, 0
    %p246 = por %p244, %p245
    %s247 = ssub.s32 %s24, %s43
    %s248 = ssub.s32 %s25, %s39
    %s249 = sor.u32 %s247, %s248
    %p250 = scmp.eq.s32.totalorder %s249, 0
    %s252 = sadd.s32 %s251, 1
    %s253 = scalar_select %p250, %s251, %s252
    %p256 = pneg %p250
    %p257 = scmp.eq.s32.totalorder %s17, 7
    %p258 = por %p256, %p257
    %p259 = scmp.ne.s32.totalorder %s251, %s254
    %p260 = scmp.eq.s32.totalorder %s17, 0
    %p261 = por %p259, %p260
    %p262 = scmp.ne.s32.totalorder %s251, %s254
    %p263 = scmp.eq.s32.totalorder %s22, 7
    %p264 = por %p262, %p263
    %p265 = scmp.ne.s32.totalorder %s254, %s255
    %p266 = scmp.eq.s32.totalorder %s22, 0
    %p267 = por %p265, %p266
    %p268 = scmp.ne.s32.totalorder %s254, %s255
    %p269 = scmp.eq.s32.totalorder %s23, 7
    %p270 = por %p268, %p269
    %p272 = scmp.ne.s32.totalorder %s255, %s271
    %p273 = scmp.eq.s32.totalorder %s23, 0
    %p274 = por %p272, %p273
    %p275 = scmp.le.s32.totalorder 1, %s17
    %p276 = scmp.lt.s32.totalorder %s17, 9
    %p277 = pnand %p275, %p276
    %p278 = pneg %p277
    // Predicated region
    $region9: #{da_head_forward.8} parent=5 // pred_check
      _
    $region10: #{da_head_forward.8} parent=5 // pred_check_branch
      %280 = sbr.rel (%p277) target = $region12
    $region11: #{da_head_forward.8} parent=5 // pred_region
      %s281 = ssub.s32 %s17, 1
      // Predicated region
      $region13: #{da_head_forward.8} parent=11 // pred_check
        %p282 = pneg %p113
      $region14: #{da_head_forward.8} parent=11 // pred_check_branch
        %284 = sbr.rel (%p282) target = $region16
      $region15: #{da_head_forward.8} parent=11 // pred_region
        _
      $region16: #{da_head_forward.8} parent=11 // pred_fallthru
        _
      // Predicated region
      $region17: #{da_head_forward.8} parent=11 // pred_check
        %p285 = pneg %p134
      $region18: #{da_head_forward.8} parent=11 // pred_check_branch
        %287 = sbr.rel (%p285) target = $region20
      $region19: #{da_head_forward.8} parent=11 // pred_region
        _
      $region20: #{da_head_forward.8} parent=11 // pred_fallthru
        _
      // Predicated region
      $region21: #{da_head_forward.8} parent=11 // pred_check
        %p288 = pneg %p155
      $region22: #{da_head_forward.8} parent=11 // pred_check_branch
        %290 = sbr.rel (%p288) target = $region24
      $region23: #{da_head_forward.8} parent=11 // pred_region
        _
      $region24: #{da_head_forward.8} parent=11 // pred_fallthru
        _
      // Predicated region
      $region25: #{da_head_forward.8} parent=11 // pred_check
        %p291 = pneg %p176
      $region26: #{da_head_forward.8} parent=11 // pred_check_branch
        %293 = sbr.rel (%p291) target = $region28
      $region27: #{da_head_forward.8} parent=11 // pred_region
        _
      $region28: #{da_head_forward.8} parent=11 // pred_fallthru
        _
      // Predicated region
      $region29: #{da_head_forward.8} parent=11 // pred_check
        %p294 = pneg %p197
      $region30: #{da_head_forward.8} parent=11 // pred_check_branch
        %296 = sbr.rel (%p294) target = $region32
      $region31: #{da_head_forward.8} parent=11 // pred_region
        _
      $region32: #{da_head_forward.8} parent=11 // pred_fallthru
        _
      // Predicated region
      $region33: #{da_head_forward.8} parent=11 // pred_check
        %p297 = pneg %p218
      $region34: #{da_head_forward.8} parent=11 // pred_check_branch
        %299 = sbr.rel (%p297) target = $region36
      $region35: #{da_head_forward.8} parent=11 // pred_region
        _
      $region36: #{da_head_forward.8} parent=11 // pred_fallthru
        _
      // Predicated region
      $region37: #{da_head_forward.8} parent=11 // pred_check
        %p300 = pneg %p239
      $region38: #{da_head_forward.8} parent=11 // pred_check_branch
        %302 = sbr.rel (%p300) target = $region40
      $region39: #{da_head_forward.8} parent=11 // pred_region
        _
      $region40: #{da_head_forward.8} parent=11 // pred_fallthru
        _
    $region12: #{da_head_forward.8} parent=5 // pred_fallthru
      _
    %p303 = scmp.lt.s32.totalorder %s17, 8
    // Predicated region
    $region41: #{da_head_forward.8} parent=5 // pred_check
      %p304 = pneg %p303
    $region42: #{da_head_forward.8} parent=5 // pred_check_branch
      %306 = sbr.rel (%p304) target = $region44
    $region43: #{da_head_forward.8} parent=5 // pred_region
      // Predicated region
      $region45: #{da_head_forward.8} parent=43 // pred_check
        %p307 = pneg %p58
      $region46: #{da_head_forward.8} parent=43 // pred_check_branch
        %309 = sbr.rel (%p307) target = $region48
      $region47: #{da_head_forward.8} parent=43 // pred_region
        %s310 = smul.u32 16, %s25
        %p311 = scmp.lt.s32.totalorder %s24, 1
        %s312 = scalar_select %p311, %s24, 1
        %p313 = scmp.lt.s32.totalorder %s310, 31
        %s314 = scalar_select %p313, %s310, 31
        %s315 = smul.addr %s312, 32
        %s316 = sadd.s32 %s314, %s315
        %s317 = smul.addr %s316, 8
        %s318 = scalar_lea.vmem %s0, %s317
        %s319 = smul.u32 16, %s25
      $region48: #{da_head_forward.8} parent=43 // pred_fallthru
        _
      // Predicated region
      $region49: #{da_head_forward.8} parent=43 // pred_check
        %p320 = pneg %p86
      $region50: #{da_head_forward.8} parent=43 // pred_check_branch
        %322 = sbr.rel (%p320) target = $region52
      $region51: #{da_head_forward.8} parent=43 // pred_region
        %s323 = smul.u32 16, %s26
        %p324 = scmp.lt.s32.totalorder %s24, 1
        %s325 = scalar_select %p324, %s24, 1
        %p326 = scmp.lt.s32.totalorder %s323, 31
        %s327 = scalar_select %p326, %s323, 31
        %s328 = smul.addr %s325, 32
        %s329 = sadd.s32 %s327, %s328
        %s330 = smul.addr %s329, 8
        %s331 = scalar_lea.vmem %s1, %s330
        %s332 = smul.u32 16, %s26
      $region52: #{da_head_forward.8} parent=43 // pred_fallthru
        _
    $region44: #{da_head_forward.8} parent=5 // pred_fallthru
      _
    %p333 = scmp.le.s32.totalorder 1, %s17
    %p334 = scmp.lt.s32.totalorder %s17, 9
    %p335 = pnand %p333, %p334
    %p336 = pneg %p335
    // Predicated region
    $region53: #{da_head_forward.8} parent=5 // pred_check
      _
    $region54: #{da_head_forward.8} parent=5 // pred_check_branch
      %338 = sbr.rel (%p335) target = $region56
    $region55: #{da_head_forward.8} parent=5 // pred_region
      %s339 = ssub.s32 %s17, 1
      %s340 = smul.u32 16, %s28
      %p341 = scmp.lt.s32.totalorder %s27, 1
      %s342 = scalar_select %p341, %s27, 1
      %p343 = scmp.lt.s32.totalorder %s340, 31
      %s344 = scalar_select %p343, %s340, 31
      %s345 = smul.addr %s342, 32
      %s346 = sadd.s32 %s344, %s345
      %s347 = smul.addr %s346, 8
      %s348 = scalar_lea.vmem %s0, %s347
      %p349 = pneg %p64
      %p350 = pneg %p61
      %s351 = smul.u32 16, %s29
      %p352 = scmp.lt.s32.totalorder %s27, 1
      %s353 = scalar_select %p352, %s27, 1
      %p354 = scmp.lt.s32.totalorder %s351, 31
      %s355 = scalar_select %p354, %s351, 31
      %s356 = smul.addr %s353, 32
      %s357 = sadd.s32 %s355, %s356
      %s358 = smul.addr %s357, 8
      %s359 = scalar_lea.vmem %s1, %s358
      %p360 = pneg %p92
      %p361 = pneg %p89
      %p362 = pneg %p113
      %p363 = pneg %p110
      %p364 = pneg %p134
      %p365 = pneg %p131
      %p366 = pneg %p155
      %p367 = pneg %p152
      %p368 = pneg %p176
      %p369 = pneg %p173
      %p370 = pneg %p197
      %p371 = pneg %p194
      %p372 = pneg %p218
      %p373 = pneg %p215
      %p374 = pneg %p239
      %p375 = pneg %p236
      %p376 = pneg %p267
      %p377 = pneg %p264
      %s378 = smul.u32 16, %s28
      %p379 = scmp.lt.s32.totalorder %s27, 1
      %s380 = scalar_select %p379, %s27, 1
      %p381 = scmp.lt.s32.totalorder %s378, 31
      %s382 = scalar_select %p381, %s378, 31
      %s383 = smul.addr %s380, 32
      %s384 = sadd.s32 %s382, %s383
      %s385 = smul.addr %s384, 8
      %s386 = scalar_lea.vmem %s9, %s385
      %s387 = smul.u32 16, %s28
      %p388 = scmp.lt.s32.totalorder %s27, 1
      %s389 = scalar_select %p388, %s27, 1
      %p390 = scmp.lt.s32.totalorder %s387, 31
      %s391 = scalar_select %p390, %s387, 31
      %s392 = smul.addr %s389, 32
      %s393 = sadd.s32 %s391, %s392
      %s394 = smul.addr %s393, 8
      %s395 = scalar_lea.vmem %s0, %s394
      %s396 = smul.u32 16, %s28
      %s397 = smul.u32 16, %s29
      %p398 = scmp.lt.s32.totalorder %s27, 1
      %s399 = scalar_select %p398, %s27, 1
      %p400 = scmp.lt.s32.totalorder %s397, 31
      %s401 = scalar_select %p400, %s397, 31
      %s402 = smul.addr %s399, 32
      %s403 = sadd.s32 %s401, %s402
      %s404 = smul.addr %s403, 8
      %s405 = scalar_lea.vmem %s1, %s404
      %s406 = smul.u32 16, %s29
      %s407 = smul.u32 16, %s28
      %p408 = scmp.lt.s32.totalorder %s27, 1
      %s409 = scalar_select %p408, %s27, 1
      %p410 = scmp.lt.s32.totalorder %s407, 31
      %s411 = scalar_select %p410, %s407, 31
      %s412 = smul.addr %s409, 32
      %s413 = sadd.s32 %s411, %s412
      %s414 = smul.addr %s413, 8
      %s415 = scalar_lea.vmem %s9, %s414
      %s416 = smul.u32 16, %s28
      %p418 = scmp.eq.s32.totalorder %s29, 0
      // Predicated region
      $region57: #{da_head_forward.8} parent=55 // pred_check
        %p419 = pneg %p418
      $region58: #{da_head_forward.8} parent=55 // pred_check_branch
        %421 = sbr.rel (%p419) target = $region60
      $region59: #{da_head_forward.8} parent=55 // pred_region
        %vm422 = vcmask 7168
        %423 = vst.msk [vmem:[#allocation2] sm:$0xff] %vm422, -inf
        %424 = vst.msk [vmem:[#allocation2 + $0x8] sm:$0xff] %vm422, -inf
        %425 = vst.msk [vmem:[#allocation2 + $0x10] sm:$0xff] %vm422, -inf
        %426 = vst.msk [vmem:[#allocation2 + $0x18] sm:$0xff] %vm422, -inf
        %427 = vst.msk [vmem:[#allocation2 + $0x20] sm:$0xff] %vm422, -inf
        %428 = vst.msk [vmem:[#allocation2 + $0x28] sm:$0xff] %vm422, -inf
        %429 = vst.msk [vmem:[#allocation2 + $0x30] sm:$0xff] %vm422, -inf
        %430 = vst.msk [vmem:[#allocation2 + $0x38] sm:$0xff] %vm422, -inf
        %431 = vst.msk [vmem:[#allocation2 + $0x40] sm:$0xff] %vm422, -inf
        %432 = vst.msk [vmem:[#allocation2 + $0x48] sm:$0xff] %vm422, -inf
        %433 = vst.msk [vmem:[#allocation2 + $0x50] sm:$0xff] %vm422, -inf
        %434 = vst.msk [vmem:[#allocation2 + $0x58] sm:$0xff] %vm422, -inf
        %435 = vst.msk [vmem:[#allocation2 + $0x60] sm:$0xff] %vm422, -inf
        %436 = vst.msk [vmem:[#allocation2 + $0x68] sm:$0xff] %vm422, -inf
        %437 = vst.msk [vmem:[#allocation2 + $0x70] sm:$0xff] %vm422, -inf
        %438 = vst.msk [vmem:[#allocation2 + $0x78] sm:$0xff] %vm422, -inf
        %439 = vst.msk [vmem:[#allocation3] sm:$0xff] %vm422, 0.0
        %440 = vst.msk [vmem:[#allocation3 + $0x8] sm:$0xff] %vm422, 0.0
        %441 = vst.msk [vmem:[#allocation3 + $0x10] sm:$0xff] %vm422, 0.0
        %442 = vst.msk [vmem:[#allocation3 + $0x18] sm:$0xff] %vm422, 0.0
        %443 = vst.msk [vmem:[#allocation3 + $0x20] sm:$0xff] %vm422, 0.0
        %444 = vst.msk [vmem:[#allocation3 + $0x28] sm:$0xff] %vm422, 0.0
        %445 = vst.msk [vmem:[#allocation3 + $0x30] sm:$0xff] %vm422, 0.0
        %446 = vst.msk [vmem:[#allocation3 + $0x38] sm:$0xff] %vm422, 0.0
        %447 = vst.msk [vmem:[#allocation3 + $0x40] sm:$0xff] %vm422, 0.0
        %448 = vst.msk [vmem:[#allocation3 + $0x48] sm:$0xff] %vm422, 0.0
        %449 = vst.msk [vmem:[#allocation3 + $0x50] sm:$0xff] %vm422, 0.0
        %450 = vst.msk [vmem:[#allocation3 + $0x58] sm:$0xff] %vm422, 0.0
        %451 = vst.msk [vmem:[#allocation3 + $0x60] sm:$0xff] %vm422, 0.0
        %452 = vst.msk [vmem:[#allocation3 + $0x68] sm:$0xff] %vm422, 0.0
        %453 = vst.msk [vmem:[#allocation3 + $0x70] sm:$0xff] %vm422, 0.0
        %454 = vst.msk [vmem:[#allocation3 + $0x78] sm:$0xff] %vm422, 0.0
        %vm455 = vcmask 130048
        %456 = vst.msk [vmem:[#allocation4] sm:$0xff] %vm455, 0.0
        %457 = vst.msk [vmem:[#allocation4 + $0x8] sm:$0xff] %vm455, 0.0
        %458 = vst.msk [vmem:[#allocation4 + $0x10] sm:$0xff] %vm455, 0.0
        %459 = vst.msk [vmem:[#allocation4 + $0x18] sm:$0xff] %vm455, 0.0
        %460 = vst.msk [vmem:[#allocation4 + $0x20] sm:$0xff] %vm455, 0.0
        %461 = vst.msk [vmem:[#allocation4 + $0x28] sm:$0xff] %vm455, 0.0
        %462 = vst.msk [vmem:[#allocation4 + $0x30] sm:$0xff] %vm455, 0.0
        %463 = vst.msk [vmem:[#allocation4 + $0x38] sm:$0xff] %vm455, 0.0
        %464 = vst.msk [vmem:[#allocation4 + $0x40] sm:$0xff] %vm455, 0.0
        %465 = vst.msk [vmem:[#allocation4 + $0x48] sm:$0xff] %vm455, 0.0
        %466 = vst.msk [vmem:[#allocation4 + $0x50] sm:$0xff] %vm455, 0.0
        %467 = vst.msk [vmem:[#allocation4 + $0x58] sm:$0xff] %vm455, 0.0
        %468 = vst.msk [vmem:[#allocation4 + $0x60] sm:$0xff] %vm455, 0.0
        %469 = vst.msk [vmem:[#allocation4 + $0x68] sm:$0xff] %vm455, 0.0
        %470 = vst.msk [vmem:[#allocation4 + $0x70] sm:$0xff] %vm455, 0.0
        %471 = vst.msk [vmem:[#allocation4 + $0x78] sm:$0xff] %vm455, 0.0
      $region60: #{da_head_forward.8} parent=55 // pred_fallthru
        _
      %v472 = vld [vmem:[%s395] sm:$0xff]
      %v473 = vld [vmem:[%s395 + $0x8] sm:$0xff]
      %v474 = vld [vmem:[%s395 + $0x10] sm:$0xff]
      %v475 = vld [vmem:[%s395 + $0x18] sm:$0xff]
      %v476 = vld [vmem:[%s395 + $0x20] sm:$0xff]
      %v477 = vld [vmem:[%s395 + $0x28] sm:$0xff]
      %v478 = vld [vmem:[%s395 + $0x30] sm:$0xff]
      %v479 = vld [vmem:[%s395 + $0x38] sm:$0xff]
      %v480 = vld [vmem:[%s395 + $0x40] sm:$0xff]
      %v481 = vld [vmem:[%s395 + $0x48] sm:$0xff]
      %v482 = vld [vmem:[%s395 + $0x50] sm:$0xff]
      %v483 = vld [vmem:[%s395 + $0x58] sm:$0xff]
      %v484 = vld [vmem:[%s395 + $0x60] sm:$0xff]
      %v485 = vld [vmem:[%s395 + $0x68] sm:$0xff]
      %v486 = vld [vmem:[%s395 + $0x70] sm:$0xff]
      %v487 = vld [vmem:[%s395 + $0x78] sm:$0xff]
      %v488 = vpack.c.bf16 %v473, %v472
      %v489 = vpack.c.bf16 %v475, %v474
      %v490 = vpack.c.bf16 %v477, %v476
      %v491 = vpack.c.bf16 %v479, %v478
      %v492 = vpack.c.bf16 %v481, %v480
      %v493 = vpack.c.bf16 %v483, %v482
      %v494 = vpack.c.bf16 %v485, %v484
      %v495 = vpack.c.bf16 %v487, %v486
      %v496 = vld [vmem:[%s405] sm:$0xff]
      %v497 = vld [vmem:[%s405 + $0x8] sm:$0xff]
      %v498 = vld [vmem:[%s405 + $0x10] sm:$0xff]
      %v499 = vld [vmem:[%s405 + $0x18] sm:$0xff]
      %v500 = vld [vmem:[%s405 + $0x20] sm:$0xff]
      %v501 = vld [vmem:[%s405 + $0x28] sm:$0xff]
      %v502 = vld [vmem:[%s405 + $0x30] sm:$0xff]
      %v503 = vld [vmem:[%s405 + $0x38] sm:$0xff]
      %v504 = vld [vmem:[%s405 + $0x40] sm:$0xff]
      %v505 = vld [vmem:[%s405 + $0x48] sm:$0xff]
      %v506 = vld [vmem:[%s405 + $0x50] sm:$0xff]
      %v507 = vld [vmem:[%s405 + $0x58] sm:$0xff]
      %v508 = vld [vmem:[%s405 + $0x60] sm:$0xff]
      %v509 = vld [vmem:[%s405 + $0x68] sm:$0xff]
      %v510 = vld [vmem:[%s405 + $0x70] sm:$0xff]
      %v511 = vld [vmem:[%s405 + $0x78] sm:$0xff]
      %v512 = vpack.c.bf16 %v497, %v496
      %v513 = vpack.c.bf16 %v499, %v498
      %v514 = vpack.c.bf16 %v501, %v500
      %v515 = vpack.c.bf16 %v503, %v502
      %v516 = vpack.c.bf16 %v505, %v504
      %v517 = vpack.c.bf16 %v507, %v506
      %v518 = vpack.c.bf16 %v509, %v508
      %v519 = vpack.c.bf16 %v511, %v510
      %v520 = vld [vmem:[%s2] sm:$0xf]
      %v521 = vld [vmem:[%s2 + $0x4] sm:$0xf]
      %v522 = vld [vmem:[%s3] sm:$0x1]
      %v524 = vlaneseq
      %v525 = vshrl.u32 %v524, 7
      %v526 = vsub.s32 0, %v525
      %v527 = vrot.slane %v522, %v526
      %v531 = vunpack.c.l.b16 %v520
      %v532 = vunpack.c.l.b16 %v521
      %v533 = vpack.c.b16 %v532, %v531
      %vm535 = vcmask 130048
      %v537 = vsel %vm535, %v488, 0
      %v540 = vsel %vm535, %v489, 0
      %v543 = vsel %vm535, %v490, 0
      %v546 = vsel %vm535, %v491, 0
      %v549 = vsel %vm535, %v492, 0
      %v552 = vsel %vm535, %v493, 0
      %v555 = vsel %vm535, %v494, 0
      %v558 = vsel %vm535, %v495, 0
      %560 = vmatprep.subr.bf16.mxu0 0
      %561 = vmatpush1.bf16.msra.mxu0 %v533
      %562 = vmatprep.subr.bf16.mxu0 0
      %563 = vmatpush1.bf16.msra.mxu0 0
      %564 = vmatprep.subr.bf16.mxu0 0
      %565 = vmatpush1.bf16.msra.mxu0 0
      %566 = vmatprep.subr.bf16.mxu0 0
      %567 = vmatpush1.bf16.msra.mxu0 0
      %568 = vmatprep.subr.bf16.mxu0 0
      %569 = vmatpush1.bf16.msra.mxu0 0
      %570 = vmatprep.subr.bf16.mxu0 0
      %571 = vmatpush1.bf16.msra.mxu0 0
      %572 = vmatprep.subr.bf16.mxu0 0
      %573 = vmatpush1.bf16.msra.mxu0 0
      %574 = vmatprep.subr.bf16.mxu0 0
      %575 = vmatpush1.bf16.msra.mxu0 0
      %576 = vmatprep.subr.bf16.mxu0 0
      %577 = vmatpush1.bf16.msra.mxu0 0
      %578 = vmatprep.subr.bf16.mxu0 0
      %579 = vmatpush1.bf16.msra.mxu0 0
      %580 = vmatprep.subr.bf16.mxu0 0
      %581 = vmatpush1.bf16.msra.mxu0 0
      %582 = vmatprep.subr.bf16.mxu0 0
      %583 = vmatpush1.bf16.msra.mxu0 0
      %584 = vmatprep.subr.bf16.mxu0 0
      %585 = vmatpush1.bf16.msra.mxu0 0
      %586 = vmatprep.subr.bf16.mxu0 0
      %587 = vmatpush1.bf16.msra.mxu0 0
      %588 = vmatprep.subr.bf16.mxu0 0
      %589 = vmatpush1.bf16.msra.mxu0 0
      %590 = vmatprep.subr.bf16.mxu0 0
      %591 = vmatpush1.bf16.msra.mxu0 0
      %592 = vmatprep.mubr.bf16.mxu0 0
      %593 = vmatmul.mubr.bf16.gmra.mrb[0].mxu0 %v537
      %v594 = vpop.f32.mrb[0].mxu0
      %v595 = vadd.f32 %v527, %v594
      %v596 = vpop.f32.mrb[0].mxu0
      %v597 = vpop.f32.mrb[0].mxu0
      %v598 = vadd.f32 %v527, %v597
      %v599 = vpop.f32.mrb[0].mxu0
      %600 = vmatprep.mubr.bf16.mxu0 0
      %601 = vmatmul.mubr.bf16.gmra.mrb[0].mxu0 %v540
      %v602 = vpop.f32.mrb[0].mxu0
      %v603 = vadd.f32 %v527, %v602
      %v604 = vpop.f32.mrb[0].mxu0
      %v605 = vpop.f32.mrb[0].mxu0
      %v606 = vadd.f32 %v527, %v605
      %v607 = vpop.f32.mrb[0].mxu0
      %608 = vmatprep.mubr.bf16.mxu0 0
      %609 = vmatmul.mubr.bf16.gmra.mrb[0].mxu0 %v543
      %v610 = vpop.f32.mrb[0].mxu0
      %v611 = vadd.f32 %v527, %v610
      %v612 = vpop.f32.mrb[0].mxu0
      %v613 = vpop.f32.mrb[0].mxu0
      %v614 = vadd.f32 %v527, %v613
      %v615 = vpop.f32.mrb[0].mxu0
      %616 = vmatprep.mubr.bf16.mxu0 0
      %617 = vmatmul.mubr.bf16.gmra.mrb[0].mxu0 %v546
      %v618 = vpop.f32.mrb[0].mxu0
      %v619 = vadd.f32 %v527, %v618
      %v620 = vpop.f32.mrb[0].mxu0
      %v621 = vpop.f32.mrb[0].mxu0
      %v622 = vadd.f32 %v527, %v621
      %v623 = vpop.f32.mrb[0].mxu0
      %624 = vmatprep.mubr.bf16.mxu0 0
      %625 = vmatmul.mubr.bf16.gmra.mrb[0].mxu0 %v549
      %v626 = vpop.f32.mrb[0].mxu0
      %v627 = vadd.f32 %v527, %v626
      %v628 = vpop.f32.mrb[0].mxu0
      %v629 = vpop.f32.mrb[0].mxu0
      %v630 = vadd.f32 %v527, %v629
      %v631 = vpop.f32.mrb[0].mxu0
      %632 = vmatprep.mubr.bf16.mxu0 0
      %633 = vmatmul.mubr.bf16.gmra.mrb[0].mxu0 %v552
      %v634 = vpop.f32.mrb[0].mxu0
      %v635 = vadd.f32 %v527, %v634
      %v636 = vpop.f32.mrb[0].mxu0
      %v637 = vpop.f32.mrb[0].mxu0
      %v638 = vadd.f32 %v527, %v637
      %v639 = vpop.f32.mrb[0].mxu0
      %640 = vmatprep.mubr.bf16.mxu0 0
      %641 = vmatmul.mubr.bf16.gmra.mrb[0].mxu0 %v555
      %v642 = vpop.f32.mrb[0].mxu0
      %v643 = vadd.f32 %v527, %v642
      %v644 = vpop.f32.mrb[0].mxu0
      %v645 = vpop.f32.mrb[0].mxu0
      %v646 = vadd.f32 %v527, %v645
      %v647 = vpop.f32.mrb[0].mxu0
      %648 = vmatprep.mubr.bf16.mxu0 0
      %649 = vmatmul.mubr.bf16.gmra.mrb[0].mxu0 %v558
      %v650 = vpop.f32.mrb[0].mxu0
      %v651 = vadd.f32 %v527, %v650
      %v652 = vpop.f32.mrb[0].mxu0
      %v653 = vpop.f32.mrb[0].mxu0
      %v654 = vadd.f32 %v527, %v653
      %v655 = vpop.f32.mrb[0].mxu0
      %656 = vdwg.mxu0
      %v657 = vld [vmem:[%s4] sm:$0xf]
      %v658 = vld [vmem:[%s4 + $0x4] sm:$0xf]
      %v659 = vld [vmem:[%s5] sm:$0x1]
      %v661 = vlaneseq
      %v662 = vshrl.u32 %v661, 7
      %v663 = vsub.s32 0, %v662
      %v664 = vrot.slane %v659, %v663
      %v668 = vunpack.c.l.b16 %v657
      %v669 = vunpack.c.l.b16 %v658
      %v670 = vpack.c.b16 %v669, %v668
      %v673 = vsel %vm535, %v512, 0
      %v676 = vsel %vm535, %v513, 0
      %v679 = vsel %vm535, %v514, 0
      %v682 = vsel %vm535, %v515, 0
      %v685 = vsel %vm535, %v516, 0
      %v688 = vsel %vm535, %v517, 0
      %v691 = vsel %vm535, %v518, 0
      %v694 = vsel %vm535, %v519, 0
      %696 = vmatprep.subr.bf16.mxu0 0
      %697 = vmatpush1.bf16.msra.mxu0 %v670
      %698 = vmatprep.subr.bf16.mxu0 0
      %699 = vmatpush1.bf16.msra.mxu0 0
      %700 = vmatprep.subr.bf16.mxu0 0
      %701 = vmatpush1.bf16.msra.mxu0 0
      %702 = vmatprep.subr.bf16.mxu0 0
      %703 = vmatpush1.bf16.msra.mxu0 0
      %704 = vmatprep.subr.bf16.mxu0 0
      %705 = vmatpush1.bf16.msra.mxu0 0
      %706 = vmatprep.subr.bf16.mxu0 0
      %707 = vmatpush1.bf16.msra.mxu0 0
      %708 = vmatprep.subr.bf16.mxu0 0
      %709 = vmatpush1.bf16.msra.mxu0 0
      %710 = vmatprep.subr.bf16.mxu0 0
      %711 = vmatpush1.bf16.msra.mxu0 0
      %712 = vmatprep.subr.bf16.mxu0 0
      %713 = vmatpush1.bf16.msra.mxu0 0
      %714 = vmatprep.subr.bf16.mxu0 0
      %715 = vmatpush1.bf16.msra.mxu0 0
      %716 = vmatprep.subr.bf16.mxu0 0
      %717 = vmatpush1.bf16.msra.mxu0 0
      %718 = vmatprep.subr.bf16.mxu0 0
      %719 = vmatpush1.bf16.msra.mxu0 0
      %720 = vmatprep.subr.bf16.mxu0 0
      %721 = vmatpush1.bf16.msra.mxu0 0
      %722 = vmatprep.subr.bf16.mxu0 0
      %723 = vmatpush1.bf16.msra.mxu0 0
      %724 = vmatprep.subr.bf16.mxu0 0
      %725 = vmatpush1.bf16.msra.mxu0 0
      %726 = vmatprep.subr.bf16.mxu0 0
      %727 = vmatpush1.bf16.msra.mxu0 0
      %728 = vmatprep.mubr.bf16.mxu0 0
      %729 = vmatmul.mubr.bf16.gmra.mrb[0].mxu0 %v673
      %v730 = vpop.f32.mrb[0].mxu0
      %v731 = vadd.f32 %v664, %v730
      %v732 = vpop.f32.mrb[0].mxu0
      %v733 = vpop.f32.mrb[0].mxu0
      %v734 = vadd.f32 %v664, %v733
      %v735 = vpop.f32.mrb[0].mxu0
      %736 = vmatprep.mubr.bf16.mxu0 0
      %737 = vmatmul.mubr.bf16.gmra.mrb[0].mxu0 %v676
      %v738 = vpop.f32.mrb[0].mxu0
      %v739 = vadd.f32 %v664, %v738
      %v740 = vpop.f32.mrb[0].mxu0
      %v741 = vpop.f32.mrb[0].mxu0
      %v742 = vadd.f32 %v664, %v741
      %v743 = vpop.f32.mrb[0].mxu0
      %744 = vmatprep.mubr.bf16.mxu0 0
      %745 = vmatmul.mubr.bf16.gmra.mrb[0].mxu0 %v679
      %v746 = vpop.f32.mrb[0].mxu0
      %v747 = vadd.f32 %v664, %v746
      %v748 = vpop.f32.mrb[0].mxu0
      %v749 = vpop.f32.mrb[0].mxu0
      %v750 = vadd.f32 %v664, %v749
      %v751 = vpop.f32.mrb[0].mxu0
      %752 = vmatprep.mubr.bf16.mxu0 0
      %753 = vmatmul.mubr.bf16.gmra.mrb[0].mxu0 %v682
      %v754 = vpop.f32.mrb[0].mxu0
      %v755 = vadd.f32 %v664, %v754
      %v756 = vpop.f32.mrb[0].mxu0
      %v757 = vpop.f32.mrb[0].mxu0
      %v758 = vadd.f32 %v664, %v757
      %v759 = vpop.f32.mrb[0].mxu0
      %760 = vmatprep.mubr.bf16.mxu0 0
      %761 = vmatmul.mubr.bf16.gmra.mrb[0].mxu0 %v685
      %v762 = vpop.f32.mrb[0].mxu0
      %v763 = vadd.f32 %v664, %v762
      %v764 = vpop.f32.mrb[0].mxu0
      %v765 = vpop.f32.mrb[0].mxu0
      %v766 = vadd.f32 %v664, %v765
      %v767 = vpop.f32.mrb[0].mxu0
      %768 = vmatprep.mubr.bf16.mxu0 0
      %769 = vmatmul.mubr.bf16.gmra.mrb[0].mxu0 %v688
      %v770 = vpop.f32.mrb[0].mxu0
      %v771 = vadd.f32 %v664, %v770
      %v772 = vpop.f32.mrb[0].mxu0
      %v773 = vpop.f32.mrb[0].mxu0
      %v774 = vadd.f32 %v664, %v773
      %v775 = vpop.f32.mrb[0].mxu0
      %776 = vmatprep.mubr.bf16.mxu0 0
      %777 = vmatmul.mubr.bf16.gmra.mrb[0].mxu0 %v691
      %v778 = vpop.f32.mrb[0].mxu0
      %v779 = vadd.f32 %v664, %v778
      %v780 = vpop.f32.mrb[0].mxu0
      %v781 = vpop.f32.mrb[0].mxu0
      %v782 = vadd.f32 %v664, %v781
      %v783 = vpop.f32.mrb[0].mxu0
      %784 = vmatprep.mubr.bf16.mxu0 0
      %785 = vmatmul.mubr.bf16.gmra.mrb[0].mxu0 %v694
      %v786 = vpop.f32.mrb[0].mxu0
      %v787 = vadd.f32 %v664, %v786
      %v788 = vpop.f32.mrb[0].mxu0
      %v789 = vpop.f32.mrb[0].mxu0
      %v790 = vadd.f32 %v664, %v789
      %v791 = vpop.f32.mrb[0].mxu0
      %792 = vdwg.mxu0
      %v793 = vld [vmem:[%s6] sm:$0xf]
      %v794 = vld [vmem:[%s6 + $0x4] sm:$0xf]
      %v795 = vld [vmem:[%s7] sm:$0x1]
      %v797 = vlaneseq
      %v798 = vshrl.u32 %v797, 7
      %v799 = vsub.s32 0, %v798
      %v800 = vrot.slane %v795, %v799
      %v804 = vunpack.c.l.b16 %v793
      %v805 = vunpack.c.l.b16 %v794
      %v806 = vpack.c.b16 %v805, %v804
      %808 = vmatprep.subr.bf16.mxu0 0
      %809 = vmatpush1.bf16.msra.mxu0 %v806
      %810 = vmatprep.subr.bf16.mxu0 0
      %811 = vmatpush1.bf16.msra.mxu0 0
      %812 = vmatprep.subr.bf16.mxu0 0
      %813 = vmatpush1.bf16.msra.mxu0 0
      %814 = vmatprep.subr.bf16.mxu0 0
      %815 = vmatpush1.bf16.msra.mxu0 0
      %816 = vmatprep.subr.bf16.mxu0 0
      %817 = vmatpush1.bf16.msra.mxu0 0
      %818 = vmatprep.subr.bf16.mxu0 0
      %819 = vmatpush1.bf16.msra.mxu0 0
      %820 = vmatprep.subr.bf16.mxu0 0
      %821 = vmatpush1.bf16.msra.mxu0 0
      %822 = vmatprep.subr.bf16.mxu0 0
      %823 = vmatpush1.bf16.msra.mxu0 0
      %824 = vmatprep.subr.bf16.mxu0 0
      %825 = vmatpush1.bf16.msra.mxu0 0
      %826 = vmatprep.subr.bf16.mxu0 0
      %827 = vmatpush1.bf16.msra.mxu0 0
      %828 = vmatprep.subr.bf16.mxu0 0
      %829 = vmatpush1.bf16.msra.mxu0 0
      %830 = vmatprep.subr.bf16.mxu0 0
      %831 = vmatpush1.bf16.msra.mxu0 0
      %832 = vmatprep.subr.bf16.mxu0 0
      %833 = vmatpush1.bf16.msra.mxu0 0
      %834 = vmatprep.subr.bf16.mxu0 0
      %835 = vmatpush1.bf16.msra.mxu0 0
      %836 = vmatprep.subr.bf16.mxu0 0
      %837 = vmatpush1.bf16.msra.mxu0 0
      %838 = vmatprep.subr.bf16.mxu0 0
      %839 = vmatpush1.bf16.msra.mxu0 0
      %840 = vmatprep.mubr.bf16.mxu0 0
      %841 = vmatmul.mubr.bf16.gmra.mrb[0].mxu0 %v673
      %v842 = vpop.f32.mrb[0].mxu0
      %v843 = vadd.f32 %v800, %v842
      %v844 = vpop.f32.mrb[0].mxu0
      %v845 = vpop.f32.mrb[0].mxu0
      %v846 = vadd.f32 %v800, %v845
      %v847 = vpop.f32.mrb[0].mxu0
      %848 = vmatprep.mubr.bf16.mxu0 0
      %849 = vmatmul.mubr.bf16.gmra.mrb[0].mxu0 %v676
      %v850 = vpop.f32.mrb[0].mxu0
      %v851 = vadd.f32 %v800, %v850
      %v852 = vpop.f32.mrb[0].mxu0
      %v853 = vpop.f32.mrb[0].mxu0
      %v854 = vadd.f32 %v800, %v853
      %v855 = vpop.f32.mrb[0].mxu0
      %856 = vmatprep.mubr.bf16.mxu0 0
      %857 = vmatmul.mubr.bf16.gmra.mrb[0].mxu0 %v679
      %v858 = vpop.f32.mrb[0].mxu0
      %v859 = vadd.f32 %v800, %v858
      %v860 = vpop.f32.mrb[0].mxu0
      %v861 = vpop.f32.mrb[0].mxu0
      %v862 = vadd.f32 %v800, %v861
      %v863 = vpop.f32.mrb[0].mxu0
      %864 = vmatprep.mubr.bf16.mxu0 0
      %865 = vmatmul.mubr.bf16.gmra.mrb[0].mxu0 %v682
      %v866 = vpop.f32.mrb[0].mxu0
      %v867 = vadd.f32 %v800, %v866
      %v868 = vpop.f32.mrb[0].mxu0
      %v869 = vpop.f32.mrb[0].mxu0
      %v870 = vadd.f32 %v800, %v869
      %v871 = vpop.f32.mrb[0].mxu0
      %872 = vmatprep.mubr.bf16.mxu0 0
      %873 = vmatmul.mubr.bf16.gmra.mrb[0].mxu0 %v685
      %v874 = vpop.f32.mrb[0].mxu0
      %v875 = vadd.f32 %v800, %v874
      %v876 = vpop.f32.mrb[0].mxu0
      %v877 = vpop.f32.mrb[0].mxu0
      %v878 = vadd.f32 %v800, %v877
      %v879 = vpop.f32.mrb[0].mxu0
      %880 = vmatprep.mubr.bf16.mxu0 0
      %881 = vmatmul.mubr.bf16.gmra.mrb[0].mxu0 %v688
      %v882 = vpop.f32.mrb[0].mxu0
      %v883 = vadd.f32 %v800, %v882
      %v884 = vpop.f32.mrb[0].mxu0
      %v885 = vpop.f32.mrb[0].mxu0
      %v886 = vadd.f32 %v800, %v885
      %v887 = vpop.f32.mrb[0].mxu0
      %888 = vmatprep.mubr.bf16.mxu0 0
      %889 = vmatmul.mubr.bf16.gmra.mrb[0].mxu0 %v691
      %v890 = vpop.f32.mrb[0].mxu0
      %v891 = vadd.f32 %v800, %v890
      %v892 = vpop.f32.mrb[0].mxu0
      %v893 = vpop.f32.mrb[0].mxu0
      %v894 = vadd.f32 %v800, %v893
      %v895 = vpop.f32.mrb[0].mxu0
      %896 = vmatprep.mubr.bf16.mxu0 0
      %897 = vmatmul.mubr.bf16.gmra.mrb[0].mxu0 %v694
      %v898 = vpop.f32.mrb[0].mxu0
      %v899 = vadd.f32 %v800, %v898
      %v900 = vpop.f32.mrb[0].mxu0
      %v901 = vpop.f32.mrb[0].mxu0
      %v902 = vadd.f32 %v800, %v901
      %v903 = vpop.f32.mrb[0].mxu0
      %904 = vdwg.mxu0
      %v905 = vpack.c.bf16 %v598, %v595
      %v906 = vpack.c.bf16 %v606, %v603
      %v907 = vpack.c.bf16 %v614, %v611
      %v908 = vpack.c.bf16 %v622, %v619
      %v909 = vpack.c.bf16 %v630, %v627
      %v910 = vpack.c.bf16 %v638, %v635
      %v911 = vpack.c.bf16 %v646, %v643
      %v912 = vpack.c.bf16 %v654, %v651
      %v913 = vpack.c.bf16 %v734, %v731
      %v914 = vpack.c.bf16 %v742, %v739
      %v915 = vpack.c.bf16 %v750, %v747
      %v916 = vpack.c.bf16 %v758, %v755
      %v917 = vpack.c.bf16 %v766, %v763
      %v918 = vpack.c.bf16 %v774, %v771
      %v919 = vpack.c.bf16 %v782, %v779
      %v920 = vpack.c.bf16 %v790, %v787
      %vm921 = vcmask 15360
      %v923 = vsel %vm921, %v905, 0
      %v926 = vsel %vm921, %v906, 0
      %v929 = vsel %vm921, %v907, 0
      %v932 = vsel %vm921, %v908, 0
      %v935 = vsel %vm921, %v909, 0
      %v938 = vsel %vm921, %v910, 0
      %v941 = vsel %vm921, %v911, 0
      %v944 = vsel %vm921, %v912, 0
      %v947 = vsel %vm921, %v913, 0
      %v950 = vsel %vm921, %v914, 0
      %v953 = vsel %vm921, %v915, 0
      %v956 = vsel %vm921, %v916, 0
      %v959 = vsel %vm921, %v917, 0
      %v962 = vsel %vm921, %v918, 0
      %v965 = vsel %vm921, %v919, 0
      %v968 = vsel %vm921, %v920, 0
      %970 = vmatprep.subr.bf16.mxu0 0
      %971 = vmatpush1.bf16.xpose.msra.mxu0 %v947
      %972 = vmatprep.subr.bf16.mxu0 0
      %973 = vmatpush1.bf16.xpose.msra.mxu0 %v950
      %974 = vmatprep.subr.bf16.mxu0 0
      %975 = vmatpush1.bf16.xpose.msra.mxu0 %v953
      %976 = vmatprep.subr.bf16.mxu0 0
      %977 = vmatpush1.bf16.xpose.msra.mxu0 %v956
      %978 = vmatprep.subr.bf16.mxu0 0
      %979 = vmatpush1.bf16.xpose.msra.mxu0 %v959
      %980 = vmatprep.subr.bf16.mxu0 0
      %981 = vmatpush1.bf16.xpose.msra.mxu0 %v962
      %982 = vmatprep.subr.bf16.mxu0 0
      %983 = vmatpush1.bf16.xpose.msra.mxu0 %v965
      %984 = vmatprep.subr.bf16.mxu0 0
      %985 = vmatpush1.bf16.xpose.msra.mxu0 %v968
      %986 = vmatprep.subr.bf16.mxu0 0
      %987 = vmatpush1.bf16.xpose.msra.mxu0 0
      %988 = vmatprep.subr.bf16.mxu0 0
      %989 = vmatpush1.bf16.xpose.msra.mxu0 0
      %990 = vmatprep.subr.bf16.mxu0 0
      %991 = vmatpush1.bf16.xpose.msra.mxu0 0
      %992 = vmatprep.subr.bf16.mxu0 0
      %993 = vmatpush1.bf16.xpose.msra.mxu0 0
      %994 = vmatprep.subr.bf16.mxu0 0
      %995 = vmatpush1.bf16.xpose.msra.mxu0 0
      %996 = vmatprep.subr.bf16.mxu0 0
      %997 = vmatpush1.bf16.xpose.msra.mxu0 0
      %998 = vmatprep.subr.bf16.mxu0 0
      %999 = vmatpush1.bf16.xpose.msra.mxu0 0
      %1000 = vmatprep.subr.bf16.mxu0 0
      %1001 = vmatpush1.bf16.xpose.msra.mxu0 0
      %1002 = vmatprep.mubr.bf16.mxu0 0
      %1003 = vmatmul.mubr.bf16.gmra.mrb[0].mxu0 %v923
      %v1004 = vpop.f32.mrb[0].mxu0
      %v1005 = vadd.f32 0.0, %v1004
      %v1006 = vpop.f32.mrb[0].mxu0
      %v1007 = vpop.f32.mrb[0].mxu0
      %v1008 = vadd.f32 0.0, %v1007
      %v1009 = vpop.f32.mrb[0].mxu0
      %1010 = vmatprep.mubr.bf16.mxu0 0
      %1011 = vmatmul.mubr.bf16.gmra.mrb[0].mxu0 %v926
      %v1012 = vpop.f32.mrb[0].mxu0
      %v1013 = vadd.f32 0.0, %v1012
      %v1014 = vpop.f32.mrb[0].mxu0
      %v1015 = vpop.f32.mrb[0].mxu0
      %v1016 = vadd.f32 0.0, %v1015
      %v1017 = vpop.f32.mrb[0].mxu0
      %1018 = vmatprep.mubr.bf16.mxu0 0
      %1019 = vmatmul.mubr.bf16.gmra.mrb[0].mxu0 %v929
      %v1020 = vpop.f32.mrb[0].mxu0
      %v1021 = vadd.f32 0.0, %v1020
      %v1022 = vpop.f32.mrb[0].mxu0
      %v1023 = vpop.f32.mrb[0].mxu0
      %v1024 = vadd.f32 0.0, %v1023
      %v1025 = vpop.f32.mrb[0].mxu0
      %1026 = vmatprep.mubr.bf16.mxu0 0
      %1027 = vmatmul.mubr.bf16.gmra.mrb[0].mxu0 %v932
      %v1028 = vpop.f32.mrb[0].mxu0
      %v1029 = vadd.f32 0.0, %v1028
      %v1030 = vpop.f32.mrb[0].mxu0
      %v1031 = vpop.f32.mrb[0].mxu0
      %v1032 = vadd.f32 0.0, %v1031
      %v1033 = vpop.f32.mrb[0].mxu0
      %1034 = vmatprep.mubr.bf16.mxu0 0
      %1035 = vmatmul.mubr.bf16.gmra.mrb[0].mxu0 %v935
      %v1036 = vpop.f32.mrb[0].mxu0
      %v1037 = vadd.f32 0.0, %v1036
      %v1038 = vpop.f32.mrb[0].mxu0
      %v1039 = vpop.f32.mrb[0].mxu0
      %v1040 = vadd.f32 0.0, %v1039
      %v1041 = vpop.f32.mrb[0].mxu0
      %1042 = vmatprep.mubr.bf16.mxu0 0
      %1043 = vmatmul.mubr.bf16.gmra.mrb[0].mxu0 %v938
      %v1044 = vpop.f32.mrb[0].mxu0
      %v1045 = vadd.f32 0.0, %v1044
      %v1046 = vpop.f32.mrb[0].mxu0
      %v1047 = vpop.f32.mrb[0].mxu0
      %v1048 = vadd.f32 0.0, %v1047
      %v1049 = vpop.f32.mrb[0].mxu0
      %1050 = vmatprep.mubr.bf16.mxu0 0
      %1051 = vmatmul.mubr.bf16.gmra.mrb[0].mxu0 %v941
      %v1052 = vpop.f32.mrb[0].mxu0
      %v1053 = vadd.f32 0.0, %v1052
      %v1054 = vpop.f32.mrb[0].mxu0
      %v1055 = vpop.f32.mrb[0].mxu0
      %v1056 = vadd.f32 0.0, %v1055
      %v1057 = vpop.f32.mrb[0].mxu0
      %1058 = vmatprep.mubr.bf16.mxu0 0
      %1059 = vmatmul.mubr.bf16.gmra.mrb[0].mxu0 %v944
      %v1060 = vpop.f32.mrb[0].mxu0
      %v1061 = vadd.f32 0.0, %v1060
      %v1062 = vpop.f32.mrb[0].mxu0
      %v1063 = vpop.f32.mrb[0].mxu0
      %v1064 = vadd.f32 0.0, %v1063
      %v1065 = vpop.f32.mrb[0].mxu0
      %1066 = vdwg.mxu0
      %v1067 = vld [vmem:[#allocation2] sm:$0xff]
      %v1068 = vld [vmem:[#allocation2 + $0x8] sm:$0xff]
      %v1069 = vld [vmem:[#allocation2 + $0x10] sm:$0xff]
      %v1070 = vld [vmem:[#allocation2 + $0x18] sm:$0xff]
      %v1071 = vld [vmem:[#allocation2 + $0x20] sm:$0xff]
      %v1072 = vld [vmem:[#allocation2 + $0x28] sm:$0xff]
      %v1073 = vld [vmem:[#allocation2 + $0x30] sm:$0xff]
      %v1074 = vld [vmem:[#allocation2 + $0x38] sm:$0xff]
      %v1075 = vld [vmem:[#allocation2 + $0x40] sm:$0xff]
      %v1076 = vld [vmem:[#allocation2 + $0x48] sm:$0xff]
      %v1077 = vld [vmem:[#allocation2 + $0x50] sm:$0xff]
      %v1078 = vld [vmem:[#allocation2 + $0x58] sm:$0xff]
      %v1079 = vld [vmem:[#allocation2 + $0x60] sm:$0xff]
      %v1080 = vld [vmem:[#allocation2 + $0x68] sm:$0xff]
      %v1081 = vld [vmem:[#allocation2 + $0x70] sm:$0xff]
      %v1082 = vld [vmem:[#allocation2 + $0x78] sm:$0xff]
      %1083 = vmax.xlane.f32.xlu0 %v1005
      %v1084 = vpop.xlane.xlu0 %1083
      %1085 = vmax.xlane.f32.xlu0 %v1008
      %v1086 = vpop.xlane.xlu0 %1085
      %1087 = vmax.xlane.f32.xlu0 %v1013
      %v1088 = vpop.xlane.xlu0 %1087
      %1089 = vmax.xlane.f32.xlu0 %v1016
      %v1090 = vpop.xlane.xlu0 %1089
      %1091 = vmax.xlane.f32.xlu0 %v1021
      %v1092 = vpop.xlane.xlu0 %1091
      %1093 = vmax.xlane.f32.xlu0 %v1024
      %v1094 = vpop.xlane.xlu0 %1093
      %1095 = vmax.xlane.f32.xlu0 %v1029
      %v1096 = vpop.xlane.xlu0 %1095
      %1097 = vmax.xlane.f32.xlu0 %v1032
      %v1098 = vpop.xlane.xlu0 %1097
      %1099 = vmax.xlane.f32.xlu0 %v1037
      %v1100 = vpop.xlane.xlu0 %1099
      %1101 = vmax.xlane.f32.xlu0 %v1040
      %v1102 = vpop.xlane.xlu0 %1101
      %1103 = vmax.xlane.f32.xlu0 %v1045
      %v1104 = vpop.xlane.xlu0 %1103
      %1105 = vmax.xlane.f32.xlu0 %v1048
      %v1106 = vpop.xlane.xlu0 %1105
      %1107 = vmax.xlane.f32.xlu0 %v1053
      %v1108 = vpop.xlane.xlu0 %1107
      %1109 = vmax.xlane.f32.xlu0 %v1056
      %v1110 = vpop.xlane.xlu0 %1109
      %1111 = vmax.xlane.f32.xlu0 %v1061
      %v1112 = vpop.xlane.xlu0 %1111
      %1113 = vmax.xlane.f32.xlu0 %v1064
      %v1114 = vpop.xlane.xlu0 %1113
      %v1115 = vmax.f32 %v1067, %v1084
      %v1116 = vmax.f32 %v1068, %v1086
      %v1117 = vmax.f32 %v1069, %v1088
      %v1118 = vmax.f32 %v1070, %v1090
      %v1119 = vmax.f32 %v1071, %v1092
      %v1120 = vmax.f32 %v1072, %v1094
      %v1121 = vmax.f32 %v1073, %v1096
      %v1122 = vmax.f32 %v1074, %v1098
      %v1123 = vmax.f32 %v1075, %v1100
      %v1124 = vmax.f32 %v1076, %v1102
      %v1125 = vmax.f32 %v1077, %v1104
      %v1126 = vmax.f32 %v1078, %v1106
      %v1127 = vmax.f32 %v1079, %v1108
      %v1128 = vmax.f32 %v1080, %v1110
      %v1129 = vmax.f32 %v1081, %v1112
      %v1130 = vmax.f32 %v1082, %v1114
      %v1131 = vsub.f32 %v1067, %v1115
      %v1132 = vsub.f32 %v1068, %v1116
      %v1133 = vsub.f32 %v1069, %v1117
      %v1134 = vsub.f32 %v1070, %v1118
      %v1135 = vsub.f32 %v1071, %v1119
      %v1136 = vsub.f32 %v1072, %v1120
      %v1137 = vsub.f32 %v1073, %v1121
      %v1138 = vsub.f32 %v1074, %v1122
      %v1139 = vsub.f32 %v1075, %v1123
      %v1140 = vsub.f32 %v1076, %v1124
      %v1141 = vsub.f32 %v1077, %v1125
      %v1142 = vsub.f32 %v1078, %v1126
      %v1143 = vsub.f32 %v1079, %v1127
      %v1144 = vsub.f32 %v1080, %v1128
      %v1145 = vsub.f32 %v1081, %v1129
      %v1146 = vsub.f32 %v1082, %v1130
      %v1147 = vmul.f32 %v1131, 1.442695
      %v1148 = vpow.pop %v1147
      %v1149 = vmul.f32 %v1132, 1.442695
      %v1150 = vpow.pop %v1149
      %v1151 = vmul.f32 %v1133, 1.442695
      %v1152 = vpow.pop %v1151
      %v1153 = vmul.f32 %v1134, 1.442695
      %v1154 = vpow.pop %v1153
      %v1155 = vmul.f32 %v1135, 1.442695
      %v1156 = vpow.pop %v1155
      %v1157 = vmul.f32 %v1136, 1.442695
      %v1158 = vpow.pop %v1157
      %v1159 = vmul.f32 %v1137, 1.442695
      %v1160 = vpow.pop %v1159
      %v1161 = vmul.f32 %v1138, 1.442695
      %v1162 = vpow.pop %v1161
      %v1163 = vmul.f32 %v1139, 1.442695
      %v1164 = vpow.pop %v1163
      %v1165 = vmul.f32 %v1140, 1.442695
      %v1166 = vpow.pop %v1165
      %v1167 = vmul.f32 %v1141, 1.442695
      %v1168 = vpow.pop %v1167
      %v1169 = vmul.f32 %v1142, 1.442695
      %v1170 = vpow.pop %v1169
      %v1171 = vmul.f32 %v1143, 1.442695
      %v1172 = vpow.pop %v1171
      %v1173 = vmul.f32 %v1144, 1.442695
      %v1174 = vpow.pop %v1173
      %v1175 = vmul.f32 %v1145, 1.442695
      %v1176 = vpow.pop %v1175
      %v1177 = vmul.f32 %v1146, 1.442695
      %v1178 = vpow.pop %v1177
      %1180 = vset.pattern.permute.xlu0 0
      %1181 = vperm.xlu0 %1180, %v1115
      %v1182 = vpop.permute.xlu0 %1181
      %1185 = vset.pattern.permute.xlu0 0
      %1186 = vperm.xlu0 %1185, %v1116
      %v1187 = vpop.permute.xlu0 %1186
      %1190 = vset.pattern.permute.xlu0 0
      %1191 = vperm.xlu0 %1190, %v1117
      %v1192 = vpop.permute.xlu0 %1191
      %1195 = vset.pattern.permute.xlu0 0
      %1196 = vperm.xlu0 %1195, %v1118
      %v1197 = vpop.permute.xlu0 %1196
      %1200 = vset.pattern.permute.xlu0 0
      %1201 = vperm.xlu0 %1200, %v1119
      %v1202 = vpop.permute.xlu0 %1201
      %1205 = vset.pattern.permute.xlu0 0
      %1206 = vperm.xlu0 %1205, %v1120
      %v1207 = vpop.permute.xlu0 %1206
      %1210 = vset.pattern.permute.xlu0 0
      %1211 = vperm.xlu0 %1210, %v1121
      %v1212 = vpop.permute.xlu0 %1211
      %1215 = vset.pattern.permute.xlu0 0
      %1216 = vperm.xlu0 %1215, %v1122
      %v1217 = vpop.permute.xlu0 %1216
      %1220 = vset.pattern.permute.xlu0 0
      %1221 = vperm.xlu0 %1220, %v1123
      %v1222 = vpop.permute.xlu0 %1221
      %1225 = vset.pattern.permute.xlu0 0
      %1226 = vperm.xlu0 %1225, %v1124
      %v1227 = vpop.permute.xlu0 %1226
      %1230 = vset.pattern.permute.xlu0 0
      %1231 = vperm.xlu0 %1230, %v1125
      %v1232 = vpop.permute.xlu0 %1231
      %1235 = vset.pattern.permute.xlu0 0
      %1236 = vperm.xlu0 %1235, %v1126
      %v1237 = vpop.permute.xlu0 %1236
      %1240 = vset.pattern.permute.xlu0 0
      %1241 = vperm.xlu0 %1240, %v1127
      %v1242 = vpop.permute.xlu0 %1241
      %1245 = vset.pattern.permute.xlu0 0
      %1246 = vperm.xlu0 %1245, %v1128
      %v1247 = vpop.permute.xlu0 %1246
      %1250 = vset.pattern.permute.xlu0 0
      %1251 = vperm.xlu0 %1250, %v1129
      %v1252 = vpop.permute.xlu0 %1251
      %1255 = vset.pattern.permute.xlu0 0
      %1256 = vperm.xlu0 %1255, %v1130
      %v1257 = vpop.permute.xlu0 %1256
      %v1259 = vsub.f32 %v1005, %v1182
      %v1260 = vsub.f32 %v1008, %v1187
      %v1261 = vsub.f32 %v1013, %v1192
      %v1262 = vsub.f32 %v1016, %v1197
      %v1263 = vsub.f32 %v1021, %v1202
      %v1264 = vsub.f32 %v1024, %v1207
      %v1265 = vsub.f32 %v1029, %v1212
      %v1266 = vsub.f32 %v1032, %v1217
      %v1267 = vsub.f32 %v1037, %v1222
      %v1268 = vsub.f32 %v1040, %v1227
      %v1269 = vsub.f32 %v1045, %v1232
      %v1270 = vsub.f32 %v1048, %v1237
      %v1271 = vsub.f32 %v1053, %v1242
      %v1272 = vsub.f32 %v1056, %v1247
      %v1273 = vsub.f32 %v1061, %v1252
      %v1274 = vsub.f32 %v1064, %v1257
      %v1275 = vmul.f32 %v1259, 1.442695
      %v1276 = vpow.pop %v1275
      %v1277 = vmul.f32 %v1260, 1.442695
      %v1278 = vpow.pop %v1277
      %v1279 = vmul.f32 %v1261, 1.442695
      %v1280 = vpow.pop %v1279
      %v1281 = vmul.f32 %v1262, 1.442695
      %v1282 = vpow.pop %v1281
      %v1283 = vmul.f32 %v1263, 1.442695
      %v1284 = vpow.pop %v1283
      %v1285 = vmul.f32 %v1264, 1.442695
      %v1286 = vpow.pop %v1285
      %v1287 = vmul.f32 %v1265, 1.442695
      %v1288 = vpow.pop %v1287
      %v1289 = vmul.f32 %v1266, 1.442695
      %v1290 = vpow.pop %v1289
      %v1291 = vmul.f32 %v1267, 1.442695
      %v1292 = vpow.pop %v1291
      %v1293 = vmul.f32 %v1268, 1.442695
      %v1294 = vpow.pop %v1293
      %v1295 = vmul.f32 %v1269, 1.442695
      %v1296 = vpow.pop %v1295
      %v1297 = vmul.f32 %v1270, 1.442695
      %v1298 = vpow.pop %v1297
      %v1299 = vmul.f32 %v1271, 1.442695
      %v1300 = vpow.pop %v1299
      %v1301 = vmul.f32 %v1272, 1.442695
      %v1302 = vpow.pop %v1301
      %v1303 = vmul.f32 %v1273, 1.442695
      %v1304 = vpow.pop %v1303
      %v1305 = vmul.f32 %v1274, 1.442695
      %v1306 = vpow.pop %v1305
      %v1307 = vld [vmem:[#allocation3] sm:$0xff]
      %v1308 = vld [vmem:[#allocation3 + $0x8] sm:$0xff]
      %v1309 = vld [vmem:[#allocation3 + $0x10] sm:$0xff]
      %v1310 = vld [vmem:[#allocation3 + $0x18] sm:$0xff]
      %v1311 = vld [vmem:[#allocation3 + $0x20] sm:$0xff]
      %v1312 = vld [vmem:[#allocation3 + $0x28] sm:$0xff]
      %v1313 = vld [vmem:[#allocation3 + $0x30] sm:$0xff]
      %v1314 = vld [vmem:[#allocation3 + $0x38] sm:$0xff]
      %v1315 = vld [vmem:[#allocation3 + $0x40] sm:$0xff]
      %v1316 = vld [vmem:[#allocation3 + $0x48] sm:$0xff]
      %v1317 = vld [vmem:[#allocation3 + $0x50] sm:$0xff]
      %v1318 = vld [vmem:[#allocation3 + $0x58] sm:$0xff]
      %v1319 = vld [vmem:[#allocation3 + $0x60] sm:$0xff]
      %v1320 = vld [vmem:[#allocation3 + $0x68] sm:$0xff]
      %v1321 = vld [vmem:[#allocation3 + $0x70] sm:$0xff]
      %v1322 = vld [vmem:[#allocation3 + $0x78] sm:$0xff]
      %v1323 = vmul.f32 %v1148, %v1307
      %v1324 = vmul.f32 %v1150, %v1308
      %v1325 = vmul.f32 %v1152, %v1309
      %v1326 = vmul.f32 %v1154, %v1310
      %v1327 = vmul.f32 %v1156, %v1311
      %v1328 = vmul.f32 %v1158, %v1312
      %v1329 = vmul.f32 %v1160, %v1313
      %v1330 = vmul.f32 %v1162, %v1314
      %v1331 = vmul.f32 %v1164, %v1315
      %v1332 = vmul.f32 %v1166, %v1316
      %v1333 = vmul.f32 %v1168, %v1317
      %v1334 = vmul.f32 %v1170, %v1318
      %v1335 = vmul.f32 %v1172, %v1319
      %v1336 = vmul.f32 %v1174, %v1320
      %v1337 = vmul.f32 %v1176, %v1321
      %v1338 = vmul.f32 %v1178, %v1322
      %1339 = vadd.xlane.f32.xlu0 %v1276
      %v1340 = vpop.xlane.xlu0 %1339
      %1341 = vadd.xlane.f32.xlu0 %v1278
      %v1342 = vpop.xlane.xlu0 %1341
      %1343 = vadd.xlane.f32.xlu0 %v1280
      %v1344 = vpop.xlane.xlu0 %1343
      %1345 = vadd.xlane.f32.xlu0 %v1282
      %v1346 = vpop.xlane.xlu0 %1345
      %1347 = vadd.xlane.f32.xlu0 %v1284
      %v1348 = vpop.xlane.xlu0 %1347
      %1349 = vadd.xlane.f32.xlu0 %v1286
      %v1350 = vpop.xlane.xlu0 %1349
      %1351 = vadd.xlane.f32.xlu0 %v1288
      %v1352 = vpop.xlane.xlu0 %1351
      %1353 = vadd.xlane.f32.xlu0 %v1290
      %v1354 = vpop.xlane.xlu0 %1353
      %1355 = vadd.xlane.f32.xlu0 %v1292
      %v1356 = vpop.xlane.xlu0 %1355
      %1357 = vadd.xlane.f32.xlu0 %v1294
      %v1358 = vpop.xlane.xlu0 %1357
      %1359 = vadd.xlane.f32.xlu0 %v1296
      %v1360 = vpop.xlane.xlu0 %1359
      %1361 = vadd.xlane.f32.xlu0 %v1298
      %v1362 = vpop.xlane.xlu0 %1361
      %1363 = vadd.xlane.f32.xlu0 %v1300
      %v1364 = vpop.xlane.xlu0 %1363
      %1365 = vadd.xlane.f32.xlu0 %v1302
      %v1366 = vpop.xlane.xlu0 %1365
      %1367 = vadd.xlane.f32.xlu0 %v1304
      %v1368 = vpop.xlane.xlu0 %1367
      %1369 = vadd.xlane.f32.xlu0 %v1306
      %v1370 = vpop.xlane.xlu0 %1369
      %v1371 = vadd.f32 %v1323, %v1340
      %v1372 = vadd.f32 %v1324, %v1342
      %v1373 = vadd.f32 %v1325, %v1344
      %v1374 = vadd.f32 %v1326, %v1346
      %v1375 = vadd.f32 %v1327, %v1348
      %v1376 = vadd.f32 %v1328, %v1350
      %v1377 = vadd.f32 %v1329, %v1352
      %v1378 = vadd.f32 %v1330, %v1354
      %v1379 = vadd.f32 %v1331, %v1356
      %v1380 = vadd.f32 %v1332, %v1358
      %v1381 = vadd.f32 %v1333, %v1360
      %v1382 = vadd.f32 %v1334, %v1362
      %v1383 = vadd.f32 %v1335, %v1364
      %v1384 = vadd.f32 %v1336, %v1366
      %v1385 = vadd.f32 %v1337, %v1368
      %v1386 = vadd.f32 %v1338, %v1370
      %vm1387 = vcmask 7168
      %1388 = vst.msk [vmem:[#allocation3] sm:$0xff] %vm1387, %v1371
      %1389 = vst.msk [vmem:[#allocation3 + $0x8] sm:$0xff] %vm1387, %v1372
      %1390 = vst.msk [vmem:[#allocation3 + $0x10] sm:$0xff] %vm1387, %v1373
      %1391 = vst.msk [vmem:[#allocation3 + $0x18] sm:$0xff] %vm1387, %v1374
      %1392 = vst.msk [vmem:[#allocation3 + $0x20] sm:$0xff] %vm1387, %v1375
      %1393 = vst.msk [vmem:[#allocation3 + $0x28] sm:$0xff] %vm1387, %v1376
      %1394 = vst.msk [vmem:[#allocation3 + $0x30] sm:$0xff] %vm1387, %v1377
      %1395 = vst.msk [vmem:[#allocation3 + $0x38] sm:$0xff] %vm1387, %v1378
      %1396 = vst.msk [vmem:[#allocation3 + $0x40] sm:$0xff] %vm1387, %v1379
      %1397 = vst.msk [vmem:[#allocation3 + $0x48] sm:$0xff] %vm1387, %v1380
      %1398 = vst.msk [vmem:[#allocation3 + $0x50] sm:$0xff] %vm1387, %v1381
      %1399 = vst.msk [vmem:[#allocation3 + $0x58] sm:$0xff] %vm1387, %v1382
      %1400 = vst.msk [vmem:[#allocation3 + $0x60] sm:$0xff] %vm1387, %v1383
      %1401 = vst.msk [vmem:[#allocation3 + $0x68] sm:$0xff] %vm1387, %v1384
      %1402 = vst.msk [vmem:[#allocation3 + $0x70] sm:$0xff] %vm1387, %v1385
      %1403 = vst.msk [vmem:[#allocation3 + $0x78] sm:$0xff] %vm1387, %v1386
      %v1404 = vld [vmem:[#allocation4] sm:$0xff]
      %v1405 = vld [vmem:[#allocation4 + $0x8] sm:$0xff]
      %v1406 = vld [vmem:[#allocation4 + $0x10] sm:$0xff]
      %v1407 = vld [vmem:[#allocation4 + $0x18] sm:$0xff]
      %v1408 = vld [vmem:[#allocation4 + $0x20] sm:$0xff]
      %v1409 = vld [vmem:[#allocation4 + $0x28] sm:$0xff]
      %v1410 = vld [vmem:[#allocation4 + $0x30] sm:$0xff]
      %v1411 = vld [vmem:[#allocation4 + $0x38] sm:$0xff]
      %v1412 = vld [vmem:[#allocation4 + $0x40] sm:$0xff]
      %v1413 = vld [vmem:[#allocation4 + $0x48] sm:$0xff]
      %v1414 = vld [vmem:[#allocation4 + $0x50] sm:$0xff]
      %v1415 = vld [vmem:[#allocation4 + $0x58] sm:$0xff]
      %v1416 = vld [vmem:[#allocation4 + $0x60] sm:$0xff]
      %v1417 = vld [vmem:[#allocation4 + $0x68] sm:$0xff]
      %v1418 = vld [vmem:[#allocation4 + $0x70] sm:$0xff]
      %v1419 = vld [vmem:[#allocation4 + $0x78] sm:$0xff]
      %1421 = vset.pattern.permute.xlu0 0
      %1422 = vperm.xlu0 %1421, %v1148
      %v1423 = vpop.permute.xlu0 %1422
      %1426 = vset.pattern.permute.xlu0 0
      %1427 = vperm.xlu0 %1426, %v1150
      %v1428 = vpop.permute.xlu0 %1427
      %1431 = vset.pattern.permute.xlu0 0
      %1432 = vperm.xlu0 %1431, %v1152
      %v1433 = vpop.permute.xlu0 %1432
      %1436 = vset.pattern.permute.xlu0 0
      %1437 = vperm.xlu0 %1436, %v1154
      %v1438 = vpop.permute.xlu0 %1437
      %1441 = vset.pattern.permute.xlu0 0
      %1442 = vperm.xlu0 %1441, %v1156
      %v1443 = vpop.permute.xlu0 %1442
      %1446 = vset.pattern.permute.xlu0 0
      %1447 = vperm.xlu0 %1446, %v1158
      %v1448 = vpop.permute.xlu0 %1447
      %1451 = vset.pattern.permute.xlu0 0
      %1452 = vperm.xlu0 %1451, %v1160
      %v1453 = vpop.permute.xlu0 %1452
      %1456 = vset.pattern.permute.xlu0 0
      %1457 = vperm.xlu0 %1456, %v1162
      %v1458 = vpop.permute.xlu0 %1457
      %1461 = vset.pattern.permute.xlu0 0
      %1462 = vperm.xlu0 %1461, %v1164
      %v1463 = vpop.permute.xlu0 %1462
      %1466 = vset.pattern.permute.xlu0 0
      %1467 = vperm.xlu0 %1466, %v1166
      %v1468 = vpop.permute.xlu0 %1467
      %1471 = vset.pattern.permute.xlu0 0
      %1472 = vperm.xlu0 %1471, %v1168
      %v1473 = vpop.permute.xlu0 %1472
      %1476 = vset.pattern.permute.xlu0 0
      %1477 = vperm.xlu0 %1476, %v1170
      %v1478 = vpop.permute.xlu0 %1477
      %1481 = vset.pattern.permute.xlu0 0
      %1482 = vperm.xlu0 %1481, %v1172
      %v1483 = vpop.permute.xlu0 %1482
      %1486 = vset.pattern.permute.xlu0 0
      %1487 = vperm.xlu0 %1486, %v1174
      %v1488 = vpop.permute.xlu0 %1487
      %1491 = vset.pattern.permute.xlu0 0
      %1492 = vperm.xlu0 %1491, %v1176
      %v1493 = vpop.permute.xlu0 %1492
      %1496 = vset.pattern.permute.xlu0 0
      %1497 = vperm.xlu0 %1496, %v1178
      %v1498 = vpop.permute.xlu0 %1497
      %v1500 = vmul.f32 %v1423, %v1404
      %v1501 = vmul.f32 %v1428, %v1405
      %v1502 = vmul.f32 %v1433, %v1406
      %v1503 = vmul.f32 %v1438, %v1407
      %v1504 = vmul.f32 %v1443, %v1408
      %v1505 = vmul.f32 %v1448, %v1409
      %v1506 = vmul.f32 %v1453, %v1410
      %v1507 = vmul.f32 %v1458, %v1411
      %v1508 = vmul.f32 %v1463, %v1412
      %v1509 = vmul.f32 %v1468, %v1413
      %v1510 = vmul.f32 %v1473, %v1414
      %v1511 = vmul.f32 %v1478, %v1415
      %v1512 = vmul.f32 %v1483, %v1416
      %v1513 = vmul.f32 %v1488, %v1417
      %v1514 = vmul.f32 %v1493, %v1418
      %v1515 = vmul.f32 %v1498, %v1419
      %v1516 = vpack.c.bf16 %v1278, %v1276
      %v1517 = vpack.c.bf16 %v1282, %v1280
      %v1518 = vpack.c.bf16 %v1286, %v1284
      %v1519 = vpack.c.bf16 %v1290, %v1288
      %v1520 = vpack.c.bf16 %v1294, %v1292
      %v1521 = vpack.c.bf16 %v1298, %v1296
      %v1522 = vpack.c.bf16 %v1302, %v1300
      %v1523 = vpack.c.bf16 %v1306, %v1304
      %v1524 = vpack.c.bf16 %v846, %v843
      %v1525 = vpack.c.bf16 %v854, %v851
      %v1526 = vpack.c.bf16 %v862, %v859
      %v1527 = vpack.c.bf16 %v870, %v867
      %v1528 = vpack.c.bf16 %v878, %v875
      %v1529 = vpack.c.bf16 %v886, %v883
      %v1530 = vpack.c.bf16 %v894, %v891
      %v1531 = vpack.c.bf16 %v902, %v899
      %1532 = vmatprep.subr.bf16.mxu0 0
      %1533 = vmatpush1.bf16.msra.mxu0 %v1524
      %1534 = vmatprep.subr.bf16.mxu0 0
      %1535 = vmatpush1.bf16.msra.mxu0 %v1525
      %1536 = vmatprep.subr.bf16.mxu0 0
      %1537 = vmatpush1.bf16.msra.mxu0 %v1526
      %1538 = vmatprep.subr.bf16.mxu0 0
      %1539 = vmatpush1.bf16.msra.mxu0 %v1527
      %1540 = vmatprep.subr.bf16.mxu0 0
      %1541 = vmatpush1.bf16.msra.mxu0 %v1528
      %1542 = vmatprep.subr.bf16.mxu0 0
      %1543 = vmatpush1.bf16.msra.mxu0 %v1529
      %1544 = vmatprep.subr.bf16.mxu0 0
      %1545 = vmatpush1.bf16.msra.mxu0 %v1530
      %1546 = vmatprep.subr.bf16.mxu0 0
      %1547 = vmatpush1.bf16.msra.mxu0 %v1531
      %1548 = vmatprep.subr.bf16.mxu0 0
      %1549 = vmatpush1.bf16.msra.mxu0 0
      %1550 = vmatprep.subr.bf16.mxu0 0
      %1551 = vmatpush1.bf16.msra.mxu0 0
      %1552 = vmatprep.subr.bf16.mxu0 0
      %1553 = vmatpush1.bf16.msra.mxu0 0
      %1554 = vmatprep.subr.bf16.mxu0 0
      %1555 = vmatpush1.bf16.msra.mxu0 0
      %1556 = vmatprep.subr.bf16.mxu0 0
      %1557 = vmatpush1.bf16.msra.mxu0 0
      %1558 = vmatprep.subr.bf16.mxu0 0
      %1559 = vmatpush1.bf16.msra.mxu0 0
      %1560 = vmatprep.subr.bf16.mxu0 0
      %1561 = vmatpush1.bf16.msra.mxu0 0
      %1562 = vmatprep.subr.bf16.mxu0 0
      %1563 = vmatpush1.bf16.msra.mxu0 0
      %1564 = vmatprep.mubr.bf16.mxu0 0
      %1565 = vmatmul.mubr.bf16.gmra.mrb[0].mxu0 %v1516
      %v1566 = vpop.f32.mrb[0].mxu0
      %v1567 = vadd.f32 0.0, %v1566
      %v1568 = vpop.f32.mrb[0].mxu0
      %v1569 = vpop.f32.mrb[0].mxu0
      %v1570 = vadd.f32 0.0, %v1569
      %v1571 = vpop.f32.mrb[0].mxu0
      %1572 = vmatprep.mubr.bf16.mxu0 0
      %1573 = vmatmul.mubr.bf16.gmra.mrb[0].mxu0 %v1517
      %v1574 = vpop.f32.mrb[0].mxu0
      %v1575 = vadd.f32 0.0, %v1574
      %v1576 = vpop.f32.mrb[0].mxu0
      %v1577 = vpop.f32.mrb[0].mxu0
      %v1578 = vadd.f32 0.0, %v1577
      %v1579 = vpop.f32.mrb[0].mxu0
      %1580 = vmatprep.mubr.bf16.mxu0 0
      %1581 = vmatmul.mubr.bf16.gmra.mrb[0].mxu0 %v1518
      %v1582 = vpop.f32.mrb[0].mxu0
      %v1583 = vadd.f32 0.0, %v1582
      %v1584 = vpop.f32.mrb[0].mxu0
      %v1585 = vpop.f32.mrb[0].mxu0
      %v1586 = vadd.f32 0.0, %v1585
      %v1587 = vpop.f32.mrb[0].mxu0
      %1588 = vmatprep.mubr.bf16.mxu0 0
      %1589 = vmatmul.mubr.bf16.gmra.mrb[0].mxu0 %v1519
      %v1590 = vpop.f32.mrb[0].mxu0
      %v1591 = vadd.f32 0.0, %v1590
      %v1592 = vpop.f32.mrb[0].mxu0
      %v1593 = vpop.f32.mrb[0].mxu0
      %v1594 = vadd.f32 0.0, %v1593
      %v1595 = vpop.f32.mrb[0].mxu0
      %1596 = vmatprep.mubr.bf16.mxu0 0
      %1597 = vmatmul.mubr.bf16.gmra.mrb[0].mxu0 %v1520
      %v1598 = vpop.f32.mrb[0].mxu0
      %v1599 = vadd.f32 0.0, %v1598
      %v1600 = vpop.f32.mrb[0].mxu0
      %v1601 = vpop.f32.mrb[0].mxu0
      %v1602 = vadd.f32 0.0, %v1601
      %v1603 = vpop.f32.mrb[0].mxu0
      %1604 = vmatprep.mubr.bf16.mxu0 0
      %1605 = vmatmul.mubr.bf16.gmra.mrb[0].mxu0 %v1521
      %v1606 = vpop.f32.mrb[0].mxu0
      %v1607 = vadd.f32 0.0, %v1606
      %v1608 = vpop.f32.mrb[0].mxu0
      %v1609 = vpop.f32.mrb[0].mxu0
      %v1610 = vadd.f32 0.0, %v1609
      %v1611 = vpop.f32.mrb[0].mxu0
      %1612 = vmatprep.mubr.bf16.mxu0 0
      %1613 = vmatmul.mubr.bf16.gmra.mrb[0].mxu0 %v1522
      %v1614 = vpop.f32.mrb[0].mxu0
      %v1615 = vadd.f32 0.0, %v1614
      %v1616 = vpop.f32.mrb[0].mxu0
      %v1617 = vpop.f32.mrb[0].mxu0
      %v1618 = vadd.f32 0.0, %v1617
      %v1619 = vpop.f32.mrb[0].mxu0
      %1620 = vmatprep.mubr.bf16.mxu0 0
      %1621 = vmatmul.mubr.bf16.gmra.mrb[0].mxu0 %v1523
      %v1622 = vpop.f32.mrb[0].mxu0
      %v1623 = vadd.f32 0.0, %v1622
      %v1624 = vpop.f32.mrb[0].mxu0
      %v1625 = vpop.f32.mrb[0].mxu0
      %v1626 = vadd.f32 0.0, %v1625
      %v1627 = vpop.f32.mrb[0].mxu0
      %1628 = vdwg.mxu0
      %v1629 = vadd.f32 %v1500, %v1567
      %v1630 = vadd.f32 %v1501, %v1570
      %v1631 = vadd.f32 %v1502, %v1575
      %v1632 = vadd.f32 %v1503, %v1578
      %v1633 = vadd.f32 %v1504, %v1583
      %v1634 = vadd.f32 %v1505, %v1586
      %v1635 = vadd.f32 %v1506, %v1591
      %v1636 = vadd.f32 %v1507, %v1594
      %v1637 = vadd.f32 %v1508, %v1599
      %v1638 = vadd.f32 %v1509, %v1602
      %v1639 = vadd.f32 %v1510, %v1607
      %v1640 = vadd.f32 %v1511, %v1610
      %v1641 = vadd.f32 %v1512, %v1615
      %v1642 = vadd.f32 %v1513, %v1618
      %v1643 = vadd.f32 %v1514, %v1623
      %v1644 = vadd.f32 %v1515, %v1626
      %1645 = vst.msk [vmem:[#allocation4] sm:$0xff] %vm535, %v1629
      %1646 = vst.msk [vmem:[#allocation4 + $0x8] sm:$0xff] %vm535, %v1630
      %1647 = vst.msk [vmem:[#allocation4 + $0x10] sm:$0xff] %vm535, %v1631
      %1648 = vst.msk [vmem:[#allocation4 + $0x18] sm:$0xff] %vm535, %v1632
      %1649 = vst.msk [vmem:[#allocation4 + $0x20] sm:$0xff] %vm535, %v1633
      %1650 = vst.msk [vmem:[#allocation4 + $0x28] sm:$0xff] %vm535, %v1634
      %1651 = vst.msk [vmem:[#allocation4 + $0x30] sm:$0xff] %vm535, %v1635
      %1652 = vst.msk [vmem:[#allocation4 + $0x38] sm:$0xff] %vm535, %v1636
      %1653 = vst.msk [vmem:[#allocation4 + $0x40] sm:$0xff] %vm535, %v1637
      %1654 = vst.msk [vmem:[#allocation4 + $0x48] sm:$0xff] %vm535, %v1638
      %1655 = vst.msk [vmem:[#allocation4 + $0x50] sm:$0xff] %vm535, %v1639
      %1656 = vst.msk [vmem:[#allocation4 + $0x58] sm:$0xff] %vm535, %v1640
      %1657 = vst.msk [vmem:[#allocation4 + $0x60] sm:$0xff] %vm535, %v1641
      %1658 = vst.msk [vmem:[#allocation4 + $0x68] sm:$0xff] %vm535, %v1642
      %1659 = vst.msk [vmem:[#allocation4 + $0x70] sm:$0xff] %vm535, %v1643
      %1660 = vst.msk [vmem:[#allocation4 + $0x78] sm:$0xff] %vm535, %v1644
      %1661 = vst.msk [vmem:[#allocation2] sm:$0xff] %vm1387, %v1115
      %1662 = vst.msk [vmem:[#allocation2 + $0x8] sm:$0xff] %vm1387, %v1116
      %1663 = vst.msk [vmem:[#allocation2 + $0x10] sm:$0xff] %vm1387, %v1117
      %1664 = vst.msk [vmem:[#allocation2 + $0x18] sm:$0xff] %vm1387, %v1118
      %1665 = vst.msk [vmem:[#allocation2 + $0x20] sm:$0xff] %vm1387, %v1119
      %1666 = vst.msk [vmem:[#allocation2 + $0x28] sm:$0xff] %vm1387, %v1120
      %1667 = vst.msk [vmem:[#allocation2 + $0x30] sm:$0xff] %vm1387, %v1121
      %1668 = vst.msk [vmem:[#allocation2 + $0x38] sm:$0xff] %vm1387, %v1122
      %1669 = vst.msk [vmem:[#allocation2 + $0x40] sm:$0xff] %vm1387, %v1123
      %1670 = vst.msk [vmem:[#allocation2 + $0x48] sm:$0xff] %vm1387, %v1124
      %1671 = vst.msk [vmem:[#allocation2 + $0x50] sm:$0xff] %vm1387, %v1125
      %1672 = vst.msk [vmem:[#allocation2 + $0x58] sm:$0xff] %vm1387, %v1126
      %1673 = vst.msk [vmem:[#allocation2 + $0x60] sm:$0xff] %vm1387, %v1127
      %1674 = vst.msk [vmem:[#allocation2 + $0x68] sm:$0xff] %vm1387, %v1128
      %1675 = vst.msk [vmem:[#allocation2 + $0x70] sm:$0xff] %vm1387, %v1129
      %1676 = vst.msk [vmem:[#allocation2 + $0x78] sm:$0xff] %vm1387, %v1130
      %p1677 = scmp.eq.s32.totalorder %s29, 1
      // Predicated region
      $region61: #{da_head_forward.8} parent=55 // pred_check
        %p1678 = pneg %p1677
      $region62: #{da_head_forward.8} parent=55 // pred_check_branch
        %1680 = sbr.rel (%p1678) target = $region64
      $region63: #{da_head_forward.8} parent=55 // pred_region
        %v1681 = vld [vmem:[#allocation3] sm:$0xff]
        %v1682 = vld [vmem:[#allocation3 + $0x8] sm:$0xff]
        %v1683 = vld [vmem:[#allocation3 + $0x10] sm:$0xff]
        %v1684 = vld [vmem:[#allocation3 + $0x18] sm:$0xff]
        %v1685 = vld [vmem:[#allocation3 + $0x20] sm:$0xff]
        %v1686 = vld [vmem:[#allocation3 + $0x28] sm:$0xff]
        %v1687 = vld [vmem:[#allocation3 + $0x30] sm:$0xff]
        %v1688 = vld [vmem:[#allocation3 + $0x38] sm:$0xff]
        %v1689 = vld [vmem:[#allocation3 + $0x40] sm:$0xff]
        %v1690 = vld [vmem:[#allocation3 + $0x48] sm:$0xff]
        %v1691 = vld [vmem:[#allocation3 + $0x50] sm:$0xff]
        %v1692 = vld [vmem:[#allocation3 + $0x58] sm:$0xff]
        %v1693 = vld [vmem:[#allocation3 + $0x60] sm:$0xff]
        %v1694 = vld [vmem:[#allocation3 + $0x68] sm:$0xff]
        %v1695 = vld [vmem:[#allocation3 + $0x70] sm:$0xff]
        %v1696 = vld [vmem:[#allocation3 + $0x78] sm:$0xff]
        %v1697 = vrcp.pop %v1681
        %v1698 = vrcp.pop %v1682
        %v1699 = vrcp.pop %v1683
        %v1700 = vrcp.pop %v1684
        %v1701 = vrcp.pop %v1685
        %v1702 = vrcp.pop %v1686
        %v1703 = vrcp.pop %v1687
        %v1704 = vrcp.pop %v1688
        %v1705 = vrcp.pop %v1689
        %v1706 = vrcp.pop %v1690
        %v1707 = vrcp.pop %v1691
        %v1708 = vrcp.pop %v1692
        %v1709 = vrcp.pop %v1693
        %v1710 = vrcp.pop %v1694
        %v1711 = vrcp.pop %v1695
        %v1712 = vrcp.pop %v1696
        %v1713 = vld [vmem:[#allocation5] sm:$0x1]
        %s1714 = vtos %v1713
        %v1715 = vld [vmem:[#allocation4] sm:$0xff]
        %v1716 = vld [vmem:[#allocation4 + $0x8] sm:$0xff]
        %v1717 = vld [vmem:[#allocation4 + $0x10] sm:$0xff]
        %v1718 = vld [vmem:[#allocation4 + $0x18] sm:$0xff]
        %v1719 = vld [vmem:[#allocation4 + $0x20] sm:$0xff]
        %v1720 = vld [vmem:[#allocation4 + $0x28] sm:$0xff]
        %v1721 = vld [vmem:[#allocation4 + $0x30] sm:$0xff]
        %v1722 = vld [vmem:[#allocation4 + $0x38] sm:$0xff]
        %v1723 = vld [vmem:[#allocation4 + $0x40] sm:$0xff]
        %v1724 = vld [vmem:[#allocation4 + $0x48] sm:$0xff]
        %v1725 = vld [vmem:[#allocation4 + $0x50] sm:$0xff]
        %v1726 = vld [vmem:[#allocation4 + $0x58] sm:$0xff]
        %v1727 = vld [vmem:[#allocation4 + $0x60] sm:$0xff]
        %v1728 = vld [vmem:[#allocation4 + $0x68] sm:$0xff]
        %v1729 = vld [vmem:[#allocation4 + $0x70] sm:$0xff]
        %v1730 = vld [vmem:[#allocation4 + $0x78] sm:$0xff]
        %1732 = vset.pattern.permute.xlu0 0
        %1733 = vperm.xlu0 %1732, %v1697
        %v1734 = vpop.permute.xlu0 %1733
        %1737 = vset.pattern.permute.xlu0 0
        %1738 = vperm.xlu0 %1737, %v1698
        %v1739 = vpop.permute.xlu0 %1738
        %1742 = vset.pattern.permute.xlu0 0
        %1743 = vperm.xlu0 %1742, %v1699
        %v1744 = vpop.permute.xlu0 %1743
        %1747 = vset.pattern.permute.xlu0 0
        %1748 = vperm.xlu0 %1747, %v1700
        %v1749 = vpop.permute.xlu0 %1748
        %1752 = vset.pattern.permute.xlu0 0
        %1753 = vperm.xlu0 %1752, %v1701
        %v1754 = vpop.permute.xlu0 %1753
        %1757 = vset.pattern.permute.xlu0 0
        %1758 = vperm.xlu0 %1757, %v1702
        %v1759 = vpop.permute.xlu0 %1758
        %1762 = vset.pattern.permute.xlu0 0
        %1763 = vperm.xlu0 %1762, %v1703
        %v1764 = vpop.permute.xlu0 %1763
        %1767 = vset.pattern.permute.xlu0 0
        %1768 = vperm.xlu0 %1767, %v1704
        %v1769 = vpop.permute.xlu0 %1768
        %1772 = vset.pattern.permute.xlu0 0
        %1773 = vperm.xlu0 %1772, %v1705
        %v1774 = vpop.permute.xlu0 %1773
        %1777 = vset.pattern.permute.xlu0 0
        %1778 = vperm.xlu0 %1777, %v1706
        %v1779 = vpop.permute.xlu0 %1778
        %1782 = vset.pattern.permute.xlu0 0
        %1783 = vperm.xlu0 %1782, %v1707
        %v1784 = vpop.permute.xlu0 %1783
        %1787 = vset.pattern.permute.xlu0 0
        %1788 = vperm.xlu0 %1787, %v1708
        %v1789 = vpop.permute.xlu0 %1788
        %1792 = vset.pattern.permute.xlu0 0
        %1793 = vperm.xlu0 %1792, %v1709
        %v1794 = vpop.permute.xlu0 %1793
        %1797 = vset.pattern.permute.xlu0 0
        %1798 = vperm.xlu0 %1797, %v1710
        %v1799 = vpop.permute.xlu0 %1798
        %1802 = vset.pattern.permute.xlu0 0
        %1803 = vperm.xlu0 %1802, %v1711
        %v1804 = vpop.permute.xlu0 %1803
        %1807 = vset.pattern.permute.xlu0 0
        %1808 = vperm.xlu0 %1807, %v1712
        %v1809 = vpop.permute.xlu0 %1808
        %v1811 = vmul.f32 %v1715, %v1734
        %v1812 = vmul.f32 %v1716, %v1739
        %v1813 = vmul.f32 %v1717, %v1744
        %v1814 = vmul.f32 %v1718, %v1749
        %v1815 = vmul.f32 %v1719, %v1754
        %v1816 = vmul.f32 %v1720, %v1759
        %v1817 = vmul.f32 %v1721, %v1764
        %v1818 = vmul.f32 %v1722, %v1769
        %v1819 = vmul.f32 %v1723, %v1774
        %v1820 = vmul.f32 %v1724, %v1779
        %v1821 = vmul.f32 %v1725, %v1784
        %v1822 = vmul.f32 %v1726, %v1789
        %v1823 = vmul.f32 %v1727, %v1794
        %v1824 = vmul.f32 %v1728, %v1799
        %v1825 = vmul.f32 %v1729, %v1804
        %v1826 = vmul.f32 %v1730, %v1809
        %v1827 = vstv %s1714
        %v1828 = vmul.f32 %v1827, %v1811
        %v1829 = vmul.f32 %v1827, %v1812
        %v1830 = vmul.f32 %v1827, %v1813
        %v1831 = vmul.f32 %v1827, %v1814
        %v1832 = vmul.f32 %v1827, %v1815
        %v1833 = vmul.f32 %v1827, %v1816
        %v1834 = vmul.f32 %v1827, %v1817
        %v1835 = vmul.f32 %v1827, %v1818
        %v1836 = vmul.f32 %v1827, %v1819
        %v1837 = vmul.f32 %v1827, %v1820
        %v1838 = vmul.f32 %v1827, %v1821
        %v1839 = vmul.f32 %v1827, %v1822
        %v1840 = vmul.f32 %v1827, %v1823
        %v1841 = vmul.f32 %v1827, %v1824
        %v1842 = vmul.f32 %v1827, %v1825
        %v1843 = vmul.f32 %v1827, %v1826
        %v1844 = vadd.f32 %v1828, %v472
        %v1845 = vadd.f32 %v1829, %v473
        %v1846 = vadd.f32 %v1830, %v474
        %v1847 = vadd.f32 %v1831, %v475
        %v1848 = vadd.f32 %v1832, %v476
        %v1849 = vadd.f32 %v1833, %v477
        %v1850 = vadd.f32 %v1834, %v478
        %v1851 = vadd.f32 %v1835, %v479
        %v1852 = vadd.f32 %v1836, %v480
        %v1853 = vadd.f32 %v1837, %v481
        %v1854 = vadd.f32 %v1838, %v482
        %v1855 = vadd.f32 %v1839, %v483
        %v1856 = vadd.f32 %v1840, %v484
        %v1857 = vadd.f32 %v1841, %v485
        %v1858 = vadd.f32 %v1842, %v486
        %v1859 = vadd.f32 %v1843, %v487
        %1860 = vst.msk [vmem:[%s415] sm:$0xff] %vm535, %v1844
        %1861 = vst.msk [vmem:[%s415 + $0x8] sm:$0xff] %vm535, %v1845
        %1862 = vst.msk [vmem:[%s415 + $0x10] sm:$0xff] %vm535, %v1846
        %1863 = vst.msk [vmem:[%s415 + $0x18] sm:$0xff] %vm535, %v1847
        %1864 = vst.msk [vmem:[%s415 + $0x20] sm:$0xff] %vm535, %v1848
        %1865 = vst.msk [vmem:[%s415 + $0x28] sm:$0xff] %vm535, %v1849
        %1866 = vst.msk [vmem:[%s415 + $0x30] sm:$0xff] %vm535, %v1850
        %1867 = vst.msk [vmem:[%s415 + $0x38] sm:$0xff] %vm535, %v1851
        %1868 = vst.msk [vmem:[%s415 + $0x40] sm:$0xff] %vm535, %v1852
        %1869 = vst.msk [vmem:[%s415 + $0x48] sm:$0xff] %vm535, %v1853
        %1870 = vst.msk [vmem:[%s415 + $0x50] sm:$0xff] %vm535, %v1854
        %1871 = vst.msk [vmem:[%s415 + $0x58] sm:$0xff] %vm535, %v1855
        %1872 = vst.msk [vmem:[%s415 + $0x60] sm:$0xff] %vm535, %v1856
        %1873 = vst.msk [vmem:[%s415 + $0x68] sm:$0xff] %vm535, %v1857
        %1874 = vst.msk [vmem:[%s415 + $0x70] sm:$0xff] %vm535, %v1858
        %1875 = vst.msk [vmem:[%s415 + $0x78] sm:$0xff] %vm535, %v1859
      $region64: #{da_head_forward.8} parent=55 // pred_fallthru
        _
      %s1876 = smul.u32 16, %s28
      %p1877 = scmp.lt.s32.totalorder %s27, 1
      %s1878 = scalar_select %p1877, %s27, 1
      %p1879 = scmp.lt.s32.totalorder %s1876, 31
      %s1880 = scalar_select %p1879, %s1876, 31
      %s1881 = smul.addr %s1878, 32
      %s1882 = sadd.s32 %s1880, %s1881
      %s1883 = smul.addr %s1882, 8
      %s1884 = scalar_lea.vmem %s9, %s1883
      // Predicated region
      $region65: #{da_head_forward.8} parent=55 // pred_check
        %p1885 = pneg %p264
      $region66: #{da_head_forward.8} parent=55 // pred_check_branch
        %1887 = sbr.rel (%p1885) target = $region68
      $region67: #{da_head_forward.8} parent=55 // pred_region
        %s1888 = smul.u32 16, %s28
      $region68: #{da_head_forward.8} parent=55 // pred_fallthru
        _
    $region56: #{da_head_forward.8} parent=5 // pred_fallthru
      _
    %p1889 = scmp.le.s32.totalorder 2, %s17
    // Predicated region
    $region69: #{da_head_forward.8} parent=5 // pred_check
      %p1890 = pneg %p1889
    $region70: #{da_head_forward.8} parent=5 // pred_check_branch
      %1892 = sbr.rel (%p1890) target = $region72
    $region71: #{da_head_forward.8} parent=5 // pred_region
      %s1893 = ssub.s32 %s17, 2
      // Predicated region
      $region73: #{da_head_forward.8} parent=71 // pred_check
        %p1894 = pneg %p270
      $region74: #{da_head_forward.8} parent=71 // pred_check_branch
        %1896 = sbr.rel (%p1894) target = $region76
      $region75: #{da_head_forward.8} parent=71 // pred_region
        %s1897 = smul.u32 16, %s31
        %p1898 = scmp.lt.s32.totalorder %s30, 1
        %s1899 = scalar_select %p1898, %s30, 1
        %p1900 = scmp.lt.s32.totalorder %s1897, 31
        %s1901 = scalar_select %p1900, %s1897, 31
        %s1902 = smul.addr %s1899, 32
        %s1903 = sadd.s32 %s1901, %s1902
        %s1904 = smul.addr %s1903, 8
        %s1905 = scalar_lea.vmem %s9, %s1904
      $region76: #{da_head_forward.8} parent=71 // pred_fallthru
        _
    $region72: #{da_head_forward.8} parent=5 // pred_fallthru
      _
  $region6: #{da_head_forward.8} parent=0 // loop_footer
    %s21 = sadd.s32 1, %s17
  $region7: #{da_head_forward.8} parent=0 // loop_footer_branch
    %16 = sbr.rel target = $region3
  $region8: #{da_head_forward.8} parent=0 // loop_exit
    _

// kernel: da_head_forward.10
$region0: #{da_head_forward.10}
  #allocation0 [shape = 'u32[]', space=smem, size = 0x4, offset = 0x4, fixed_abs, tag = 'smem constant byte address 0x4 - core index']
  #allocation1 [shape = 'u32[144,128]{1,0:T(1,128)}', space=vmem, size = 0x12000, scoped, tag = 'internal scratch']
  %s0 = inlined_call_operand.vmem [shape: f32[2,18,18,64], index: 0, kind: input, shape index: {}]
  %s1 = inlined_call_operand.vmem [shape: bf16[3,3,64,16], index: 1, kind: input, shape index: {}]
  %s2 = inlined_call_operand.vmem [shape: f32[1,16], index: 2, kind: input, shape index: {}]
  %s3 = inlined_call_operand.vmem [shape: f32[2,256,16], index: 3, kind: output, shape index: {}]
  %s4 = sld [smem:[#allocation0]]
  $region45: #{da_head_forward.10} parent=0
    _
  %s6 = ssub.s32 1, %s4
  %s7 = scalar_select 0, %s6, %s4
  loop: start=0, step=1, limit=4
  $region2: #{da_head_forward.10} parent=0 // loop_pre_header
    _
  $region3: #{da_head_forward.10} parent=0 // loop_header
    %s9 = sphi 0, %s13
    %p10 = scmp.ge.s32.totalorder %s9, 4
    %s19 = sphi 0, %s21
    %s22 = sphi 0, %s19
    %s23 = sphi 0, %s22
    %s39 = sphi 0, %s23
    %s43 = sphi 0, %s43
    %s45 = sphi 0, %s43
    %s46 = sphi 0, %s45
    %s60 = sphi 0, %s46
    %s64 = sphi 0, %s64
    %s66 = sphi 0, %s64
    %s67 = sphi 0, %s66
    %s81 = sphi 0, %s67
    %s87 = sphi 0, %s89
    %s90 = sphi 0, %s87
    %s91 = sphi 0, %s90
    %s107 = sphi 0, %s91
  $region4: #{da_head_forward.10} parent=0 // loop_header_branch
    %12 = sbr.rel (%p10) target = $region8
  $region5: #{da_head_forward.10} parent=0 // loop_body
    %s14 = ssub.s32 %s9, 1
    %s15 = ssub.s32 %s9, 2
    %s16 = sadd.s32 %s9, 1
    %s17 = ssub.s32 %s9, %s16
    %p18 = scmp.eq.s32.totalorder %s17, 0
    %s20 = sadd.s32 %s19, 1
    %s21 = scalar_select %p18, %s19, %s20
    %p24 = pneg %p18
    %p25 = scmp.eq.s32.totalorder %s9, 1
    %p26 = por %p24, %p25
    %p27 = scmp.ne.s32.totalorder %s19, %s22
    %p28 = scmp.eq.s32.totalorder %s9, 0
    %p29 = por %p27, %p28
    %p30 = scmp.ne.s32.totalorder %s19, %s22
    %p31 = scmp.eq.s32.totalorder %s14, 1
    %p32 = por %p30, %p31
    %p33 = scmp.ne.s32.totalorder %s22, %s23
    %p34 = scmp.eq.s32.totalorder %s14, 0
    %p35 = por %p33, %p34
    %p36 = scmp.ne.s32.totalorder %s22, %s23
    %p37 = scmp.eq.s32.totalorder %s15, 1
    %p38 = por %p36, %p37
    %p40 = scmp.ne.s32.totalorder %s23, %s39
    %p41 = scmp.eq.s32.totalorder %s15, 0
    %p42 = por %p40, %p41
    %s44 = sadd.s32 %s43, 1
    %p47 = scmp.eq.s32.totalorder %s9, 1
    %p48 = scmp.ne.s32.totalorder %s43, %s45
    %p49 = scmp.eq.s32.totalorder %s9, 0
    %p50 = por %p48, %p49
    %p51 = scmp.ne.s32.totalorder %s43, %s45
    %p52 = scmp.eq.s32.totalorder %s14, 1
    %p53 = por %p51, %p52
    %p54 = scmp.ne.s32.totalorder %s45, %s46
    %p55 = scmp.eq.s32.totalorder %s14, 0
    %p56 = por %p54, %p55
    %p57 = scmp.ne.s32.totalorder %s45, %s46
    %p58 = scmp.eq.s32.totalorder %s15, 1
    %p59 = por %p57, %p58
    %p61 = scmp.ne.s32.totalorder %s46, %s60
    %p62 = scmp.eq.s32.totalorder %s15, 0
    %p63 = por %p61, %p62
    %s65 = sadd.s32 %s64, 1
    %p68 = scmp.eq.s32.totalorder %s9, 1
    %p69 = scmp.ne.s32.totalorder %s64, %s66
    %p70 = scmp.eq.s32.totalorder %s9, 0
    %p71 = por %p69, %p70
    %p72 = scmp.ne.s32.totalorder %s64, %s66
    %p73 = scmp.eq.s32.totalorder %s14, 1
    %p74 = por %p72, %p73
    %p75 = scmp.ne.s32.totalorder %s66, %s67
    %p76 = scmp.eq.s32.totalorder %s14, 0
    %p77 = por %p75, %p76
    %p78 = scmp.ne.s32.totalorder %s66, %s67
    %p79 = scmp.eq.s32.totalorder %s15, 1
    %p80 = por %p78, %p79
    %p82 = scmp.ne.s32.totalorder %s67, %s81
    %p83 = scmp.eq.s32.totalorder %s15, 0
    %p84 = por %p82, %p83
    %s85 = ssub.s32 %s9, %s16
    %p86 = scmp.eq.s32.totalorder %s85, 0
    %s88 = sadd.s32 %s87, 1
    %s89 = scalar_select %p86, %s87, %s88
    %p92 = pneg %p86
    %p93 = scmp.eq.s32.totalorder %s9, 1
    %p94 = por %p92, %p93
    %p95 = scmp.ne.s32.totalorder %s87, %s90
    %p96 = scmp.eq.s32.totalorder %s9, 0
    %p97 = por %p95, %p96
    %p98 = scmp.ne.s32.totalorder %s87, %s90
    %p99 = scmp.eq.s32.totalorder %s14, 1
    %p100 = por %p98, %p99
    %p101 = scmp.ne.s32.totalorder %s90, %s91
    %p102 = scmp.eq.s32.totalorder %s14, 0
    %p103 = por %p101, %p102
    %p104 = scmp.ne.s32.totalorder %s90, %s91
    %p105 = scmp.eq.s32.totalorder %s15, 1
    %p106 = por %p104, %p105
    %p108 = scmp.ne.s32.totalorder %s91, %s107
    %p109 = scmp.eq.s32.totalorder %s15, 0
    %p110 = por %p108, %p109
    %p111 = scmp.le.s32.totalorder 1, %s9
    %p112 = scmp.lt.s32.totalorder %s9, 3
    %p113 = pnand %p111, %p112
    %p114 = pneg %p113
    // Predicated region
    $region9: #{da_head_forward.10} parent=5 // pred_check
      _
    $region10: #{da_head_forward.10} parent=5 // pred_check_branch
      %116 = sbr.rel (%p113) target = $region12
    $region11: #{da_head_forward.10} parent=5 // pred_region
      %s117 = ssub.s32 %s9, 1
      // Predicated region
      $region13: #{da_head_forward.10} parent=11 // pred_check
        %p118 = pneg %p56
      $region14: #{da_head_forward.10} parent=11 // pred_check_branch
        %120 = sbr.rel (%p118) target = $region16
      $region15: #{da_head_forward.10} parent=11 // pred_region
        _
      $region16: #{da_head_forward.10} parent=11 // pred_fallthru
        _
      // Predicated region
      $region17: #{da_head_forward.10} parent=11 // pred_check
        %p121 = pneg %p77
      $region18: #{da_head_forward.10} parent=11 // pred_check_branch
        %123 = sbr.rel (%p121) target = $region20
      $region19: #{da_head_forward.10} parent=11 // pred_region
        _
      $region20: #{da_head_forward.10} parent=11 // pred_fallthru
        _
    $region12: #{da_head_forward.10} parent=5 // pred_fallthru
      _
    %p124 = scmp.lt.s32.totalorder %s9, 2
    // Predicated region
    $region21: #{da_head_forward.10} parent=5 // pred_check
      %p125 = pneg %p124
    $region22: #{da_head_forward.10} parent=5 // pred_check_branch
      %127 = sbr.rel (%p125) target = $region24
    $region23: #{da_head_forward.10} parent=5 // pred_region
      // Predicated region
      $region25: #{da_head_forward.10} parent=23 // pred_check
        %p128 = pneg %p29
      $region26: #{da_head_forward.10} parent=23 // pred_check_branch
        %130 = sbr.rel (%p128) target = $region28
      $region27: #{da_head_forward.10} parent=23 // pred_region
        %p131 = scmp.lt.s32.totalorder %s9, 1
        %s132 = scalar_select %p131, %s9, 1
        %s133 = smul.addr %s132, 54
        %s134 = smul.addr %s133, 8
        %s135 = scalar_lea.vmem %s0, %s134
      $region28: #{da_head_forward.10} parent=23 // pred_fallthru
        _
    $region24: #{da_head_forward.10} parent=5 // pred_fallthru
      _
    %p136 = scmp.le.s32.totalorder 1, %s9
    %p137 = scmp.lt.s32.totalorder %s9, 3
    %p138 = pnand %p136, %p137
    %p139 = pneg %p138
    // Predicated region
    $region29: #{da_head_forward.10} parent=5 // pred_check
      _
    $region30: #{da_head_forward.10} parent=5 // pred_check_branch
      %141 = sbr.rel (%p138) target = $region32
    $region31: #{da_head_forward.10} parent=5 // pred_region
      %s142 = ssub.s32 %s9, 1
      %p143 = scmp.lt.s32.totalorder %s14, 1
      %s144 = scalar_select %p143, %s14, 1
      %s145 = smul.addr %s144, 54
      %s146 = smul.addr %s145, 8
      %s147 = scalar_lea.vmem %s0, %s146
      %p148 = pneg %p35
      %p149 = pneg %p32
      %p150 = pneg %p56
      %p151 = pneg %p53
      %p152 = pneg %p77
      %p153 = pneg %p74
      %p154 = pneg %p103
      %p155 = pneg %p100
      %p156 = scmp.lt.s32.totalorder %s14, 1
      %s157 = scalar_select %p156, %s14, 1
      %s158 = smul.addr %s157, 32
      %s159 = smul.addr %s158, 8
      %s160 = scalar_lea.vmem %s3, %s159
      %p161 = scmp.lt.s32.totalorder %s14, 1
      %s162 = scalar_select %p161, %s14, 1
      %s163 = smul.addr %s162, 54
      %s164 = smul.addr %s163, 8
      %s165 = scalar_lea.vmem %s0, %s164
      %p166 = scmp.lt.s32.totalorder %s14, 1
      %s167 = scalar_select %p166, %s14, 1
      %s168 = smul.addr %s167, 32
      %s169 = smul.addr %s168, 8
      %s170 = scalar_lea.vmem %s3, %s169
      %v172 = vld [vmem:[%s165] sm:$0xff]
      %v173 = vld [vmem:[%s165 + $0x8] sm:$0xff]
      %v174 = vld [vmem:[%s165 + $0x18] sm:$0xff]
      %v175 = vld [vmem:[%s165 + $0x20] sm:$0xff]
      %v176 = vld [vmem:[%s165 + $0x30] sm:$0xff]
      %v177 = vld [vmem:[%s165 + $0x38] sm:$0xff]
      %v178 = vld [vmem:[%s165 + $0x48] sm:$0xff]
      %v179 = vld [vmem:[%s165 + $0x50] sm:$0xff]
      %v180 = vld [vmem:[%s165 + $0x60] sm:$0xff]
      %v181 = vld [vmem:[%s165 + $0x68] sm:$0xff]
      %v182 = vld [vmem:[%s165 + $0x78] sm:$0xff]
      %v183 = vld [vmem:[%s165 + $0x80] sm:$0xff]
      %v184 = vld [vmem:[%s165 + $0x90] sm:$0xff]
      %v185 = vld [vmem:[%s165 + $0x98] sm:$0xff]
      %v186 = vld [vmem:[%s165 + $0xa8] sm:$0xff]
      %v187 = vld [vmem:[%s165 + $0xb0] sm:$0xff]
      %v188 = vld [vmem:[%s165 + $0xc0] sm:$0xff]
      %v189 = vld [vmem:[%s165 + $0xc8] sm:$0xff]
      %v190 = vld [vmem:[%s165 + $0xd8] sm:$0xff]
      %v191 = vld [vmem:[%s165 + $0xe0] sm:$0xff]
      %v192 = vld [vmem:[%s165 + $0xf0] sm:$0xff]
      %v193 = vld [vmem:[%s165 + $0xf8] sm:$0xff]
      %v194 = vld [vmem:[%s165 + $0x108] sm:$0xff]
      %v195 = vld [vmem:[%s165 + $0x110] sm:$0xff]
      %v196 = vld [vmem:[%s165 + $0x120] sm:$0xff]
      %v197 = vld [vmem:[%s165 + $0x128] sm:$0xff]
      %v198 = vld [vmem:[%s165 + $0x138] sm:$0xff]
      %v199 = vld [vmem:[%s165 + $0x140] sm:$0xff]
      %v200 = vld [vmem:[%s165 + $0x150] sm:$0xff]
      %v201 = vld [vmem:[%s165 + $0x158] sm:$0xff]
      %v202 = vld [vmem:[%s165 + $0x168] sm:$0xff]
      %v203 = vld [vmem:[%s165 + $0x170] sm:$0xff]
      %v204 = vpack.c.bf16 %v173, %v172
      %v205 = vpack.c.bf16 %v175, %v174
      %v206 = vpack.c.bf16 %v177, %v176
      %v207 = vpack.c.bf16 %v179, %v178
      %v208 = vpack.c.bf16 %v181, %v180
      %v209 = vpack.c.bf16 %v183, %v182
      %v210 = vpack.c.bf16 %v185, %v184
      %v211 = vpack.c.bf16 %v187, %v186
      %v212 = vpack.c.bf16 %v189, %v188
      %v213 = vpack.c.bf16 %v191, %v190
      %v214 = vpack.c.bf16 %v193, %v192
      %v215 = vpack.c.bf16 %v195, %v194
      %v216 = vpack.c.bf16 %v197, %v196
      %v217 = vpack.c.bf16 %v199, %v198
      %v218 = vpack.c.bf16 %v201, %v200
      %v219 = vpack.c.bf16 %v203, %v202
      %v220 = vld [vmem:[%s1] sm:$0xf]
      %v221 = vld [vmem:[%s1 + $0x4] sm:$0xf]
      %v222 = vld [vmem:[%s1 + $0x8] sm:$0xf]
      %v223 = vld [vmem:[%s1 + $0xc] sm:$0xf]
      %v224 = vld [vmem:[%s1 + $0x10] sm:$0xf]
      %v225 = vld [vmem:[%s1 + $0x14] sm:$0xf]
      %v226 = vld [vmem:[%s1 + $0x18] sm:$0xf]
      %v227 = vld [vmem:[%s1 + $0x1c] sm:$0xf]
      %v228 = vld [vmem:[%s165 + $0x1] sm:$0xff]
      %v229 = vld [vmem:[%s165 + $0x9] sm:$0xff]
      %v230 = vld [vmem:[%s165 + $0x19] sm:$0xff]
      %v231 = vld [vmem:[%s165 + $0x21] sm:$0xff]
      %v232 = vld [vmem:[%s165 + $0x31] sm:$0xff]
      %v233 = vld [vmem:[%s165 + $0x39] sm:$0xff]
      %v234 = vld [vmem:[%s165 + $0x49] sm:$0xff]
      %v235 = vld [vmem:[%s165 + $0x51] sm:$0xff]
      %v236 = vld [vmem:[%s165 + $0x61] sm:$0xff]
      %v237 = vld [vmem:[%s165 + $0x69] sm:$0xff]
      %v238 = vld [vmem:[%s165 + $0x79] sm:$0xff]
      %v239 = vld [vmem:[%s165 + $0x81] sm:$0xff]
      %v240 = vld [vmem:[%s165 + $0x91] sm:$0xff]
      %v241 = vld [vmem:[%s165 + $0x99] sm:$0xff]
      %v242 = vld [vmem:[%s165 + $0xa9] sm:$0xff]
      %v243 = vld [vmem:[%s165 + $0xb1] sm:$0xff]
      %v244 = vld [vmem:[%s165 + $0xc1] sm:$0xff]
      %v245 = vld [vmem:[%s165 + $0xc9] sm:$0xff]
      %v246 = vld [vmem:[%s165 + $0xd9] sm:$0xff]
      %v247 = vld [vmem:[%s165 + $0xe1] sm:$0xff]
      %v248 = vld [vmem:[%s165 + $0xf1] sm:$0xff]
      %v249 = vld [vmem:[%s165 + $0xf9] sm:$0xff]
      %v250 = vld [vmem:[%s165 + $0x109] sm:$0xff]
      %v251 = vld [vmem:[%s165 + $0x111] sm:$0xff]
      %v252 = vld [vmem:[%s165 + $0x121] sm:$0xff]
      %v253 = vld [vmem:[%s165 + $0x129] sm:$0xff]
      %v254 = vld [vmem:[%s165 + $0x139] sm:$0xff]
      %v255 = vld [vmem:[%s165 + $0x141] sm:$0xff]
      %v256 = vld [vmem:[%s165 + $0x151] sm:$0xff]
      %v257 = vld [vmem:[%s165 + $0x159] sm:$0xff]
      %v258 = vld [vmem:[%s165 + $0x169] sm:$0xff]
      %v259 = vld [vmem:[%s165 + $0x171] sm:$0xff]
      %v260 = vpack.c.bf16 %v229, %v228
      %v261 = vpack.c.bf16 %v231, %v230
      %v262 = vpack.c.bf16 %v233, %v232
      %v263 = vpack.c.bf16 %v235, %v234
      %v264 = vpack.c.bf16 %v237, %v236
      %v265 = vpack.c.bf16 %v239, %v238
      %v266 = vpack.c.bf16 %v241, %v240
      %v267 = vpack.c.bf16 %v243, %v242
      %v268 = vpack.c.bf16 %v245, %v244
      %v269 = vpack.c.bf16 %v247, %v246
      %v270 = vpack.c.bf16 %v249, %v248
      %v271 = vpack.c.bf16 %v251, %v250
      %v272 = vpack.c.bf16 %v253, %v252
      %v273 = vpack.c.bf16 %v255, %v254
      %v274 = vpack.c.bf16 %v257, %v256
      %v275 = vpack.c.bf16 %v259, %v258
      %s276 = scalar_lea.vmem %s1, 32
      %v277 = vld [vmem:[%s276] sm:$0xf]
      %v278 = vld [vmem:[%s276 + $0x4] sm:$0xf]
      %v279 = vld [vmem:[%s276 + $0x8] sm:$0xf]
      %v280 = vld [vmem:[%s276 + $0xc] sm:$0xf]
      %v281 = vld [vmem:[%s276 + $0x10] sm:$0xf]
      %v282 = vld [vmem:[%s276 + $0x14] sm:$0xf]
      %v283 = vld [vmem:[%s276 + $0x18] sm:$0xf]
      %v284 = vld [vmem:[%s276 + $0x1c] sm:$0xf]
      %v293 = vunpack.c.l.b16 %v277
      %v294 = vunpack.c.l.b16 %v278
      %v295 = vunpack.c.l.b16 %v279
      %v296 = vunpack.c.l.b16 %v280
      %v297 = vunpack.c.l.b16 %v281
      %v298 = vunpack.c.l.b16 %v282
      %v299 = vunpack.c.l.b16 %v283
      %v300 = vunpack.c.l.b16 %v284
      %v301 = vpack.c.b16 %v294, %v293
      %v302 = vpack.c.b16 %v296, %v295
      %v303 = vpack.c.b16 %v298, %v297
      %v304 = vpack.c.b16 %v300, %v299
      %vm309 = vcmask 523264
      %v311 = vsel %vm309, %v260, 0
      %v314 = vsel %vm309, %v261, 0
      %v317 = vsel %vm309, %v262, 0
      %v320 = vsel %vm309, %v263, 0
      %v323 = vsel %vm309, %v264, 0
      %v326 = vsel %vm309, %v265, 0
      %v329 = vsel %vm309, %v266, 0
      %v332 = vsel %vm309, %v267, 0
      %v335 = vsel %vm309, %v268, 0
      %v338 = vsel %vm309, %v269, 0
      %v341 = vsel %vm309, %v270, 0
      %v344 = vsel %vm309, %v271, 0
      %v347 = vsel %vm309, %v272, 0
      %v350 = vsel %vm309, %v273, 0
      %v353 = vsel %vm309, %v274, 0
      %v356 = vsel %vm309, %v275, 0
      %358 = vmatprep.subr.bf16.mxu0 0
      %359 = vmatpush1.bf16.msra.mxu0 %v301
      %360 = vmatprep.subr.bf16.mxu0 0
      %361 = vmatpush1.bf16.msra.mxu0 %v302
      %362 = vmatprep.subr.bf16.mxu0 0
      %363 = vmatpush1.bf16.msra.mxu0 %v303
      %364 = vmatprep.subr.bf16.mxu0 0
      %365 = vmatpush1.bf16.msra.mxu0 %v304
      %366 = vmatprep.subr.bf16.mxu0 0
      %367 = vmatpush1.bf16.msra.mxu0 0
      %368 = vmatprep.subr.bf16.mxu0 0
      %369 = vmatpush1.bf16.msra.mxu0 0
      %370 = vmatprep.subr.bf16.mxu0 0
      %371 = vmatpush1.bf16.msra.mxu0 0
      %372 = vmatprep.subr.bf16.mxu0 0
      %373 = vmatpush1.bf16.msra.mxu0 0
      %374 = vmatprep.subr.bf16.mxu0 0
      %375 = vmatpush1.bf16.msra.mxu0 0
      %376 = vmatprep.subr.bf16.mxu0 0
      %377 = vmatpush1.bf16.msra.mxu0 0
      %378 = vmatprep.subr.bf16.mxu0 0
      %379 = vmatpush1.bf16.msra.mxu0 0
      %380 = vmatprep.subr.bf16.mxu0 0
      %381 = vmatpush1.bf16.msra.mxu0 0
      %382 = vmatprep.subr.bf16.mxu0 0
      %383 = vmatpush1.bf16.msra.mxu0 0
      %384 = vmatprep.subr.bf16.mxu0 0
      %385 = vmatpush1.bf16.msra.mxu0 0
      %386 = vmatprep.subr.bf16.mxu0 0
      %387 = vmatpush1.bf16.msra.mxu0 0
      %388 = vmatprep.subr.bf16.mxu0 0
      %389 = vmatpush1.bf16.msra.mxu0 0
      %390 = vmatprep.mubr.bf16.mxu0 0
      %391 = vmatmul.mubr.bf16.gmra.mrb[0].mxu0 %v311
      %v392 = vpop.f32.mrb[0].mxu0
      %v393 = vadd.f32 0.0, %v392
      %v394 = vpop.f32.mrb[0].mxu0
      %v395 = vpop.f32.mrb[0].mxu0
      %v396 = vadd.f32 0.0, %v395
      %v397 = vpop.f32.mrb[0].mxu0
      %398 = vmatprep.mubr.bf16.mxu0 0
      %399 = vmatmul.mubr.bf16.gmra.mrb[0].mxu0 %v314
      %v400 = vpop.f32.mrb[0].mxu0
      %v401 = vadd.f32 0.0, %v400
      %v402 = vpop.f32.mrb[0].mxu0
      %v403 = vpop.f32.mrb[0].mxu0
      %v404 = vadd.f32 0.0, %v403
      %v405 = vpop.f32.mrb[0].mxu0
      %406 = vmatprep.mubr.bf16.mxu0 0
      %407 = vmatmul.mubr.bf16.gmra.mrb[0].mxu0 %v317
      %v408 = vpop.f32.mrb[0].mxu0
      %v409 = vadd.f32 0.0, %v408
      %v410 = vpop.f32.mrb[0].mxu0
      %v411 = vpop.f32.mrb[0].mxu0
      %v412 = vadd.f32 0.0, %v411
      %v413 = vpop.f32.mrb[0].mxu0
      %414 = vmatprep.mubr.bf16.mxu0 0
      %415 = vmatmul.mubr.bf16.gmra.mrb[0].mxu0 %v320
      %v416 = vpop.f32.mrb[0].mxu0
      %v417 = vadd.f32 0.0, %v416
      %v418 = vpop.f32.mrb[0].mxu0
      %v419 = vpop.f32.mrb[0].mxu0
      %v420 = vadd.f32 0.0, %v419
      %v421 = vpop.f32.mrb[0].mxu0
      %422 = vmatprep.mubr.bf16.mxu0 0
      %423 = vmatmul.mubr.bf16.gmra.mrb[0].mxu0 %v323
      %v424 = vpop.f32.mrb[0].mxu0
      %v425 = vadd.f32 0.0, %v424
      %v426 = vpop.f32.mrb[0].mxu0
      %v427 = vpop.f32.mrb[0].mxu0
      %v428 = vadd.f32 0.0, %v427
      %v429 = vpop.f32.mrb[0].mxu0
      %430 = vmatprep.mubr.bf16.mxu0 0
      %431 = vmatmul.mubr.bf16.gmra.mrb[0].mxu0 %v326
      %v432 = vpop.f32.mrb[0].mxu0
      %v433 = vadd.f32 0.0, %v432
      %v434 = vpop.f32.mrb[0].mxu0
      %v435 = vpop.f32.mrb[0].mxu0
      %v436 = vadd.f32 0.0, %v435
      %v437 = vpop.f32.mrb[0].mxu0
      %438 = vmatprep.mubr.bf16.mxu0 0
      %439 = vmatmul.mubr.bf16.gmra.mrb[0].mxu0 %v329
      %v440 = vpop.f32.mrb[0].mxu0
      %v441 = vadd.f32 0.0, %v440
      %v442 = vpop.f32.mrb[0].mxu0
      %v443 = vpop.f32.mrb[0].mxu0
      %v444 = vadd.f32 0.0, %v443
      %v445 = vpop.f32.mrb[0].mxu0
      %446 = vmatprep.mubr.bf16.mxu0 0
      %447 = vmatmul.mubr.bf16.gmra.mrb[0].mxu0 %v332
      %v448 = vpop.f32.mrb[0].mxu0
      %v449 = vadd.f32 0.0, %v448
      %v450 = vpop.f32.mrb[0].mxu0
      %v451 = vpop.f32.mrb[0].mxu0
      %v452 = vadd.f32 0.0, %v451
      %v453 = vpop.f32.mrb[0].mxu0
      %454 = vmatprep.mubr.bf16.mxu0 0
      %455 = vmatmul.mubr.bf16.gmra.mrb[0].mxu0 %v335
      %v456 = vpop.f32.mrb[0].mxu0
      %v457 = vadd.f32 0.0, %v456
      %v458 = vpop.f32.mrb[0].mxu0
      %v459 = vpop.f32.mrb[0].mxu0
      %v460 = vadd.f32 0.0, %v459
      %v461 = vpop.f32.mrb[0].mxu0
      %462 = vmatprep.mubr.bf16.mxu0 0
      %463 = vmatmul.mubr.bf16.gmra.mrb[0].mxu0 %v338
      %v464 = vpop.f32.mrb[0].mxu0
      %v465 = vadd.f32 0.0, %v464
      %v466 = vpop.f32.mrb[0].mxu0
      %v467 = vpop.f32.mrb[0].mxu0
      %v468 = vadd.f32 0.0, %v467
      %v469 = vpop.f32.mrb[0].mxu0
      %470 = vmatprep.mubr.bf16.mxu0 0
      %471 = vmatmul.mubr.bf16.gmra.mrb[0].mxu0 %v341
      %v472 = vpop.f32.mrb[0].mxu0
      %v473 = vadd.f32 0.0, %v472
      %v474 = vpop.f32.mrb[0].mxu0
      %v475 = vpop.f32.mrb[0].mxu0
      %v476 = vadd.f32 0.0, %v475
      %v477 = vpop.f32.mrb[0].mxu0
      %478 = vmatprep.mubr.bf16.mxu0 0
      %479 = vmatmul.mubr.bf16.gmra.mrb[0].mxu0 %v344
      %v480 = vpop.f32.mrb[0].mxu0
      %v481 = vadd.f32 0.0, %v480
      %v482 = vpop.f32.mrb[0].mxu0
      %v483 = vpop.f32.mrb[0].mxu0
      %v484 = vadd.f32 0.0, %v483
      %v485 = vpop.f32.mrb[0].mxu0
      %486 = vmatprep.mubr.bf16.mxu0 0
      %487 = vmatmul.mubr.bf16.gmra.mrb[0].mxu0 %v347
      %v488 = vpop.f32.mrb[0].mxu0
      %v489 = vadd.f32 0.0, %v488
      %v490 = vpop.f32.mrb[0].mxu0
      %v491 = vpop.f32.mrb[0].mxu0
      %v492 = vadd.f32 0.0, %v491
      %v493 = vpop.f32.mrb[0].mxu0
      %494 = vmatprep.mubr.bf16.mxu0 0
      %495 = vmatmul.mubr.bf16.gmra.mrb[0].mxu0 %v350
      %v496 = vpop.f32.mrb[0].mxu0
      %v497 = vadd.f32 0.0, %v496
      %v498 = vpop.f32.mrb[0].mxu0
      %v499 = vpop.f32.mrb[0].mxu0
      %v500 = vadd.f32 0.0, %v499
      %v501 = vpop.f32.mrb[0].mxu0
      %502 = vmatprep.mubr.bf16.mxu0 0
      %503 = vmatmul.mubr.bf16.gmra.mrb[0].mxu0 %v353
      %v504 = vpop.f32.mrb[0].mxu0
      %v505 = vadd.f32 0.0, %v504
      %v506 = vpop.f32.mrb[0].mxu0
      %v507 = vpop.f32.mrb[0].mxu0
      %v508 = vadd.f32 0.0, %v507
      %v509 = vpop.f32.mrb[0].mxu0
      %510 = vmatprep.mubr.bf16.mxu0 0
      %511 = vmatmul.mubr.bf16.gmra.mrb[0].mxu0 %v356
      %v512 = vpop.f32.mrb[0].mxu0
      %v513 = vadd.f32 0.0, %v512
      %v514 = vpop.f32.mrb[0].mxu0
      %v515 = vpop.f32.mrb[0].mxu0
      %v516 = vadd.f32 0.0, %v515
      %v517 = vpop.f32.mrb[0].mxu0
      %518 = vdwg.mxu0
      %v527 = vunpack.c.l.b16 %v220
      %v528 = vunpack.c.l.b16 %v221
      %v529 = vunpack.c.l.b16 %v222
      %v530 = vunpack.c.l.b16 %v223
      %v531 = vunpack.c.l.b16 %v224
      %v532 = vunpack.c.l.b16 %v225
      %v533 = vunpack.c.l.b16 %v226
      %v534 = vunpack.c.l.b16 %v227
      %v535 = vpack.c.b16 %v528, %v527
      %v536 = vpack.c.b16 %v530, %v529
      %v537 = vpack.c.b16 %v532, %v531
      %v538 = vpack.c.b16 %v534, %v533
      %v544 = vsel %vm309, %v204, 0
      %v547 = vsel %vm309, %v205, 0
      %v550 = vsel %vm309, %v206, 0
      %v553 = vsel %vm309, %v207, 0
      %v556 = vsel %vm309, %v208, 0
      %v559 = vsel %vm309, %v209, 0
      %v562 = vsel %vm309, %v210, 0
      %v565 = vsel %vm309, %v211, 0
      %v568 = vsel %vm309, %v212, 0
      %v571 = vsel %vm309, %v213, 0
      %v574 = vsel %vm309, %v214, 0
      %v577 = vsel %vm309, %v215, 0
      %v580 = vsel %vm309, %v216, 0
      %v583 = vsel %vm309, %v217, 0
      %v586 = vsel %vm309, %v218, 0
      %v589 = vsel %vm309, %v219, 0
      %591 = vmatprep.subr.bf16.mxu0 0
      %592 = vmatpush1.bf16.msra.mxu0 %v535
      %593 = vmatprep.subr.bf16.mxu0 0
      %594 = vmatpush1.bf16.msra.mxu0 %v536
      %595 = vmatprep.subr.bf16.mxu0 0
      %596 = vmatpush1.bf16.msra.mxu0 %v537
      %597 = vmatprep.subr.bf16.mxu0 0
      %598 = vmatpush1.bf16.msra.mxu0 %v538
      %599 = vmatprep.subr.bf16.mxu0 0
      %600 = vmatpush1.bf16.msra.mxu0 0
      %601 = vmatprep.subr.bf16.mxu0 0
      %602 = vmatpush1.bf16.msra.mxu0 0
      %603 = vmatprep.subr.bf16.mxu0 0
      %604 = vmatpush1.bf16.msra.mxu0 0
      %605 = vmatprep.subr.bf16.mxu0 0
      %606 = vmatpush1.bf16.msra.mxu0 0
      %607 = vmatprep.subr.bf16.mxu0 0
      %608 = vmatpush1.bf16.msra.mxu0 0
      %609 = vmatprep.subr.bf16.mxu0 0
      %610 = vmatpush1.bf16.msra.mxu0 0
      %611 = vmatprep.subr.bf16.mxu0 0
      %612 = vmatpush1.bf16.msra.mxu0 0
      %613 = vmatprep.subr.bf16.mxu0 0
      %614 = vmatpush1.bf16.msra.mxu0 0
      %615 = vmatprep.subr.bf16.mxu0 0
      %616 = vmatpush1.bf16.msra.mxu0 0
      %617 = vmatprep.subr.bf16.mxu0 0
      %618 = vmatpush1.bf16.msra.mxu0 0
      %619 = vmatprep.subr.bf16.mxu0 0
      %620 = vmatpush1.bf16.msra.mxu0 0
      %621 = vmatprep.subr.bf16.mxu0 0
      %622 = vmatpush1.bf16.msra.mxu0 0
      %623 = vmatprep.mubr.bf16.mxu0 0
      %624 = vmatmul.mubr.bf16.gmra.mrb[0].mxu0 %v544
      %v625 = vpop.f32.mrb[0].mxu0
      %v626 = vadd.f32 %v393, %v625
      %v627 = vpop.f32.mrb[0].mxu0
      %v628 = vpop.f32.mrb[0].mxu0
      %v629 = vadd.f32 %v396, %v628
      %v630 = vpop.f32.mrb[0].mxu0
      %631 = vmatprep.mubr.bf16.mxu0 0
      %632 = vmatmul.mubr.bf16.gmra.mrb[0].mxu0 %v547
      %v633 = vpop.f32.mrb[0].mxu0
      %v634 = vadd.f32 %v401, %v633
      %v635 = vpop.f32.mrb[0].mxu0
      %v636 = vpop.f32.mrb[0].mxu0
      %v637 = vadd.f32 %v404, %v636
      %v638 = vpop.f32.mrb[0].mxu0
      %639 = vmatprep.mubr.bf16.mxu0 0
      %640 = vmatmul.mubr.bf16.gmra.mrb[0].mxu0 %v550
      %v641 = vpop.f32.mrb[0].mxu0
      %v642 = vadd.f32 %v409, %v641
      %v643 = vpop.f32.mrb[0].mxu0
      %v644 = vpop.f32.mrb[0].mxu0
      %v645 = vadd.f32 %v412, %v644
      %v646 = vpop.f32.mrb[0].mxu0
      %647 = vmatprep.mubr.bf16.mxu0 0
      %648 = vmatmul.mubr.bf16.gmra.mrb[0].mxu0 %v553
      %v649 = vpop.f32.mrb[0].mxu0
      %v650 = vadd.f32 %v417, %v649
      %v651 = vpop.f32.mrb[0].mxu0
      %v652 = vpop.f32.mrb[0].mxu0
      %v653 = vadd.f32 %v420, %v652
      %v654 = vpop.f32.mrb[0].mxu0
      %655 = vmatprep.mubr.bf16.mxu0 0
      %656 = vmatmul.mubr.bf16.gmra.mrb[0].mxu0 %v556
      %v657 = vpop.f32.mrb[0].mxu0
      %v658 = vadd.f32 %v425, %v657
      %v659 = vpop.f32.mrb[0].mxu0
      %v660 = vpop.f32.mrb[0].mxu0
      %v661 = vadd.f32 %v428, %v660
      %v662 = vpop.f32.mrb[0].mxu0
      %663 = vmatprep.mubr.bf16.mxu0 0
      %664 = vmatmul.mubr.bf16.gmra.mrb[0].mxu0 %v559
      %v665 = vpop.f32.mrb[0].mxu0
      %v666 = vadd.f32 %v433, %v665
      %v667 = vpop.f32.mrb[0].mxu0
      %v668 = vpop.f32.mrb[0].mxu0
      %v669 = vadd.f32 %v436, %v668
      %v670 = vpop.f32.mrb[0].mxu0
      %671 = vmatprep.mubr.bf16.mxu0 0
      %672 = vmatmul.mubr.bf16.gmra.mrb[0].mxu0 %v562
      %v673 = vpop.f32.mrb[0].mxu0
      %v674 = vadd.f32 %v441, %v673
      %v675 = vpop.f32.mrb[0].mxu0
      %v676 = vpop.f32.mrb[0].mxu0
      %v677 = vadd.f32 %v444, %v676
      %v678 = vpop.f32.mrb[0].mxu0
      %679 = vmatprep.mubr.bf16.mxu0 0
      %680 = vmatmul.mubr.bf16.gmra.mrb[0].mxu0 %v565
      %v681 = vpop.f32.mrb[0].mxu0
      %v682 = vadd.f32 %v449, %v681
      %v683 = vpop.f32.mrb[0].mxu0
      %v684 = vpop.f32.mrb[0].mxu0
      %v685 = vadd.f32 %v452, %v684
      %v686 = vpop.f32.mrb[0].mxu0
      %687 = vmatprep.mubr.bf16.mxu0 0
      %688 = vmatmul.mubr.bf16.gmra.mrb[0].mxu0 %v568
      %v689 = vpop.f32.mrb[0].mxu0
      %v690 = vadd.f32 %v457, %v689
      %v691 = vpop.f32.mrb[0].mxu0
      %v692 = vpop.f32.mrb[0].mxu0
      %v693 = vadd.f32 %v460, %v692
      %v694 = vpop.f32.mrb[0].mxu0
      %695 = vmatprep.mubr.bf16.mxu0 0
      %696 = vmatmul.mubr.bf16.gmra.mrb[0].mxu0 %v571
      %v697 = vpop.f32.mrb[0].mxu0
      %v698 = vadd.f32 %v465, %v697
      %v699 = vpop.f32.mrb[0].mxu0
      %v700 = vpop.f32.mrb[0].mxu0
      %v701 = vadd.f32 %v468, %v700
      %v702 = vpop.f32.mrb[0].mxu0
      %703 = vmatprep.mubr.bf16.mxu0 0
      %704 = vmatmul.mubr.bf16.gmra.mrb[0].mxu0 %v574
      %v705 = vpop.f32.mrb[0].mxu0
      %v706 = vadd.f32 %v473, %v705
      %v707 = vpop.f32.mrb[0].mxu0
      %v708 = vpop.f32.mrb[0].mxu0
      %v709 = vadd.f32 %v476, %v708
      %v710 = vpop.f32.mrb[0].mxu0
      %711 = vmatprep.mubr.bf16.mxu0 0
      %712 = vmatmul.mubr.bf16.gmra.mrb[0].mxu0 %v577
      %v713 = vpop.f32.mrb[0].mxu0
      %v714 = vadd.f32 %v481, %v713
      %v715 = vpop.f32.mrb[0].mxu0
      %v716 = vpop.f32.mrb[0].mxu0
      %v717 = vadd.f32 %v484, %v716
      %v718 = vpop.f32.mrb[0].mxu0
      %719 = vmatprep.mubr.bf16.mxu0 0
      %720 = vmatmul.mubr.bf16.gmra.mrb[0].mxu0 %v580
      %v721 = vpop.f32.mrb[0].mxu0
      %v722 = vadd.f32 %v489, %v721
      %v723 = vpop.f32.mrb[0].mxu0
      %v724 = vpop.f32.mrb[0].mxu0
      %v725 = vadd.f32 %v492, %v724
      %v726 = vpop.f32.mrb[0].mxu0
      %727 = vmatprep.mubr.bf16.mxu0 0
      %728 = vmatmul.mubr.bf16.gmra.mrb[0].mxu0 %v583
      %v729 = vpop.f32.mrb[0].mxu0
      %v730 = vadd.f32 %v497, %v729
      %v731 = vpop.f32.mrb[0].mxu0
      %v732 = vpop.f32.mrb[0].mxu0
      %v733 = vadd.f32 %v500, %v732
      %v734 = vpop.f32.mrb[0].mxu0
      %735 = vmatprep.mubr.bf16.mxu0 0
      %736 = vmatmul.mubr.bf16.gmra.mrb[0].mxu0 %v586
      %v737 = vpop.f32.mrb[0].mxu0
      %v738 = vadd.f32 %v505, %v737
      %v739 = vpop.f32.mrb[0].mxu0
      %v740 = vpop.f32.mrb[0].mxu0
      %v741 = vadd.f32 %v508, %v740
      %v742 = vpop.f32.mrb[0].mxu0
      %743 = vmatprep.mubr.bf16.mxu0 0
      %744 = vmatmul.mubr.bf16.gmra.mrb[0].mxu0 %v589
      %v745 = vpop.f32.mrb[0].mxu0
      %v746 = vadd.f32 %v513, %v745
      %v747 = vpop.f32.mrb[0].mxu0
      %v748 = vpop.f32.mrb[0].mxu0
      %v749 = vadd.f32 %v516, %v748
      %v750 = vpop.f32.mrb[0].mxu0
      %751 = vdwg.mxu0
      %v752 = vld [vmem:[%s165 + $0x2] sm:$0xff]
      %v753 = vld [vmem:[%s165 + $0xa] sm:$0xff]
      %v754 = vld [vmem:[%s165 + $0x1a] sm:$0xff]
      %v755 = vld [vmem:[%s165 + $0x22] sm:$0xff]
      %v756 = vld [vmem:[%s165 + $0x32] sm:$0xff]
      %v757 = vld [vmem:[%s165 + $0x3a] sm:$0xff]
      %v758 = vld [vmem:[%s165 + $0x4a] sm:$0xff]
      %v759 = vld [vmem:[%s165 + $0x52] sm:$0xff]
      %v760 = vld [vmem:[%s165 + $0x62] sm:$0xff]
      %v761 = vld [vmem:[%s165 + $0x6a] sm:$0xff]
      %v762 = vld [vmem:[%s165 + $0x7a] sm:$0xff]
      %v763 = vld [vmem:[%s165 + $0x82] sm:$0xff]
      %v764 = vld [vmem:[%s165 + $0x92] sm:$0xff]
      %v765 = vld [vmem:[%s165 + $0x9a] sm:$0xff]
      %v766 = vld [vmem:[%s165 + $0xaa] sm:$0xff]
      %v767 = vld [vmem:[%s165 + $0xb2] sm:$0xff]
      %v768 = vld [vmem:[%s165 + $0xc2] sm:$0xff]
      %v769 = vld [vmem:[%s165 + $0xca] sm:$0xff]
      %v770 = vld [vmem:[%s165 + $0xda] sm:$0xff]
      %v771 = vld [vmem:[%s165 + $0xe2] sm:$0xff]
      %v772 = vld [vmem:[%s165 + $0xf2] sm:$0xff]
      %v773 = vld [vmem:[%s165 + $0xfa] sm:$0xff]
      %v774 = vld [vmem:[%s165 + $0x10a] sm:$0xff]
      %v775 = vld [vmem:[%s165 + $0x112] sm:$0xff]
      %v776 = vld [vmem:[%s165 + $0x122] sm:$0xff]
      %v777 = vld [vmem:[%s165 + $0x12a] sm:$0xff]
      %v778 = vld [vmem:[%s165 + $0x13a] sm:$0xff]
      %v779 = vld [vmem:[%s165 + $0x142] sm:$0xff]
      %v780 = vld [vmem:[%s165 + $0x152] sm:$0xff]
      %v781 = vld [vmem:[%s165 + $0x15a] sm:$0xff]
      %v782 = vld [vmem:[%s165 + $0x16a] sm:$0xff]
      %v783 = vld [vmem:[%s165 + $0x172] sm:$0xff]
      %v784 = vpack.c.bf16 %v753, %v752
      %v785 = vpack.c.bf16 %v755, %v754
      %v786 = vpack.c.bf16 %v757, %v756
      %v787 = vpack.c.bf16 %v759, %v758
      %v788 = vpack.c.bf16 %v761, %v760
      %v789 = vpack.c.bf16 %v763, %v762
      %v790 = vpack.c.bf16 %v765, %v764
      %v791 = vpack.c.bf16 %v767, %v766
      %v792 = vpack.c.bf16 %v769, %v768
      %v793 = vpack.c.bf16 %v771, %v770
      %v794 = vpack.c.bf16 %v773, %v772
      %v795 = vpack.c.bf16 %v775, %v774
      %v796 = vpack.c.bf16 %v777, %v776
      %v797 = vpack.c.bf16 %v779, %v778
      %v798 = vpack.c.bf16 %v781, %v780
      %v799 = vpack.c.bf16 %v783, %v782
      %s800 = scalar_lea.vmem %s1, 64
      %v801 = vld [vmem:[%s800] sm:$0xf]
      %v802 = vld [vmem:[%s800 + $0x4] sm:$0xf]
      %v803 = vld [vmem:[%s800 + $0x8] sm:$0xf]
      %v804 = vld [vmem:[%s800 + $0xc] sm:$0xf]
      %v805 = vld [vmem:[%s800 + $0x10] sm:$0xf]
      %v806 = vld [vmem:[%s800 + $0x14] sm:$0xf]
      %v807 = vld [vmem:[%s800 + $0x18] sm:$0xf]
      %v808 = vld [vmem:[%s800 + $0x1c] sm:$0xf]
      %v817 = vunpack.c.l.b16 %v801
      %v818 = vunpack.c.l.b16 %v802
      %v819 = vunpack.c.l.b16 %v803
      %v820 = vunpack.c.l.b16 %v804
      %v821 = vunpack.c.l.b16 %v805
      %v822 = vunpack.c.l.b16 %v806
      %v823 = vunpack.c.l.b16 %v807
      %v824 = vunpack.c.l.b16 %v808
      %v825 = vpack.c.b16 %v818, %v817
      %v826 = vpack.c.b16 %v820, %v819
      %v827 = vpack.c.b16 %v822, %v821
      %v828 = vpack.c.b16 %v824, %v823
      %v834 = vsel %vm309, %v784, 0
      %v837 = vsel %vm309, %v785, 0
      %v840 = vsel %vm309, %v786, 0
      %v843 = vsel %vm309, %v787, 0
      %v846 = vsel %vm309, %v788, 0
      %v849 = vsel %vm309, %v789, 0
      %v852 = vsel %vm309, %v790, 0
      %v855 = vsel %vm309, %v791, 0
      %v858 = vsel %vm309, %v792, 0
      %v861 = vsel %vm309, %v793, 0
      %v864 = vsel %vm309, %v794, 0
      %v867 = vsel %vm309, %v795, 0
      %v870 = vsel %vm309, %v796, 0
      %v873 = vsel %vm309, %v797, 0
      %v876 = vsel %vm309, %v798, 0
      %v879 = vsel %vm309, %v799, 0
      %881 = vmatprep.subr.bf16.mxu0 0
      %882 = vmatpush1.bf16.msra.mxu0 %v825
      %883 = vmatprep.subr.bf16.mxu0 0
      %884 = vmatpush1.bf16.msra.mxu0 %v826
      %885 = vmatprep.subr.bf16.mxu0 0
      %886 = vmatpush1.bf16.msra.mxu0 %v827
      %887 = vmatprep.subr.bf16.mxu0 0
      %888 = vmatpush1.bf16.msra.mxu0 %v828
      %889 = vmatprep.subr.bf16.mxu0 0
      %890 = vmatpush1.bf16.msra.mxu0 0
      %891 = vmatprep.subr.bf16.mxu0 0
      %892 = vmatpush1.bf16.msra.mxu0 0
      %893 = vmatprep.subr.bf16.mxu0 0
      %894 = vmatpush1.bf16.msra.mxu0 0
      %895 = vmatprep.subr.bf16.mxu0 0
      %896 = vmatpush1.bf16.msra.mxu0 0
      %897 = vmatprep.subr.bf16.mxu0 0
      %898 = vmatpush1.bf16.msra.mxu0 0
      %899 = vmatprep.subr.bf16.mxu0 0
      %900 = vmatpush1.bf16.msra.mxu0 0
      %901 = vmatprep.subr.bf16.mxu0 0
      %902 = vmatpush1.bf16.msra.mxu0 0
      %903 = vmatprep.subr.bf16.mxu0 0
      %904 = vmatpush1.bf16.msra.mxu0 0
      %905 = vmatprep.subr.bf16.mxu0 0
      %906 = vmatpush1.bf16.msra.mxu0 0
      %907 = vmatprep.subr.bf16.mxu0 0
      %908 = vmatpush1.bf16.msra.mxu0 0
      %909 = vmatprep.subr.bf16.mxu0 0
      %910 = vmatpush1.bf16.msra.mxu0 0
      %911 = vmatprep.subr.bf16.mxu0 0
      %912 = vmatpush1.bf16.msra.mxu0 0
      %913 = vmatprep.mubr.bf16.mxu0 0
      %914 = vmatmul.mubr.bf16.gmra.mrb[0].mxu0 %v834
      %v915 = vpop.f32.mrb[0].mxu0
      %v916 = vadd.f32 0.0, %v915
      %v917 = vpop.f32.mrb[0].mxu0
      %v918 = vpop.f32.mrb[0].mxu0
      %v919 = vadd.f32 0.0, %v918
      %v920 = vpop.f32.mrb[0].mxu0
      %921 = vmatprep.mubr.bf16.mxu0 0
      %922 = vmatmul.mubr.bf16.gmra.mrb[0].mxu0 %v837
      %v923 = vpop.f32.mrb[0].mxu0
      %v924 = vadd.f32 0.0, %v923
      %v925 = vpop.f32.mrb[0].mxu0
      %v926 = vpop.f32.mrb[0].mxu0
      %v927 = vadd.f32 0.0, %v926
      %v928 = vpop.f32.mrb[0].mxu0
      %929 = vmatprep.mubr.bf16.mxu0 0
      %930 = vmatmul.mubr.bf16.gmra.mrb[0].mxu0 %v840
      %v931 = vpop.f32.mrb[0].mxu0
      %v932 = vadd.f32 0.0, %v931
      %v933 = vpop.f32.mrb[0].mxu0
      %v934 = vpop.f32.mrb[0].mxu0
      %v935 = vadd.f32 0.0, %v934
      %v936 = vpop.f32.mrb[0].mxu0
      %937 = vmatprep.mubr.bf16.mxu0 0
      %938 = vmatmul.mubr.bf16.gmra.mrb[0].mxu0 %v843
      %v939 = vpop.f32.mrb[0].mxu0
      %v940 = vadd.f32 0.0, %v939
      %v941 = vpop.f32.mrb[0].mxu0
      %v942 = vpop.f32.mrb[0].mxu0
      %v943 = vadd.f32 0.0, %v942
      %v944 = vpop.f32.mrb[0].mxu0
      %945 = vmatprep.mubr.bf16.mxu0 0
      %946 = vmatmul.mubr.bf16.gmra.mrb[0].mxu0 %v846
      %v947 = vpop.f32.mrb[0].mxu0
      %v948 = vadd.f32 0.0, %v947
      %v949 = vpop.f32.mrb[0].mxu0
      %v950 = vpop.f32.mrb[0].mxu0
      %v951 = vadd.f32 0.0, %v950
      %v952 = vpop.f32.mrb[0].mxu0
      %953 = vmatprep.mubr.bf16.mxu0 0
      %954 = vmatmul.mubr.bf16.gmra.mrb[0].mxu0 %v849
      %v955 = vpop.f32.mrb[0].mxu0
      %v956 = vadd.f32 0.0, %v955
      %v957 = vpop.f32.mrb[0].mxu0
      %v958 = vpop.f32.mrb[0].mxu0
      %v959 = vadd.f32 0.0, %v958
      %v960 = vpop.f32.mrb[0].mxu0
      %961 = vmatprep.mubr.bf16.mxu0 0
      %962 = vmatmul.mubr.bf16.gmra.mrb[0].mxu0 %v852
      %v963 = vpop.f32.mrb[0].mxu0
      %v964 = vadd.f32 0.0, %v963
      %v965 = vpop.f32.mrb[0].mxu0
      %v966 = vpop.f32.mrb[0].mxu0
      %v967 = vadd.f32 0.0, %v966
      %v968 = vpop.f32.mrb[0].mxu0
      %969 = vmatprep.mubr.bf16.mxu0 0
      %970 = vmatmul.mubr.bf16.gmra.mrb[0].mxu0 %v855
      %v971 = vpop.f32.mrb[0].mxu0
      %v972 = vadd.f32 0.0, %v971
      %v973 = vpop.f32.mrb[0].mxu0
      %v974 = vpop.f32.mrb[0].mxu0
      %v975 = vadd.f32 0.0, %v974
      %v976 = vpop.f32.mrb[0].mxu0
      %977 = vmatprep.mubr.bf16.mxu0 0
      %978 = vmatmul.mubr.bf16.gmra.mrb[0].mxu0 %v858
      %v979 = vpop.f32.mrb[0].mxu0
      %v980 = vadd.f32 0.0, %v979
      %v981 = vpop.f32.mrb[0].mxu0
      %v982 = vpop.f32.mrb[0].mxu0
      %v983 = vadd.f32 0.0, %v982
      %v984 = vpop.f32.mrb[0].mxu0
      %985 = vmatprep.mubr.bf16.mxu0 0
      %986 = vmatmul.mubr.bf16.gmra.mrb[0].mxu0 %v861
      %v987 = vpop.f32.mrb[0].mxu0
      %v988 = vadd.f32 0.0, %v987
      %v989 = vpop.f32.mrb[0].mxu0
      %v990 = vpop.f32.mrb[0].mxu0
      %v991 = vadd.f32 0.0, %v990
      %v992 = vpop.f32.mrb[0].mxu0
      %993 = vmatprep.mubr.bf16.mxu0 0
      %994 = vmatmul.mubr.bf16.gmra.mrb[0].mxu0 %v864
      %v995 = vpop.f32.mrb[0].mxu0
      %v996 = vadd.f32 0.0, %v995
      %v997 = vpop.f32.mrb[0].mxu0
      %v998 = vpop.f32.mrb[0].mxu0
      %v999 = vadd.f32 0.0, %v998
      %v1000 = vpop.f32.mrb[0].mxu0
      %1001 = vmatprep.mubr.bf16.mxu0 0
      %1002 = vmatmul.mubr.bf16.gmra.mrb[0].mxu0 %v867
      %v1003 = vpop.f32.mrb[0].mxu0
      %v1004 = vadd.f32 0.0, %v1003
      %v1005 = vpop.f32.mrb[0].mxu0
      %v1006 = vpop.f32.mrb[0].mxu0
      %v1007 = vadd.f32 0.0, %v1006
      %v1008 = vpop.f32.mrb[0].mxu0
      %1009 = vmatprep.mubr.bf16.mxu0 0
      %1010 = vmatmul.mubr.bf16.gmra.mrb[0].mxu0 %v870
      %v1011 = vpop.f32.mrb[0].mxu0
      %v1012 = vadd.f32 0.0, %v1011
      %v1013 = vpop.f32.mrb[0].mxu0
      %v1014 = vpop.f32.mrb[0].mxu0
      %v1015 = vadd.f32 0.0, %v1014
      %v1016 = vpop.f32.mrb[0].mxu0
      %1017 = vmatprep.mubr.bf16.mxu0 0
      %1018 = vmatmul.mubr.bf16.gmra.mrb[0].mxu0 %v873
      %v1019 = vpop.f32.mrb[0].mxu0
      %v1020 = vadd.f32 0.0, %v1019
      %v1021 = vpop.f32.mrb[0].mxu0
      %v1022 = vpop.f32.mrb[0].mxu0
      %v1023 = vadd.f32 0.0, %v1022
      %v1024 = vpop.f32.mrb[0].mxu0
      %1025 = vmatprep.mubr.bf16.mxu0 0
      %1026 = vmatmul.mubr.bf16.gmra.mrb[0].mxu0 %v876
      %v1027 = vpop.f32.mrb[0].mxu0
      %v1028 = vadd.f32 0.0, %v1027
      %v1029 = vpop.f32.mrb[0].mxu0
      %v1030 = vpop.f32.mrb[0].mxu0
      %v1031 = vadd.f32 0.0, %v1030
      %v1032 = vpop.f32.mrb[0].mxu0
      %1033 = vmatprep.mubr.bf16.mxu0 0
      %1034 = vmatmul.mubr.bf16.gmra.mrb[0].mxu0 %v879
      %v1035 = vpop.f32.mrb[0].mxu0
      %v1036 = vadd.f32 0.0, %v1035
      %v1037 = vpop.f32.mrb[0].mxu0
      %v1038 = vpop.f32.mrb[0].mxu0
      %v1039 = vadd.f32 0.0, %v1038
      %v1040 = vpop.f32.mrb[0].mxu0
      %1041 = vdwg.mxu0
      %v1042 = vadd.f32 %v626, %v916
      %v1043 = vadd.f32 %v629, %v919
      %v1044 = vadd.f32 %v634, %v924
      %v1045 = vadd.f32 %v637, %v927
      %v1046 = vadd.f32 %v642, %v932
      %v1047 = vadd.f32 %v645, %v935
      %v1048 = vadd.f32 %v650, %v940
      %v1049 = vadd.f32 %v653, %v943
      %v1050 = vadd.f32 %v658, %v948
      %v1051 = vadd.f32 %v661, %v951
      %v1052 = vadd.f32 %v666, %v956
      %v1053 = vadd.f32 %v669, %v959
      %v1054 = vadd.f32 %v674, %v964
      %v1055 = vadd.f32 %v677, %v967
      %v1056 = vadd.f32 %v682, %v972
      %v1057 = vadd.f32 %v685, %v975
      %v1058 = vadd.f32 %v690, %v980
      %v1059 = vadd.f32 %v693, %v983
      %v1060 = vadd.f32 %v698, %v988
      %v1061 = vadd.f32 %v701, %v991
      %v1062 = vadd.f32 %v706, %v996
      %v1063 = vadd.f32 %v709, %v999
      %v1064 = vadd.f32 %v714, %v1004
      %v1065 = vadd.f32 %v717, %v1007
      %v1066 = vadd.f32 %v722, %v1012
      %v1067 = vadd.f32 %v725, %v1015
      %v1068 = vadd.f32 %v730, %v1020
      %v1069 = vadd.f32 %v733, %v1023
      %v1070 = vadd.f32 %v738, %v1028
      %v1071 = vadd.f32 %v741, %v1031
      %v1072 = vadd.f32 %v746, %v1036
      %v1073 = vadd.f32 %v749, %v1039
      %s1074 = scalar_lea.vmem %s165, 24
      %v1075 = vld [vmem:[%s1074] sm:$0xff]
      %v1076 = vld [vmem:[%s1074 + $0x8] sm:$0xff]
      %v1077 = vld [vmem:[%s1074 + $0x18] sm:$0xff]
      %v1078 = vld [vmem:[%s1074 + $0x20] sm:$0xff]
      %v1079 = vld [vmem:[%s1074 + $0x30] sm:$0xff]
      %v1080 = vld [vmem:[%s1074 + $0x38] sm:$0xff]
      %v1081 = vld [vmem:[%s1074 + $0x48] sm:$0xff]
      %v1082 = vld [vmem:[%s1074 + $0x50] sm:$0xff]
      %v1083 = vld [vmem:[%s1074 + $0x60] sm:$0xff]
      %v1084 = vld [vmem:[%s1074 + $0x68] sm:$0xff]
      %v1085 = vld [vmem:[%s1074 + $0x78] sm:$0xff]
      %v1086 = vld [vmem:[%s1074 + $0x80] sm:$0xff]
      %v1087 = vld [vmem:[%s1074 + $0x90] sm:$0xff]
      %v1088 = vld [vmem:[%s1074 + $0x98] sm:$0xff]
      %v1089 = vld [vmem:[%s1074 + $0xa8] sm:$0xff]
      %v1090 = vld [vmem:[%s1074 + $0xb0] sm:$0xff]
      %v1091 = vld [vmem:[%s1074 + $0xc0] sm:$0xff]
      %v1092 = vld [vmem:[%s1074 + $0xc8] sm:$0xff]
      %v1093 = vld [vmem:[%s1074 + $0xd8] sm:$0xff]
      %v1094 = vld [vmem:[%s1074 + $0xe0] sm:$0xff]
      %v1095 = vld [vmem:[%s1074 + $0xf0] sm:$0xff]
      %v1096 = vld [vmem:[%s1074 + $0xf8] sm:$0xff]
      %v1097 = vld [vmem:[%s1074 + $0x108] sm:$0xff]
      %v1098 = vld [vmem:[%s1074 + $0x110] sm:$0xff]
      %v1099 = vld [vmem:[%s1074 + $0x120] sm:$0xff]
      %v1100 = vld [vmem:[%s1074 + $0x128] sm:$0xff]
      %v1101 = vld [vmem:[%s1074 + $0x138] sm:$0xff]
      %v1102 = vld [vmem:[%s1074 + $0x140] sm:$0xff]
      %v1103 = vld [vmem:[%s1074 + $0x150] sm:$0xff]
      %v1104 = vld [vmem:[%s1074 + $0x158] sm:$0xff]
      %v1105 = vld [vmem:[%s1074 + $0x168] sm:$0xff]
      %v1106 = vld [vmem:[%s1074 + $0x170] sm:$0xff]
      %v1107 = vpack.c.bf16 %v1076, %v1075
      %v1108 = vpack.c.bf16 %v1078, %v1077
      %v1109 = vpack.c.bf16 %v1080, %v1079
      %v1110 = vpack.c.bf16 %v1082, %v1081
      %v1111 = vpack.c.bf16 %v1084, %v1083
      %v1112 = vpack.c.bf16 %v1086, %v1085
      %v1113 = vpack.c.bf16 %v1088, %v1087
      %v1114 = vpack.c.bf16 %v1090, %v1089
      %v1115 = vpack.c.bf16 %v1092, %v1091
      %v1116 = vpack.c.bf16 %v1094, %v1093
      %v1117 = vpack.c.bf16 %v1096, %v1095
      %v1118 = vpack.c.bf16 %v1098, %v1097
      %v1119 = vpack.c.bf16 %v1100, %v1099
      %v1120 = vpack.c.bf16 %v1102, %v1101
      %v1121 = vpack.c.bf16 %v1104, %v1103
      %v1122 = vpack.c.bf16 %v1106, %v1105
      %s1123 = scalar_lea.vmem %s1, 96
      %v1124 = vld [vmem:[%s1123] sm:$0xf]
      %v1125 = vld [vmem:[%s1123 + $0x4] sm:$0xf]
      %v1126 = vld [vmem:[%s1123 + $0x8] sm:$0xf]
      %v1127 = vld [vmem:[%s1123 + $0xc] sm:$0xf]
      %v1128 = vld [vmem:[%s1123 + $0x10] sm:$0xf]
      %v1129 = vld [vmem:[%s1123 + $0x14] sm:$0xf]
      %v1130 = vld [vmem:[%s1123 + $0x18] sm:$0xf]
      %v1131 = vld [vmem:[%s1123 + $0x1c] sm:$0xf]
      %v1140 = vunpack.c.l.b16 %v1124
      %v1141 = vunpack.c.l.b16 %v1125
      %v1142 = vunpack.c.l.b16 %v1126
      %v1143 = vunpack.c.l.b16 %v1127
      %v1144 = vunpack.c.l.b16 %v1128
      %v1145 = vunpack.c.l.b16 %v1129
      %v1146 = vunpack.c.l.b16 %v1130
      %v1147 = vunpack.c.l.b16 %v1131
      %v1148 = vpack.c.b16 %v1141, %v1140
      %v1149 = vpack.c.b16 %v1143, %v1142
      %v1150 = vpack.c.b16 %v1145, %v1144
      %v1151 = vpack.c.b16 %v1147, %v1146
      %v1157 = vsel %vm309, %v1107, 0
      %v1160 = vsel %vm309, %v1108, 0
      %v1163 = vsel %vm309, %v1109, 0
      %v1166 = vsel %vm309, %v1110, 0
      %v1169 = vsel %vm309, %v1111, 0
      %v1172 = vsel %vm309, %v1112, 0
      %v1175 = vsel %vm309, %v1113, 0
      %v1178 = vsel %vm309, %v1114, 0
      %v1181 = vsel %vm309, %v1115, 0
      %v1184 = vsel %vm309, %v1116, 0
      %v1187 = vsel %vm309, %v1117, 0
      %v1190 = vsel %vm309, %v1118, 0
      %v1193 = vsel %vm309, %v1119, 0
      %v1196 = vsel %vm309, %v1120, 0
      %v1199 = vsel %vm309, %v1121, 0
      %v1202 = vsel %vm309, %v1122, 0
      %1204 = vmatprep.subr.bf16.mxu0 0
      %1205 = vmatpush1.bf16.msra.mxu0 %v1148
      %1206 = vmatprep.subr.bf16.mxu0 0
      %1207 = vmatpush1.bf16.msra.mxu0 %v1149
      %1208 = vmatprep.subr.bf16.mxu0 0
      %1209 = vmatpush1.bf16.msra.mxu0 %v1150
      %1210 = vmatprep.subr.bf16.mxu0 0
      %1211 = vmatpush1.bf16.msra.mxu0 %v1151
      %1212 = vmatprep.subr.bf16.mxu0 0
      %1213 = vmatpush1.bf16.msra.mxu0 0
      %1214 = vmatprep.subr.bf16.mxu0 0
      %1215 = vmatpush1.bf16.msra.mxu0 0
      %1216 = vmatprep.subr.bf16.mxu0 0
      %1217 = vmatpush1.bf16.msra.mxu0 0
      %1218 = vmatprep.subr.bf16.mxu0 0
      %1219 = vmatpush1.bf16.msra.mxu0 0
      %1220 = vmatprep.subr.bf16.mxu0 0
      %1221 = vmatpush1.bf16.msra.mxu0 0
      %1222 = vmatprep.subr.bf16.mxu0 0
      %1223 = vmatpush1.bf16.msra.mxu0 0
      %1224 = vmatprep.subr.bf16.mxu0 0
      %1225 = vmatpush1.bf16.msra.mxu0 0
      %1226 = vmatprep.subr.bf16.mxu0 0
      %1227 = vmatpush1.bf16.msra.mxu0 0
      %1228 = vmatprep.subr.bf16.mxu0 0
      %1229 = vmatpush1.bf16.msra.mxu0 0
      %1230 = vmatprep.subr.bf16.mxu0 0
      %1231 = vmatpush1.bf16.msra.mxu0 0
      %1232 = vmatprep.subr.bf16.mxu0 0
      %1233 = vmatpush1.bf16.msra.mxu0 0
      %1234 = vmatprep.subr.bf16.mxu0 0
      %1235 = vmatpush1.bf16.msra.mxu0 0
      %1236 = vmatprep.mubr.bf16.mxu0 0
      %1237 = vmatmul.mubr.bf16.gmra.mrb[0].mxu0 %v1157
      %v1238 = vpop.f32.mrb[0].mxu0
      %v1239 = vadd.f32 0.0, %v1238
      %v1240 = vpop.f32.mrb[0].mxu0
      %v1241 = vpop.f32.mrb[0].mxu0
      %v1242 = vadd.f32 0.0, %v1241
      %v1243 = vpop.f32.mrb[0].mxu0
      %1244 = vmatprep.mubr.bf16.mxu0 0
      %1245 = vmatmul.mubr.bf16.gmra.mrb[0].mxu0 %v1160
      %v1246 = vpop.f32.mrb[0].mxu0
      %v1247 = vadd.f32 0.0, %v1246
      %v1248 = vpop.f32.mrb[0].mxu0
      %v1249 = vpop.f32.mrb[0].mxu0
      %v1250 = vadd.f32 0.0, %v1249
      %v1251 = vpop.f32.mrb[0].mxu0
      %1252 = vmatprep.mubr.bf16.mxu0 0
      %1253 = vmatmul.mubr.bf16.gmra.mrb[0].mxu0 %v1163
      %v1254 = vpop.f32.mrb[0].mxu0
      %v1255 = vadd.f32 0.0, %v1254
      %v1256 = vpop.f32.mrb[0].mxu0
      %v1257 = vpop.f32.mrb[0].mxu0
      %v1258 = vadd.f32 0.0, %v1257
      %v1259 = vpop.f32.mrb[0].mxu0
      %1260 = vmatprep.mubr.bf16.mxu0 0
      %1261 = vmatmul.mubr.bf16.gmra.mrb[0].mxu0 %v1166
      %v1262 = vpop.f32.mrb[0].mxu0
      %v1263 = vadd.f32 0.0, %v1262
      %v1264 = vpop.f32.mrb[0].mxu0
      %v1265 = vpop.f32.mrb[0].mxu0
      %v1266 = vadd.f32 0.0, %v1265
      %v1267 = vpop.f32.mrb[0].mxu0
      %1268 = vmatprep.mubr.bf16.mxu0 0
      %1269 = vmatmul.mubr.bf16.gmra.mrb[0].mxu0 %v1169
      %v1270 = vpop.f32.mrb[0].mxu0
      %v1271 = vadd.f32 0.0, %v1270
      %v1272 = vpop.f32.mrb[0].mxu0
      %v1273 = vpop.f32.mrb[0].mxu0
      %v1274 = vadd.f32 0.0, %v1273
      %v1275 = vpop.f32.mrb[0].mxu0
      %1276 = vmatprep.mubr.bf16.mxu0 0
      %1277 = vmatmul.mubr.bf16.gmra.mrb[0].mxu0 %v1172
      %v1278 = vpop.f32.mrb[0].mxu0
      %v1279 = vadd.f32 0.0, %v1278
      %v1280 = vpop.f32.mrb[0].mxu0
      %v1281 = vpop.f32.mrb[0].mxu0
      %v1282 = vadd.f32 0.0, %v1281
      %v1283 = vpop.f32.mrb[0].mxu0
      %1284 = vmatprep.mubr.bf16.mxu0 0
      %1285 = vmatmul.mubr.bf16.gmra.mrb[0].mxu0 %v1175
      %v1286 = vpop.f32.mrb[0].mxu0
      %v1287 = vadd.f32 0.0, %v1286
      %v1288 = vpop.f32.mrb[0].mxu0
      %v1289 = vpop.f32.mrb[0].mxu0
      %v1290 = vadd.f32 0.0, %v1289
      %v1291 = vpop.f32.mrb[0].mxu0
      %1292 = vmatprep.mubr.bf16.mxu0 0
      %1293 = vmatmul.mubr.bf16.gmra.mrb[0].mxu0 %v1178
      %v1294 = vpop.f32.mrb[0].mxu0
      %v1295 = vadd.f32 0.0, %v1294
      %v1296 = vpop.f32.mrb[0].mxu0
      %v1297 = vpop.f32.mrb[0].mxu0
      %v1298 = vadd.f32 0.0, %v1297
      %v1299 = vpop.f32.mrb[0].mxu0
      %1300 = vmatprep.mubr.bf16.mxu0 0
      %1301 = vmatmul.mubr.bf16.gmra.mrb[0].mxu0 %v1181
      %v1302 = vpop.f32.mrb[0].mxu0
      %v1303 = vadd.f32 0.0, %v1302
      %v1304 = vpop.f32.mrb[0].mxu0
      %v1305 = vpop.f32.mrb[0].mxu0
      %v1306 = vadd.f32 0.0, %v1305
      %v1307 = vpop.f32.mrb[0].mxu0
      %1308 = vmatprep.mubr.bf16.mxu0 0
      %1309 = vmatmul.mubr.bf16.gmra.mrb[0].mxu0 %v1184
      %v1310 = vpop.f32.mrb[0].mxu0
      %v1311 = vadd.f32 0.0, %v1310
      %v1312 = vpop.f32.mrb[0].mxu0
      %v1313 = vpop.f32.mrb[0].mxu0
      %v1314 = vadd.f32 0.0, %v1313
      %v1315 = vpop.f32.mrb[0].mxu0
      %1316 = vmatprep.mubr.bf16.mxu0 0
      %1317 = vmatmul.mubr.bf16.gmra.mrb[0].mxu0 %v1187
      %v1318 = vpop.f32.mrb[0].mxu0
      %v1319 = vadd.f32 0.0, %v1318
      %v1320 = vpop.f32.mrb[0].mxu0
      %v1321 = vpop.f32.mrb[0].mxu0
      %v1322 = vadd.f32 0.0, %v1321
      %v1323 = vpop.f32.mrb[0].mxu0
      %1324 = vmatprep.mubr.bf16.mxu0 0
      %1325 = vmatmul.mubr.bf16.gmra.mrb[0].mxu0 %v1190
      %v1326 = vpop.f32.mrb[0].mxu0
      %v1327 = vadd.f32 0.0, %v1326
      %v1328 = vpop.f32.mrb[0].mxu0
      %v1329 = vpop.f32.mrb[0].mxu0
      %v1330 = vadd.f32 0.0, %v1329
      %v1331 = vpop.f32.mrb[0].mxu0
      %1332 = vmatprep.mubr.bf16.mxu0 0
      %1333 = vmatmul.mubr.bf16.gmra.mrb[0].mxu0 %v1193
      %v1334 = vpop.f32.mrb[0].mxu0
      %v1335 = vadd.f32 0.0, %v1334
      %v1336 = vpop.f32.mrb[0].mxu0
      %v1337 = vpop.f32.mrb[0].mxu0
      %v1338 = vadd.f32 0.0, %v1337
      %v1339 = vpop.f32.mrb[0].mxu0
      %1340 = vmatprep.mubr.bf16.mxu0 0
      %1341 = vmatmul.mubr.bf16.gmra.mrb[0].mxu0 %v1196
      %v1342 = vpop.f32.mrb[0].mxu0
      %v1343 = vadd.f32 0.0, %v1342
      %v1344 = vpop.f32.mrb[0].mxu0
      %v1345 = vpop.f32.mrb[0].mxu0
      %v1346 = vadd.f32 0.0, %v1345
      %v1347 = vpop.f32.mrb[0].mxu0
      %1348 = vmatprep.mubr.bf16.mxu0 0
      %1349 = vmatmul.mubr.bf16.gmra.mrb[0].mxu0 %v1199
      %v1350 = vpop.f32.mrb[0].mxu0
      %v1351 = vadd.f32 0.0, %v1350
      %v1352 = vpop.f32.mrb[0].mxu0
      %v1353 = vpop.f32.mrb[0].mxu0
      %v1354 = vadd.f32 0.0, %v1353
      %v1355 = vpop.f32.mrb[0].mxu0
      %1356 = vmatprep.mubr.bf16.mxu0 0
      %1357 = vmatmul.mubr.bf16.gmra.mrb[0].mxu0 %v1202
      %v1358 = vpop.f32.mrb[0].mxu0
      %v1359 = vadd.f32 0.0, %v1358
      %v1360 = vpop.f32.mrb[0].mxu0
      %v1361 = vpop.f32.mrb[0].mxu0
      %v1362 = vadd.f32 0.0, %v1361
      %v1363 = vpop.f32.mrb[0].mxu0
      %1364 = vdwg.mxu0
      %v1365 = vadd.f32 %v1042, %v1239
      %v1366 = vadd.f32 %v1043, %v1242
      %v1367 = vadd.f32 %v1044, %v1247
      %v1368 = vadd.f32 %v1045, %v1250
      %v1369 = vadd.f32 %v1046, %v1255
      %v1370 = vadd.f32 %v1047, %v1258
      %v1371 = vadd.f32 %v1048, %v1263
      %v1372 = vadd.f32 %v1049, %v1266
      %v1373 = vadd.f32 %v1050, %v1271
      %v1374 = vadd.f32 %v1051, %v1274
      %v1375 = vadd.f32 %v1052, %v1279
      %v1376 = vadd.f32 %v1053, %v1282
      %v1377 = vadd.f32 %v1054, %v1287
      %v1378 = vadd.f32 %v1055, %v1290
      %v1379 = vadd.f32 %v1056, %v1295
      %v1380 = vadd.f32 %v1057, %v1298
      %v1381 = vadd.f32 %v1058, %v1303
      %v1382 = vadd.f32 %v1059, %v1306
      %v1383 = vadd.f32 %v1060, %v1311
      %v1384 = vadd.f32 %v1061, %v1314
      %v1385 = vadd.f32 %v1062, %v1319
      %v1386 = vadd.f32 %v1063, %v1322
      %v1387 = vadd.f32 %v1064, %v1327
      %v1388 = vadd.f32 %v1065, %v1330
      %v1389 = vadd.f32 %v1066, %v1335
      %v1390 = vadd.f32 %v1067, %v1338
      %v1391 = vadd.f32 %v1068, %v1343
      %v1392 = vadd.f32 %v1069, %v1346
      %v1393 = vadd.f32 %v1070, %v1351
      %v1394 = vadd.f32 %v1071, %v1354
      %v1395 = vadd.f32 %v1072, %v1359
      %v1396 = vadd.f32 %v1073, %v1362
      %v1397 = vld [vmem:[%s1074 + $0x1] sm:$0xff]
      %v1398 = vld [vmem:[%s1074 + $0x9] sm:$0xff]
      %v1399 = vld [vmem:[%s1074 + $0x19] sm:$0xff]
      %v1400 = vld [vmem:[%s1074 + $0x21] sm:$0xff]
      %v1401 = vld [vmem:[%s1074 + $0x31] sm:$0xff]
      %v1402 = vld [vmem:[%s1074 + $0x39] sm:$0xff]
      %v1403 = vld [vmem:[%s1074 + $0x49] sm:$0xff]
      %v1404 = vld [vmem:[%s1074 + $0x51] sm:$0xff]
      %v1405 = vld [vmem:[%s1074 + $0x61] sm:$0xff]
      %v1406 = vld [vmem:[%s1074 + $0x69] sm:$0xff]
      %v1407 = vld [vmem:[%s1074 + $0x79] sm:$0xff]
      %v1408 = vld [vmem:[%s1074 + $0x81] sm:$0xff]
      %v1409 = vld [vmem:[%s1074 + $0x91] sm:$0xff]
      %v1410 = vld [vmem:[%s1074 + $0x99] sm:$0xff]
      %v1411 = vld [vmem:[%s1074 + $0xa9] sm:$0xff]
      %v1412 = vld [vmem:[%s1074 + $0xb1] sm:$0xff]
      %v1413 = vld [vmem:[%s1074 + $0xc1] sm:$0xff]
      %v1414 = vld [vmem:[%s1074 + $0xc9] sm:$0xff]
      %v1415 = vld [vmem:[%s1074 + $0xd9] sm:$0xff]
      %v1416 = vld [vmem:[%s1074 + $0xe1] sm:$0xff]
      %v1417 = vld [vmem:[%s1074 + $0xf1] sm:$0xff]
      %v1418 = vld [vmem:[%s1074 + $0xf9] sm:$0xff]
      %v1419 = vld [vmem:[%s1074 + $0x109] sm:$0xff]
      %v1420 = vld [vmem:[%s1074 + $0x111] sm:$0xff]
      %v1421 = vld [vmem:[%s1074 + $0x121] sm:$0xff]
      %v1422 = vld [vmem:[%s1074 + $0x129] sm:$0xff]
      %v1423 = vld [vmem:[%s1074 + $0x139] sm:$0xff]
      %v1424 = vld [vmem:[%s1074 + $0x141] sm:$0xff]
      %v1425 = vld [vmem:[%s1074 + $0x151] sm:$0xff]
      %v1426 = vld [vmem:[%s1074 + $0x159] sm:$0xff]
      %v1427 = vld [vmem:[%s1074 + $0x169] sm:$0xff]
      %v1428 = vld [vmem:[%s1074 + $0x171] sm:$0xff]
      %v1429 = vpack.c.bf16 %v1398, %v1397
      %v1430 = vpack.c.bf16 %v1400, %v1399
      %v1431 = vpack.c.bf16 %v1402, %v1401
      %v1432 = vpack.c.bf16 %v1404, %v1403
      %v1433 = vpack.c.bf16 %v1406, %v1405
      %v1434 = vpack.c.bf16 %v1408, %v1407
      %v1435 = vpack.c.bf16 %v1410, %v1409
      %v1436 = vpack.c.bf16 %v1412, %v1411
      %v1437 = vpack.c.bf16 %v1414, %v1413
      %v1438 = vpack.c.bf16 %v1416, %v1415
      %v1439 = vpack.c.bf16 %v1418, %v1417
      %v1440 = vpack.c.bf16 %v1420, %v1419
      %v1441 = vpack.c.bf16 %v1422, %v1421
      %v1442 = vpack.c.bf16 %v1424, %v1423
      %v1443 = vpack.c.bf16 %v1426, %v1425
      %v1444 = vpack.c.bf16 %v1428, %v1427
      %s1445 = scalar_lea.vmem %s1, 128
      %v1446 = vld [vmem:[%s1445] sm:$0xf]
      %v1447 = vld [vmem:[%s1445 + $0x4] sm:$0xf]
      %v1448 = vld [vmem:[%s1445 + $0x8] sm:$0xf]
      %v1449 = vld [vmem:[%s1445 + $0xc] sm:$0xf]
      %v1450 = vld [vmem:[%s1445 + $0x10] sm:$0xf]
      %v1451 = vld [vmem:[%s1445 + $0x14] sm:$0xf]
      %v1452 = vld [vmem:[%s1445 + $0x18] sm:$0xf]
      %v1453 = vld [vmem:[%s1445 + $0x1c] sm:$0xf]
      %v1462 = vunpack.c.l.b16 %v1446
      %v1463 = vunpack.c.l.b16 %v1447
      %v1464 = vunpack.c.l.b16 %v1448
      %v1465 = vunpack.c.l.b16 %v1449
      %v1466 = vunpack.c.l.b16 %v1450
      %v1467 = vunpack.c.l.b16 %v1451
      %v1468 = vunpack.c.l.b16 %v1452
      %v1469 = vunpack.c.l.b16 %v1453
      %v1470 = vpack.c.b16 %v1463, %v1462
      %v1471 = vpack.c.b16 %v1465, %v1464
      %v1472 = vpack.c.b16 %v1467, %v1466
      %v1473 = vpack.c.b16 %v1469, %v1468
      %v1479 = vsel %vm309, %v1429, 0
      %v1482 = vsel %vm309, %v1430, 0
      %v1485 = vsel %vm309, %v1431, 0
      %v1488 = vsel %vm309, %v1432, 0
      %v1491 = vsel %vm309, %v1433, 0
      %v1494 = vsel %vm309, %v1434, 0
      %v1497 = vsel %vm309, %v1435, 0
      %v1500 = vsel %vm309, %v1436, 0
      %v1503 = vsel %vm309, %v1437, 0
      %v1506 = vsel %vm309, %v1438, 0
      %v1509 = vsel %vm309, %v1439, 0
      %v1512 = vsel %vm309, %v1440, 0
      %v1515 = vsel %vm309, %v1441, 0
      %v1518 = vsel %vm309, %v1442, 0
      %v1521 = vsel %vm309, %v1443, 0
      %v1524 = vsel %vm309, %v1444, 0
      %1526 = vmatprep.subr.bf16.mxu0 0
      %1527 = vmatpush1.bf16.msra.mxu0 %v1470
      %1528 = vmatprep.subr.bf16.mxu0 0
      %1529 = vmatpush1.bf16.msra.mxu0 %v1471
      %1530 = vmatprep.subr.bf16.mxu0 0
      %1531 = vmatpush1.bf16.msra.mxu0 %v1472
      %1532 = vmatprep.subr.bf16.mxu0 0
      %1533 = vmatpush1.bf16.msra.mxu0 %v1473
      %1534 = vmatprep.subr.bf16.mxu0 0
      %1535 = vmatpush1.bf16.msra.mxu0 0
      %1536 = vmatprep.subr.bf16.mxu0 0
      %1537 = vmatpush1.bf16.msra.mxu0 0
      %1538 = vmatprep.subr.bf16.mxu0 0
      %1539 = vmatpush1.bf16.msra.mxu0 0
      %1540 = vmatprep.subr.bf16.mxu0 0
      %1541 = vmatpush1.bf16.msra.mxu0 0
      %1542 = vmatprep.subr.bf16.mxu0 0
      %1543 = vmatpush1.bf16.msra.mxu0 0
      %1544 = vmatprep.subr.bf16.mxu0 0
      %1545 = vmatpush1.bf16.msra.mxu0 0
      %1546 = vmatprep.subr.bf16.mxu0 0
      %1547 = vmatpush1.bf16.msra.mxu0 0
      %1548 = vmatprep.subr.bf16.mxu0 0
      %1549 = vmatpush1.bf16.msra.mxu0 0
      %1550 = vmatprep.subr.bf16.mxu0 0
      %1551 = vmatpush1.bf16.msra.mxu0 0
      %1552 = vmatprep.subr.bf16.mxu0 0
      %1553 = vmatpush1.bf16.msra.mxu0 0
      %1554 = vmatprep.subr.bf16.mxu0 0
      %1555 = vmatpush1.bf16.msra.mxu0 0
      %1556 = vmatprep.subr.bf16.mxu0 0
      %1557 = vmatpush1.bf16.msra.mxu0 0
      %1558 = vmatprep.mubr.bf16.mxu0 0
      %1559 = vmatmul.mubr.bf16.gmra.mrb[0].mxu0 %v1479
      %v1560 = vpop.f32.mrb[0].mxu0
      %v1561 = vadd.f32 0.0, %v1560
      %v1562 = vpop.f32.mrb[0].mxu0
      %v1563 = vpop.f32.mrb[0].mxu0
      %v1564 = vadd.f32 0.0, %v1563
      %v1565 = vpop.f32.mrb[0].mxu0
      %1566 = vmatprep.mubr.bf16.mxu0 0
      %1567 = vmatmul.mubr.bf16.gmra.mrb[0].mxu0 %v1482
      %v1568 = vpop.f32.mrb[0].mxu0
      %v1569 = vadd.f32 0.0, %v1568
      %v1570 = vpop.f32.mrb[0].mxu0
      %v1571 = vpop.f32.mrb[0].mxu0
      %v1572 = vadd.f32 0.0, %v1571
      %v1573 = vpop.f32.mrb[0].mxu0
      %1574 = vmatprep.mubr.bf16.mxu0 0
      %1575 = vmatmul.mubr.bf16.gmra.mrb[0].mxu0 %v1485
      %v1576 = vpop.f32.mrb[0].mxu0
      %v1577 = vadd.f32 0.0, %v1576
      %v1578 = vpop.f32.mrb[0].mxu0
      %v1579 = vpop.f32.mrb[0].mxu0
      %v1580 = vadd.f32 0.0, %v1579
      %v1581 = vpop.f32.mrb[0].mxu0
      %1582 = vmatprep.mubr.bf16.mxu0 0
      %1583 = vmatmul.mubr.bf16.gmra.mrb[0].mxu0 %v1488
      %v1584 = vpop.f32.mrb[0].mxu0
      %v1585 = vadd.f32 0.0, %v1584
      %v1586 = vpop.f32.mrb[0].mxu0
      %v1587 = vpop.f32.mrb[0].mxu0
      %v1588 = vadd.f32 0.0, %v1587
      %v1589 = vpop.f32.mrb[0].mxu0
      %1590 = vmatprep.mubr.bf16.mxu0 0
      %1591 = vmatmul.mubr.bf16.gmra.mrb[0].mxu0 %v1491
      %v1592 = vpop.f32.mrb[0].mxu0
      %v1593 = vadd.f32 0.0, %v1592
      %v1594 = vpop.f32.mrb[0].mxu0
      %v1595 = vpop.f32.mrb[0].mxu0
      %v1596 = vadd.f32 0.0, %v1595
      %v1597 = vpop.f32.mrb[0].mxu0
      %1598 = vmatprep.mubr.bf16.mxu0 0
      %1599 = vmatmul.mubr.bf16.gmra.mrb[0].mxu0 %v1494
      %v1600 = vpop.f32.mrb[0].mxu0
      %v1601 = vadd.f32 0.0, %v1600
      %v1602 = vpop.f32.mrb[0].mxu0
      %v1603 = vpop.f32.mrb[0].mxu0
      %v1604 = vadd.f32 0.0, %v1603
      %v1605 = vpop.f32.mrb[0].mxu0
      %1606 = vmatprep.mubr.bf16.mxu0 0
      %1607 = vmatmul.mubr.bf16.gmra.mrb[0].mxu0 %v1497
      %v1608 = vpop.f32.mrb[0].mxu0
      %v1609 = vadd.f32 0.0, %v1608
      %v1610 = vpop.f32.mrb[0].mxu0
      %v1611 = vpop.f32.mrb[0].mxu0
      %v1612 = vadd.f32 0.0, %v1611
      %v1613 = vpop.f32.mrb[0].mxu0
      %1614 = vmatprep.mubr.bf16.mxu0 0
      %1615 = vmatmul.mubr.bf16.gmra.mrb[0].mxu0 %v1500
      %v1616 = vpop.f32.mrb[0].mxu0
      %v1617 = vadd.f32 0.0, %v1616
      %v1618 = vpop.f32.mrb[0].mxu0
      %v1619 = vpop.f32.mrb[0].mxu0
      %v1620 = vadd.f32 0.0, %v1619
      %v1621 = vpop.f32.mrb[0].mxu0
      %1622 = vmatprep.mubr.bf16.mxu0 0
      %1623 = vmatmul.mubr.bf16.gmra.mrb[0].mxu0 %v1503
      %v1624 = vpop.f32.mrb[0].mxu0
      %v1625 = vadd.f32 0.0, %v1624
      %v1626 = vpop.f32.mrb[0].mxu0
      %v1627 = vpop.f32.mrb[0].mxu0
      %v1628 = vadd.f32 0.0, %v1627
      %v1629 = vpop.f32.mrb[0].mxu0
      %1630 = vmatprep.mubr.bf16.mxu0 0
      %1631 = vmatmul.mubr.bf16.gmra.mrb[0].mxu0 %v1506
      %v1632 = vpop.f32.mrb[0].mxu0
      %v1633 = vadd.f32 0.0, %v1632
      %v1634 = vpop.f32.mrb[0].mxu0
      %v1635 = vpop.f32.mrb[0].mxu0
      %v1636 = vadd.f32 0.0, %v1635
      %v1637 = vpop.f32.mrb[0].mxu0
      %1638 = vmatprep.mubr.bf16.mxu0 0
      %1639 = vmatmul.mubr.bf16.gmra.mrb[0].mxu0 %v1509
      %v1640 = vpop.f32.mrb[0].mxu0
      %v1641 = vadd.f32 0.0, %v1640
      %v1642 = vpop.f32.mrb[0].mxu0
      %v1643 = vpop.f32.mrb[0].mxu0
      %v1644 = vadd.f32 0.0, %v1643
      %v1645 = vpop.f32.mrb[0].mxu0
      %1646 = vmatprep.mubr.bf16.mxu0 0
      %1647 = vmatmul.mubr.bf16.gmra.mrb[0].mxu0 %v1512
      %v1648 = vpop.f32.mrb[0].mxu0
      %v1649 = vadd.f32 0.0, %v1648
      %v1650 = vpop.f32.mrb[0].mxu0
      %v1651 = vpop.f32.mrb[0].mxu0
      %v1652 = vadd.f32 0.0, %v1651
      %v1653 = vpop.f32.mrb[0].mxu0
      %1654 = vmatprep.mubr.bf16.mxu0 0
      %1655 = vmatmul.mubr.bf16.gmra.mrb[0].mxu0 %v1515
      %v1656 = vpop.f32.mrb[0].mxu0
      %v1657 = vadd.f32 0.0, %v1656
      %v1658 = vpop.f32.mrb[0].mxu0
      %v1659 = vpop.f32.mrb[0].mxu0
      %v1660 = vadd.f32 0.0, %v1659
      %v1661 = vpop.f32.mrb[0].mxu0
      %1662 = vmatprep.mubr.bf16.mxu0 0
      %1663 = vmatmul.mubr.bf16.gmra.mrb[0].mxu0 %v1518
      %v1664 = vpop.f32.mrb[0].mxu0
      %v1665 = vadd.f32 0.0, %v1664
      %v1666 = vpop.f32.mrb[0].mxu0
      %v1667 = vpop.f32.mrb[0].mxu0
      %v1668 = vadd.f32 0.0, %v1667
      %v1669 = vpop.f32.mrb[0].mxu0
      %1670 = vmatprep.mubr.bf16.mxu0 0
      %1671 = vmatmul.mubr.bf16.gmra.mrb[0].mxu0 %v1521
      %v1672 = vpop.f32.mrb[0].mxu0
      %v1673 = vadd.f32 0.0, %v1672
      %v1674 = vpop.f32.mrb[0].mxu0
      %v1675 = vpop.f32.mrb[0].mxu0
      %v1676 = vadd.f32 0.0, %v1675
      %v1677 = vpop.f32.mrb[0].mxu0
      %1678 = vmatprep.mubr.bf16.mxu0 0
      %1679 = vmatmul.mubr.bf16.gmra.mrb[0].mxu0 %v1524
      %v1680 = vpop.f32.mrb[0].mxu0
      %v1681 = vadd.f32 0.0, %v1680
      %v1682 = vpop.f32.mrb[0].mxu0
      %v1683 = vpop.f32.mrb[0].mxu0
      %v1684 = vadd.f32 0.0, %v1683
      %v1685 = vpop.f32.mrb[0].mxu0
      %1686 = vdwg.mxu0
      %v1687 = vadd.f32 %v1365, %v1561
      %v1688 = vadd.f32 %v1366, %v1564
      %v1689 = vadd.f32 %v1367, %v1569
      %v1690 = vadd.f32 %v1368, %v1572
      %v1691 = vadd.f32 %v1369, %v1577
      %v1692 = vadd.f32 %v1370, %v1580
      %v1693 = vadd.f32 %v1371, %v1585
      %v1694 = vadd.f32 %v1372, %v1588
      %v1695 = vadd.f32 %v1373, %v1593
      %v1696 = vadd.f32 %v1374, %v1596
      %v1697 = vadd.f32 %v1375, %v1601
      %v1698 = vadd.f32 %v1376, %v1604
      %v1699 = vadd.f32 %v1377, %v1609
      %v1700 = vadd.f32 %v1378, %v1612
      %v1701 = vadd.f32 %v1379, %v1617
      %v1702 = vadd.f32 %v1380, %v1620
      %v1703 = vadd.f32 %v1381, %v1625
      %v1704 = vadd.f32 %v1382, %v1628
      %v1705 = vadd.f32 %v1383, %v1633
      %v1706 = vadd.f32 %v1384, %v1636
      %v1707 = vadd.f32 %v1385, %v1641
      %v1708 = vadd.f32 %v1386, %v1644
      %v1709 = vadd.f32 %v1387, %v1649
      %v1710 = vadd.f32 %v1388, %v1652
      %v1711 = vadd.f32 %v1389, %v1657
      %v1712 = vadd.f32 %v1390, %v1660
      %v1713 = vadd.f32 %v1391, %v1665
      %v1714 = vadd.f32 %v1392, %v1668
      %v1715 = vadd.f32 %v1393, %v1673
      %v1716 = vadd.f32 %v1394, %v1676
      %v1717 = vadd.f32 %v1395, %v1681
      %v1718 = vadd.f32 %v1396, %v1684
      %v1719 = vld [vmem:[%s1074 + $0x2] sm:$0xff]
      %v1720 = vld [vmem:[%s1074 + $0xa] sm:$0xff]
      %v1721 = vld [vmem:[%s1074 + $0x1a] sm:$0xff]
      %v1722 = vld [vmem:[%s1074 + $0x22] sm:$0xff]
      %v1723 = vld [vmem:[%s1074 + $0x32] sm:$0xff]
      %v1724 = vld [vmem:[%s1074 + $0x3a] sm:$0xff]
      %v1725 = vld [vmem:[%s1074 + $0x4a] sm:$0xff]
      %v1726 = vld [vmem:[%s1074 + $0x52] sm:$0xff]
      %v1727 = vld [vmem:[%s1074 + $0x62] sm:$0xff]
      %v1728 = vld [vmem:[%s1074 + $0x6a] sm:$0xff]
      %v1729 = vld [vmem:[%s1074 + $0x7a] sm:$0xff]
      %v1730 = vld [vmem:[%s1074 + $0x82] sm:$0xff]
      %v1731 = vld [vmem:[%s1074 + $0x92] sm:$0xff]
      %v1732 = vld [vmem:[%s1074 + $0x9a] sm:$0xff]
      %v1733 = vld [vmem:[%s1074 + $0xaa] sm:$0xff]
      %v1734 = vld [vmem:[%s1074 + $0xb2] sm:$0xff]
      %v1735 = vld [vmem:[%s1074 + $0xc2] sm:$0xff]
      %v1736 = vld [vmem:[%s1074 + $0xca] sm:$0xff]
      %v1737 = vld [vmem:[%s1074 + $0xda] sm:$0xff]
      %v1738 = vld [vmem:[%s1074 + $0xe2] sm:$0xff]
      %v1739 = vld [vmem:[%s1074 + $0xf2] sm:$0xff]
      %v1740 = vld [vmem:[%s1074 + $0xfa] sm:$0xff]
      %v1741 = vld [vmem:[%s1074 + $0x10a] sm:$0xff]
      %v1742 = vld [vmem:[%s1074 + $0x112] sm:$0xff]
      %v1743 = vld [vmem:[%s1074 + $0x122] sm:$0xff]
      %v1744 = vld [vmem:[%s1074 + $0x12a] sm:$0xff]
      %v1745 = vld [vmem:[%s1074 + $0x13a] sm:$0xff]
      %v1746 = vld [vmem:[%s1074 + $0x142] sm:$0xff]
      %v1747 = vld [vmem:[%s1074 + $0x152] sm:$0xff]
      %v1748 = vld [vmem:[%s1074 + $0x15a] sm:$0xff]
      %v1749 = vld [vmem:[%s1074 + $0x16a] sm:$0xff]
      %v1750 = vld [vmem:[%s1074 + $0x172] sm:$0xff]
      %v1751 = vpack.c.bf16 %v1720, %v1719
      %v1752 = vpack.c.bf16 %v1722, %v1721
      %v1753 = vpack.c.bf16 %v1724, %v1723
      %v1754 = vpack.c.bf16 %v1726, %v1725
      %v1755 = vpack.c.bf16 %v1728, %v1727
      %v1756 = vpack.c.bf16 %v1730, %v1729
      %v1757 = vpack.c.bf16 %v1732, %v1731
      %v1758 = vpack.c.bf16 %v1734, %v1733
      %v1759 = vpack.c.bf16 %v1736, %v1735
      %v1760 = vpack.c.bf16 %v1738, %v1737
      %v1761 = vpack.c.bf16 %v1740, %v1739
      %v1762 = vpack.c.bf16 %v1742, %v1741
      %v1763 = vpack.c.bf16 %v1744, %v1743
      %v1764 = vpack.c.bf16 %v1746, %v1745
      %v1765 = vpack.c.bf16 %v1748, %v1747
      %v1766 = vpack.c.bf16 %v1750, %v1749
      %s1767 = scalar_lea.vmem %s1, 160
      %v1768 = vld [vmem:[%s1767] sm:$0xf]
      %v1769 = vld [vmem:[%s1767 + $0x4] sm:$0xf]
      %v1770 = vld [vmem:[%s1767 + $0x8] sm:$0xf]
      %v1771 = vld [vmem:[%s1767 + $0xc] sm:$0xf]
      %v1772 = vld [vmem:[%s1767 + $0x10] sm:$0xf]
      %v1773 = vld [vmem:[%s1767 + $0x14] sm:$0xf]
      %v1774 = vld [vmem:[%s1767 + $0x18] sm:$0xf]
      %v1775 = vld [vmem:[%s1767 + $0x1c] sm:$0xf]
      %v1784 = vunpack.c.l.b16 %v1768
      %v1785 = vunpack.c.l.b16 %v1769
      %v1786 = vunpack.c.l.b16 %v1770
      %v1787 = vunpack.c.l.b16 %v1771
      %v1788 = vunpack.c.l.b16 %v1772
      %v1789 = vunpack.c.l.b16 %v1773
      %v1790 = vunpack.c.l.b16 %v1774
      %v1791 = vunpack.c.l.b16 %v1775
      %v1792 = vpack.c.b16 %v1785, %v1784
      %v1793 = vpack.c.b16 %v1787, %v1786
      %v1794 = vpack.c.b16 %v1789, %v1788
      %v1795 = vpack.c.b16 %v1791, %v1790
      %v1801 = vsel %vm309, %v1751, 0
      %v1804 = vsel %vm309, %v1752, 0
      %v1807 = vsel %vm309, %v1753, 0
      %v1810 = vsel %vm309, %v1754, 0
      %v1813 = vsel %vm309, %v1755, 0
      %v1816 = vsel %vm309, %v1756, 0
      %v1819 = vsel %vm309, %v1757, 0
      %v1822 = vsel %vm309, %v1758, 0
      %v1825 = vsel %vm309, %v1759, 0
      %v1828 = vsel %vm309, %v1760, 0
      %v1831 = vsel %vm309, %v1761, 0
      %v1834 = vsel %vm309, %v1762, 0
      %v1837 = vsel %vm309, %v1763, 0
      %v1840 = vsel %vm309, %v1764, 0
      %v1843 = vsel %vm309, %v1765, 0
      %v1846 = vsel %vm309, %v1766, 0
      %1848 = vmatprep.subr.bf16.mxu0 0
      %1849 = vmatpush1.bf16.msra.mxu0 %v1792
      %1850 = vmatprep.subr.bf16.mxu0 0
      %1851 = vmatpush1.bf16.msra.mxu0 %v1793
      %1852 = vmatprep.subr.bf16.mxu0 0
      %1853 = vmatpush1.bf16.msra.mxu0 %v1794
      %1854 = vmatprep.subr.bf16.mxu0 0
      %1855 = vmatpush1.bf16.msra.mxu0 %v1795
      %1856 = vmatprep.subr.bf16.mxu0 0
      %1857 = vmatpush1.bf16.msra.mxu0 0
      %1858 = vmatprep.subr.bf16.mxu0 0
      %1859 = vmatpush1.bf16.msra.mxu0 0
      %1860 = vmatprep.subr.bf16.mxu0 0
      %1861 = vmatpush1.bf16.msra.mxu0 0
      %1862 = vmatprep.subr.bf16.mxu0 0
      %1863 = vmatpush1.bf16.msra.mxu0 0
      %1864 = vmatprep.subr.bf16.mxu0 0
      %1865 = vmatpush1.bf16.msra.mxu0 0
      %1866 = vmatprep.subr.bf16.mxu0 0
      %1867 = vmatpush1.bf16.msra.mxu0 0
      %1868 = vmatprep.subr.bf16.mxu0 0
      %1869 = vmatpush1.bf16.msra.mxu0 0
      %1870 = vmatprep.subr.bf16.mxu0 0
      %1871 = vmatpush1.bf16.msra.mxu0 0
      %1872 = vmatprep.subr.bf16.mxu0 0
      %1873 = vmatpush1.bf16.msra.mxu0 0
      %1874 = vmatprep.subr.bf16.mxu0 0
      %1875 = vmatpush1.bf16.msra.mxu0 0
      %1876 = vmatprep.subr.bf16.mxu0 0
      %1877 = vmatpush1.bf16.msra.mxu0 0
      %1878 = vmatprep.subr.bf16.mxu0 0
      %1879 = vmatpush1.bf16.msra.mxu0 0
      %1880 = vmatprep.mubr.bf16.mxu0 0
      %1881 = vmatmul.mubr.bf16.gmra.mrb[0].mxu0 %v1801
      %v1882 = vpop.f32.mrb[0].mxu0
      %v1883 = vadd.f32 0.0, %v1882
      %v1884 = vpop.f32.mrb[0].mxu0
      %v1885 = vpop.f32.mrb[0].mxu0
      %v1886 = vadd.f32 0.0, %v1885
      %v1887 = vpop.f32.mrb[0].mxu0
      %1888 = vmatprep.mubr.bf16.mxu0 0
      %1889 = vmatmul.mubr.bf16.gmra.mrb[0].mxu0 %v1804
      %v1890 = vpop.f32.mrb[0].mxu0
      %v1891 = vadd.f32 0.0, %v1890
      %v1892 = vpop.f32.mrb[0].mxu0
      %v1893 = vpop.f32.mrb[0].mxu0
      %v1894 = vadd.f32 0.0, %v1893
      %v1895 = vpop.f32.mrb[0].mxu0
      %1896 = vmatprep.mubr.bf16.mxu0 0
      %1897 = vmatmul.mubr.bf16.gmra.mrb[0].mxu0 %v1807
      %v1898 = vpop.f32.mrb[0].mxu0
      %v1899 = vadd.f32 0.0, %v1898
      %v1900 = vpop.f32.mrb[0].mxu0
      %v1901 = vpop.f32.mrb[0].mxu0
      %v1902 = vadd.f32 0.0, %v1901
      %v1903 = vpop.f32.mrb[0].mxu0
      %1904 = vmatprep.mubr.bf16.mxu0 0
      %1905 = vmatmul.mubr.bf16.gmra.mrb[0].mxu0 %v1810
      %v1906 = vpop.f32.mrb[0].mxu0
      %v1907 = vadd.f32 0.0, %v1906
      %v1908 = vpop.f32.mrb[0].mxu0
      %v1909 = vpop.f32.mrb[0].mxu0
      %v1910 = vadd.f32 0.0, %v1909
      %v1911 = vpop.f32.mrb[0].mxu0
      %1912 = vmatprep.mubr.bf16.mxu0 0
      %1913 = vmatmul.mubr.bf16.gmra.mrb[0].mxu0 %v1813
      %v1914 = vpop.f32.mrb[0].mxu0
      %v1915 = vadd.f32 0.0, %v1914
      %v1916 = vpop.f32.mrb[0].mxu0
      %v1917 = vpop.f32.mrb[0].mxu0
      %v1918 = vadd.f32 0.0, %v1917
      %v1919 = vpop.f32.mrb[0].mxu0
      %1920 = vmatprep.mubr.bf16.mxu0 0
      %1921 = vmatmul.mubr.bf16.gmra.mrb[0].mxu0 %v1816
      %v1922 = vpop.f32.mrb[0].mxu0
      %v1923 = vadd.f32 0.0, %v1922
      %v1924 = vpop.f32.mrb[0].mxu0
      %v1925 = vpop.f32.mrb[0].mxu0
      %v1926 = vadd.f32 0.0, %v1925
      %v1927 = vpop.f32.mrb[0].mxu0
      %1928 = vmatprep.mubr.bf16.mxu0 0
      %1929 = vmatmul.mubr.bf16.gmra.mrb[0].mxu0 %v1819
      %v1930 = vpop.f32.mrb[0].mxu0
      %v1931 = vadd.f32 0.0, %v1930
      %v1932 = vpop.f32.mrb[0].mxu0
      %v1933 = vpop.f32.mrb[0].mxu0
      %v1934 = vadd.f32 0.0, %v1933
      %v1935 = vpop.f32.mrb[0].mxu0
      %1936 = vmatprep.mubr.bf16.mxu0 0
      %1937 = vmatmul.mubr.bf16.gmra.mrb[0].mxu0 %v1822
      %v1938 = vpop.f32.mrb[0].mxu0
      %v1939 = vadd.f32 0.0, %v1938
      %v1940 = vpop.f32.mrb[0].mxu0
      %v1941 = vpop.f32.mrb[0].mxu0
      %v1942 = vadd.f32 0.0, %v1941
      %v1943 = vpop.f32.mrb[0].mxu0
      %1944 = vmatprep.mubr.bf16.mxu0 0
      %1945 = vmatmul.mubr.bf16.gmra.mrb[0].mxu0 %v1825
      %v1946 = vpop.f32.mrb[0].mxu0
      %v1947 = vadd.f32 0.0, %v1946
      %v1948 = vpop.f32.mrb[0].mxu0
      %v1949 = vpop.f32.mrb[0].mxu0
      %v1950 = vadd.f32 0.0, %v1949
      %v1951 = vpop.f32.mrb[0].mxu0
      %1952 = vmatprep.mubr.bf16.mxu0 0
      %1953 = vmatmul.mubr.bf16.gmra.mrb[0].mxu0 %v1828
      %v1954 = vpop.f32.mrb[0].mxu0
      %v1955 = vadd.f32 0.0, %v1954
      %v1956 = vpop.f32.mrb[0].mxu0
      %v1957 = vpop.f32.mrb[0].mxu0
      %v1958 = vadd.f32 0.0, %v1957
      %v1959 = vpop.f32.mrb[0].mxu0
      %1960 = vmatprep.mubr.bf16.mxu0 0
      %1961 = vmatmul.mubr.bf16.gmra.mrb[0].mxu0 %v1831
      %v1962 = vpop.f32.mrb[0].mxu0
      %v1963 = vadd.f32 0.0, %v1962
      %v1964 = vpop.f32.mrb[0].mxu0
      %v1965 = vpop.f32.mrb[0].mxu0
      %v1966 = vadd.f32 0.0, %v1965
      %v1967 = vpop.f32.mrb[0].mxu0
      %1968 = vmatprep.mubr.bf16.mxu0 0
      %1969 = vmatmul.mubr.bf16.gmra.mrb[0].mxu0 %v1834
      %v1970 = vpop.f32.mrb[0].mxu0
      %v1971 = vadd.f32 0.0, %v1970
      %v1972 = vpop.f32.mrb[0].mxu0
      %v1973 = vpop.f32.mrb[0].mxu0
      %v1974 = vadd.f32 0.0, %v1973
      %v1975 = vpop.f32.mrb[0].mxu0
      %1976 = vmatprep.mubr.bf16.mxu0 0
      %1977 = vmatmul.mubr.bf16.gmra.mrb[0].mxu0 %v1837
      %v1978 = vpop.f32.mrb[0].mxu0
      %v1979 = vadd.f32 0.0, %v1978
      %v1980 = vpop.f32.mrb[0].mxu0
      %v1981 = vpop.f32.mrb[0].mxu0
      %v1982 = vadd.f32 0.0, %v1981
      %v1983 = vpop.f32.mrb[0].mxu0
      %1984 = vmatprep.mubr.bf16.mxu0 0
      %1985 = vmatmul.mubr.bf16.gmra.mrb[0].mxu0 %v1840
      %v1986 = vpop.f32.mrb[0].mxu0
      %v1987 = vadd.f32 0.0, %v1986
      %v1988 = vpop.f32.mrb[0].mxu0
      %v1989 = vpop.f32.mrb[0].mxu0
      %v1990 = vadd.f32 0.0, %v1989
      %v1991 = vpop.f32.mrb[0].mxu0
      %1992 = vmatprep.mubr.bf16.mxu0 0
      %1993 = vmatmul.mubr.bf16.gmra.mrb[0].mxu0 %v1843
      %v1994 = vpop.f32.mrb[0].mxu0
      %v1995 = vadd.f32 0.0, %v1994
      %v1996 = vpop.f32.mrb[0].mxu0
      %v1997 = vpop.f32.mrb[0].mxu0
      %v1998 = vadd.f32 0.0, %v1997
      %v1999 = vpop.f32.mrb[0].mxu0
      %2000 = vmatprep.mubr.bf16.mxu0 0
      %2001 = vmatmul.mubr.bf16.gmra.mrb[0].mxu0 %v1846
      %v2002 = vpop.f32.mrb[0].mxu0
      %v2003 = vadd.f32 0.0, %v2002
      %v2004 = vpop.f32.mrb[0].mxu0
      %v2005 = vpop.f32.mrb[0].mxu0
      %v2006 = vadd.f32 0.0, %v2005
      %v2007 = vpop.f32.mrb[0].mxu0
      %2008 = vdwg.mxu0
      %v2009 = vadd.f32 %v1687, %v1883
      %v2010 = vadd.f32 %v1688, %v1886
      %v2011 = vadd.f32 %v1689, %v1891
      %v2012 = vadd.f32 %v1690, %v1894
      %v2013 = vadd.f32 %v1691, %v1899
      %v2014 = vadd.f32 %v1692, %v1902
      %v2015 = vadd.f32 %v1693, %v1907
      %v2016 = vadd.f32 %v1694, %v1910
      %v2017 = vadd.f32 %v1695, %v1915
      %v2018 = vadd.f32 %v1696, %v1918
      %v2019 = vadd.f32 %v1697, %v1923
      %v2020 = vadd.f32 %v1698, %v1926
      %v2021 = vadd.f32 %v1699, %v1931
      %v2022 = vadd.f32 %v1700, %v1934
      %v2023 = vadd.f32 %v1701, %v1939
      %v2024 = vadd.f32 %v1702, %v1942
      %v2025 = vadd.f32 %v1703, %v1947
      %v2026 = vadd.f32 %v1704, %v1950
      %v2027 = vadd.f32 %v1705, %v1955
      %v2028 = vadd.f32 %v1706, %v1958
      %v2029 = vadd.f32 %v1707, %v1963
      %v2030 = vadd.f32 %v1708, %v1966
      %v2031 = vadd.f32 %v1709, %v1971
      %v2032 = vadd.f32 %v1710, %v1974
      %v2033 = vadd.f32 %v1711, %v1979
      %v2034 = vadd.f32 %v1712, %v1982
      %v2035 = vadd.f32 %v1713, %v1987
      %v2036 = vadd.f32 %v1714, %v1990
      %v2037 = vadd.f32 %v1715, %v1995
      %v2038 = vadd.f32 %v1716, %v1998
      %v2039 = vadd.f32 %v1717, %v2003
      %v2040 = vadd.f32 %v1718, %v2006
      %s2041 = scalar_lea.vmem %s165, 48
      %v2042 = vld [vmem:[%s2041] sm:$0xff]
      %v2043 = vld [vmem:[%s2041 + $0x8] sm:$0xff]
      %v2044 = vld [vmem:[%s2041 + $0x18] sm:$0xff]
      %v2045 = vld [vmem:[%s2041 + $0x20] sm:$0xff]
      %v2046 = vld [vmem:[%s2041 + $0x30] sm:$0xff]
      %v2047 = vld [vmem:[%s2041 + $0x38] sm:$0xff]
      %v2048 = vld [vmem:[%s2041 + $0x48] sm:$0xff]
      %v2049 = vld [vmem:[%s2041 + $0x50] sm:$0xff]
      %v2050 = vld [vmem:[%s2041 + $0x60] sm:$0xff]
      %v2051 = vld [vmem:[%s2041 + $0x68] sm:$0xff]
      %v2052 = vld [vmem:[%s2041 + $0x78] sm:$0xff]
      %v2053 = vld [vmem:[%s2041 + $0x80] sm:$0xff]
      %v2054 = vld [vmem:[%s2041 + $0x90] sm:$0xff]
      %v2055 = vld [vmem:[%s2041 + $0x98] sm:$0xff]
      %v2056 = vld [vmem:[%s2041 + $0xa8] sm:$0xff]
      %v2057 = vld [vmem:[%s2041 + $0xb0] sm:$0xff]
      %v2058 = vld [vmem:[%s2041 + $0xc0] sm:$0xff]
      %v2059 = vld [vmem:[%s2041 + $0xc8] sm:$0xff]
      %v2060 = vld [vmem:[%s2041 + $0xd8] sm:$0xff]
      %v2061 = vld [vmem:[%s2041 + $0xe0] sm:$0xff]
      %v2062 = vld [vmem:[%s2041 + $0xf0] sm:$0xff]
      %v2063 = vld [vmem:[%s2041 + $0xf8] sm:$0xff]
      %v2064 = vld [vmem:[%s2041 + $0x108] sm:$0xff]
      %v2065 = vld [vmem:[%s2041 + $0x110] sm:$0xff]
      %v2066 = vld [vmem:[%s2041 + $0x120] sm:$0xff]
      %v2067 = vld [vmem:[%s2041 + $0x128] sm:$0xff]
      %v2068 = vld [vmem:[%s2041 + $0x138] sm:$0xff]
      %v2069 = vld [vmem:[%s2041 + $0x140] sm:$0xff]
      %v2070 = vld [vmem:[%s2041 + $0x150] sm:$0xff]
      %v2071 = vld [vmem:[%s2041 + $0x158] sm:$0xff]
      %v2072 = vld [vmem:[%s2041 + $0x168] sm:$0xff]
      %v2073 = vld [vmem:[%s2041 + $0x170] sm:$0xff]
      %v2074 = vpack.c.bf16 %v2043, %v2042
      %v2075 = vpack.c.bf16 %v2045, %v2044
      %v2076 = vpack.c.bf16 %v2047, %v2046
      %v2077 = vpack.c.bf16 %v2049, %v2048
      %v2078 = vpack.c.bf16 %v2051, %v2050
      %v2079 = vpack.c.bf16 %v2053, %v2052
      %v2080 = vpack.c.bf16 %v2055, %v2054
      %v2081 = vpack.c.bf16 %v2057, %v2056
      %v2082 = vpack.c.bf16 %v2059, %v2058
      %v2083 = vpack.c.bf16 %v2061, %v2060
      %v2084 = vpack.c.bf16 %v2063, %v2062
      %v2085 = vpack.c.bf16 %v2065, %v2064
      %v2086 = vpack.c.bf16 %v2067, %v2066
      %v2087 = vpack.c.bf16 %v2069, %v2068
      %v2088 = vpack.c.bf16 %v2071, %v2070
      %v2089 = vpack.c.bf16 %v2073, %v2072
      %s2090 = scalar_lea.vmem %s1, 192
      %v2091 = vld [vmem:[%s2090] sm:$0xf]
      %v2092 = vld [vmem:[%s2090 + $0x4] sm:$0xf]
      %v2093 = vld [vmem:[%s2090 + $0x8] sm:$0xf]
      %v2094 = vld [vmem:[%s2090 + $0xc] sm:$0xf]
      %v2095 = vld [vmem:[%s2090 + $0x10] sm:$0xf]
      %v2096 = vld [vmem:[%s2090 + $0x14] sm:$0xf]
      %v2097 = vld [vmem:[%s2090 + $0x18] sm:$0xf]
      %v2098 = vld [vmem:[%s2090 + $0x1c] sm:$0xf]
      %v2107 = vunpack.c.l.b16 %v2091
      %v2108 = vunpack.c.l.b16 %v2092
      %v2109 = vunpack.c.l.b16 %v2093
      %v2110 = vunpack.c.l.b16 %v2094
      %v2111 = vunpack.c.l.b16 %v2095
      %v2112 = vunpack.c.l.b16 %v2096
      %v2113 = vunpack.c.l.b16 %v2097
      %v2114 = vunpack.c.l.b16 %v2098
      %v2115 = vpack.c.b16 %v2108, %v2107
      %v2116 = vpack.c.b16 %v2110, %v2109
      %v2117 = vpack.c.b16 %v2112, %v2111
      %v2118 = vpack.c.b16 %v2114, %v2113
      %v2124 = vsel %vm309, %v2074, 0
      %v2127 = vsel %vm309, %v2075, 0
      %v2130 = vsel %vm309, %v2076, 0
      %v2133 = vsel %vm309, %v2077, 0
      %v2136 = vsel %vm309, %v2078, 0
      %v2139 = vsel %vm309, %v2079, 0
      %v2142 = vsel %vm309, %v2080, 0
      %v2145 = vsel %vm309, %v2081, 0
      %v2148 = vsel %vm309, %v2082, 0
      %v2151 = vsel %vm309, %v2083, 0
      %v2154 = vsel %vm309, %v2084, 0
      %v2157 = vsel %vm309, %v2085, 0
      %v2160 = vsel %vm309, %v2086, 0
      %v2163 = vsel %vm309, %v2087, 0
      %v2166 = vsel %vm309, %v2088, 0
      %v2169 = vsel %vm309, %v2089, 0
      %2171 = vmatprep.subr.bf16.mxu0 0
      %2172 = vmatpush1.bf16.msra.mxu0 %v2115
      %2173 = vmatprep.subr.bf16.mxu0 0
      %2174 = vmatpush1.bf16.msra.mxu0 %v2116
      %2175 = vmatprep.subr.bf16.mxu0 0
      %2176 = vmatpush1.bf16.msra.mxu0 %v2117
      %2177 = vmatprep.subr.bf16.mxu0 0
      %2178 = vmatpush1.bf16.msra.mxu0 %v2118
      %2179 = vmatprep.subr.bf16.mxu0 0
      %2180 = vmatpush1.bf16.msra.mxu0 0
      %2181 = vmatprep.subr.bf16.mxu0 0
      %2182 = vmatpush1.bf16.msra.mxu0 0
      %2183 = vmatprep.subr.bf16.mxu0 0
      %2184 = vmatpush1.bf16.msra.mxu0 0
      %2185 = vmatprep.subr.bf16.mxu0 0
      %2186 = vmatpush1.bf16.msra.mxu0 0
      %2187 = vmatprep.subr.bf16.mxu0 0
      %2188 = vmatpush1.bf16.msra.mxu0 0
      %2189 = vmatprep.subr.bf16.mxu0 0
      %2190 = vmatpush1.bf16.msra.mxu0 0
      %2191 = vmatprep.subr.bf16.mxu0 0
      %2192 = vmatpush1.bf16.msra.mxu0 0
      %2193 = vmatprep.subr.bf16.mxu0 0
      %2194 = vmatpush1.bf16.msra.mxu0 0
      %2195 = vmatprep.subr.bf16.mxu0 0
      %2196 = vmatpush1.bf16.msra.mxu0 0
      %2197 = vmatprep.subr.bf16.mxu0 0
      %2198 = vmatpush1.bf16.msra.mxu0 0
      %2199 = vmatprep.subr.bf16.mxu0 0
      %2200 = vmatpush1.bf16.msra.mxu0 0
      %2201 = vmatprep.subr.bf16.mxu0 0
      %2202 = vmatpush1.bf16.msra.mxu0 0
      %2203 = vmatprep.mubr.bf16.mxu0 0
      %2204 = vmatmul.mubr.bf16.gmra.mrb[0].mxu0 %v2124
      %v2205 = vpop.f32.mrb[0].mxu0
      %v2206 = vadd.f32 0.0, %v2205
      %v2207 = vpop.f32.mrb[0].mxu0
      %v2208 = vpop.f32.mrb[0].mxu0
      %v2209 = vadd.f32 0.0, %v2208
      %v2210 = vpop.f32.mrb[0].mxu0
      %2211 = vmatprep.mubr.bf16.mxu0 0
      %2212 = vmatmul.mubr.bf16.gmra.mrb[0].mxu0 %v2127
      %v2213 = vpop.f32.mrb[0].mxu0
      %v2214 = vadd.f32 0.0, %v2213
      %v2215 = vpop.f32.mrb[0].mxu0
      %v2216 = vpop.f32.mrb[0].mxu0
      %v2217 = vadd.f32 0.0, %v2216
      %v2218 = vpop.f32.mrb[0].mxu0
      %2219 = vmatprep.mubr.bf16.mxu0 0
      %2220 = vmatmul.mubr.bf16.gmra.mrb[0].mxu0 %v2130
      %v2221 = vpop.f32.mrb[0].mxu0
      %v2222 = vadd.f32 0.0, %v2221
      %v2223 = vpop.f32.mrb[0].mxu0
      %v2224 = vpop.f32.mrb[0].mxu0
      %v2225 = vadd.f32 0.0, %v2224
      %v2226 = vpop.f32.mrb[0].mxu0
      %2227 = vmatprep.mubr.bf16.mxu0 0
      %2228 = vmatmul.mubr.bf16.gmra.mrb[0].mxu0 %v2133
      %v2229 = vpop.f32.mrb[0].mxu0
      %v2230 = vadd.f32 0.0, %v2229
      %v2231 = vpop.f32.mrb[0].mxu0
      %v2232 = vpop.f32.mrb[0].mxu0
      %v2233 = vadd.f32 0.0, %v2232
      %v2234 = vpop.f32.mrb[0].mxu0
      %2235 = vmatprep.mubr.bf16.mxu0 0
      %2236 = vmatmul.mubr.bf16.gmra.mrb[0].mxu0 %v2136
      %v2237 = vpop.f32.mrb[0].mxu0
      %v2238 = vadd.f32 0.0, %v2237
      %v2239 = vpop.f32.mrb[0].mxu0
      %v2240 = vpop.f32.mrb[0].mxu0
      %v2241 = vadd.f32 0.0, %v2240
      %v2242 = vpop.f32.mrb[0].mxu0
      %2243 = vmatprep.mubr.bf16.mxu0 0
      %2244 = vmatmul.mubr.bf16.gmra.mrb[0].mxu0 %v2139
      %v2245 = vpop.f32.mrb[0].mxu0
      %v2246 = vadd.f32 0.0, %v2245
      %v2247 = vpop.f32.mrb[0].mxu0
      %v2248 = vpop.f32.mrb[0].mxu0
      %v2249 = vadd.f32 0.0, %v2248
      %v2250 = vpop.f32.mrb[0].mxu0
      %2251 = vmatprep.mubr.bf16.mxu0 0
      %2252 = vmatmul.mubr.bf16.gmra.mrb[0].mxu0 %v2142
      %v2253 = vpop.f32.mrb[0].mxu0
      %v2254 = vadd.f32 0.0, %v2253
      %v2255 = vpop.f32.mrb[0].mxu0
      %v2256 = vpop.f32.mrb[0].mxu0
      %v2257 = vadd.f32 0.0, %v2256
      %v2258 = vpop.f32.mrb[0].mxu0
      %2259 = vmatprep.mubr.bf16.mxu0 0
      %2260 = vmatmul.mubr.bf16.gmra.mrb[0].mxu0 %v2145
      %v2261 = vpop.f32.mrb[0].mxu0
      %v2262 = vadd.f32 0.0, %v2261
      %v2263 = vpop.f32.mrb[0].mxu0
      %v2264 = vpop.f32.mrb[0].mxu0
      %v2265 = vadd.f32 0.0, %v2264
      %v2266 = vpop.f32.mrb[0].mxu0
      %2267 = vmatprep.mubr.bf16.mxu0 0
      %2268 = vmatmul.mubr.bf16.gmra.mrb[0].mxu0 %v2148
      %v2269 = vpop.f32.mrb[0].mxu0
      %v2270 = vadd.f32 0.0, %v2269
      %v2271 = vpop.f32.mrb[0].mxu0
      %v2272 = vpop.f32.mrb[0].mxu0
      %v2273 = vadd.f32 0.0, %v2272
      %v2274 = vpop.f32.mrb[0].mxu0
      %2275 = vmatprep.mubr.bf16.mxu0 0
      %2276 = vmatmul.mubr.bf16.gmra.mrb[0].mxu0 %v2151
      %v2277 = vpop.f32.mrb[0].mxu0
      %v2278 = vadd.f32 0.0, %v2277
      %v2279 = vpop.f32.mrb[0].mxu0
      %v2280 = vpop.f32.mrb[0].mxu0
      %v2281 = vadd.f32 0.0, %v2280
      %v2282 = vpop.f32.mrb[0].mxu0
      %2283 = vmatprep.mubr.bf16.mxu0 0
      %2284 = vmatmul.mubr.bf16.gmra.mrb[0].mxu0 %v2154
      %v2285 = vpop.f32.mrb[0].mxu0
      %v2286 = vadd.f32 0.0, %v2285
      %v2287 = vpop.f32.mrb[0].mxu0
      %v2288 = vpop.f32.mrb[0].mxu0
      %v2289 = vadd.f32 0.0, %v2288
      %v2290 = vpop.f32.mrb[0].mxu0
      %2291 = vmatprep.mubr.bf16.mxu0 0
      %2292 = vmatmul.mubr.bf16.gmra.mrb[0].mxu0 %v2157
      %v2293 = vpop.f32.mrb[0].mxu0
      %v2294 = vadd.f32 0.0, %v2293
      %v2295 = vpop.f32.mrb[0].mxu0
      %v2296 = vpop.f32.mrb[0].mxu0
      %v2297 = vadd.f32 0.0, %v2296
      %v2298 = vpop.f32.mrb[0].mxu0
      %2299 = vmatprep.mubr.bf16.mxu0 0
      %2300 = vmatmul.mubr.bf16.gmra.mrb[0].mxu0 %v2160
      %v2301 = vpop.f32.mrb[0].mxu0
      %v2302 = vadd.f32 0.0, %v2301
      %v2303 = vpop.f32.mrb[0].mxu0
      %v2304 = vpop.f32.mrb[0].mxu0
      %v2305 = vadd.f32 0.0, %v2304
      %v2306 = vpop.f32.mrb[0].mxu0
      %2307 = vmatprep.mubr.bf16.mxu0 0
      %2308 = vmatmul.mubr.bf16.gmra.mrb[0].mxu0 %v2163
      %v2309 = vpop.f32.mrb[0].mxu0
      %v2310 = vadd.f32 0.0, %v2309
      %v2311 = vpop.f32.mrb[0].mxu0
      %v2312 = vpop.f32.mrb[0].mxu0
      %v2313 = vadd.f32 0.0, %v2312
      %v2314 = vpop.f32.mrb[0].mxu0
      %2315 = vmatprep.mubr.bf16.mxu0 0
      %2316 = vmatmul.mubr.bf16.gmra.mrb[0].mxu0 %v2166
      %v2317 = vpop.f32.mrb[0].mxu0
      %v2318 = vadd.f32 0.0, %v2317
      %v2319 = vpop.f32.mrb[0].mxu0
      %v2320 = vpop.f32.mrb[0].mxu0
      %v2321 = vadd.f32 0.0, %v2320
      %v2322 = vpop.f32.mrb[0].mxu0
      %2323 = vmatprep.mubr.bf16.mxu0 0
      %2324 = vmatmul.mubr.bf16.gmra.mrb[0].mxu0 %v2169
      %v2325 = vpop.f32.mrb[0].mxu0
      %v2326 = vadd.f32 0.0, %v2325
      %v2327 = vpop.f32.mrb[0].mxu0
      %v2328 = vpop.f32.mrb[0].mxu0
      %v2329 = vadd.f32 0.0, %v2328
      %v2330 = vpop.f32.mrb[0].mxu0
      %2331 = vdwg.mxu0
      %v2332 = vadd.f32 %v2009, %v2206
      %v2333 = vadd.f32 %v2010, %v2209
      %v2334 = vadd.f32 %v2011, %v2214
      %v2335 = vadd.f32 %v2012, %v2217
      %v2336 = vadd.f32 %v2013, %v2222
      %v2337 = vadd.f32 %v2014, %v2225
      %v2338 = vadd.f32 %v2015, %v2230
      %v2339 = vadd.f32 %v2016, %v2233
      %v2340 = vadd.f32 %v2017, %v2238
      %v2341 = vadd.f32 %v2018, %v2241
      %v2342 = vadd.f32 %v2019, %v2246
      %v2343 = vadd.f32 %v2020, %v2249
      %v2344 = vadd.f32 %v2021, %v2254
      %v2345 = vadd.f32 %v2022, %v2257
      %v2346 = vadd.f32 %v2023, %v2262
      %v2347 = vadd.f32 %v2024, %v2265
      %v2348 = vadd.f32 %v2025, %v2270
      %v2349 = vadd.f32 %v2026, %v2273
      %v2350 = vadd.f32 %v2027, %v2278
      %v2351 = vadd.f32 %v2028, %v2281
      %v2352 = vadd.f32 %v2029, %v2286
      %v2353 = vadd.f32 %v2030, %v2289
      %v2354 = vadd.f32 %v2031, %v2294
      %v2355 = vadd.f32 %v2032, %v2297
      %v2356 = vadd.f32 %v2033, %v2302
      %v2357 = vadd.f32 %v2034, %v2305
      %v2358 = vadd.f32 %v2035, %v2310
      %v2359 = vadd.f32 %v2036, %v2313
      %v2360 = vadd.f32 %v2037, %v2318
      %v2361 = vadd.f32 %v2038, %v2321
      %v2362 = vadd.f32 %v2039, %v2326
      %v2363 = vadd.f32 %v2040, %v2329
      %v2364 = vld [vmem:[%s2041 + $0x1] sm:$0xff]
      %v2365 = vld [vmem:[%s2041 + $0x9] sm:$0xff]
      %v2366 = vld [vmem:[%s2041 + $0x19] sm:$0xff]
      %v2367 = vld [vmem:[%s2041 + $0x21] sm:$0xff]
      %v2368 = vld [vmem:[%s2041 + $0x31] sm:$0xff]
      %v2369 = vld [vmem:[%s2041 + $0x39] sm:$0xff]
      %v2370 = vld [vmem:[%s2041 + $0x49] sm:$0xff]
      %v2371 = vld [vmem:[%s2041 + $0x51] sm:$0xff]
      %v2372 = vld [vmem:[%s2041 + $0x61] sm:$0xff]
      %v2373 = vld [vmem:[%s2041 + $0x69] sm:$0xff]
      %v2374 = vld [vmem:[%s2041 + $0x79] sm:$0xff]
      %v2375 = vld [vmem:[%s2041 + $0x81] sm:$0xff]
      %v2376 = vld [vmem:[%s2041 + $0x91] sm:$0xff]
      %v2377 = vld [vmem:[%s2041 + $0x99] sm:$0xff]
      %v2378 = vld [vmem:[%s2041 + $0xa9] sm:$0xff]
      %v2379 = vld [vmem:[%s2041 + $0xb1] sm:$0xff]
      %v2380 = vld [vmem:[%s2041 + $0xc1] sm:$0xff]
      %v2381 = vld [vmem:[%s2041 + $0xc9] sm:$0xff]
      %v2382 = vld [vmem:[%s2041 + $0xd9] sm:$0xff]
      %v2383 = vld [vmem:[%s2041 + $0xe1] sm:$0xff]
      %v2384 = vld [vmem:[%s2041 + $0xf1] sm:$0xff]
      %v2385 = vld [vmem:[%s2041 + $0xf9] sm:$0xff]
      %v2386 = vld [vmem:[%s2041 + $0x109] sm:$0xff]
      %v2387 = vld [vmem:[%s2041 + $0x111] sm:$0xff]
      %v2388 = vld [vmem:[%s2041 + $0x121] sm:$0xff]
      %v2389 = vld [vmem:[%s2041 + $0x129] sm:$0xff]
      %v2390 = vld [vmem:[%s2041 + $0x139] sm:$0xff]
      %v2391 = vld [vmem:[%s2041 + $0x141] sm:$0xff]
      %v2392 = vld [vmem:[%s2041 + $0x151] sm:$0xff]
      %v2393 = vld [vmem:[%s2041 + $0x159] sm:$0xff]
      %v2394 = vld [vmem:[%s2041 + $0x169] sm:$0xff]
      %v2395 = vld [vmem:[%s2041 + $0x171] sm:$0xff]
      %v2396 = vpack.c.bf16 %v2365, %v2364
      %v2397 = vpack.c.bf16 %v2367, %v2366
      %v2398 = vpack.c.bf16 %v2369, %v2368
      %v2399 = vpack.c.bf16 %v2371, %v2370
      %v2400 = vpack.c.bf16 %v2373, %v2372
      %v2401 = vpack.c.bf16 %v2375, %v2374
      %v2402 = vpack.c.bf16 %v2377, %v2376
      %v2403 = vpack.c.bf16 %v2379, %v2378
      %v2404 = vpack.c.bf16 %v2381, %v2380
      %v2405 = vpack.c.bf16 %v2383, %v2382
      %v2406 = vpack.c.bf16 %v2385, %v2384
      %v2407 = vpack.c.bf16 %v2387, %v2386
      %v2408 = vpack.c.bf16 %v2389, %v2388
      %v2409 = vpack.c.bf16 %v2391, %v2390
      %v2410 = vpack.c.bf16 %v2393, %v2392
      %v2411 = vpack.c.bf16 %v2395, %v2394
      %s2412 = scalar_lea.vmem %s1, 224
      %v2413 = vld [vmem:[%s2412] sm:$0xf]
      %v2414 = vld [vmem:[%s2412 + $0x4] sm:$0xf]
      %v2415 = vld [vmem:[%s2412 + $0x8] sm:$0xf]
      %v2416 = vld [vmem:[%s2412 + $0xc] sm:$0xf]
      %v2417 = vld [vmem:[%s2412 + $0x10] sm:$0xf]
      %v2418 = vld [vmem:[%s2412 + $0x14] sm:$0xf]
      %v2419 = vld [vmem:[%s2412 + $0x18] sm:$0xf]
      %v2420 = vld [vmem:[%s2412 + $0x1c] sm:$0xf]
      %v2429 = vunpack.c.l.b16 %v2413
      %v2430 = vunpack.c.l.b16 %v2414
      %v2431 = vunpack.c.l.b16 %v2415
      %v2432 = vunpack.c.l.b16 %v2416
      %v2433 = vunpack.c.l.b16 %v2417
      %v2434 = vunpack.c.l.b16 %v2418
      %v2435 = vunpack.c.l.b16 %v2419
      %v2436 = vunpack.c.l.b16 %v2420
      %v2437 = vpack.c.b16 %v2430, %v2429
      %v2438 = vpack.c.b16 %v2432, %v2431
      %v2439 = vpack.c.b16 %v2434, %v2433
      %v2440 = vpack.c.b16 %v2436, %v2435
      %v2446 = vsel %vm309, %v2396, 0
      %v2449 = vsel %vm309, %v2397, 0
      %v2452 = vsel %vm309, %v2398, 0
      %v2455 = vsel %vm309, %v2399, 0
      %v2458 = vsel %vm309, %v2400, 0
      %v2461 = vsel %vm309, %v2401, 0
      %v2464 = vsel %vm309, %v2402, 0
      %v2467 = vsel %vm309, %v2403, 0
      %v2470 = vsel %vm309, %v2404, 0
      %v2473 = vsel %vm309, %v2405, 0
      %v2476 = vsel %vm309, %v2406, 0
      %v2479 = vsel %vm309, %v2407, 0
      %v2482 = vsel %vm309, %v2408, 0
      %v2485 = vsel %vm309, %v2409, 0
      %v2488 = vsel %vm309, %v2410, 0
      %v2491 = vsel %vm309, %v2411, 0
      %2493 = vmatprep.subr.bf16.mxu0 0
      %2494 = vmatpush1.bf16.msra.mxu0 %v2437
      %2495 = vmatprep.subr.bf16.mxu0 0
      %2496 = vmatpush1.bf16.msra.mxu0 %v2438
      %2497 = vmatprep.subr.bf16.mxu0 0
      %2498 = vmatpush1.bf16.msra.mxu0 %v2439
      %2499 = vmatprep.subr.bf16.mxu0 0
      %2500 = vmatpush1.bf16.msra.mxu0 %v2440
      %2501 = vmatprep.subr.bf16.mxu0 0
      %2502 = vmatpush1.bf16.msra.mxu0 0
      %2503 = vmatprep.subr.bf16.mxu0 0
      %2504 = vmatpush1.bf16.msra.mxu0 0
      %2505 = vmatprep.subr.bf16.mxu0 0
      %2506 = vmatpush1.bf16.msra.mxu0 0
      %2507 = vmatprep.subr.bf16.mxu0 0
      %2508 = vmatpush1.bf16.msra.mxu0 0
      %2509 = vmatprep.subr.bf16.mxu0 0
      %2510 = vmatpush1.bf16.msra.mxu0 0
      %2511 = vmatprep.subr.bf16.mxu0 0
      %2512 = vmatpush1.bf16.msra.mxu0 0
      %2513 = vmatprep.subr.bf16.mxu0 0
      %2514 = vmatpush1.bf16.msra.mxu0 0
      %2515 = vmatprep.subr.bf16.mxu0 0
      %2516 = vmatpush1.bf16.msra.mxu0 0
      %2517 = vmatprep.subr.bf16.mxu0 0
      %2518 = vmatpush1.bf16.msra.mxu0 0
      %2519 = vmatprep.subr.bf16.mxu0 0
      %2520 = vmatpush1.bf16.msra.mxu0 0
      %2521 = vmatprep.subr.bf16.mxu0 0
      %2522 = vmatpush1.bf16.msra.mxu0 0
      %2523 = vmatprep.subr.bf16.mxu0 0
      %2524 = vmatpush1.bf16.msra.mxu0 0
      %2525 = vmatprep.mubr.bf16.mxu0 0
      %2526 = vmatmul.mubr.bf16.gmra.mrb[0].mxu0 %v2446
      %v2527 = vpop.f32.mrb[0].mxu0
      %v2528 = vadd.f32 0.0, %v2527
      %v2529 = vpop.f32.mrb[0].mxu0
      %v2530 = vpop.f32.mrb[0].mxu0
      %v2531 = vadd.f32 0.0, %v2530
      %v2532 = vpop.f32.mrb[0].mxu0
      %2533 = vmatprep.mubr.bf16.mxu0 0
      %2534 = vmatmul.mubr.bf16.gmra.mrb[0].mxu0 %v2449
      %v2535 = vpop.f32.mrb[0].mxu0
      %v2536 = vadd.f32 0.0, %v2535
      %v2537 = vpop.f32.mrb[0].mxu0
      %v2538 = vpop.f32.mrb[0].mxu0
      %v2539 = vadd.f32 0.0, %v2538
      %v2540 = vpop.f32.mrb[0].mxu0
      %2541 = vmatprep.mubr.bf16.mxu0 0
      %2542 = vmatmul.mubr.bf16.gmra.mrb[0].mxu0 %v2452
      %v2543 = vpop.f32.mrb[0].mxu0
      %v2544 = vadd.f32 0.0, %v2543
      %v2545 = vpop.f32.mrb[0].mxu0
      %v2546 = vpop.f32.mrb[0].mxu0
      %v2547 = vadd.f32 0.0, %v2546
      %v2548 = vpop.f32.mrb[0].mxu0
      %2549 = vmatprep.mubr.bf16.mxu0 0
      %2550 = vmatmul.mubr.bf16.gmra.mrb[0].mxu0 %v2455
      %v2551 = vpop.f32.mrb[0].mxu0
      %v2552 = vadd.f32 0.0, %v2551
      %v2553 = vpop.f32.mrb[0].mxu0
      %v2554 = vpop.f32.mrb[0].mxu0
      %v2555 = vadd.f32 0.0, %v2554
      %v2556 = vpop.f32.mrb[0].mxu0
      %2557 = vmatprep.mubr.bf16.mxu0 0
      %2558 = vmatmul.mubr.bf16.gmra.mrb[0].mxu0 %v2458
      %v2559 = vpop.f32.mrb[0].mxu0
      %v2560 = vadd.f32 0.0, %v2559
      %v2561 = vpop.f32.mrb[0].mxu0
      %v2562 = vpop.f32.mrb[0].mxu0
      %v2563 = vadd.f32 0.0, %v2562
      %v2564 = vpop.f32.mrb[0].mxu0
      %2565 = vmatprep.mubr.bf16.mxu0 0
      %2566 = vmatmul.mubr.bf16.gmra.mrb[0].mxu0 %v2461
      %v2567 = vpop.f32.mrb[0].mxu0
      %v2568 = vadd.f32 0.0, %v2567
      %v2569 = vpop.f32.mrb[0].mxu0
      %v2570 = vpop.f32.mrb[0].mxu0
      %v2571 = vadd.f32 0.0, %v2570
      %v2572 = vpop.f32.mrb[0].mxu0
      %2573 = vmatprep.mubr.bf16.mxu0 0
      %2574 = vmatmul.mubr.bf16.gmra.mrb[0].mxu0 %v2464
      %v2575 = vpop.f32.mrb[0].mxu0
      %v2576 = vadd.f32 0.0, %v2575
      %v2577 = vpop.f32.mrb[0].mxu0
      %v2578 = vpop.f32.mrb[0].mxu0
      %v2579 = vadd.f32 0.0, %v2578
      %v2580 = vpop.f32.mrb[0].mxu0
      %2581 = vmatprep.mubr.bf16.mxu0 0
      %2582 = vmatmul.mubr.bf16.gmra.mrb[0].mxu0 %v2467
      %v2583 = vpop.f32.mrb[0].mxu0
      %v2584 = vadd.f32 0.0, %v2583
      %v2585 = vpop.f32.mrb[0].mxu0
      %v2586 = vpop.f32.mrb[0].mxu0
      %v2587 = vadd.f32 0.0, %v2586
      %v2588 = vpop.f32.mrb[0].mxu0
      %2589 = vmatprep.mubr.bf16.mxu0 0
      %2590 = vmatmul.mubr.bf16.gmra.mrb[0].mxu0 %v2470
      %v2591 = vpop.f32.mrb[0].mxu0
      %v2592 = vadd.f32 0.0, %v2591
      %v2593 = vpop.f32.mrb[0].mxu0
      %v2594 = vpop.f32.mrb[0].mxu0
      %v2595 = vadd.f32 0.0, %v2594
      %v2596 = vpop.f32.mrb[0].mxu0
      %2597 = vmatprep.mubr.bf16.mxu0 0
      %2598 = vmatmul.mubr.bf16.gmra.mrb[0].mxu0 %v2473
      %v2599 = vpop.f32.mrb[0].mxu0
      %v2600 = vadd.f32 0.0, %v2599
      %v2601 = vpop.f32.mrb[0].mxu0
      %v2602 = vpop.f32.mrb[0].mxu0
      %v2603 = vadd.f32 0.0, %v2602
      %v2604 = vpop.f32.mrb[0].mxu0
      %2605 = vmatprep.mubr.bf16.mxu0 0
      %2606 = vmatmul.mubr.bf16.gmra.mrb[0].mxu0 %v2476
      %v2607 = vpop.f32.mrb[0].mxu0
      %v2608 = vadd.f32 0.0, %v2607
      %v2609 = vpop.f32.mrb[0].mxu0
      %v2610 = vpop.f32.mrb[0].mxu0
      %v2611 = vadd.f32 0.0, %v2610
      %v2612 = vpop.f32.mrb[0].mxu0
      %2613 = vmatprep.mubr.bf16.mxu0 0
      %2614 = vmatmul.mubr.bf16.gmra.mrb[0].mxu0 %v2479
      %v2615 = vpop.f32.mrb[0].mxu0
      %v2616 = vadd.f32 0.0, %v2615
      %v2617 = vpop.f32.mrb[0].mxu0
      %v2618 = vpop.f32.mrb[0].mxu0
      %v2619 = vadd.f32 0.0, %v2618
      %v2620 = vpop.f32.mrb[0].mxu0
      %2621 = vmatprep.mubr.bf16.mxu0 0
      %2622 = vmatmul.mubr.bf16.gmra.mrb[0].mxu0 %v2482
      %v2623 = vpop.f32.mrb[0].mxu0
      %v2624 = vadd.f32 0.0, %v2623
      %v2625 = vpop.f32.mrb[0].mxu0
      %v2626 = vpop.f32.mrb[0].mxu0
      %v2627 = vadd.f32 0.0, %v2626
      %v2628 = vpop.f32.mrb[0].mxu0
      %2629 = vmatprep.mubr.bf16.mxu0 0
      %2630 = vmatmul.mubr.bf16.gmra.mrb[0].mxu0 %v2485
      %v2631 = vpop.f32.mrb[0].mxu0
      %v2632 = vadd.f32 0.0, %v2631
      %v2633 = vpop.f32.mrb[0].mxu0
      %v2634 = vpop.f32.mrb[0].mxu0
      %v2635 = vadd.f32 0.0, %v2634
      %v2636 = vpop.f32.mrb[0].mxu0
      %2637 = vmatprep.mubr.bf16.mxu0 0
      %2638 = vmatmul.mubr.bf16.gmra.mrb[0].mxu0 %v2488
      %v2639 = vpop.f32.mrb[0].mxu0
      %v2640 = vadd.f32 0.0, %v2639
      %v2641 = vpop.f32.mrb[0].mxu0
      %v2642 = vpop.f32.mrb[0].mxu0
      %v2643 = vadd.f32 0.0, %v2642
      %v2644 = vpop.f32.mrb[0].mxu0
      %2645 = vmatprep.mubr.bf16.mxu0 0
      %2646 = vmatmul.mubr.bf16.gmra.mrb[0].mxu0 %v2491
      %v2647 = vpop.f32.mrb[0].mxu0
      %v2648 = vadd.f32 0.0, %v2647
      %v2649 = vpop.f32.mrb[0].mxu0
      %v2650 = vpop.f32.mrb[0].mxu0
      %v2651 = vadd.f32 0.0, %v2650
      %v2652 = vpop.f32.mrb[0].mxu0
      %2653 = vdwg.mxu0
      %v2654 = vadd.f32 %v2332, %v2528
      %v2655 = vadd.f32 %v2333, %v2531
      %v2656 = vadd.f32 %v2334, %v2536
      %v2657 = vadd.f32 %v2335, %v2539
      %v2658 = vadd.f32 %v2336, %v2544
      %v2659 = vadd.f32 %v2337, %v2547
      %v2660 = vadd.f32 %v2338, %v2552
      %v2661 = vadd.f32 %v2339, %v2555
      %v2662 = vadd.f32 %v2340, %v2560
      %v2663 = vadd.f32 %v2341, %v2563
      %v2664 = vadd.f32 %v2342, %v2568
      %v2665 = vadd.f32 %v2343, %v2571
      %v2666 = vadd.f32 %v2344, %v2576
      %v2667 = vadd.f32 %v2345, %v2579
      %v2668 = vadd.f32 %v2346, %v2584
      %v2669 = vadd.f32 %v2347, %v2587
      %v2670 = vadd.f32 %v2348, %v2592
      %v2671 = vadd.f32 %v2349, %v2595
      %v2672 = vadd.f32 %v2350, %v2600
      %v2673 = vadd.f32 %v2351, %v2603
      %v2674 = vadd.f32 %v2352, %v2608
      %v2675 = vadd.f32 %v2353, %v2611
      %v2676 = vadd.f32 %v2354, %v2616
      %v2677 = vadd.f32 %v2355, %v2619
      %v2678 = vadd.f32 %v2356, %v2624
      %v2679 = vadd.f32 %v2357, %v2627
      %v2680 = vadd.f32 %v2358, %v2632
      %v2681 = vadd.f32 %v2359, %v2635
      %v2682 = vadd.f32 %v2360, %v2640
      %v2683 = vadd.f32 %v2361, %v2643
      %v2684 = vadd.f32 %v2362, %v2648
      %v2685 = vadd.f32 %v2363, %v2651
      %v2686 = vld [vmem:[%s2041 + $0x2] sm:$0xff]
      %v2687 = vld [vmem:[%s2041 + $0xa] sm:$0xff]
      %v2688 = vld [vmem:[%s2041 + $0x1a] sm:$0xff]
      %v2689 = vld [vmem:[%s2041 + $0x22] sm:$0xff]
      %v2690 = vld [vmem:[%s2041 + $0x32] sm:$0xff]
      %v2691 = vld [vmem:[%s2041 + $0x3a] sm:$0xff]
      %v2692 = vld [vmem:[%s2041 + $0x4a] sm:$0xff]
      %v2693 = vld [vmem:[%s2041 + $0x52] sm:$0xff]
      %v2694 = vld [vmem:[%s2041 + $0x62] sm:$0xff]
      %v2695 = vld [vmem:[%s2041 + $0x6a] sm:$0xff]
      %v2696 = vld [vmem:[%s2041 + $0x7a] sm:$0xff]
      %v2697 = vld [vmem:[%s2041 + $0x82] sm:$0xff]
      %v2698 = vld [vmem:[%s2041 + $0x92] sm:$0xff]
      %v2699 = vld [vmem:[%s2041 + $0x9a] sm:$0xff]
      %v2700 = vld [vmem:[%s2041 + $0xaa] sm:$0xff]
      %v2701 = vld [vmem:[%s2041 + $0xb2] sm:$0xff]
      %v2702 = vld [vmem:[%s2041 + $0xc2] sm:$0xff]
      %v2703 = vld [vmem:[%s2041 + $0xca] sm:$0xff]
      %v2704 = vld [vmem:[%s2041 + $0xda] sm:$0xff]
      %v2705 = vld [vmem:[%s2041 + $0xe2] sm:$0xff]
      %v2706 = vld [vmem:[%s2041 + $0xf2] sm:$0xff]
      %v2707 = vld [vmem:[%s2041 + $0xfa] sm:$0xff]
      %v2708 = vld [vmem:[%s2041 + $0x10a] sm:$0xff]
      %v2709 = vld [vmem:[%s2041 + $0x112] sm:$0xff]
      %v2710 = vld [vmem:[%s2041 + $0x122] sm:$0xff]
      %v2711 = vld [vmem:[%s2041 + $0x12a] sm:$0xff]
      %v2712 = vld [vmem:[%s2041 + $0x13a] sm:$0xff]
      %v2713 = vld [vmem:[%s2041 + $0x142] sm:$0xff]
      %v2714 = vld [vmem:[%s2041 + $0x152] sm:$0xff]
      %v2715 = vld [vmem:[%s2041 + $0x15a] sm:$0xff]
      %v2716 = vld [vmem:[%s2041 + $0x16a] sm:$0xff]
      %v2717 = vld [vmem:[%s2041 + $0x172] sm:$0xff]
      %v2718 = vpack.c.bf16 %v2687, %v2686
      %v2719 = vpack.c.bf16 %v2689, %v2688
      %v2720 = vpack.c.bf16 %v2691, %v2690
      %v2721 = vpack.c.bf16 %v2693, %v2692
      %v2722 = vpack.c.bf16 %v2695, %v2694
      %v2723 = vpack.c.bf16 %v2697, %v2696
      %v2724 = vpack.c.bf16 %v2699, %v2698
      %v2725 = vpack.c.bf16 %v2701, %v2700
      %v2726 = vpack.c.bf16 %v2703, %v2702
      %v2727 = vpack.c.bf16 %v2705, %v2704
      %v2728 = vpack.c.bf16 %v2707, %v2706
      %v2729 = vpack.c.bf16 %v2709, %v2708
      %v2730 = vpack.c.bf16 %v2711, %v2710
      %v2731 = vpack.c.bf16 %v2713, %v2712
      %v2732 = vpack.c.bf16 %v2715, %v2714
      %v2733 = vpack.c.bf16 %v2717, %v2716
      %s2734 = scalar_lea.vmem %s1, 256
      %v2735 = vld [vmem:[%s2734] sm:$0xf]
      %v2736 = vld [vmem:[%s2734 + $0x4] sm:$0xf]
      %v2737 = vld [vmem:[%s2734 + $0x8] sm:$0xf]
      %v2738 = vld [vmem:[%s2734 + $0xc] sm:$0xf]
      %v2739 = vld [vmem:[%s2734 + $0x10] sm:$0xf]
      %v2740 = vld [vmem:[%s2734 + $0x14] sm:$0xf]
      %v2741 = vld [vmem:[%s2734 + $0x18] sm:$0xf]
      %v2742 = vld [vmem:[%s2734 + $0x1c] sm:$0xf]
      %v2751 = vunpack.c.l.b16 %v2735
      %v2752 = vunpack.c.l.b16 %v2736
      %v2753 = vunpack.c.l.b16 %v2737
      %v2754 = vunpack.c.l.b16 %v2738
      %v2755 = vunpack.c.l.b16 %v2739
      %v2756 = vunpack.c.l.b16 %v2740
      %v2757 = vunpack.c.l.b16 %v2741
      %v2758 = vunpack.c.l.b16 %v2742
      %v2759 = vpack.c.b16 %v2752, %v2751
      %v2760 = vpack.c.b16 %v2754, %v2753
      %v2761 = vpack.c.b16 %v2756, %v2755
      %v2762 = vpack.c.b16 %v2758, %v2757
      %v2768 = vsel %vm309, %v2718, 0
      %v2771 = vsel %vm309, %v2719, 0
      %v2774 = vsel %vm309, %v2720, 0
      %v2777 = vsel %vm309, %v2721, 0
      %v2780 = vsel %vm309, %v2722, 0
      %v2783 = vsel %vm309, %v2723, 0
      %v2786 = vsel %vm309, %v2724, 0
      %v2789 = vsel %vm309, %v2725, 0
      %v2792 = vsel %vm309, %v2726, 0
      %v2795 = vsel %vm309, %v2727, 0
      %v2798 = vsel %vm309, %v2728, 0
      %v2801 = vsel %vm309, %v2729, 0
      %v2804 = vsel %vm309, %v2730, 0
      %v2807 = vsel %vm309, %v2731, 0
      %v2810 = vsel %vm309, %v2732, 0
      %v2813 = vsel %vm309, %v2733, 0
      %2815 = vmatprep.subr.bf16.mxu0 0
      %2816 = vmatpush1.bf16.msra.mxu0 %v2759
      %2817 = vmatprep.subr.bf16.mxu0 0
      %2818 = vmatpush1.bf16.msra.mxu0 %v2760
      %2819 = vmatprep.subr.bf16.mxu0 0
      %2820 = vmatpush1.bf16.msra.mxu0 %v2761
      %2821 = vmatprep.subr.bf16.mxu0 0
      %2822 = vmatpush1.bf16.msra.mxu0 %v2762
      %2823 = vmatprep.subr.bf16.mxu0 0
      %2824 = vmatpush1.bf16.msra.mxu0 0
      %2825 = vmatprep.subr.bf16.mxu0 0
      %2826 = vmatpush1.bf16.msra.mxu0 0
      %2827 = vmatprep.subr.bf16.mxu0 0
      %2828 = vmatpush1.bf16.msra.mxu0 0
      %2829 = vmatprep.subr.bf16.mxu0 0
      %2830 = vmatpush1.bf16.msra.mxu0 0
      %2831 = vmatprep.subr.bf16.mxu0 0
      %2832 = vmatpush1.bf16.msra.mxu0 0
      %2833 = vmatprep.subr.bf16.mxu0 0
      %2834 = vmatpush1.bf16.msra.mxu0 0
      %2835 = vmatprep.subr.bf16.mxu0 0
      %2836 = vmatpush1.bf16.msra.mxu0 0
      %2837 = vmatprep.subr.bf16.mxu0 0
      %2838 = vmatpush1.bf16.msra.mxu0 0
      %2839 = vmatprep.subr.bf16.mxu0 0
      %2840 = vmatpush1.bf16.msra.mxu0 0
      %2841 = vmatprep.subr.bf16.mxu0 0
      %2842 = vmatpush1.bf16.msra.mxu0 0
      %2843 = vmatprep.subr.bf16.mxu0 0
      %2844 = vmatpush1.bf16.msra.mxu0 0
      %2845 = vmatprep.subr.bf16.mxu0 0
      %2846 = vmatpush1.bf16.msra.mxu0 0
      %2847 = vmatprep.mubr.bf16.mxu0 0
      %2848 = vmatmul.mubr.bf16.gmra.mrb[0].mxu0 %v2768
      %v2849 = vpop.f32.mrb[0].mxu0
      %v2850 = vadd.f32 0.0, %v2849
      %v2851 = vpop.f32.mrb[0].mxu0
      %v2852 = vpop.f32.mrb[0].mxu0
      %v2853 = vadd.f32 0.0, %v2852
      %v2854 = vpop.f32.mrb[0].mxu0
      %2855 = vmatprep.mubr.bf16.mxu0 0
      %2856 = vmatmul.mubr.bf16.gmra.mrb[0].mxu0 %v2771
      %v2857 = vpop.f32.mrb[0].mxu0
      %v2858 = vadd.f32 0.0, %v2857
      %v2859 = vpop.f32.mrb[0].mxu0
      %v2860 = vpop.f32.mrb[0].mxu0
      %v2861 = vadd.f32 0.0, %v2860
      %v2862 = vpop.f32.mrb[0].mxu0
      %2863 = vmatprep.mubr.bf16.mxu0 0
      %2864 = vmatmul.mubr.bf16.gmra.mrb[0].mxu0 %v2774
      %v2865 = vpop.f32.mrb[0].mxu0
      %v2866 = vadd.f32 0.0, %v2865
      %v2867 = vpop.f32.mrb[0].mxu0
      %v2868 = vpop.f32.mrb[0].mxu0
      %v2869 = vadd.f32 0.0, %v2868
      %v2870 = vpop.f32.mrb[0].mxu0
      %2871 = vmatprep.mubr.bf16.mxu0 0
      %2872 = vmatmul.mubr.bf16.gmra.mrb[0].mxu0 %v2777
      %v2873 = vpop.f32.mrb[0].mxu0
      %v2874 = vadd.f32 0.0, %v2873
      %v2875 = vpop.f32.mrb[0].mxu0
      %v2876 = vpop.f32.mrb[0].mxu0
      %v2877 = vadd.f32 0.0, %v2876
      %v2878 = vpop.f32.mrb[0].mxu0
      %2879 = vmatprep.mubr.bf16.mxu0 0
      %2880 = vmatmul.mubr.bf16.gmra.mrb[0].mxu0 %v2780
      %v2881 = vpop.f32.mrb[0].mxu0
      %v2882 = vadd.f32 0.0, %v2881
      %v2883 = vpop.f32.mrb[0].mxu0
      %v2884 = vpop.f32.mrb[0].mxu0
      %v2885 = vadd.f32 0.0, %v2884
      %v2886 = vpop.f32.mrb[0].mxu0
      %2887 = vmatprep.mubr.bf16.mxu0 0
      %2888 = vmatmul.mubr.bf16.gmra.mrb[0].mxu0 %v2783
      %v2889 = vpop.f32.mrb[0].mxu0
      %v2890 = vadd.f32 0.0, %v2889
      %v2891 = vpop.f32.mrb[0].mxu0
      %v2892 = vpop.f32.mrb[0].mxu0
      %v2893 = vadd.f32 0.0, %v2892
      %v2894 = vpop.f32.mrb[0].mxu0
      %2895 = vmatprep.mubr.bf16.mxu0 0
      %2896 = vmatmul.mubr.bf16.gmra.mrb[0].mxu0 %v2786
      %v2897 = vpop.f32.mrb[0].mxu0
      %v2898 = vadd.f32 0.0, %v2897
      %v2899 = vpop.f32.mrb[0].mxu0
      %v2900 = vpop.f32.mrb[0].mxu0
      %v2901 = vadd.f32 0.0, %v2900
      %v2902 = vpop.f32.mrb[0].mxu0
      %2903 = vmatprep.mubr.bf16.mxu0 0
      %2904 = vmatmul.mubr.bf16.gmra.mrb[0].mxu0 %v2789
      %v2905 = vpop.f32.mrb[0].mxu0
      %v2906 = vadd.f32 0.0, %v2905
      %v2907 = vpop.f32.mrb[0].mxu0
      %v2908 = vpop.f32.mrb[0].mxu0
      %v2909 = vadd.f32 0.0, %v2908
      %v2910 = vpop.f32.mrb[0].mxu0
      %2911 = vmatprep.mubr.bf16.mxu0 0
      %2912 = vmatmul.mubr.bf16.gmra.mrb[0].mxu0 %v2792
      %v2913 = vpop.f32.mrb[0].mxu0
      %v2914 = vadd.f32 0.0, %v2913
      %v2915 = vpop.f32.mrb[0].mxu0
      %v2916 = vpop.f32.mrb[0].mxu0
      %v2917 = vadd.f32 0.0, %v2916
      %v2918 = vpop.f32.mrb[0].mxu0
      %2919 = vmatprep.mubr.bf16.mxu0 0
      %2920 = vmatmul.mubr.bf16.gmra.mrb[0].mxu0 %v2795
      %v2921 = vpop.f32.mrb[0].mxu0
      %v2922 = vadd.f32 0.0, %v2921
      %v2923 = vpop.f32.mrb[0].mxu0
      %v2924 = vpop.f32.mrb[0].mxu0
      %v2925 = vadd.f32 0.0, %v2924
      %v2926 = vpop.f32.mrb[0].mxu0
      %2927 = vmatprep.mubr.bf16.mxu0 0
      %2928 = vmatmul.mubr.bf16.gmra.mrb[0].mxu0 %v2798
      %v2929 = vpop.f32.mrb[0].mxu0
      %v2930 = vadd.f32 0.0, %v2929
      %v2931 = vpop.f32.mrb[0].mxu0
      %v2932 = vpop.f32.mrb[0].mxu0
      %v2933 = vadd.f32 0.0, %v2932
      %v2934 = vpop.f32.mrb[0].mxu0
      %2935 = vmatprep.mubr.bf16.mxu0 0
      %2936 = vmatmul.mubr.bf16.gmra.mrb[0].mxu0 %v2801
      %v2937 = vpop.f32.mrb[0].mxu0
      %v2938 = vadd.f32 0.0, %v2937
      %v2939 = vpop.f32.mrb[0].mxu0
      %v2940 = vpop.f32.mrb[0].mxu0
      %v2941 = vadd.f32 0.0, %v2940
      %v2942 = vpop.f32.mrb[0].mxu0
      %2943 = vmatprep.mubr.bf16.mxu0 0
      %2944 = vmatmul.mubr.bf16.gmra.mrb[0].mxu0 %v2804
      %v2945 = vpop.f32.mrb[0].mxu0
      %v2946 = vadd.f32 0.0, %v2945
      %v2947 = vpop.f32.mrb[0].mxu0
      %v2948 = vpop.f32.mrb[0].mxu0
      %v2949 = vadd.f32 0.0, %v2948
      %v2950 = vpop.f32.mrb[0].mxu0
      %2951 = vmatprep.mubr.bf16.mxu0 0
      %2952 = vmatmul.mubr.bf16.gmra.mrb[0].mxu0 %v2807
      %v2953 = vpop.f32.mrb[0].mxu0
      %v2954 = vadd.f32 0.0, %v2953
      %v2955 = vpop.f32.mrb[0].mxu0
      %v2956 = vpop.f32.mrb[0].mxu0
      %v2957 = vadd.f32 0.0, %v2956
      %v2958 = vpop.f32.mrb[0].mxu0
      %2959 = vmatprep.mubr.bf16.mxu0 0
      %2960 = vmatmul.mubr.bf16.gmra.mrb[0].mxu0 %v2810
      %v2961 = vpop.f32.mrb[0].mxu0
      %v2962 = vadd.f32 0.0, %v2961
      %v2963 = vpop.f32.mrb[0].mxu0
      %v2964 = vpop.f32.mrb[0].mxu0
      %v2965 = vadd.f32 0.0, %v2964
      %v2966 = vpop.f32.mrb[0].mxu0
      %2967 = vmatprep.mubr.bf16.mxu0 0
      %2968 = vmatmul.mubr.bf16.gmra.mrb[0].mxu0 %v2813
      %v2969 = vpop.f32.mrb[0].mxu0
      %v2970 = vadd.f32 0.0, %v2969
      %v2971 = vpop.f32.mrb[0].mxu0
      %v2972 = vpop.f32.mrb[0].mxu0
      %v2973 = vadd.f32 0.0, %v2972
      %v2974 = vpop.f32.mrb[0].mxu0
      %2975 = vdwg.mxu0
      %v2976 = vadd.f32 %v2654, %v2850
      %v2977 = vadd.f32 %v2655, %v2853
      %v2978 = vadd.f32 %v2656, %v2858
      %v2979 = vadd.f32 %v2657, %v2861
      %v2980 = vadd.f32 %v2658, %v2866
      %v2981 = vadd.f32 %v2659, %v2869
      %v2982 = vadd.f32 %v2660, %v2874
      %v2983 = vadd.f32 %v2661, %v2877
      %v2984 = vadd.f32 %v2662, %v2882
      %v2985 = vadd.f32 %v2663, %v2885
      %v2986 = vadd.f32 %v2664, %v2890
      %v2987 = vadd.f32 %v2665, %v2893
      %v2988 = vadd.f32 %v2666, %v2898
      %v2989 = vadd.f32 %v2667, %v2901
      %v2990 = vadd.f32 %v2668, %v2906
      %v2991 = vadd.f32 %v2669, %v2909
      %v2992 = vadd.f32 %v2670, %v2914
      %v2993 = vadd.f32 %v2671, %v2917
      %v2994 = vadd.f32 %v2672, %v2922
      %v2995 = vadd.f32 %v2673, %v2925
      %v2996 = vadd.f32 %v2674, %v2930
      %v2997 = vadd.f32 %v2675, %v2933
      %v2998 = vadd.f32 %v2676, %v2938
      %v2999 = vadd.f32 %v2677, %v2941
      %v3000 = vadd.f32 %v2678, %v2946
      %v3001 = vadd.f32 %v2679, %v2949
      %v3002 = vadd.f32 %v2680, %v2954
      %v3003 = vadd.f32 %v2681, %v2957
      %v3004 = vadd.f32 %v2682, %v2962
      %v3005 = vadd.f32 %v2683, %v2965
      %v3006 = vadd.f32 %v2684, %v2970
      %v3007 = vadd.f32 %v2685, %v2973
      %v3008 = vld [vmem:[%s2] sm:$0x1]
      %v3010 = vlaneseq
      %v3011 = vshrl.u32 %v3010, 7
      %v3012 = vsub.s32 0, %v3011
      %v3013 = vrot.slane %v3008, %v3012
      %v3015 = vadd.f32 %v2976, %v3013
      %v3016 = vadd.f32 %v2977, %v3013
      %v3017 = vadd.f32 %v2978, %v3013
      %v3018 = vadd.f32 %v2979, %v3013
      %v3019 = vadd.f32 %v2980, %v3013
      %v3020 = vadd.f32 %v2981, %v3013
      %v3021 = vadd.f32 %v2982, %v3013
      %v3022 = vadd.f32 %v2983, %v3013
      %v3023 = vadd.f32 %v2984, %v3013
      %v3024 = vadd.f32 %v2985, %v3013
      %v3025 = vadd.f32 %v2986, %v3013
      %v3026 = vadd.f32 %v2987, %v3013
      %v3027 = vadd.f32 %v2988, %v3013
      %v3028 = vadd.f32 %v2989, %v3013
      %v3029 = vadd.f32 %v2990, %v3013
      %v3030 = vadd.f32 %v2991, %v3013
      %v3031 = vadd.f32 %v2992, %v3013
      %v3032 = vadd.f32 %v2993, %v3013
      %v3033 = vadd.f32 %v2994, %v3013
      %v3034 = vadd.f32 %v2995, %v3013
      %v3035 = vadd.f32 %v2996, %v3013
      %v3036 = vadd.f32 %v2997, %v3013
      %v3037 = vadd.f32 %v2998, %v3013
      %v3038 = vadd.f32 %v2999, %v3013
      %v3039 = vadd.f32 %v3000, %v3013
      %v3040 = vadd.f32 %v3001, %v3013
      %v3041 = vadd.f32 %v3002, %v3013
      %v3042 = vadd.f32 %v3003, %v3013
      %v3043 = vadd.f32 %v3004, %v3013
      %v3044 = vadd.f32 %v3005, %v3013
      %v3045 = vadd.f32 %v3006, %v3013
      %v3046 = vadd.f32 %v3007, %v3013
      %v3047 = vmax.f32 %v3015, 0.0
      %v3048 = vmax.f32 %v3016, 0.0
      %v3049 = vmax.f32 %v3017, 0.0
      %v3050 = vmax.f32 %v3018, 0.0
      %v3051 = vmax.f32 %v3019, 0.0
      %v3052 = vmax.f32 %v3020, 0.0
      %v3053 = vmax.f32 %v3021, 0.0
      %v3054 = vmax.f32 %v3022, 0.0
      %v3055 = vmax.f32 %v3023, 0.0
      %v3056 = vmax.f32 %v3024, 0.0
      %v3057 = vmax.f32 %v3025, 0.0
      %v3058 = vmax.f32 %v3026, 0.0
      %v3059 = vmax.f32 %v3027, 0.0
      %v3060 = vmax.f32 %v3028, 0.0
      %v3061 = vmax.f32 %v3029, 0.0
      %v3062 = vmax.f32 %v3030, 0.0
      %v3063 = vmax.f32 %v3031, 0.0
      %v3064 = vmax.f32 %v3032, 0.0
      %v3065 = vmax.f32 %v3033, 0.0
      %v3066 = vmax.f32 %v3034, 0.0
      %v3067 = vmax.f32 %v3035, 0.0
      %v3068 = vmax.f32 %v3036, 0.0
      %v3069 = vmax.f32 %v3037, 0.0
      %v3070 = vmax.f32 %v3038, 0.0
      %v3071 = vmax.f32 %v3039, 0.0
      %v3072 = vmax.f32 %v3040, 0.0
      %v3073 = vmax.f32 %v3041, 0.0
      %v3074 = vmax.f32 %v3042, 0.0
      %v3075 = vmax.f32 %v3043, 0.0
      %v3076 = vmax.f32 %v3044, 0.0
      %v3077 = vmax.f32 %v3045, 0.0
      %v3078 = vmax.f32 %v3046, 0.0
      %vm3079 = vcmask 130048
      %3080 = vst.msk [vmem:[%s170] sm:$0xff] %vm3079, %v3047
      %3081 = vst.msk [vmem:[%s170 + $0x8] sm:$0xff] %vm3079, %v3048
      %3082 = vst.msk [vmem:[%s170 + $0x10] sm:$0xff] %vm3079, %v3049
      %3083 = vst.msk [vmem:[%s170 + $0x18] sm:$0xff] %vm3079, %v3050
      %3084 = vst.msk [vmem:[%s170 + $0x20] sm:$0xff] %vm3079, %v3051
      %3085 = vst.msk [vmem:[%s170 + $0x28] sm:$0xff] %vm3079, %v3052
      %3086 = vst.msk [vmem:[%s170 + $0x30] sm:$0xff] %vm3079, %v3053
      %3087 = vst.msk [vmem:[%s170 + $0x38] sm:$0xff] %vm3079, %v3054
      %3088 = vst.msk [vmem:[%s170 + $0x40] sm:$0xff] %vm3079, %v3055
      %3089 = vst.msk [vmem:[%s170 + $0x48] sm:$0xff] %vm3079, %v3056
      %3090 = vst.msk [vmem:[%s170 + $0x50] sm:$0xff] %vm3079, %v3057
      %3091 = vst.msk [vmem:[%s170 + $0x58] sm:$0xff] %vm3079, %v3058
      %3092 = vst.msk [vmem:[%s170 + $0x60] sm:$0xff] %vm3079, %v3059
      %3093 = vst.msk [vmem:[%s170 + $0x68] sm:$0xff] %vm3079, %v3060
      %3094 = vst.msk [vmem:[%s170 + $0x70] sm:$0xff] %vm3079, %v3061
      %3095 = vst.msk [vmem:[%s170 + $0x78] sm:$0xff] %vm3079, %v3062
      %3096 = vst.msk [vmem:[%s170 + $0x80] sm:$0xff] %vm3079, %v3063
      %3097 = vst.msk [vmem:[%s170 + $0x88] sm:$0xff] %vm3079, %v3064
      %3098 = vst.msk [vmem:[%s170 + $0x90] sm:$0xff] %vm3079, %v3065
      %3099 = vst.msk [vmem:[%s170 + $0x98] sm:$0xff] %vm3079, %v3066
      %3100 = vst.msk [vmem:[%s170 + $0xa0] sm:$0xff] %vm3079, %v3067
      %3101 = vst.msk [vmem:[%s170 + $0xa8] sm:$0xff] %vm3079, %v3068
      %3102 = vst.msk [vmem:[%s170 + $0xb0] sm:$0xff] %vm3079, %v3069
      %3103 = vst.msk [vmem:[%s170 + $0xb8] sm:$0xff] %vm3079, %v3070
      %3104 = vst.msk [vmem:[%s170 + $0xc0] sm:$0xff] %vm3079, %v3071
      %3105 = vst.msk [vmem:[%s170 + $0xc8] sm:$0xff] %vm3079, %v3072
      %3106 = vst.msk [vmem:[%s170 + $0xd0] sm:$0xff] %vm3079, %v3073
      %3107 = vst.msk [vmem:[%s170 + $0xd8] sm:$0xff] %vm3079, %v3074
      %3108 = vst.msk [vmem:[%s170 + $0xe0] sm:$0xff] %vm3079, %v3075
      %3109 = vst.msk [vmem:[%s170 + $0xe8] sm:$0xff] %vm3079, %v3076
      %3110 = vst.msk [vmem:[%s170 + $0xf0] sm:$0xff] %vm3079, %v3077
      %3111 = vst.msk [vmem:[%s170 + $0xf8] sm:$0xff] %vm3079, %v3078
      %p3112 = scmp.lt.s32.totalorder %s14, 1
      %s3113 = scalar_select %p3112, %s14, 1
      %s3114 = smul.addr %s3113, 32
      %s3115 = smul.addr %s3114, 8
      %s3116 = scalar_lea.vmem %s3, %s3115
      // Predicated region
      $region33: #{da_head_forward.10} parent=31 // pred_check
        %p3117 = pneg %p100
      $region34: #{da_head_forward.10} parent=31 // pred_check_branch
        %3119 = sbr.rel (%p3117) target = $region36
      $region35: #{da_head_forward.10} parent=31 // pred_region
        _
      $region36: #{da_head_forward.10} parent=31 // pred_fallthru
        _
    $region32: #{da_head_forward.10} parent=5 // pred_fallthru
      _
    %p3120 = scmp.le.s32.totalorder 2, %s9
    // Predicated region
    $region37: #{da_head_forward.10} parent=5 // pred_check
      %p3121 = pneg %p3120
    $region38: #{da_head_forward.10} parent=5 // pred_check_branch
      %3123 = sbr.rel (%p3121) target = $region40
    $region39: #{da_head_forward.10} parent=5 // pred_region
      %s3124 = ssub.s32 %s9, 2
      // Predicated region
      $region41: #{da_head_forward.10} parent=39 // pred_check
        %p3125 = pneg %p106
      $region42: #{da_head_forward.10} parent=39 // pred_check_branch
        %3127 = sbr.rel (%p3125) target = $region44
      $region43: #{da_head_forward.10} parent=39 // pred_region
        %p3128 = scmp.lt.s32.totalorder %s15, 1
        %s3129 = scalar_select %p3128, %s15, 1
        %s3130 = smul.addr %s3129, 32
        %s3131 = smul.addr %s3130, 8
        %s3132 = scalar_lea.vmem %s3, %s3131
      $region44: #{da_head_forward.10} parent=39 // pred_fallthru
        _
    $region40: #{da_head_forward.10} parent=5 // pred_fallthru
      _
  $region6: #{da_head_forward.10} parent=0 // loop_footer
    %s13 = sadd.s32 1, %s9
  $region7: #{da_head_forward.10} parent=0 // loop_footer_branch
    %8 = sbr.rel target = $region3
  $region8: #{da_head_forward.10} parent=0 // loop_exit
    _

// kernel: da_head_forward.9
$region0: #{da_head_forward.9}
  #allocation0 [shape = 'u32[]', space=smem, size = 0x4, offset = 0x4, fixed_abs, tag = 'smem constant byte address 0x4 - core index']
  #allocation1 [shape = 'u32[144,128]{1,0:T(1,128)}', space=vmem, size = 0x12000, scoped, tag = 'internal scratch']
  %s0 = inlined_call_operand.vmem [shape: f32[2,18,18,16], index: 0, kind: input, shape index: {}]
  %s1 = inlined_call_operand.vmem [shape: bf16[3,3,16,16], index: 1, kind: input, shape index: {}]
  %s2 = inlined_call_operand.vmem [shape: f32[1,16], index: 2, kind: input, shape index: {}]
  %s3 = inlined_call_operand.vmem [shape: f32[2,256,16], index: 3, kind: output, shape index: {}]
  %s4 = sld [smem:[#allocation0]]
  $region45: #{da_head_forward.9} parent=0
    _
  %s6 = ssub.s32 1, %s4
  %s7 = scalar_select 0, %s6, %s4
  loop: start=0, step=1, limit=4
  $region2: #{da_head_forward.9} parent=0 // loop_pre_header
    _
  $region3: #{da_head_forward.9} parent=0 // loop_header
    %s9 = sphi 0, %s13
    %p10 = scmp.ge.s32.totalorder %s9, 4
    %s19 = sphi 0, %s21
    %s22 = sphi 0, %s19
    %s23 = sphi 0, %s22
    %s39 = sphi 0, %s23
    %s43 = sphi 0, %s43
    %s45 = sphi 0, %s43
    %s46 = sphi 0, %s45
    %s60 = sphi 0, %s46
    %s64 = sphi 0, %s64
    %s66 = sphi 0, %s64
    %s67 = sphi 0, %s66
    %s81 = sphi 0, %s67
    %s87 = sphi 0, %s89
    %s90 = sphi 0, %s87
    %s91 = sphi 0, %s90
    %s107 = sphi 0, %s91
  $region4: #{da_head_forward.9} parent=0 // loop_header_branch
    %12 = sbr.rel (%p10) target = $region8
  $region5: #{da_head_forward.9} parent=0 // loop_body
    %s14 = ssub.s32 %s9, 1
    %s15 = ssub.s32 %s9, 2
    %s16 = sadd.s32 %s9, 1
    %s17 = ssub.s32 %s9, %s16
    %p18 = scmp.eq.s32.totalorder %s17, 0
    %s20 = sadd.s32 %s19, 1
    %s21 = scalar_select %p18, %s19, %s20
    %p24 = pneg %p18
    %p25 = scmp.eq.s32.totalorder %s9, 1
    %p26 = por %p24, %p25
    %p27 = scmp.ne.s32.totalorder %s19, %s22
    %p28 = scmp.eq.s32.totalorder %s9, 0
    %p29 = por %p27, %p28
    %p30 = scmp.ne.s32.totalorder %s19, %s22
    %p31 = scmp.eq.s32.totalorder %s14, 1
    %p32 = por %p30, %p31
    %p33 = scmp.ne.s32.totalorder %s22, %s23
    %p34 = scmp.eq.s32.totalorder %s14, 0
    %p35 = por %p33, %p34
    %p36 = scmp.ne.s32.totalorder %s22, %s23
    %p37 = scmp.eq.s32.totalorder %s15, 1
    %p38 = por %p36, %p37
    %p40 = scmp.ne.s32.totalorder %s23, %s39
    %p41 = scmp.eq.s32.totalorder %s15, 0
    %p42 = por %p40, %p41
    %s44 = sadd.s32 %s43, 1
    %p47 = scmp.eq.s32.totalorder %s9, 1
    %p48 = scmp.ne.s32.totalorder %s43, %s45
    %p49 = scmp.eq.s32.totalorder %s9, 0
    %p50 = por %p48, %p49
    %p51 = scmp.ne.s32.totalorder %s43, %s45
    %p52 = scmp.eq.s32.totalorder %s14, 1
    %p53 = por %p51, %p52
    %p54 = scmp.ne.s32.totalorder %s45, %s46
    %p55 = scmp.eq.s32.totalorder %s14, 0
    %p56 = por %p54, %p55
    %p57 = scmp.ne.s32.totalorder %s45, %s46
    %p58 = scmp.eq.s32.totalorder %s15, 1
    %p59 = por %p57, %p58
    %p61 = scmp.ne.s32.totalorder %s46, %s60
    %p62 = scmp.eq.s32.totalorder %s15, 0
    %p63 = por %p61, %p62
    %s65 = sadd.s32 %s64, 1
    %p68 = scmp.eq.s32.totalorder %s9, 1
    %p69 = scmp.ne.s32.totalorder %s64, %s66
    %p70 = scmp.eq.s32.totalorder %s9, 0
    %p71 = por %p69, %p70
    %p72 = scmp.ne.s32.totalorder %s64, %s66
    %p73 = scmp.eq.s32.totalorder %s14, 1
    %p74 = por %p72, %p73
    %p75 = scmp.ne.s32.totalorder %s66, %s67
    %p76 = scmp.eq.s32.totalorder %s14, 0
    %p77 = por %p75, %p76
    %p78 = scmp.ne.s32.totalorder %s66, %s67
    %p79 = scmp.eq.s32.totalorder %s15, 1
    %p80 = por %p78, %p79
    %p82 = scmp.ne.s32.totalorder %s67, %s81
    %p83 = scmp.eq.s32.totalorder %s15, 0
    %p84 = por %p82, %p83
    %s85 = ssub.s32 %s9, %s16
    %p86 = scmp.eq.s32.totalorder %s85, 0
    %s88 = sadd.s32 %s87, 1
    %s89 = scalar_select %p86, %s87, %s88
    %p92 = pneg %p86
    %p93 = scmp.eq.s32.totalorder %s9, 1
    %p94 = por %p92, %p93
    %p95 = scmp.ne.s32.totalorder %s87, %s90
    %p96 = scmp.eq.s32.totalorder %s9, 0
    %p97 = por %p95, %p96
    %p98 = scmp.ne.s32.totalorder %s87, %s90
    %p99 = scmp.eq.s32.totalorder %s14, 1
    %p100 = por %p98, %p99
    %p101 = scmp.ne.s32.totalorder %s90, %s91
    %p102 = scmp.eq.s32.totalorder %s14, 0
    %p103 = por %p101, %p102
    %p104 = scmp.ne.s32.totalorder %s90, %s91
    %p105 = scmp.eq.s32.totalorder %s15, 1
    %p106 = por %p104, %p105
    %p108 = scmp.ne.s32.totalorder %s91, %s107
    %p109 = scmp.eq.s32.totalorder %s15, 0
    %p110 = por %p108, %p109
    %p111 = scmp.le.s32.totalorder 1, %s9
    %p112 = scmp.lt.s32.totalorder %s9, 3
    %p113 = pnand %p111, %p112
    %p114 = pneg %p113
    // Predicated region
    $region9: #{da_head_forward.9} parent=5 // pred_check
      _
    $region10: #{da_head_forward.9} parent=5 // pred_check_branch
      %116 = sbr.rel (%p113) target = $region12
    $region11: #{da_head_forward.9} parent=5 // pred_region
      %s117 = ssub.s32 %s9, 1
      // Predicated region
      $region13: #{da_head_forward.9} parent=11 // pred_check
        %p118 = pneg %p56
      $region14: #{da_head_forward.9} parent=11 // pred_check_branch
        %120 = sbr.rel (%p118) target = $region16
      $region15: #{da_head_forward.9} parent=11 // pred_region
        _
      $region16: #{da_head_forward.9} parent=11 // pred_fallthru
        _
      // Predicated region
      $region17: #{da_head_forward.9} parent=11 // pred_check
        %p121 = pneg %p77
      $region18: #{da_head_forward.9} parent=11 // pred_check_branch
        %123 = sbr.rel (%p121) target = $region20
      $region19: #{da_head_forward.9} parent=11 // pred_region
        _
      $region20: #{da_head_forward.9} parent=11 // pred_fallthru
        _
    $region12: #{da_head_forward.9} parent=5 // pred_fallthru
      _
    %p124 = scmp.lt.s32.totalorder %s9, 2
    // Predicated region
    $region21: #{da_head_forward.9} parent=5 // pred_check
      %p125 = pneg %p124
    $region22: #{da_head_forward.9} parent=5 // pred_check_branch
      %127 = sbr.rel (%p125) target = $region24
    $region23: #{da_head_forward.9} parent=5 // pred_region
      // Predicated region
      $region25: #{da_head_forward.9} parent=23 // pred_check
        %p128 = pneg %p29
      $region26: #{da_head_forward.9} parent=23 // pred_check_branch
        %130 = sbr.rel (%p128) target = $region28
      $region27: #{da_head_forward.9} parent=23 // pred_region
        %p131 = scmp.lt.s32.totalorder %s9, 1
        %s132 = scalar_select %p131, %s9, 1
        %s133 = smul.addr %s132, 54
        %s134 = smul.addr %s133, 8
        %s135 = scalar_lea.vmem %s0, %s134
      $region28: #{da_head_forward.9} parent=23 // pred_fallthru
        _
    $region24: #{da_head_forward.9} parent=5 // pred_fallthru
      _
    %p136 = scmp.le.s32.totalorder 1, %s9
    %p137 = scmp.lt.s32.totalorder %s9, 3
    %p138 = pnand %p136, %p137
    %p139 = pneg %p138
    // Predicated region
    $region29: #{da_head_forward.9} parent=5 // pred_check
      _
    $region30: #{da_head_forward.9} parent=5 // pred_check_branch
      %141 = sbr.rel (%p138) target = $region32
    $region31: #{da_head_forward.9} parent=5 // pred_region
      %s142 = ssub.s32 %s9, 1
      %p143 = scmp.lt.s32.totalorder %s14, 1
      %s144 = scalar_select %p143, %s14, 1
      %s145 = smul.addr %s144, 54
      %s146 = smul.addr %s145, 8
      %s147 = scalar_lea.vmem %s0, %s146
      %p148 = pneg %p35
      %p149 = pneg %p32
      %p150 = pneg %p56
      %p151 = pneg %p53
      %p152 = pneg %p77
      %p153 = pneg %p74
      %p154 = pneg %p103
      %p155 = pneg %p100
      %p156 = scmp.lt.s32.totalorder %s14, 1
      %s157 = scalar_select %p156, %s14, 1
      %s158 = smul.addr %s157, 32
      %s159 = smul.addr %s158, 8
      %s160 = scalar_lea.vmem %s3, %s159
      %p161 = scmp.lt.s32.totalorder %s14, 1
      %s162 = scalar_select %p161, %s14, 1
      %s163 = smul.addr %s162, 54
      %s164 = smul.addr %s163, 8
      %s165 = scalar_lea.vmem %s0, %s164
      %p166 = scmp.lt.s32.totalorder %s14, 1
      %s167 = scalar_select %p166, %s14, 1
      %s168 = smul.addr %s167, 32
      %s169 = smul.addr %s168, 8
      %s170 = scalar_lea.vmem %s3, %s169
      %v172 = vld [vmem:[%s165] sm:$0xff]
      %v173 = vld [vmem:[%s165 + $0x8] sm:$0xff]
      %v174 = vld [vmem:[%s165 + $0x18] sm:$0xff]
      %v175 = vld [vmem:[%s165 + $0x20] sm:$0xff]
      %v176 = vld [vmem:[%s165 + $0x30] sm:$0xff]
      %v177 = vld [vmem:[%s165 + $0x38] sm:$0xff]
      %v178 = vld [vmem:[%s165 + $0x48] sm:$0xff]
      %v179 = vld [vmem:[%s165 + $0x50] sm:$0xff]
      %v180 = vld [vmem:[%s165 + $0x60] sm:$0xff]
      %v181 = vld [vmem:[%s165 + $0x68] sm:$0xff]
      %v182 = vld [vmem:[%s165 + $0x78] sm:$0xff]
      %v183 = vld [vmem:[%s165 + $0x80] sm:$0xff]
      %v184 = vld [vmem:[%s165 + $0x90] sm:$0xff]
      %v185 = vld [vmem:[%s165 + $0x98] sm:$0xff]
      %v186 = vld [vmem:[%s165 + $0xa8] sm:$0xff]
      %v187 = vld [vmem:[%s165 + $0xb0] sm:$0xff]
      %v188 = vld [vmem:[%s165 + $0xc0] sm:$0xff]
      %v189 = vld [vmem:[%s165 + $0xc8] sm:$0xff]
      %v190 = vld [vmem:[%s165 + $0xd8] sm:$0xff]
      %v191 = vld [vmem:[%s165 + $0xe0] sm:$0xff]
      %v192 = vld [vmem:[%s165 + $0xf0] sm:$0xff]
      %v193 = vld [vmem:[%s165 + $0xf8] sm:$0xff]
      %v194 = vld [vmem:[%s165 + $0x108] sm:$0xff]
      %v195 = vld [vmem:[%s165 + $0x110] sm:$0xff]
      %v196 = vld [vmem:[%s165 + $0x120] sm:$0xff]
      %v197 = vld [vmem:[%s165 + $0x128] sm:$0xff]
      %v198 = vld [vmem:[%s165 + $0x138] sm:$0xff]
      %v199 = vld [vmem:[%s165 + $0x140] sm:$0xff]
      %v200 = vld [vmem:[%s165 + $0x150] sm:$0xff]
      %v201 = vld [vmem:[%s165 + $0x158] sm:$0xff]
      %v202 = vld [vmem:[%s165 + $0x168] sm:$0xff]
      %v203 = vld [vmem:[%s165 + $0x170] sm:$0xff]
      %v204 = vpack.c.bf16 %v173, %v172
      %v205 = vpack.c.bf16 %v175, %v174
      %v206 = vpack.c.bf16 %v177, %v176
      %v207 = vpack.c.bf16 %v179, %v178
      %v208 = vpack.c.bf16 %v181, %v180
      %v209 = vpack.c.bf16 %v183, %v182
      %v210 = vpack.c.bf16 %v185, %v184
      %v211 = vpack.c.bf16 %v187, %v186
      %v212 = vpack.c.bf16 %v189, %v188
      %v213 = vpack.c.bf16 %v191, %v190
      %v214 = vpack.c.bf16 %v193, %v192
      %v215 = vpack.c.bf16 %v195, %v194
      %v216 = vpack.c.bf16 %v197, %v196
      %v217 = vpack.c.bf16 %v199, %v198
      %v218 = vpack.c.bf16 %v201, %v200
      %v219 = vpack.c.bf16 %v203, %v202
      %v220 = vld [vmem:[%s1] sm:$0xf]
      %v221 = vld [vmem:[%s1 + $0x4] sm:$0xf]
      %v222 = vld [vmem:[%s165 + $0x1] sm:$0xff]
      %v223 = vld [vmem:[%s165 + $0x9] sm:$0xff]
      %v224 = vld [vmem:[%s165 + $0x19] sm:$0xff]
      %v225 = vld [vmem:[%s165 + $0x21] sm:$0xff]
      %v226 = vld [vmem:[%s165 + $0x31] sm:$0xff]
      %v227 = vld [vmem:[%s165 + $0x39] sm:$0xff]
      %v228 = vld [vmem:[%s165 + $0x49] sm:$0xff]
      %v229 = vld [vmem:[%s165 + $0x51] sm:$0xff]
      %v230 = vld [vmem:[%s165 + $0x61] sm:$0xff]
      %v231 = vld [vmem:[%s165 + $0x69] sm:$0xff]
      %v232 = vld [vmem:[%s165 + $0x79] sm:$0xff]
      %v233 = vld [vmem:[%s165 + $0x81] sm:$0xff]
      %v234 = vld [vmem:[%s165 + $0x91] sm:$0xff]
      %v235 = vld [vmem:[%s165 + $0x99] sm:$0xff]
      %v236 = vld [vmem:[%s165 + $0xa9] sm:$0xff]
      %v237 = vld [vmem:[%s165 + $0xb1] sm:$0xff]
      %v238 = vld [vmem:[%s165 + $0xc1] sm:$0xff]
      %v239 = vld [vmem:[%s165 + $0xc9] sm:$0xff]
      %v240 = vld [vmem:[%s165 + $0xd9] sm:$0xff]
      %v241 = vld [vmem:[%s165 + $0xe1] sm:$0xff]
      %v242 = vld [vmem:[%s165 + $0xf1] sm:$0xff]
      %v243 = vld [vmem:[%s165 + $0xf9] sm:$0xff]
      %v244 = vld [vmem:[%s165 + $0x109] sm:$0xff]
      %v245 = vld [vmem:[%s165 + $0x111] sm:$0xff]
      %v246 = vld [vmem:[%s165 + $0x121] sm:$0xff]
      %v247 = vld [vmem:[%s165 + $0x129] sm:$0xff]
      %v248 = vld [vmem:[%s165 + $0x139] sm:$0xff]
      %v249 = vld [vmem:[%s165 + $0x141] sm:$0xff]
      %v250 = vld [vmem:[%s165 + $0x151] sm:$0xff]
      %v251 = vld [vmem:[%s165 + $0x159] sm:$0xff]
      %v252 = vld [vmem:[%s165 + $0x169] sm:$0xff]
      %v253 = vld [vmem:[%s165 + $0x171] sm:$0xff]
      %v254 = vpack.c.bf16 %v223, %v222
      %v255 = vpack.c.bf16 %v225, %v224
      %v256 = vpack.c.bf16 %v227, %v226
      %v257 = vpack.c.bf16 %v229, %v228
      %v258 = vpack.c.bf16 %v231, %v230
      %v259 = vpack.c.bf16 %v233, %v232
      %v260 = vpack.c.bf16 %v235, %v234
      %v261 = vpack.c.bf16 %v237, %v236
      %v262 = vpack.c.bf16 %v239, %v238
      %v263 = vpack.c.bf16 %v241, %v240
      %v264 = vpack.c.bf16 %v243, %v242
      %v265 = vpack.c.bf16 %v245, %v244
      %v266 = vpack.c.bf16 %v247, %v246
      %v267 = vpack.c.bf16 %v249, %v248
      %v268 = vpack.c.bf16 %v251, %v250
      %v269 = vpack.c.bf16 %v253, %v252
      %s270 = scalar_lea.vmem %s1, 8
      %v271 = vld [vmem:[%s270] sm:$0xf]
      %v272 = vld [vmem:[%s270 + $0x4] sm:$0xf]
      %v275 = vunpack.c.l.b16 %v271
      %v276 = vunpack.c.l.b16 %v272
      %v277 = vpack.c.b16 %v276, %v275
      %vm279 = vcmask 130048
      %v281 = vsel %vm279, %v254, 0
      %v284 = vsel %vm279, %v255, 0
      %v287 = vsel %vm279, %v256, 0
      %v290 = vsel %vm279, %v257, 0
      %v293 = vsel %vm279, %v258, 0
      %v296 = vsel %vm279, %v259, 0
      %v299 = vsel %vm279, %v260, 0
      %v302 = vsel %vm279, %v261, 0
      %v305 = vsel %vm279, %v262, 0
      %v308 = vsel %vm279, %v263, 0
      %v311 = vsel %vm279, %v264, 0
      %v314 = vsel %vm279, %v265, 0
      %v317 = vsel %vm279, %v266, 0
      %v320 = vsel %vm279, %v267, 0
      %v323 = vsel %vm279, %v268, 0
      %v326 = vsel %vm279, %v269, 0
      %328 = vmatprep.subr.bf16.mxu0 0
      %329 = vmatpush1.bf16.msra.mxu0 %v277
      %330 = vmatprep.subr.bf16.mxu0 0
      %331 = vmatpush1.bf16.msra.mxu0 0
      %332 = vmatprep.subr.bf16.mxu0 0
      %333 = vmatpush1.bf16.msra.mxu0 0
      %334 = vmatprep.subr.bf16.mxu0 0
      %335 = vmatpush1.bf16.msra.mxu0 0
      %336 = vmatprep.subr.bf16.mxu0 0
      %337 = vmatpush1.bf16.msra.mxu0 0
      %338 = vmatprep.subr.bf16.mxu0 0
      %339 = vmatpush1.bf16.msra.mxu0 0
      %340 = vmatprep.subr.bf16.mxu0 0
      %341 = vmatpush1.bf16.msra.mxu0 0
      %342 = vmatprep.subr.bf16.mxu0 0
      %343 = vmatpush1.bf16.msra.mxu0 0
      %344 = vmatprep.subr.bf16.mxu0 0
      %345 = vmatpush1.bf16.msra.mxu0 0
      %346 = vmatprep.subr.bf16.mxu0 0
      %347 = vmatpush1.bf16.msra.mxu0 0
      %348 = vmatprep.subr.bf16.mxu0 0
      %349 = vmatpush1.bf16.msra.mxu0 0
      %350 = vmatprep.subr.bf16.mxu0 0
      %351 = vmatpush1.bf16.msra.mxu0 0
      %352 = vmatprep.subr.bf16.mxu0 0
      %353 = vmatpush1.bf16.msra.mxu0 0
      %354 = vmatprep.subr.bf16.mxu0 0
      %355 = vmatpush1.bf16.msra.mxu0 0
      %356 = vmatprep.subr.bf16.mxu0 0
      %357 = vmatpush1.bf16.msra.mxu0 0
      %358 = vmatprep.subr.bf16.mxu0 0
      %359 = vmatpush1.bf16.msra.mxu0 0
      %360 = vmatprep.mubr.bf16.mxu0 0
      %361 = vmatmul.mubr.bf16.gmra.mrb[0].mxu0 %v281
      %v362 = vpop.f32.mrb[0].mxu0
      %v363 = vadd.f32 0.0, %v362
      %v364 = vpop.f32.mrb[0].mxu0
      %v365 = vpop.f32.mrb[0].mxu0
      %v366 = vadd.f32 0.0, %v365
      %v367 = vpop.f32.mrb[0].mxu0
      %368 = vmatprep.mubr.bf16.mxu0 0
      %369 = vmatmul.mubr.bf16.gmra.mrb[0].mxu0 %v284
      %v370 = vpop.f32.mrb[0].mxu0
      %v371 = vadd.f32 0.0, %v370
      %v372 = vpop.f32.mrb[0].mxu0
      %v373 = vpop.f32.mrb[0].mxu0
      %v374 = vadd.f32 0.0, %v373
      %v375 = vpop.f32.mrb[0].mxu0
      %376 = vmatprep.mubr.bf16.mxu0 0
      %377 = vmatmul.mubr.bf16.gmra.mrb[0].mxu0 %v287
      %v378 = vpop.f32.mrb[0].mxu0
      %v379 = vadd.f32 0.0, %v378
      %v380 = vpop.f32.mrb[0].mxu0
      %v381 = vpop.f32.mrb[0].mxu0
      %v382 = vadd.f32 0.0, %v381
      %v383 = vpop.f32.mrb[0].mxu0
      %384 = vmatprep.mubr.bf16.mxu0 0
      %385 = vmatmul.mubr.bf16.gmra.mrb[0].mxu0 %v290
      %v386 = vpop.f32.mrb[0].mxu0
      %v387 = vadd.f32 0.0, %v386
      %v388 = vpop.f32.mrb[0].mxu0
      %v389 = vpop.f32.mrb[0].mxu0
      %v390 = vadd.f32 0.0, %v389
      %v391 = vpop.f32.mrb[0].mxu0
      %392 = vmatprep.mubr.bf16.mxu0 0
      %393 = vmatmul.mubr.bf16.gmra.mrb[0].mxu0 %v293
      %v394 = vpop.f32.mrb[0].mxu0
      %v395 = vadd.f32 0.0, %v394
      %v396 = vpop.f32.mrb[0].mxu0
      %v397 = vpop.f32.mrb[0].mxu0
      %v398 = vadd.f32 0.0, %v397
      %v399 = vpop.f32.mrb[0].mxu0
      %400 = vmatprep.mubr.bf16.mxu0 0
      %401 = vmatmul.mubr.bf16.gmra.mrb[0].mxu0 %v296
      %v402 = vpop.f32.mrb[0].mxu0
      %v403 = vadd.f32 0.0, %v402
      %v404 = vpop.f32.mrb[0].mxu0
      %v405 = vpop.f32.mrb[0].mxu0
      %v406 = vadd.f32 0.0, %v405
      %v407 = vpop.f32.mrb[0].mxu0
      %408 = vmatprep.mubr.bf16.mxu0 0
      %409 = vmatmul.mubr.bf16.gmra.mrb[0].mxu0 %v299
      %v410 = vpop.f32.mrb[0].mxu0
      %v411 = vadd.f32 0.0, %v410
      %v412 = vpop.f32.mrb[0].mxu0
      %v413 = vpop.f32.mrb[0].mxu0
      %v414 = vadd.f32 0.0, %v413
      %v415 = vpop.f32.mrb[0].mxu0
      %416 = vmatprep.mubr.bf16.mxu0 0
      %417 = vmatmul.mubr.bf16.gmra.mrb[0].mxu0 %v302
      %v418 = vpop.f32.mrb[0].mxu0
      %v419 = vadd.f32 0.0, %v418
      %v420 = vpop.f32.mrb[0].mxu0
      %v421 = vpop.f32.mrb[0].mxu0
      %v422 = vadd.f32 0.0, %v421
      %v423 = vpop.f32.mrb[0].mxu0
      %424 = vmatprep.mubr.bf16.mxu0 0
      %425 = vmatmul.mubr.bf16.gmra.mrb[0].mxu0 %v305
      %v426 = vpop.f32.mrb[0].mxu0
      %v427 = vadd.f32 0.0, %v426
      %v428 = vpop.f32.mrb[0].mxu0
      %v429 = vpop.f32.mrb[0].mxu0
      %v430 = vadd.f32 0.0, %v429
      %v431 = vpop.f32.mrb[0].mxu0
      %432 = vmatprep.mubr.bf16.mxu0 0
      %433 = vmatmul.mubr.bf16.gmra.mrb[0].mxu0 %v308
      %v434 = vpop.f32.mrb[0].mxu0
      %v435 = vadd.f32 0.0, %v434
      %v436 = vpop.f32.mrb[0].mxu0
      %v437 = vpop.f32.mrb[0].mxu0
      %v438 = vadd.f32 0.0, %v437
      %v439 = vpop.f32.mrb[0].mxu0
      %440 = vmatprep.mubr.bf16.mxu0 0
      %441 = vmatmul.mubr.bf16.gmra.mrb[0].mxu0 %v311
      %v442 = vpop.f32.mrb[0].mxu0
      %v443 = vadd.f32 0.0, %v442
      %v444 = vpop.f32.mrb[0].mxu0
      %v445 = vpop.f32.mrb[0].mxu0
      %v446 = vadd.f32 0.0, %v445
      %v447 = vpop.f32.mrb[0].mxu0
      %448 = vmatprep.mubr.bf16.mxu0 0
      %449 = vmatmul.mubr.bf16.gmra.mrb[0].mxu0 %v314
      %v450 = vpop.f32.mrb[0].mxu0
      %v451 = vadd.f32 0.0, %v450
      %v452 = vpop.f32.mrb[0].mxu0
      %v453 = vpop.f32.mrb[0].mxu0
      %v454 = vadd.f32 0.0, %v453
      %v455 = vpop.f32.mrb[0].mxu0
      %456 = vmatprep.mubr.bf16.mxu0 0
      %457 = vmatmul.mubr.bf16.gmra.mrb[0].mxu0 %v317
      %v458 = vpop.f32.mrb[0].mxu0
      %v459 = vadd.f32 0.0, %v458
      %v460 = vpop.f32.mrb[0].mxu0
      %v461 = vpop.f32.mrb[0].mxu0
      %v462 = vadd.f32 0.0, %v461
      %v463 = vpop.f32.mrb[0].mxu0
      %464 = vmatprep.mubr.bf16.mxu0 0
      %465 = vmatmul.mubr.bf16.gmra.mrb[0].mxu0 %v320
      %v466 = vpop.f32.mrb[0].mxu0
      %v467 = vadd.f32 0.0, %v466
      %v468 = vpop.f32.mrb[0].mxu0
      %v469 = vpop.f32.mrb[0].mxu0
      %v470 = vadd.f32 0.0, %v469
      %v471 = vpop.f32.mrb[0].mxu0
      %472 = vmatprep.mubr.bf16.mxu0 0
      %473 = vmatmul.mubr.bf16.gmra.mrb[0].mxu0 %v323
      %v474 = vpop.f32.mrb[0].mxu0
      %v475 = vadd.f32 0.0, %v474
      %v476 = vpop.f32.mrb[0].mxu0
      %v477 = vpop.f32.mrb[0].mxu0
      %v478 = vadd.f32 0.0, %v477
      %v479 = vpop.f32.mrb[0].mxu0
      %480 = vmatprep.mubr.bf16.mxu0 0
      %481 = vmatmul.mubr.bf16.gmra.mrb[0].mxu0 %v326
      %v482 = vpop.f32.mrb[0].mxu0
      %v483 = vadd.f32 0.0, %v482
      %v484 = vpop.f32.mrb[0].mxu0
      %v485 = vpop.f32.mrb[0].mxu0
      %v486 = vadd.f32 0.0, %v485
      %v487 = vpop.f32.mrb[0].mxu0
      %488 = vdwg.mxu0
      %v491 = vunpack.c.l.b16 %v220
      %v492 = vunpack.c.l.b16 %v221
      %v493 = vpack.c.b16 %v492, %v491
      %v496 = vsel %vm279, %v204, 0
      %v499 = vsel %vm279, %v205, 0
      %v502 = vsel %vm279, %v206, 0
      %v505 = vsel %vm279, %v207, 0
      %v508 = vsel %vm279, %v208, 0
      %v511 = vsel %vm279, %v209, 0
      %v514 = vsel %vm279, %v210, 0
      %v517 = vsel %vm279, %v211, 0
      %v520 = vsel %vm279, %v212, 0
      %v523 = vsel %vm279, %v213, 0
      %v526 = vsel %vm279, %v214, 0
      %v529 = vsel %vm279, %v215, 0
      %v532 = vsel %vm279, %v216, 0
      %v535 = vsel %vm279, %v217, 0
      %v538 = vsel %vm279, %v218, 0
      %v541 = vsel %vm279, %v219, 0
      %543 = vmatprep.subr.bf16.mxu0 0
      %544 = vmatpush1.bf16.msra.mxu0 %v493
      %545 = vmatprep.subr.bf16.mxu0 0
      %546 = vmatpush1.bf16.msra.mxu0 0
      %547 = vmatprep.subr.bf16.mxu0 0
      %548 = vmatpush1.bf16.msra.mxu0 0
      %549 = vmatprep.subr.bf16.mxu0 0
      %550 = vmatpush1.bf16.msra.mxu0 0
      %551 = vmatprep.subr.bf16.mxu0 0
      %552 = vmatpush1.bf16.msra.mxu0 0
      %553 = vmatprep.subr.bf16.mxu0 0
      %554 = vmatpush1.bf16.msra.mxu0 0
      %555 = vmatprep.subr.bf16.mxu0 0
      %556 = vmatpush1.bf16.msra.mxu0 0
      %557 = vmatprep.subr.bf16.mxu0 0
      %558 = vmatpush1.bf16.msra.mxu0 0
      %559 = vmatprep.subr.bf16.mxu0 0
      %560 = vmatpush1.bf16.msra.mxu0 0
      %561 = vmatprep.subr.bf16.mxu0 0
      %562 = vmatpush1.bf16.msra.mxu0 0
      %563 = vmatprep.subr.bf16.mxu0 0
      %564 = vmatpush1.bf16.msra.mxu0 0
      %565 = vmatprep.subr.bf16.mxu0 0
      %566 = vmatpush1.bf16.msra.mxu0 0
      %567 = vmatprep.subr.bf16.mxu0 0
      %568 = vmatpush1.bf16.msra.mxu0 0
      %569 = vmatprep.subr.bf16.mxu0 0
      %570 = vmatpush1.bf16.msra.mxu0 0
      %571 = vmatprep.subr.bf16.mxu0 0
      %572 = vmatpush1.bf16.msra.mxu0 0
      %573 = vmatprep.subr.bf16.mxu0 0
      %574 = vmatpush1.bf16.msra.mxu0 0
      %575 = vmatprep.mubr.bf16.mxu0 0
      %576 = vmatmul.mubr.bf16.gmra.mrb[0].mxu0 %v496
      %v577 = vpop.f32.mrb[0].mxu0
      %v578 = vadd.f32 %v363, %v577
      %v579 = vpop.f32.mrb[0].mxu0
      %v580 = vpop.f32.mrb[0].mxu0
      %v581 = vadd.f32 %v366, %v580
      %v582 = vpop.f32.mrb[0].mxu0
      %583 = vmatprep.mubr.bf16.mxu0 0
      %584 = vmatmul.mubr.bf16.gmra.mrb[0].mxu0 %v499
      %v585 = vpop.f32.mrb[0].mxu0
      %v586 = vadd.f32 %v371, %v585
      %v587 = vpop.f32.mrb[0].mxu0
      %v588 = vpop.f32.mrb[0].mxu0
      %v589 = vadd.f32 %v374, %v588
      %v590 = vpop.f32.mrb[0].mxu0
      %591 = vmatprep.mubr.bf16.mxu0 0
      %592 = vmatmul.mubr.bf16.gmra.mrb[0].mxu0 %v502
      %v593 = vpop.f32.mrb[0].mxu0
      %v594 = vadd.f32 %v379, %v593
      %v595 = vpop.f32.mrb[0].mxu0
      %v596 = vpop.f32.mrb[0].mxu0
      %v597 = vadd.f32 %v382, %v596
      %v598 = vpop.f32.mrb[0].mxu0
      %599 = vmatprep.mubr.bf16.mxu0 0
      %600 = vmatmul.mubr.bf16.gmra.mrb[0].mxu0 %v505
      %v601 = vpop.f32.mrb[0].mxu0
      %v602 = vadd.f32 %v387, %v601
      %v603 = vpop.f32.mrb[0].mxu0
      %v604 = vpop.f32.mrb[0].mxu0
      %v605 = vadd.f32 %v390, %v604
      %v606 = vpop.f32.mrb[0].mxu0
      %607 = vmatprep.mubr.bf16.mxu0 0
      %608 = vmatmul.mubr.bf16.gmra.mrb[0].mxu0 %v508
      %v609 = vpop.f32.mrb[0].mxu0
      %v610 = vadd.f32 %v395, %v609
      %v611 = vpop.f32.mrb[0].mxu0
      %v612 = vpop.f32.mrb[0].mxu0
      %v613 = vadd.f32 %v398, %v612
      %v614 = vpop.f32.mrb[0].mxu0
      %615 = vmatprep.mubr.bf16.mxu0 0
      %616 = vmatmul.mubr.bf16.gmra.mrb[0].mxu0 %v511
      %v617 = vpop.f32.mrb[0].mxu0
      %v618 = vadd.f32 %v403, %v617
      %v619 = vpop.f32.mrb[0].mxu0
      %v620 = vpop.f32.mrb[0].mxu0
      %v621 = vadd.f32 %v406, %v620
      %v622 = vpop.f32.mrb[0].mxu0
      %623 = vmatprep.mubr.bf16.mxu0 0
      %624 = vmatmul.mubr.bf16.gmra.mrb[0].mxu0 %v514
      %v625 = vpop.f32.mrb[0].mxu0
      %v626 = vadd.f32 %v411, %v625
      %v627 = vpop.f32.mrb[0].mxu0
      %v628 = vpop.f32.mrb[0].mxu0
      %v629 = vadd.f32 %v414, %v628
      %v630 = vpop.f32.mrb[0].mxu0
      %631 = vmatprep.mubr.bf16.mxu0 0
      %632 = vmatmul.mubr.bf16.gmra.mrb[0].mxu0 %v517
      %v633 = vpop.f32.mrb[0].mxu0
      %v634 = vadd.f32 %v419, %v633
      %v635 = vpop.f32.mrb[0].mxu0
      %v636 = vpop.f32.mrb[0].mxu0
      %v637 = vadd.f32 %v422, %v636
      %v638 = vpop.f32.mrb[0].mxu0
      %639 = vmatprep.mubr.bf16.mxu0 0
      %640 = vmatmul.mubr.bf16.gmra.mrb[0].mxu0 %v520
      %v641 = vpop.f32.mrb[0].mxu0
      %v642 = vadd.f32 %v427, %v641
      %v643 = vpop.f32.mrb[0].mxu0
      %v644 = vpop.f32.mrb[0].mxu0
      %v645 = vadd.f32 %v430, %v644
      %v646 = vpop.f32.mrb[0].mxu0
      %647 = vmatprep.mubr.bf16.mxu0 0
      %648 = vmatmul.mubr.bf16.gmra.mrb[0].mxu0 %v523
      %v649 = vpop.f32.mrb[0].mxu0
      %v650 = vadd.f32 %v435, %v649
      %v651 = vpop.f32.mrb[0].mxu0
      %v652 = vpop.f32.mrb[0].mxu0
      %v653 = vadd.f32 %v438, %v652
      %v654 = vpop.f32.mrb[0].mxu0
      %655 = vmatprep.mubr.bf16.mxu0 0
      %656 = vmatmul.mubr.bf16.gmra.mrb[0].mxu0 %v526
      %v657 = vpop.f32.mrb[0].mxu0
      %v658 = vadd.f32 %v443, %v657
      %v659 = vpop.f32.mrb[0].mxu0
      %v660 = vpop.f32.mrb[0].mxu0
      %v661 = vadd.f32 %v446, %v660
      %v662 = vpop.f32.mrb[0].mxu0
      %663 = vmatprep.mubr.bf16.mxu0 0
      %664 = vmatmul.mubr.bf16.gmra.mrb[0].mxu0 %v529
      %v665 = vpop.f32.mrb[0].mxu0
      %v666 = vadd.f32 %v451, %v665
      %v667 = vpop.f32.mrb[0].mxu0
      %v668 = vpop.f32.mrb[0].mxu0
      %v669 = vadd.f32 %v454, %v668
      %v670 = vpop.f32.mrb[0].mxu0
      %671 = vmatprep.mubr.bf16.mxu0 0
      %672 = vmatmul.mubr.bf16.gmra.mrb[0].mxu0 %v532
      %v673 = vpop.f32.mrb[0].mxu0
      %v674 = vadd.f32 %v459, %v673
      %v675 = vpop.f32.mrb[0].mxu0
      %v676 = vpop.f32.mrb[0].mxu0
      %v677 = vadd.f32 %v462, %v676
      %v678 = vpop.f32.mrb[0].mxu0
      %679 = vmatprep.mubr.bf16.mxu0 0
      %680 = vmatmul.mubr.bf16.gmra.mrb[0].mxu0 %v535
      %v681 = vpop.f32.mrb[0].mxu0
      %v682 = vadd.f32 %v467, %v681
      %v683 = vpop.f32.mrb[0].mxu0
      %v684 = vpop.f32.mrb[0].mxu0
      %v685 = vadd.f32 %v470, %v684
      %v686 = vpop.f32.mrb[0].mxu0
      %687 = vmatprep.mubr.bf16.mxu0 0
      %688 = vmatmul.mubr.bf16.gmra.mrb[0].mxu0 %v538
      %v689 = vpop.f32.mrb[0].mxu0
      %v690 = vadd.f32 %v475, %v689
      %v691 = vpop.f32.mrb[0].mxu0
      %v692 = vpop.f32.mrb[0].mxu0
      %v693 = vadd.f32 %v478, %v692
      %v694 = vpop.f32.mrb[0].mxu0
      %695 = vmatprep.mubr.bf16.mxu0 0
      %696 = vmatmul.mubr.bf16.gmra.mrb[0].mxu0 %v541
      %v697 = vpop.f32.mrb[0].mxu0
      %v698 = vadd.f32 %v483, %v697
      %v699 = vpop.f32.mrb[0].mxu0
      %v700 = vpop.f32.mrb[0].mxu0
      %v701 = vadd.f32 %v486, %v700
      %v702 = vpop.f32.mrb[0].mxu0
      %703 = vdwg.mxu0
      %v704 = vld [vmem:[%s165 + $0x2] sm:$0xff]
      %v705 = vld [vmem:[%s165 + $0xa] sm:$0xff]
      %v706 = vld [vmem:[%s165 + $0x1a] sm:$0xff]
      %v707 = vld [vmem:[%s165 + $0x22] sm:$0xff]
      %v708 = vld [vmem:[%s165 + $0x32] sm:$0xff]
      %v709 = vld [vmem:[%s165 + $0x3a] sm:$0xff]
      %v710 = vld [vmem:[%s165 + $0x4a] sm:$0xff]
      %v711 = vld [vmem:[%s165 + $0x52] sm:$0xff]
      %v712 = vld [vmem:[%s165 + $0x62] sm:$0xff]
      %v713 = vld [vmem:[%s165 + $0x6a] sm:$0xff]
      %v714 = vld [vmem:[%s165 + $0x7a] sm:$0xff]
      %v715 = vld [vmem:[%s165 + $0x82] sm:$0xff]
      %v716 = vld [vmem:[%s165 + $0x92] sm:$0xff]
      %v717 = vld [vmem:[%s165 + $0x9a] sm:$0xff]
      %v718 = vld [vmem:[%s165 + $0xaa] sm:$0xff]
      %v719 = vld [vmem:[%s165 + $0xb2] sm:$0xff]
      %v720 = vld [vmem:[%s165 + $0xc2] sm:$0xff]
      %v721 = vld [vmem:[%s165 + $0xca] sm:$0xff]
      %v722 = vld [vmem:[%s165 + $0xda] sm:$0xff]
      %v723 = vld [vmem:[%s165 + $0xe2] sm:$0xff]
      %v724 = vld [vmem:[%s165 + $0xf2] sm:$0xff]
      %v725 = vld [vmem:[%s165 + $0xfa] sm:$0xff]
      %v726 = vld [vmem:[%s165 + $0x10a] sm:$0xff]
      %v727 = vld [vmem:[%s165 + $0x112] sm:$0xff]
      %v728 = vld [vmem:[%s165 + $0x122] sm:$0xff]
      %v729 = vld [vmem:[%s165 + $0x12a] sm:$0xff]
      %v730 = vld [vmem:[%s165 + $0x13a] sm:$0xff]
      %v731 = vld [vmem:[%s165 + $0x142] sm:$0xff]
      %v732 = vld [vmem:[%s165 + $0x152] sm:$0xff]
      %v733 = vld [vmem:[%s165 + $0x15a] sm:$0xff]
      %v734 = vld [vmem:[%s165 + $0x16a] sm:$0xff]
      %v735 = vld [vmem:[%s165 + $0x172] sm:$0xff]
      %v736 = vpack.c.bf16 %v705, %v704
      %v737 = vpack.c.bf16 %v707, %v706
      %v738 = vpack.c.bf16 %v709, %v708
      %v739 = vpack.c.bf16 %v711, %v710
      %v740 = vpack.c.bf16 %v713, %v712
      %v741 = vpack.c.bf16 %v715, %v714
      %v742 = vpack.c.bf16 %v717, %v716
      %v743 = vpack.c.bf16 %v719, %v718
      %v744 = vpack.c.bf16 %v721, %v720
      %v745 = vpack.c.bf16 %v723, %v722
      %v746 = vpack.c.bf16 %v725, %v724
      %v747 = vpack.c.bf16 %v727, %v726
      %v748 = vpack.c.bf16 %v729, %v728
      %v749 = vpack.c.bf16 %v731, %v730
      %v750 = vpack.c.bf16 %v733, %v732
      %v751 = vpack.c.bf16 %v735, %v734
      %s752 = scalar_lea.vmem %s1, 16
      %v753 = vld [vmem:[%s752] sm:$0xf]
      %v754 = vld [vmem:[%s752 + $0x4] sm:$0xf]
      %v757 = vunpack.c.l.b16 %v753
      %v758 = vunpack.c.l.b16 %v754
      %v759 = vpack.c.b16 %v758, %v757
      %v762 = vsel %vm279, %v736, 0
      %v765 = vsel %vm279, %v737, 0
      %v768 = vsel %vm279, %v738, 0
      %v771 = vsel %vm279, %v739, 0
      %v774 = vsel %vm279, %v740, 0
      %v777 = vsel %vm279, %v741, 0
      %v780 = vsel %vm279, %v742, 0
      %v783 = vsel %vm279, %v743, 0
      %v786 = vsel %vm279, %v744, 0
      %v789 = vsel %vm279, %v745, 0
      %v792 = vsel %vm279, %v746, 0
      %v795 = vsel %vm279, %v747, 0
      %v798 = vsel %vm279, %v748, 0
      %v801 = vsel %vm279, %v749, 0
      %v804 = vsel %vm279, %v750, 0
      %v807 = vsel %vm279, %v751, 0
      %809 = vmatprep.subr.bf16.mxu0 0
      %810 = vmatpush1.bf16.msra.mxu0 %v759
      %811 = vmatprep.subr.bf16.mxu0 0
      %812 = vmatpush1.bf16.msra.mxu0 0
      %813 = vmatprep.subr.bf16.mxu0 0
      %814 = vmatpush1.bf16.msra.mxu0 0
      %815 = vmatprep.subr.bf16.mxu0 0
      %816 = vmatpush1.bf16.msra.mxu0 0
      %817 = vmatprep.subr.bf16.mxu0 0
      %818 = vmatpush1.bf16.msra.mxu0 0
      %819 = vmatprep.subr.bf16.mxu0 0
      %820 = vmatpush1.bf16.msra.mxu0 0
      %821 = vmatprep.subr.bf16.mxu0 0
      %822 = vmatpush1.bf16.msra.mxu0 0
      %823 = vmatprep.subr.bf16.mxu0 0
      %824 = vmatpush1.bf16.msra.mxu0 0
      %825 = vmatprep.subr.bf16.mxu0 0
      %826 = vmatpush1.bf16.msra.mxu0 0
      %827 = vmatprep.subr.bf16.mxu0 0
      %828 = vmatpush1.bf16.msra.mxu0 0
      %829 = vmatprep.subr.bf16.mxu0 0
      %830 = vmatpush1.bf16.msra.mxu0 0
      %831 = vmatprep.subr.bf16.mxu0 0
      %832 = vmatpush1.bf16.msra.mxu0 0
      %833 = vmatprep.subr.bf16.mxu0 0
      %834 = vmatpush1.bf16.msra.mxu0 0
      %835 = vmatprep.subr.bf16.mxu0 0
      %836 = vmatpush1.bf16.msra.mxu0 0
      %837 = vmatprep.subr.bf16.mxu0 0
      %838 = vmatpush1.bf16.msra.mxu0 0
      %839 = vmatprep.subr.bf16.mxu0 0
      %840 = vmatpush1.bf16.msra.mxu0 0
      %841 = vmatprep.mubr.bf16.mxu0 0
      %842 = vmatmul.mubr.bf16.gmra.mrb[0].mxu0 %v762
      %v843 = vpop.f32.mrb[0].mxu0
      %v844 = vadd.f32 0.0, %v843
      %v845 = vpop.f32.mrb[0].mxu0
      %v846 = vpop.f32.mrb[0].mxu0
      %v847 = vadd.f32 0.0, %v846
      %v848 = vpop.f32.mrb[0].mxu0
      %849 = vmatprep.mubr.bf16.mxu0 0
      %850 = vmatmul.mubr.bf16.gmra.mrb[0].mxu0 %v765
      %v851 = vpop.f32.mrb[0].mxu0
      %v852 = vadd.f32 0.0, %v851
      %v853 = vpop.f32.mrb[0].mxu0
      %v854 = vpop.f32.mrb[0].mxu0
      %v855 = vadd.f32 0.0, %v854
      %v856 = vpop.f32.mrb[0].mxu0
      %857 = vmatprep.mubr.bf16.mxu0 0
      %858 = vmatmul.mubr.bf16.gmra.mrb[0].mxu0 %v768
      %v859 = vpop.f32.mrb[0].mxu0
      %v860 = vadd.f32 0.0, %v859
      %v861 = vpop.f32.mrb[0].mxu0
      %v862 = vpop.f32.mrb[0].mxu0
      %v863 = vadd.f32 0.0, %v862
      %v864 = vpop.f32.mrb[0].mxu0
      %865 = vmatprep.mubr.bf16.mxu0 0
      %866 = vmatmul.mubr.bf16.gmra.mrb[0].mxu0 %v771
      %v867 = vpop.f32.mrb[0].mxu0
      %v868 = vadd.f32 0.0, %v867
      %v869 = vpop.f32.mrb[0].mxu0
      %v870 = vpop.f32.mrb[0].mxu0
      %v871 = vadd.f32 0.0, %v870
      %v872 = vpop.f32.mrb[0].mxu0
      %873 = vmatprep.mubr.bf16.mxu0 0
      %874 = vmatmul.mubr.bf16.gmra.mrb[0].mxu0 %v774
      %v875 = vpop.f32.mrb[0].mxu0
      %v876 = vadd.f32 0.0, %v875
      %v877 = vpop.f32.mrb[0].mxu0
      %v878 = vpop.f32.mrb[0].mxu0
      %v879 = vadd.f32 0.0, %v878
      %v880 = vpop.f32.mrb[0].mxu0
      %881 = vmatprep.mubr.bf16.mxu0 0
      %882 = vmatmul.mubr.bf16.gmra.mrb[0].mxu0 %v777
      %v883 = vpop.f32.mrb[0].mxu0
      %v884 = vadd.f32 0.0, %v883
      %v885 = vpop.f32.mrb[0].mxu0
      %v886 = vpop.f32.mrb[0].mxu0
      %v887 = vadd.f32 0.0, %v886
      %v888 = vpop.f32.mrb[0].mxu0
      %889 = vmatprep.mubr.bf16.mxu0 0
      %890 = vmatmul.mubr.bf16.gmra.mrb[0].mxu0 %v780
      %v891 = vpop.f32.mrb[0].mxu0
      %v892 = vadd.f32 0.0, %v891
      %v893 = vpop.f32.mrb[0].mxu0
      %v894 = vpop.f32.mrb[0].mxu0
      %v895 = vadd.f32 0.0, %v894
      %v896 = vpop.f32.mrb[0].mxu0
      %897 = vmatprep.mubr.bf16.mxu0 0
      %898 = vmatmul.mubr.bf16.gmra.mrb[0].mxu0 %v783
      %v899 = vpop.f32.mrb[0].mxu0
      %v900 = vadd.f32 0.0, %v899
      %v901 = vpop.f32.mrb[0].mxu0
      %v902 = vpop.f32.mrb[0].mxu0
      %v903 = vadd.f32 0.0, %v902
      %v904 = vpop.f32.mrb[0].mxu0
      %905 = vmatprep.mubr.bf16.mxu0 0
      %906 = vmatmul.mubr.bf16.gmra.mrb[0].mxu0 %v786
      %v907 = vpop.f32.mrb[0].mxu0
      %v908 = vadd.f32 0.0, %v907
      %v909 = vpop.f32.mrb[0].mxu0
      %v910 = vpop.f32.mrb[0].mxu0
      %v911 = vadd.f32 0.0, %v910
      %v912 = vpop.f32.mrb[0].mxu0
      %913 = vmatprep.mubr.bf16.mxu0 0
      %914 = vmatmul.mubr.bf16.gmra.mrb[0].mxu0 %v789
      %v915 = vpop.f32.mrb[0].mxu0
      %v916 = vadd.f32 0.0, %v915
      %v917 = vpop.f32.mrb[0].mxu0
      %v918 = vpop.f32.mrb[0].mxu0
      %v919 = vadd.f32 0.0, %v918
      %v920 = vpop.f32.mrb[0].mxu0
      %921 = vmatprep.mubr.bf16.mxu0 0
      %922 = vmatmul.mubr.bf16.gmra.mrb[0].mxu0 %v792
      %v923 = vpop.f32.mrb[0].mxu0
      %v924 = vadd.f32 0.0, %v923
      %v925 = vpop.f32.mrb[0].mxu0
      %v926 = vpop.f32.mrb[0].mxu0
      %v927 = vadd.f32 0.0, %v926
      %v928 = vpop.f32.mrb[0].mxu0
      %929 = vmatprep.mubr.bf16.mxu0 0
      %930 = vmatmul.mubr.bf16.gmra.mrb[0].mxu0 %v795
      %v931 = vpop.f32.mrb[0].mxu0
      %v932 = vadd.f32 0.0, %v931
      %v933 = vpop.f32.mrb[0].mxu0
      %v934 = vpop.f32.mrb[0].mxu0
      %v935 = vadd.f32 0.0, %v934
      %v936 = vpop.f32.mrb[0].mxu0
      %937 = vmatprep.mubr.bf16.mxu0 0
      %938 = vmatmul.mubr.bf16.gmra.mrb[0].mxu0 %v798
      %v939 = vpop.f32.mrb[0].mxu0
      %v940 = vadd.f32 0.0, %v939
      %v941 = vpop.f32.mrb[0].mxu0
      %v942 = vpop.f32.mrb[0].mxu0
      %v943 = vadd.f32 0.0, %v942
      %v944 = vpop.f32.mrb[0].mxu0
      %945 = vmatprep.mubr.bf16.mxu0 0
      %946 = vmatmul.mubr.bf16.gmra.mrb[0].mxu0 %v801
      %v947 = vpop.f32.mrb[0].mxu0
      %v948 = vadd.f32 0.0, %v947
      %v949 = vpop.f32.mrb[0].mxu0
      %v950 = vpop.f32.mrb[0].mxu0
      %v951 = vadd.f32 0.0, %v950
      %v952 = vpop.f32.mrb[0].mxu0
      %953 = vmatprep.mubr.bf16.mxu0 0
      %954 = vmatmul.mubr.bf16.gmra.mrb[0].mxu0 %v804
      %v955 = vpop.f32.mrb[0].mxu0
      %v956 = vadd.f32 0.0, %v955
      %v957 = vpop.f32.mrb[0].mxu0
      %v958 = vpop.f32.mrb[0].mxu0
      %v959 = vadd.f32 0.0, %v958
      %v960 = vpop.f32.mrb[0].mxu0
      %961 = vmatprep.mubr.bf16.mxu0 0
      %962 = vmatmul.mubr.bf16.gmra.mrb[0].mxu0 %v807
      %v963 = vpop.f32.mrb[0].mxu0
      %v964 = vadd.f32 0.0, %v963
      %v965 = vpop.f32.mrb[0].mxu0
      %v966 = vpop.f32.mrb[0].mxu0
      %v967 = vadd.f32 0.0, %v966
      %v968 = vpop.f32.mrb[0].mxu0
      %969 = vdwg.mxu0
      %v970 = vadd.f32 %v578, %v844
      %v971 = vadd.f32 %v581, %v847
      %v972 = vadd.f32 %v586, %v852
      %v973 = vadd.f32 %v589, %v855
      %v974 = vadd.f32 %v594, %v860
      %v975 = vadd.f32 %v597, %v863
      %v976 = vadd.f32 %v602, %v868
      %v977 = vadd.f32 %v605, %v871
      %v978 = vadd.f32 %v610, %v876
      %v979 = vadd.f32 %v613, %v879
      %v980 = vadd.f32 %v618, %v884
      %v981 = vadd.f32 %v621, %v887
      %v982 = vadd.f32 %v626, %v892
      %v983 = vadd.f32 %v629, %v895
      %v984 = vadd.f32 %v634, %v900
      %v985 = vadd.f32 %v637, %v903
      %v986 = vadd.f32 %v642, %v908
      %v987 = vadd.f32 %v645, %v911
      %v988 = vadd.f32 %v650, %v916
      %v989 = vadd.f32 %v653, %v919
      %v990 = vadd.f32 %v658, %v924
      %v991 = vadd.f32 %v661, %v927
      %v992 = vadd.f32 %v666, %v932
      %v993 = vadd.f32 %v669, %v935
      %v994 = vadd.f32 %v674, %v940
      %v995 = vadd.f32 %v677, %v943
      %v996 = vadd.f32 %v682, %v948
      %v997 = vadd.f32 %v685, %v951
      %v998 = vadd.f32 %v690, %v956
      %v999 = vadd.f32 %v693, %v959
      %v1000 = vadd.f32 %v698, %v964
      %v1001 = vadd.f32 %v701, %v967
      %s1002 = scalar_lea.vmem %s165, 24
      %v1003 = vld [vmem:[%s1002] sm:$0xff]
      %v1004 = vld [vmem:[%s1002 + $0x8] sm:$0xff]
      %v1005 = vld [vmem:[%s1002 + $0x18] sm:$0xff]
      %v1006 = vld [vmem:[%s1002 + $0x20] sm:$0xff]
      %v1007 = vld [vmem:[%s1002 + $0x30] sm:$0xff]
      %v1008 = vld [vmem:[%s1002 + $0x38] sm:$0xff]
      %v1009 = vld [vmem:[%s1002 + $0x48] sm:$0xff]
      %v1010 = vld [vmem:[%s1002 + $0x50] sm:$0xff]
      %v1011 = vld [vmem:[%s1002 + $0x60] sm:$0xff]
      %v1012 = vld [vmem:[%s1002 + $0x68] sm:$0xff]
      %v1013 = vld [vmem:[%s1002 + $0x78] sm:$0xff]
      %v1014 = vld [vmem:[%s1002 + $0x80] sm:$0xff]
      %v1015 = vld [vmem:[%s1002 + $0x90] sm:$0xff]
      %v1016 = vld [vmem:[%s1002 + $0x98] sm:$0xff]
      %v1017 = vld [vmem:[%s1002 + $0xa8] sm:$0xff]
      %v1018 = vld [vmem:[%s1002 + $0xb0] sm:$0xff]
      %v1019 = vld [vmem:[%s1002 + $0xc0] sm:$0xff]
      %v1020 = vld [vmem:[%s1002 + $0xc8] sm:$0xff]
      %v1021 = vld [vmem:[%s1002 + $0xd8] sm:$0xff]
      %v1022 = vld [vmem:[%s1002 + $0xe0] sm:$0xff]
      %v1023 = vld [vmem:[%s1002 + $0xf0] sm:$0xff]
      %v1024 = vld [vmem:[%s1002 + $0xf8] sm:$0xff]
      %v1025 = vld [vmem:[%s1002 + $0x108] sm:$0xff]
      %v1026 = vld [vmem:[%s1002 + $0x110] sm:$0xff]
      %v1027 = vld [vmem:[%s1002 + $0x120] sm:$0xff]
      %v1028 = vld [vmem:[%s1002 + $0x128] sm:$0xff]
      %v1029 = vld [vmem:[%s1002 + $0x138] sm:$0xff]
      %v1030 = vld [vmem:[%s1002 + $0x140] sm:$0xff]
      %v1031 = vld [vmem:[%s1002 + $0x150] sm:$0xff]
      %v1032 = vld [vmem:[%s1002 + $0x158] sm:$0xff]
      %v1033 = vld [vmem:[%s1002 + $0x168] sm:$0xff]
      %v1034 = vld [vmem:[%s1002 + $0x170] sm:$0xff]
      %v1035 = vpack.c.bf16 %v1004, %v1003
      %v1036 = vpack.c.bf16 %v1006, %v1005
      %v1037 = vpack.c.bf16 %v1008, %v1007
      %v1038 = vpack.c.bf16 %v1010, %v1009
      %v1039 = vpack.c.bf16 %v1012, %v1011
      %v1040 = vpack.c.bf16 %v1014, %v1013
      %v1041 = vpack.c.bf16 %v1016, %v1015
      %v1042 = vpack.c.bf16 %v1018, %v1017
      %v1043 = vpack.c.bf16 %v1020, %v1019
      %v1044 = vpack.c.bf16 %v1022, %v1021
      %v1045 = vpack.c.bf16 %v1024, %v1023
      %v1046 = vpack.c.bf16 %v1026, %v1025
      %v1047 = vpack.c.bf16 %v1028, %v1027
      %v1048 = vpack.c.bf16 %v1030, %v1029
      %v1049 = vpack.c.bf16 %v1032, %v1031
      %v1050 = vpack.c.bf16 %v1034, %v1033
      %s1051 = scalar_lea.vmem %s1, 24
      %v1052 = vld [vmem:[%s1051] sm:$0xf]
      %v1053 = vld [vmem:[%s1051 + $0x4] sm:$0xf]
      %v1056 = vunpack.c.l.b16 %v1052
      %v1057 = vunpack.c.l.b16 %v1053
      %v1058 = vpack.c.b16 %v1057, %v1056
      %v1061 = vsel %vm279, %v1035, 0
      %v1064 = vsel %vm279, %v1036, 0
      %v1067 = vsel %vm279, %v1037, 0
      %v1070 = vsel %vm279, %v1038, 0
      %v1073 = vsel %vm279, %v1039, 0
      %v1076 = vsel %vm279, %v1040, 0
      %v1079 = vsel %vm279, %v1041, 0
      %v1082 = vsel %vm279, %v1042, 0
      %v1085 = vsel %vm279, %v1043, 0
      %v1088 = vsel %vm279, %v1044, 0
      %v1091 = vsel %vm279, %v1045, 0
      %v1094 = vsel %vm279, %v1046, 0
      %v1097 = vsel %vm279, %v1047, 0
      %v1100 = vsel %vm279, %v1048, 0
      %v1103 = vsel %vm279, %v1049, 0
      %v1106 = vsel %vm279, %v1050, 0
      %1108 = vmatprep.subr.bf16.mxu0 0
      %1109 = vmatpush1.bf16.msra.mxu0 %v1058
      %1110 = vmatprep.subr.bf16.mxu0 0
      %1111 = vmatpush1.bf16.msra.mxu0 0
      %1112 = vmatprep.subr.bf16.mxu0 0
      %1113 = vmatpush1.bf16.msra.mxu0 0
      %1114 = vmatprep.subr.bf16.mxu0 0
      %1115 = vmatpush1.bf16.msra.mxu0 0
      %1116 = vmatprep.subr.bf16.mxu0 0
      %1117 = vmatpush1.bf16.msra.mxu0 0
      %1118 = vmatprep.subr.bf16.mxu0 0
      %1119 = vmatpush1.bf16.msra.mxu0 0
      %1120 = vmatprep.subr.bf16.mxu0 0
      %1121 = vmatpush1.bf16.msra.mxu0 0
      %1122 = vmatprep.subr.bf16.mxu0 0
      %1123 = vmatpush1.bf16.msra.mxu0 0
      %1124 = vmatprep.subr.bf16.mxu0 0
      %1125 = vmatpush1.bf16.msra.mxu0 0
      %1126 = vmatprep.subr.bf16.mxu0 0
      %1127 = vmatpush1.bf16.msra.mxu0 0
      %1128 = vmatprep.subr.bf16.mxu0 0
      %1129 = vmatpush1.bf16.msra.mxu0 0
      %1130 = vmatprep.subr.bf16.mxu0 0
      %1131 = vmatpush1.bf16.msra.mxu0 0
      %1132 = vmatprep.subr.bf16.mxu0 0
      %1133 = vmatpush1.bf16.msra.mxu0 0
      %1134 = vmatprep.subr.bf16.mxu0 0
      %1135 = vmatpush1.bf16.msra.mxu0 0
      %1136 = vmatprep.subr.bf16.mxu0 0
      %1137 = vmatpush1.bf16.msra.mxu0 0
      %1138 = vmatprep.subr.bf16.mxu0 0
      %1139 = vmatpush1.bf16.msra.mxu0 0
      %1140 = vmatprep.mubr.bf16.mxu0 0
      %1141 = vmatmul.mubr.bf16.gmra.mrb[0].mxu0 %v1061
      %v1142 = vpop.f32.mrb[0].mxu0
      %v1143 = vadd.f32 0.0, %v1142
      %v1144 = vpop.f32.mrb[0].mxu0
      %v1145 = vpop.f32.mrb[0].mxu0
      %v1146 = vadd.f32 0.0, %v1145
      %v1147 = vpop.f32.mrb[0].mxu0
      %1148 = vmatprep.mubr.bf16.mxu0 0
      %1149 = vmatmul.mubr.bf16.gmra.mrb[0].mxu0 %v1064
      %v1150 = vpop.f32.mrb[0].mxu0
      %v1151 = vadd.f32 0.0, %v1150
      %v1152 = vpop.f32.mrb[0].mxu0
      %v1153 = vpop.f32.mrb[0].mxu0
      %v1154 = vadd.f32 0.0, %v1153
      %v1155 = vpop.f32.mrb[0].mxu0
      %1156 = vmatprep.mubr.bf16.mxu0 0
      %1157 = vmatmul.mubr.bf16.gmra.mrb[0].mxu0 %v1067
      %v1158 = vpop.f32.mrb[0].mxu0
      %v1159 = vadd.f32 0.0, %v1158
      %v1160 = vpop.f32.mrb[0].mxu0
      %v1161 = vpop.f32.mrb[0].mxu0
      %v1162 = vadd.f32 0.0, %v1161
      %v1163 = vpop.f32.mrb[0].mxu0
      %1164 = vmatprep.mubr.bf16.mxu0 0
      %1165 = vmatmul.mubr.bf16.gmra.mrb[0].mxu0 %v1070
      %v1166 = vpop.f32.mrb[0].mxu0
      %v1167 = vadd.f32 0.0, %v1166
      %v1168 = vpop.f32.mrb[0].mxu0
      %v1169 = vpop.f32.mrb[0].mxu0
      %v1170 = vadd.f32 0.0, %v1169
      %v1171 = vpop.f32.mrb[0].mxu0
      %1172 = vmatprep.mubr.bf16.mxu0 0
      %1173 = vmatmul.mubr.bf16.gmra.mrb[0].mxu0 %v1073
      %v1174 = vpop.f32.mrb[0].mxu0
      %v1175 = vadd.f32 0.0, %v1174
      %v1176 = vpop.f32.mrb[0].mxu0
      %v1177 = vpop.f32.mrb[0].mxu0
      %v1178 = vadd.f32 0.0, %v1177
      %v1179 = vpop.f32.mrb[0].mxu0
      %1180 = vmatprep.mubr.bf16.mxu0 0
      %1181 = vmatmul.mubr.bf16.gmra.mrb[0].mxu0 %v1076
      %v1182 = vpop.f32.mrb[0].mxu0
      %v1183 = vadd.f32 0.0, %v1182
      %v1184 = vpop.f32.mrb[0].mxu0
      %v1185 = vpop.f32.mrb[0].mxu0
      %v1186 = vadd.f32 0.0, %v1185
      %v1187 = vpop.f32.mrb[0].mxu0
      %1188 = vmatprep.mubr.bf16.mxu0 0
      %1189 = vmatmul.mubr.bf16.gmra.mrb[0].mxu0 %v1079
      %v1190 = vpop.f32.mrb[0].mxu0
      %v1191 = vadd.f32 0.0, %v1190
      %v1192 = vpop.f32.mrb[0].mxu0
      %v1193 = vpop.f32.mrb[0].mxu0
      %v1194 = vadd.f32 0.0, %v1193
      %v1195 = vpop.f32.mrb[0].mxu0
      %1196 = vmatprep.mubr.bf16.mxu0 0
      %1197 = vmatmul.mubr.bf16.gmra.mrb[0].mxu0 %v1082
      %v1198 = vpop.f32.mrb[0].mxu0
      %v1199 = vadd.f32 0.0, %v1198
      %v1200 = vpop.f32.mrb[0].mxu0
      %v1201 = vpop.f32.mrb[0].mxu0
      %v1202 = vadd.f32 0.0, %v1201
      %v1203 = vpop.f32.mrb[0].mxu0
      %1204 = vmatprep.mubr.bf16.mxu0 0
      %1205 = vmatmul.mubr.bf16.gmra.mrb[0].mxu0 %v1085
      %v1206 = vpop.f32.mrb[0].mxu0
      %v1207 = vadd.f32 0.0, %v1206
      %v1208 = vpop.f32.mrb[0].mxu0
      %v1209 = vpop.f32.mrb[0].mxu0
      %v1210 = vadd.f32 0.0, %v1209
      %v1211 = vpop.f32.mrb[0].mxu0
      %1212 = vmatprep.mubr.bf16.mxu0 0
      %1213 = vmatmul.mubr.bf16.gmra.mrb[0].mxu0 %v1088
      %v1214 = vpop.f32.mrb[0].mxu0
      %v1215 = vadd.f32 0.0, %v1214
      %v1216 = vpop.f32.mrb[0].mxu0
      %v1217 = vpop.f32.mrb[0].mxu0
      %v1218 = vadd.f32 0.0, %v1217
      %v1219 = vpop.f32.mrb[0].mxu0
      %1220 = vmatprep.mubr.bf16.mxu0 0
      %1221 = vmatmul.mubr.bf16.gmra.mrb[0].mxu0 %v1091
      %v1222 = vpop.f32.mrb[0].mxu0
      %v1223 = vadd.f32 0.0, %v1222
      %v1224 = vpop.f32.mrb[0].mxu0
      %v1225 = vpop.f32.mrb[0].mxu0
      %v1226 = vadd.f32 0.0, %v1225
      %v1227 = vpop.f32.mrb[0].mxu0
      %1228 = vmatprep.mubr.bf16.mxu0 0
      %1229 = vmatmul.mubr.bf16.gmra.mrb[0].mxu0 %v1094
      %v1230 = vpop.f32.mrb[0].mxu0
      %v1231 = vadd.f32 0.0, %v1230
      %v1232 = vpop.f32.mrb[0].mxu0
      %v1233 = vpop.f32.mrb[0].mxu0
      %v1234 = vadd.f32 0.0, %v1233
      %v1235 = vpop.f32.mrb[0].mxu0
      %1236 = vmatprep.mubr.bf16.mxu0 0
      %1237 = vmatmul.mubr.bf16.gmra.mrb[0].mxu0 %v1097
      %v1238 = vpop.f32.mrb[0].mxu0
      %v1239 = vadd.f32 0.0, %v1238
      %v1240 = vpop.f32.mrb[0].mxu0
      %v1241 = vpop.f32.mrb[0].mxu0
      %v1242 = vadd.f32 0.0, %v1241
      %v1243 = vpop.f32.mrb[0].mxu0
      %1244 = vmatprep.mubr.bf16.mxu0 0
      %1245 = vmatmul.mubr.bf16.gmra.mrb[0].mxu0 %v1100
      %v1246 = vpop.f32.mrb[0].mxu0
      %v1247 = vadd.f32 0.0, %v1246
      %v1248 = vpop.f32.mrb[0].mxu0
      %v1249 = vpop.f32.mrb[0].mxu0
      %v1250 = vadd.f32 0.0, %v1249
      %v1251 = vpop.f32.mrb[0].mxu0
      %1252 = vmatprep.mubr.bf16.mxu0 0
      %1253 = vmatmul.mubr.bf16.gmra.mrb[0].mxu0 %v1103
      %v1254 = vpop.f32.mrb[0].mxu0
      %v1255 = vadd.f32 0.0, %v1254
      %v1256 = vpop.f32.mrb[0].mxu0
      %v1257 = vpop.f32.mrb[0].mxu0
      %v1258 = vadd.f32 0.0, %v1257
      %v1259 = vpop.f32.mrb[0].mxu0
      %1260 = vmatprep.mubr.bf16.mxu0 0
      %1261 = vmatmul.mubr.bf16.gmra.mrb[0].mxu0 %v1106
      %v1262 = vpop.f32.mrb[0].mxu0
      %v1263 = vadd.f32 0.0, %v1262
      %v1264 = vpop.f32.mrb[0].mxu0
      %v1265 = vpop.f32.mrb[0].mxu0
      %v1266 = vadd.f32 0.0, %v1265
      %v1267 = vpop.f32.mrb[0].mxu0
      %1268 = vdwg.mxu0
      %v1269 = vadd.f32 %v970, %v1143
      %v1270 = vadd.f32 %v971, %v1146
      %v1271 = vadd.f32 %v972, %v1151
      %v1272 = vadd.f32 %v973, %v1154
      %v1273 = vadd.f32 %v974, %v1159
      %v1274 = vadd.f32 %v975, %v1162
      %v1275 = vadd.f32 %v976, %v1167
      %v1276 = vadd.f32 %v977, %v1170
      %v1277 = vadd.f32 %v978, %v1175
      %v1278 = vadd.f32 %v979, %v1178
      %v1279 = vadd.f32 %v980, %v1183
      %v1280 = vadd.f32 %v981, %v1186
      %v1281 = vadd.f32 %v982, %v1191
      %v1282 = vadd.f32 %v983, %v1194
      %v1283 = vadd.f32 %v984, %v1199
      %v1284 = vadd.f32 %v985, %v1202
      %v1285 = vadd.f32 %v986, %v1207
      %v1286 = vadd.f32 %v987, %v1210
      %v1287 = vadd.f32 %v988, %v1215
      %v1288 = vadd.f32 %v989, %v1218
      %v1289 = vadd.f32 %v990, %v1223
      %v1290 = vadd.f32 %v991, %v1226
      %v1291 = vadd.f32 %v992, %v1231
      %v1292 = vadd.f32 %v993, %v1234
      %v1293 = vadd.f32 %v994, %v1239
      %v1294 = vadd.f32 %v995, %v1242
      %v1295 = vadd.f32 %v996, %v1247
      %v1296 = vadd.f32 %v997, %v1250
      %v1297 = vadd.f32 %v998, %v1255
      %v1298 = vadd.f32 %v999, %v1258
      %v1299 = vadd.f32 %v1000, %v1263
      %v1300 = vadd.f32 %v1001, %v1266
      %v1301 = vld [vmem:[%s1002 + $0x1] sm:$0xff]
      %v1302 = vld [vmem:[%s1002 + $0x9] sm:$0xff]
      %v1303 = vld [vmem:[%s1002 + $0x19] sm:$0xff]
      %v1304 = vld [vmem:[%s1002 + $0x21] sm:$0xff]
      %v1305 = vld [vmem:[%s1002 + $0x31] sm:$0xff]
      %v1306 = vld [vmem:[%s1002 + $0x39] sm:$0xff]
      %v1307 = vld [vmem:[%s1002 + $0x49] sm:$0xff]
      %v1308 = vld [vmem:[%s1002 + $0x51] sm:$0xff]
      %v1309 = vld [vmem:[%s1002 + $0x61] sm:$0xff]
      %v1310 = vld [vmem:[%s1002 + $0x69] sm:$0xff]
      %v1311 = vld [vmem:[%s1002 + $0x79] sm:$0xff]
      %v1312 = vld [vmem:[%s1002 + $0x81] sm:$0xff]
      %v1313 = vld [vmem:[%s1002 + $0x91] sm:$0xff]
      %v1314 = vld [vmem:[%s1002 + $0x99] sm:$0xff]
      %v1315 = vld [vmem:[%s1002 + $0xa9] sm:$0xff]
      %v1316 = vld [vmem:[%s1002 + $0xb1] sm:$0xff]
      %v1317 = vld [vmem:[%s1002 + $0xc1] sm:$0xff]
      %v1318 = vld [vmem:[%s1002 + $0xc9] sm:$0xff]
      %v1319 = vld [vmem:[%s1002 + $0xd9] sm:$0xff]
      %v1320 = vld [vmem:[%s1002 + $0xe1] sm:$0xff]
      %v1321 = vld [vmem:[%s1002 + $0xf1] sm:$0xff]
      %v1322 = vld [vmem:[%s1002 + $0xf9] sm:$0xff]
      %v1323 = vld [vmem:[%s1002 + $0x109] sm:$0xff]
      %v1324 = vld [vmem:[%s1002 + $0x111] sm:$0xff]
      %v1325 = vld [vmem:[%s1002 + $0x121] sm:$0xff]
      %v1326 = vld [vmem:[%s1002 + $0x129] sm:$0xff]
      %v1327 = vld [vmem:[%s1002 + $0x139] sm:$0xff]
      %v1328 = vld [vmem:[%s1002 + $0x141] sm:$0xff]
      %v1329 = vld [vmem:[%s1002 + $0x151] sm:$0xff]
      %v1330 = vld [vmem:[%s1002 + $0x159] sm:$0xff]
      %v1331 = vld [vmem:[%s1002 + $0x169] sm:$0xff]
      %v1332 = vld [vmem:[%s1002 + $0x171] sm:$0xff]
      %v1333 = vpack.c.bf16 %v1302, %v1301
      %v1334 = vpack.c.bf16 %v1304, %v1303
      %v1335 = vpack.c.bf16 %v1306, %v1305
      %v1336 = vpack.c.bf16 %v1308, %v1307
      %v1337 = vpack.c.bf16 %v1310, %v1309
      %v1338 = vpack.c.bf16 %v1312, %v1311
      %v1339 = vpack.c.bf16 %v1314, %v1313
      %v1340 = vpack.c.bf16 %v1316, %v1315
      %v1341 = vpack.c.bf16 %v1318, %v1317
      %v1342 = vpack.c.bf16 %v1320, %v1319
      %v1343 = vpack.c.bf16 %v1322, %v1321
      %v1344 = vpack.c.bf16 %v1324, %v1323
      %v1345 = vpack.c.bf16 %v1326, %v1325
      %v1346 = vpack.c.bf16 %v1328, %v1327
      %v1347 = vpack.c.bf16 %v1330, %v1329
      %v1348 = vpack.c.bf16 %v1332, %v1331
      %s1349 = scalar_lea.vmem %s1, 32
      %v1350 = vld [vmem:[%s1349] sm:$0xf]
      %v1351 = vld [vmem:[%s1349 + $0x4] sm:$0xf]
      %v1354 = vunpack.c.l.b16 %v1350
      %v1355 = vunpack.c.l.b16 %v1351
      %v1356 = vpack.c.b16 %v1355, %v1354
      %v1359 = vsel %vm279, %v1333, 0
      %v1362 = vsel %vm279, %v1334, 0
      %v1365 = vsel %vm279, %v1335, 0
      %v1368 = vsel %vm279, %v1336, 0
      %v1371 = vsel %vm279, %v1337, 0
      %v1374 = vsel %vm279, %v1338, 0
      %v1377 = vsel %vm279, %v1339, 0
      %v1380 = vsel %vm279, %v1340, 0
      %v1383 = vsel %vm279, %v1341, 0
      %v1386 = vsel %vm279, %v1342, 0
      %v1389 = vsel %vm279, %v1343, 0
      %v1392 = vsel %vm279, %v1344, 0
      %v1395 = vsel %vm279, %v1345, 0
      %v1398 = vsel %vm279, %v1346, 0
      %v1401 = vsel %vm279, %v1347, 0
      %v1404 = vsel %vm279, %v1348, 0
      %1406 = vmatprep.subr.bf16.mxu0 0
      %1407 = vmatpush1.bf16.msra.mxu0 %v1356
      %1408 = vmatprep.subr.bf16.mxu0 0
      %1409 = vmatpush1.bf16.msra.mxu0 0
      %1410 = vmatprep.subr.bf16.mxu0 0
      %1411 = vmatpush1.bf16.msra.mxu0 0
      %1412 = vmatprep.subr.bf16.mxu0 0
      %1413 = vmatpush1.bf16.msra.mxu0 0
      %1414 = vmatprep.subr.bf16.mxu0 0
      %1415 = vmatpush1.bf16.msra.mxu0 0
      %1416 = vmatprep.subr.bf16.mxu0 0
      %1417 = vmatpush1.bf16.msra.mxu0 0
      %1418 = vmatprep.subr.bf16.mxu0 0
      %1419 = vmatpush1.bf16.msra.mxu0 0
      %1420 = vmatprep.subr.bf16.mxu0 0
      %1421 = vmatpush1.bf16.msra.mxu0 0
      %1422 = vmatprep.subr.bf16.mxu0 0
      %1423 = vmatpush1.bf16.msra.mxu0 0
      %1424 = vmatprep.subr.bf16.mxu0 0
      %1425 = vmatpush1.bf16.msra.mxu0 0
      %1426 = vmatprep.subr.bf16.mxu0 0
      %1427 = vmatpush1.bf16.msra.mxu0 0
      %1428 = vmatprep.subr.bf16.mxu0 0
      %1429 = vmatpush1.bf16.msra.mxu0 0
      %1430 = vmatprep.subr.bf16.mxu0 0
      %1431 = vmatpush1.bf16.msra.mxu0 0
      %1432 = vmatprep.subr.bf16.mxu0 0
      %1433 = vmatpush1.bf16.msra.mxu0 0
      %1434 = vmatprep.subr.bf16.mxu0 0
      %1435 = vmatpush1.bf16.msra.mxu0 0
      %1436 = vmatprep.subr.bf16.mxu0 0
      %1437 = vmatpush1.bf16.msra.mxu0 0
      %1438 = vmatprep.mubr.bf16.mxu0 0
      %1439 = vmatmul.mubr.bf16.gmra.mrb[0].mxu0 %v1359
      %v1440 = vpop.f32.mrb[0].mxu0
      %v1441 = vadd.f32 0.0, %v1440
      %v1442 = vpop.f32.mrb[0].mxu0
      %v1443 = vpop.f32.mrb[0].mxu0
      %v1444 = vadd.f32 0.0, %v1443
      %v1445 = vpop.f32.mrb[0].mxu0
      %1446 = vmatprep.mubr.bf16.mxu0 0
      %1447 = vmatmul.mubr.bf16.gmra.mrb[0].mxu0 %v1362
      %v1448 = vpop.f32.mrb[0].mxu0
      %v1449 = vadd.f32 0.0, %v1448
      %v1450 = vpop.f32.mrb[0].mxu0
      %v1451 = vpop.f32.mrb[0].mxu0
      %v1452 = vadd.f32 0.0, %v1451
      %v1453 = vpop.f32.mrb[0].mxu0
      %1454 = vmatprep.mubr.bf16.mxu0 0
      %1455 = vmatmul.mubr.bf16.gmra.mrb[0].mxu0 %v1365
      %v1456 = vpop.f32.mrb[0].mxu0
      %v1457 = vadd.f32 0.0, %v1456
      %v1458 = vpop.f32.mrb[0].mxu0
      %v1459 = vpop.f32.mrb[0].mxu0
      %v1460 = vadd.f32 0.0, %v1459
      %v1461 = vpop.f32.mrb[0].mxu0
      %1462 = vmatprep.mubr.bf16.mxu0 0
      %1463 = vmatmul.mubr.bf16.gmra.mrb[0].mxu0 %v1368
      %v1464 = vpop.f32.mrb[0].mxu0
      %v1465 = vadd.f32 0.0, %v1464
      %v1466 = vpop.f32.mrb[0].mxu0
      %v1467 = vpop.f32.mrb[0].mxu0
      %v1468 = vadd.f32 0.0, %v1467
      %v1469 = vpop.f32.mrb[0].mxu0
      %1470 = vmatprep.mubr.bf16.mxu0 0
      %1471 = vmatmul.mubr.bf16.gmra.mrb[0].mxu0 %v1371
      %v1472 = vpop.f32.mrb[0].mxu0
      %v1473 = vadd.f32 0.0, %v1472
      %v1474 = vpop.f32.mrb[0].mxu0
      %v1475 = vpop.f32.mrb[0].mxu0
      %v1476 = vadd.f32 0.0, %v1475
      %v1477 = vpop.f32.mrb[0].mxu0
      %1478 = vmatprep.mubr.bf16.mxu0 0
      %1479 = vmatmul.mubr.bf16.gmra.mrb[0].mxu0 %v1374
      %v1480 = vpop.f32.mrb[0].mxu0
      %v1481 = vadd.f32 0.0, %v1480
      %v1482 = vpop.f32.mrb[0].mxu0
      %v1483 = vpop.f32.mrb[0].mxu0
      %v1484 = vadd.f32 0.0, %v1483
      %v1485 = vpop.f32.mrb[0].mxu0
      %1486 = vmatprep.mubr.bf16.mxu0 0
      %1487 = vmatmul.mubr.bf16.gmra.mrb[0].mxu0 %v1377
      %v1488 = vpop.f32.mrb[0].mxu0
      %v1489 = vadd.f32 0.0, %v1488
      %v1490 = vpop.f32.mrb[0].mxu0
      %v1491 = vpop.f32.mrb[0].mxu0
      %v1492 = vadd.f32 0.0, %v1491
      %v1493 = vpop.f32.mrb[0].mxu0
      %1494 = vmatprep.mubr.bf16.mxu0 0
      %1495 = vmatmul.mubr.bf16.gmra.mrb[0].mxu0 %v1380
      %v1496 = vpop.f32.mrb[0].mxu0
      %v1497 = vadd.f32 0.0, %v1496
      %v1498 = vpop.f32.mrb[0].mxu0
      %v1499 = vpop.f32.mrb[0].mxu0
      %v1500 = vadd.f32 0.0, %v1499
      %v1501 = vpop.f32.mrb[0].mxu0
      %1502 = vmatprep.mubr.bf16.mxu0 0
      %1503 = vmatmul.mubr.bf16.gmra.mrb[0].mxu0 %v1383
      %v1504 = vpop.f32.mrb[0].mxu0
      %v1505 = vadd.f32 0.0, %v1504
      %v1506 = vpop.f32.mrb[0].mxu0
      %v1507 = vpop.f32.mrb[0].mxu0
      %v1508 = vadd.f32 0.0, %v1507
      %v1509 = vpop.f32.mrb[0].mxu0
      %1510 = vmatprep.mubr.bf16.mxu0 0
      %1511 = vmatmul.mubr.bf16.gmra.mrb[0].mxu0 %v1386
      %v1512 = vpop.f32.mrb[0].mxu0
      %v1513 = vadd.f32 0.0, %v1512
      %v1514 = vpop.f32.mrb[0].mxu0
      %v1515 = vpop.f32.mrb[0].mxu0
      %v1516 = vadd.f32 0.0, %v1515
      %v1517 = vpop.f32.mrb[0].mxu0
      %1518 = vmatprep.mubr.bf16.mxu0 0
      %1519 = vmatmul.mubr.bf16.gmra.mrb[0].mxu0 %v1389
      %v1520 = vpop.f32.mrb[0].mxu0
      %v1521 = vadd.f32 0.0, %v1520
      %v1522 = vpop.f32.mrb[0].mxu0
      %v1523 = vpop.f32.mrb[0].mxu0
      %v1524 = vadd.f32 0.0, %v1523
      %v1525 = vpop.f32.mrb[0].mxu0
      %1526 = vmatprep.mubr.bf16.mxu0 0
      %1527 = vmatmul.mubr.bf16.gmra.mrb[0].mxu0 %v1392
      %v1528 = vpop.f32.mrb[0].mxu0
      %v1529 = vadd.f32 0.0, %v1528
      %v1530 = vpop.f32.mrb[0].mxu0
      %v1531 = vpop.f32.mrb[0].mxu0
      %v1532 = vadd.f32 0.0, %v1531
      %v1533 = vpop.f32.mrb[0].mxu0
      %1534 = vmatprep.mubr.bf16.mxu0 0
      %1535 = vmatmul.mubr.bf16.gmra.mrb[0].mxu0 %v1395
      %v1536 = vpop.f32.mrb[0].mxu0
      %v1537 = vadd.f32 0.0, %v1536
      %v1538 = vpop.f32.mrb[0].mxu0
      %v1539 = vpop.f32.mrb[0].mxu0
      %v1540 = vadd.f32 0.0, %v1539
      %v1541 = vpop.f32.mrb[0].mxu0
      %1542 = vmatprep.mubr.bf16.mxu0 0
      %1543 = vmatmul.mubr.bf16.gmra.mrb[0].mxu0 %v1398
      %v1544 = vpop.f32.mrb[0].mxu0
      %v1545 = vadd.f32 0.0, %v1544
      %v1546 = vpop.f32.mrb[0].mxu0
      %v1547 = vpop.f32.mrb[0].mxu0
      %v1548 = vadd.f32 0.0, %v1547
      %v1549 = vpop.f32.mrb[0].mxu0
      %1550 = vmatprep.mubr.bf16.mxu0 0
      %1551 = vmatmul.mubr.bf16.gmra.mrb[0].mxu0 %v1401
      %v1552 = vpop.f32.mrb[0].mxu0
      %v1553 = vadd.f32 0.0, %v1552
      %v1554 = vpop.f32.mrb[0].mxu0
      %v1555 = vpop.f32.mrb[0].mxu0
      %v1556 = vadd.f32 0.0, %v1555
      %v1557 = vpop.f32.mrb[0].mxu0
      %1558 = vmatprep.mubr.bf16.mxu0 0
      %1559 = vmatmul.mubr.bf16.gmra.mrb[0].mxu0 %v1404
      %v1560 = vpop.f32.mrb[0].mxu0
      %v1561 = vadd.f32 0.0, %v1560
      %v1562 = vpop.f32.mrb[0].mxu0
      %v1563 = vpop.f32.mrb[0].mxu0
      %v1564 = vadd.f32 0.0, %v1563
      %v1565 = vpop.f32.mrb[0].mxu0
      %1566 = vdwg.mxu0
      %v1567 = vadd.f32 %v1269, %v1441
      %v1568 = vadd.f32 %v1270, %v1444
      %v1569 = vadd.f32 %v1271, %v1449
      %v1570 = vadd.f32 %v1272, %v1452
      %v1571 = vadd.f32 %v1273, %v1457
      %v1572 = vadd.f32 %v1274, %v1460
      %v1573 = vadd.f32 %v1275, %v1465
      %v1574 = vadd.f32 %v1276, %v1468
      %v1575 = vadd.f32 %v1277, %v1473
      %v1576 = vadd.f32 %v1278, %v1476
      %v1577 = vadd.f32 %v1279, %v1481
      %v1578 = vadd.f32 %v1280, %v1484
      %v1579 = vadd.f32 %v1281, %v1489
      %v1580 = vadd.f32 %v1282, %v1492
      %v1581 = vadd.f32 %v1283, %v1497
      %v1582 = vadd.f32 %v1284, %v1500
      %v1583 = vadd.f32 %v1285, %v1505
      %v1584 = vadd.f32 %v1286, %v1508
      %v1585 = vadd.f32 %v1287, %v1513
      %v1586 = vadd.f32 %v1288, %v1516
      %v1587 = vadd.f32 %v1289, %v1521
      %v1588 = vadd.f32 %v1290, %v1524
      %v1589 = vadd.f32 %v1291, %v1529
      %v1590 = vadd.f32 %v1292, %v1532
      %v1591 = vadd.f32 %v1293, %v1537
      %v1592 = vadd.f32 %v1294, %v1540
      %v1593 = vadd.f32 %v1295, %v1545
      %v1594 = vadd.f32 %v1296, %v1548
      %v1595 = vadd.f32 %v1297, %v1553
      %v1596 = vadd.f32 %v1298, %v1556
      %v1597 = vadd.f32 %v1299, %v1561
      %v1598 = vadd.f32 %v1300, %v1564
      %v1599 = vld [vmem:[%s1002 + $0x2] sm:$0xff]
      %v1600 = vld [vmem:[%s1002 + $0xa] sm:$0xff]
      %v1601 = vld [vmem:[%s1002 + $0x1a] sm:$0xff]
      %v1602 = vld [vmem:[%s1002 + $0x22] sm:$0xff]
      %v1603 = vld [vmem:[%s1002 + $0x32] sm:$0xff]
      %v1604 = vld [vmem:[%s1002 + $0x3a] sm:$0xff]
      %v1605 = vld [vmem:[%s1002 + $0x4a] sm:$0xff]
      %v1606 = vld [vmem:[%s1002 + $0x52] sm:$0xff]
      %v1607 = vld [vmem:[%s1002 + $0x62] sm:$0xff]
      %v1608 = vld [vmem:[%s1002 + $0x6a] sm:$0xff]
      %v1609 = vld [vmem:[%s1002 + $0x7a] sm:$0xff]
      %v1610 = vld [vmem:[%s1002 + $0x82] sm:$0xff]
      %v1611 = vld [vmem:[%s1002 + $0x92] sm:$0xff]
      %v1612 = vld [vmem:[%s1002 + $0x9a] sm:$0xff]
      %v1613 = vld [vmem:[%s1002 + $0xaa] sm:$0xff]
      %v1614 = vld [vmem:[%s1002 + $0xb2] sm:$0xff]
      %v1615 = vld [vmem:[%s1002 + $0xc2] sm:$0xff]
      %v1616 = vld [vmem:[%s1002 + $0xca] sm:$0xff]
      %v1617 = vld [vmem:[%s1002 + $0xda] sm:$0xff]
      %v1618 = vld [vmem:[%s1002 + $0xe2] sm:$0xff]
      %v1619 = vld [vmem:[%s1002 + $0xf2] sm:$0xff]
      %v1620 = vld [vmem:[%s1002 + $0xfa] sm:$0xff]
      %v1621 = vld [vmem:[%s1002 + $0x10a] sm:$0xff]
      %v1622 = vld [vmem:[%s1002 + $0x112] sm:$0xff]
      %v1623 = vld [vmem:[%s1002 + $0x122] sm:$0xff]
      %v1624 = vld [vmem:[%s1002 + $0x12a] sm:$0xff]
      %v1625 = vld [vmem:[%s1002 + $0x13a] sm:$0xff]
      %v1626 = vld [vmem:[%s1002 + $0x142] sm:$0xff]
      %v1627 = vld [vmem:[%s1002 + $0x152] sm:$0xff]
      %v1628 = vld [vmem:[%s1002 + $0x15a] sm:$0xff]
      %v1629 = vld [vmem:[%s1002 + $0x16a] sm:$0xff]
      %v1630 = vld [vmem:[%s1002 + $0x172] sm:$0xff]
      %v1631 = vpack.c.bf16 %v1600, %v1599
      %v1632 = vpack.c.bf16 %v1602, %v1601
      %v1633 = vpack.c.bf16 %v1604, %v1603
      %v1634 = vpack.c.bf16 %v1606, %v1605
      %v1635 = vpack.c.bf16 %v1608, %v1607
      %v1636 = vpack.c.bf16 %v1610, %v1609
      %v1637 = vpack.c.bf16 %v1612, %v1611
      %v1638 = vpack.c.bf16 %v1614, %v1613
      %v1639 = vpack.c.bf16 %v1616, %v1615
      %v1640 = vpack.c.bf16 %v1618, %v1617
      %v1641 = vpack.c.bf16 %v1620, %v1619
      %v1642 = vpack.c.bf16 %v1622, %v1621
      %v1643 = vpack.c.bf16 %v1624, %v1623
      %v1644 = vpack.c.bf16 %v1626, %v1625
      %v1645 = vpack.c.bf16 %v1628, %v1627
      %v1646 = vpack.c.bf16 %v1630, %v1629
      %s1647 = scalar_lea.vmem %s1, 40
      %v1648 = vld [vmem:[%s1647] sm:$0xf]
      %v1649 = vld [vmem:[%s1647 + $0x4] sm:$0xf]
      %v1652 = vunpack.c.l.b16 %v1648
      %v1653 = vunpack.c.l.b16 %v1649
      %v1654 = vpack.c.b16 %v1653, %v1652
      %v1657 = vsel %vm279, %v1631, 0
      %v1660 = vsel %vm279, %v1632, 0
      %v1663 = vsel %vm279, %v1633, 0
      %v1666 = vsel %vm279, %v1634, 0
      %v1669 = vsel %vm279, %v1635, 0
      %v1672 = vsel %vm279, %v1636, 0
      %v1675 = vsel %vm279, %v1637, 0
      %v1678 = vsel %vm279, %v1638, 0
      %v1681 = vsel %vm279, %v1639, 0
      %v1684 = vsel %vm279, %v1640, 0
      %v1687 = vsel %vm279, %v1641, 0
      %v1690 = vsel %vm279, %v1642, 0
      %v1693 = vsel %vm279, %v1643, 0
      %v1696 = vsel %vm279, %v1644, 0
      %v1699 = vsel %vm279, %v1645, 0
      %v1702 = vsel %vm279, %v1646, 0
      %1704 = vmatprep.subr.bf16.mxu0 0
      %1705 = vmatpush1.bf16.msra.mxu0 %v1654
      %1706 = vmatprep.subr.bf16.mxu0 0
      %1707 = vmatpush1.bf16.msra.mxu0 0
      %1708 = vmatprep.subr.bf16.mxu0 0
      %1709 = vmatpush1.bf16.msra.mxu0 0
      %1710 = vmatprep.subr.bf16.mxu0 0
      %1711 = vmatpush1.bf16.msra.mxu0 0
      %1712 = vmatprep.subr.bf16.mxu0 0
      %1713 = vmatpush1.bf16.msra.mxu0 0
      %1714 = vmatprep.subr.bf16.mxu0 0
      %1715 = vmatpush1.bf16.msra.mxu0 0
      %1716 = vmatprep.subr.bf16.mxu0 0
      %1717 = vmatpush1.bf16.msra.mxu0 0
      %1718 = vmatprep.subr.bf16.mxu0 0
      %1719 = vmatpush1.bf16.msra.mxu0 0
      %1720 = vmatprep.subr.bf16.mxu0 0
      %1721 = vmatpush1.bf16.msra.mxu0 0
      %1722 = vmatprep.subr.bf16.mxu0 0
      %1723 = vmatpush1.bf16.msra.mxu0 0
      %1724 = vmatprep.subr.bf16.mxu0 0
      %1725 = vmatpush1.bf16.msra.mxu0 0
      %1726 = vmatprep.subr.bf16.mxu0 0
      %1727 = vmatpush1.bf16.msra.mxu0 0
      %1728 = vmatprep.subr.bf16.mxu0 0
      %1729 = vmatpush1.bf16.msra.mxu0 0
      %1730 = vmatprep.subr.bf16.mxu0 0
      %1731 = vmatpush1.bf16.msra.mxu0 0
      %1732 = vmatprep.subr.bf16.mxu0 0
      %1733 = vmatpush1.bf16.msra.mxu0 0
      %1734 = vmatprep.subr.bf16.mxu0 0
      %1735 = vmatpush1.bf16.msra.mxu0 0
      %1736 = vmatprep.mubr.bf16.mxu0 0
      %1737 = vmatmul.mubr.bf16.gmra.mrb[0].mxu0 %v1657
      %v1738 = vpop.f32.mrb[0].mxu0
      %v1739 = vadd.f32 0.0, %v1738
      %v1740 = vpop.f32.mrb[0].mxu0
      %v1741 = vpop.f32.mrb[0].mxu0
      %v1742 = vadd.f32 0.0, %v1741
      %v1743 = vpop.f32.mrb[0].mxu0
      %1744 = vmatprep.mubr.bf16.mxu0 0
      %1745 = vmatmul.mubr.bf16.gmra.mrb[0].mxu0 %v1660
      %v1746 = vpop.f32.mrb[0].mxu0
      %v1747 = vadd.f32 0.0, %v1746
      %v1748 = vpop.f32.mrb[0].mxu0
      %v1749 = vpop.f32.mrb[0].mxu0
      %v1750 = vadd.f32 0.0, %v1749
      %v1751 = vpop.f32.mrb[0].mxu0
      %1752 = vmatprep.mubr.bf16.mxu0 0
      %1753 = vmatmul.mubr.bf16.gmra.mrb[0].mxu0 %v1663
      %v1754 = vpop.f32.mrb[0].mxu0
      %v1755 = vadd.f32 0.0, %v1754
      %v1756 = vpop.f32.mrb[0].mxu0
      %v1757 = vpop.f32.mrb[0].mxu0
      %v1758 = vadd.f32 0.0, %v1757
      %v1759 = vpop.f32.mrb[0].mxu0
      %1760 = vmatprep.mubr.bf16.mxu0 0
      %1761 = vmatmul.mubr.bf16.gmra.mrb[0].mxu0 %v1666
      %v1762 = vpop.f32.mrb[0].mxu0
      %v1763 = vadd.f32 0.0, %v1762
      %v1764 = vpop.f32.mrb[0].mxu0
      %v1765 = vpop.f32.mrb[0].mxu0
      %v1766 = vadd.f32 0.0, %v1765
      %v1767 = vpop.f32.mrb[0].mxu0
      %1768 = vmatprep.mubr.bf16.mxu0 0
      %1769 = vmatmul.mubr.bf16.gmra.mrb[0].mxu0 %v1669
      %v1770 = vpop.f32.mrb[0].mxu0
      %v1771 = vadd.f32 0.0, %v1770
      %v1772 = vpop.f32.mrb[0].mxu0
      %v1773 = vpop.f32.mrb[0].mxu0
      %v1774 = vadd.f32 0.0, %v1773
      %v1775 = vpop.f32.mrb[0].mxu0
      %1776 = vmatprep.mubr.bf16.mxu0 0
      %1777 = vmatmul.mubr.bf16.gmra.mrb[0].mxu0 %v1672
      %v1778 = vpop.f32.mrb[0].mxu0
      %v1779 = vadd.f32 0.0, %v1778
      %v1780 = vpop.f32.mrb[0].mxu0
      %v1781 = vpop.f32.mrb[0].mxu0
      %v1782 = vadd.f32 0.0, %v1781
      %v1783 = vpop.f32.mrb[0].mxu0
      %1784 = vmatprep.mubr.bf16.mxu0 0
      %1785 = vmatmul.mubr.bf16.gmra.mrb[0].mxu0 %v1675
      %v1786 = vpop.f32.mrb[0].mxu0
      %v1787 = vadd.f32 0.0, %v1786
      %v1788 = vpop.f32.mrb[0].mxu0
      %v1789 = vpop.f32.mrb[0].mxu0
      %v1790 = vadd.f32 0.0, %v1789
      %v1791 = vpop.f32.mrb[0].mxu0
      %1792 = vmatprep.mubr.bf16.mxu0 0
      %1793 = vmatmul.mubr.bf16.gmra.mrb[0].mxu0 %v1678
      %v1794 = vpop.f32.mrb[0].mxu0
      %v1795 = vadd.f32 0.0, %v1794
      %v1796 = vpop.f32.mrb[0].mxu0
      %v1797 = vpop.f32.mrb[0].mxu0
      %v1798 = vadd.f32 0.0, %v1797
      %v1799 = vpop.f32.mrb[0].mxu0
      %1800 = vmatprep.mubr.bf16.mxu0 0
      %1801 = vmatmul.mubr.bf16.gmra.mrb[0].mxu0 %v1681
      %v1802 = vpop.f32.mrb[0].mxu0
      %v1803 = vadd.f32 0.0, %v1802
      %v1804 = vpop.f32.mrb[0].mxu0
      %v1805 = vpop.f32.mrb[0].mxu0
      %v1806 = vadd.f32 0.0, %v1805
      %v1807 = vpop.f32.mrb[0].mxu0
      %1808 = vmatprep.mubr.bf16.mxu0 0
      %1809 = vmatmul.mubr.bf16.gmra.mrb[0].mxu0 %v1684
      %v1810 = vpop.f32.mrb[0].mxu0
      %v1811 = vadd.f32 0.0, %v1810
      %v1812 = vpop.f32.mrb[0].mxu0
      %v1813 = vpop.f32.mrb[0].mxu0
      %v1814 = vadd.f32 0.0, %v1813
      %v1815 = vpop.f32.mrb[0].mxu0
      %1816 = vmatprep.mubr.bf16.mxu0 0
      %1817 = vmatmul.mubr.bf16.gmra.mrb[0].mxu0 %v1687
      %v1818 = vpop.f32.mrb[0].mxu0
      %v1819 = vadd.f32 0.0, %v1818
      %v1820 = vpop.f32.mrb[0].mxu0
      %v1821 = vpop.f32.mrb[0].mxu0
      %v1822 = vadd.f32 0.0, %v1821
      %v1823 = vpop.f32.mrb[0].mxu0
      %1824 = vmatprep.mubr.bf16.mxu0 0
      %1825 = vmatmul.mubr.bf16.gmra.mrb[0].mxu0 %v1690
      %v1826 = vpop.f32.mrb[0].mxu0
      %v1827 = vadd.f32 0.0, %v1826
      %v1828 = vpop.f32.mrb[0].mxu0
      %v1829 = vpop.f32.mrb[0].mxu0
      %v1830 = vadd.f32 0.0, %v1829
      %v1831 = vpop.f32.mrb[0].mxu0
      %1832 = vmatprep.mubr.bf16.mxu0 0
      %1833 = vmatmul.mubr.bf16.gmra.mrb[0].mxu0 %v1693
      %v1834 = vpop.f32.mrb[0].mxu0
      %v1835 = vadd.f32 0.0, %v1834
      %v1836 = vpop.f32.mrb[0].mxu0
      %v1837 = vpop.f32.mrb[0].mxu0
      %v1838 = vadd.f32 0.0, %v1837
      %v1839 = vpop.f32.mrb[0].mxu0
      %1840 = vmatprep.mubr.bf16.mxu0 0
      %1841 = vmatmul.mubr.bf16.gmra.mrb[0].mxu0 %v1696
      %v1842 = vpop.f32.mrb[0].mxu0
      %v1843 = vadd.f32 0.0, %v1842
      %v1844 = vpop.f32.mrb[0].mxu0
      %v1845 = vpop.f32.mrb[0].mxu0
      %v1846 = vadd.f32 0.0, %v1845
      %v1847 = vpop.f32.mrb[0].mxu0
      %1848 = vmatprep.mubr.bf16.mxu0 0
      %1849 = vmatmul.mubr.bf16.gmra.mrb[0].mxu0 %v1699
      %v1850 = vpop.f32.mrb[0].mxu0
      %v1851 = vadd.f32 0.0, %v1850
      %v1852 = vpop.f32.mrb[0].mxu0
      %v1853 = vpop.f32.mrb[0].mxu0
      %v1854 = vadd.f32 0.0, %v1853
      %v1855 = vpop.f32.mrb[0].mxu0
      %1856 = vmatprep.mubr.bf16.mxu0 0
      %1857 = vmatmul.mubr.bf16.gmra.mrb[0].mxu0 %v1702
      %v1858 = vpop.f32.mrb[0].mxu0
      %v1859 = vadd.f32 0.0, %v1858
      %v1860 = vpop.f32.mrb[0].mxu0
      %v1861 = vpop.f32.mrb[0].mxu0
      %v1862 = vadd.f32 0.0, %v1861
      %v1863 = vpop.f32.mrb[0].mxu0
      %1864 = vdwg.mxu0
      %v1865 = vadd.f32 %v1567, %v1739
      %v1866 = vadd.f32 %v1568, %v1742
      %v1867 = vadd.f32 %v1569, %v1747
      %v1868 = vadd.f32 %v1570, %v1750
      %v1869 = vadd.f32 %v1571, %v1755
      %v1870 = vadd.f32 %v1572, %v1758
      %v1871 = vadd.f32 %v1573, %v1763
      %v1872 = vadd.f32 %v1574, %v1766
      %v1873 = vadd.f32 %v1575, %v1771
      %v1874 = vadd.f32 %v1576, %v1774
      %v1875 = vadd.f32 %v1577, %v1779
      %v1876 = vadd.f32 %v1578, %v1782
      %v1877 = vadd.f32 %v1579, %v1787
      %v1878 = vadd.f32 %v1580, %v1790
      %v1879 = vadd.f32 %v1581, %v1795
      %v1880 = vadd.f32 %v1582, %v1798
      %v1881 = vadd.f32 %v1583, %v1803
      %v1882 = vadd.f32 %v1584, %v1806
      %v1883 = vadd.f32 %v1585, %v1811
      %v1884 = vadd.f32 %v1586, %v1814
      %v1885 = vadd.f32 %v1587, %v1819
      %v1886 = vadd.f32 %v1588, %v1822
      %v1887 = vadd.f32 %v1589, %v1827
      %v1888 = vadd.f32 %v1590, %v1830
      %v1889 = vadd.f32 %v1591, %v1835
      %v1890 = vadd.f32 %v1592, %v1838
      %v1891 = vadd.f32 %v1593, %v1843
      %v1892 = vadd.f32 %v1594, %v1846
      %v1893 = vadd.f32 %v1595, %v1851
      %v1894 = vadd.f32 %v1596, %v1854
      %v1895 = vadd.f32 %v1597, %v1859
      %v1896 = vadd.f32 %v1598, %v1862
      %s1897 = scalar_lea.vmem %s165, 48
      %v1898 = vld [vmem:[%s1897] sm:$0xff]
      %v1899 = vld [vmem:[%s1897 + $0x8] sm:$0xff]
      %v1900 = vld [vmem:[%s1897 + $0x18] sm:$0xff]
      %v1901 = vld [vmem:[%s1897 + $0x20] sm:$0xff]
      %v1902 = vld [vmem:[%s1897 + $0x30] sm:$0xff]
      %v1903 = vld [vmem:[%s1897 + $0x38] sm:$0xff]
      %v1904 = vld [vmem:[%s1897 + $0x48] sm:$0xff]
      %v1905 = vld [vmem:[%s1897 + $0x50] sm:$0xff]
      %v1906 = vld [vmem:[%s1897 + $0x60] sm:$0xff]
      %v1907 = vld [vmem:[%s1897 + $0x68] sm:$0xff]
      %v1908 = vld [vmem:[%s1897 + $0x78] sm:$0xff]
      %v1909 = vld [vmem:[%s1897 + $0x80] sm:$0xff]
      %v1910 = vld [vmem:[%s1897 + $0x90] sm:$0xff]
      %v1911 = vld [vmem:[%s1897 + $0x98] sm:$0xff]
      %v1912 = vld [vmem:[%s1897 + $0xa8] sm:$0xff]
      %v1913 = vld [vmem:[%s1897 + $0xb0] sm:$0xff]
      %v1914 = vld [vmem:[%s1897 + $0xc0] sm:$0xff]
      %v1915 = vld [vmem:[%s1897 + $0xc8] sm:$0xff]
      %v1916 = vld [vmem:[%s1897 + $0xd8] sm:$0xff]
      %v1917 = vld [vmem:[%s1897 + $0xe0] sm:$0xff]
      %v1918 = vld [vmem:[%s1897 + $0xf0] sm:$0xff]
      %v1919 = vld [vmem:[%s1897 + $0xf8] sm:$0xff]
      %v1920 = vld [vmem:[%s1897 + $0x108] sm:$0xff]
      %v1921 = vld [vmem:[%s1897 + $0x110] sm:$0xff]
      %v1922 = vld [vmem:[%s1897 + $0x120] sm:$0xff]
      %v1923 = vld [vmem:[%s1897 + $0x128] sm:$0xff]
      %v1924 = vld [vmem:[%s1897 + $0x138] sm:$0xff]
      %v1925 = vld [vmem:[%s1897 + $0x140] sm:$0xff]
      %v1926 = vld [vmem:[%s1897 + $0x150] sm:$0xff]
      %v1927 = vld [vmem:[%s1897 + $0x158] sm:$0xff]
      %v1928 = vld [vmem:[%s1897 + $0x168] sm:$0xff]
      %v1929 = vld [vmem:[%s1897 + $0x170] sm:$0xff]
      %v1930 = vpack.c.bf16 %v1899, %v1898
      %v1931 = vpack.c.bf16 %v1901, %v1900
      %v1932 = vpack.c.bf16 %v1903, %v1902
      %v1933 = vpack.c.bf16 %v1905, %v1904
      %v1934 = vpack.c.bf16 %v1907, %v1906
      %v1935 = vpack.c.bf16 %v1909, %v1908
      %v1936 = vpack.c.bf16 %v1911, %v1910
      %v1937 = vpack.c.bf16 %v1913, %v1912
      %v1938 = vpack.c.bf16 %v1915, %v1914
      %v1939 = vpack.c.bf16 %v1917, %v1916
      %v1940 = vpack.c.bf16 %v1919, %v1918
      %v1941 = vpack.c.bf16 %v1921, %v1920
      %v1942 = vpack.c.bf16 %v1923, %v1922
      %v1943 = vpack.c.bf16 %v1925, %v1924
      %v1944 = vpack.c.bf16 %v1927, %v1926
      %v1945 = vpack.c.bf16 %v1929, %v1928
      %s1946 = scalar_lea.vmem %s1, 48
      %v1947 = vld [vmem:[%s1946] sm:$0xf]
      %v1948 = vld [vmem:[%s1946 + $0x4] sm:$0xf]
      %v1951 = vunpack.c.l.b16 %v1947
      %v1952 = vunpack.c.l.b16 %v1948
      %v1953 = vpack.c.b16 %v1952, %v1951
      %v1956 = vsel %vm279, %v1930, 0
      %v1959 = vsel %vm279, %v1931, 0
      %v1962 = vsel %vm279, %v1932, 0
      %v1965 = vsel %vm279, %v1933, 0
      %v1968 = vsel %vm279, %v1934, 0
      %v1971 = vsel %vm279, %v1935, 0
      %v1974 = vsel %vm279, %v1936, 0
      %v1977 = vsel %vm279, %v1937, 0
      %v1980 = vsel %vm279, %v1938, 0
      %v1983 = vsel %vm279, %v1939, 0
      %v1986 = vsel %vm279, %v1940, 0
      %v1989 = vsel %vm279, %v1941, 0
      %v1992 = vsel %vm279, %v1942, 0
      %v1995 = vsel %vm279, %v1943, 0
      %v1998 = vsel %vm279, %v1944, 0
      %v2001 = vsel %vm279, %v1945, 0
      %2003 = vmatprep.subr.bf16.mxu0 0
      %2004 = vmatpush1.bf16.msra.mxu0 %v1953
      %2005 = vmatprep.subr.bf16.mxu0 0
      %2006 = vmatpush1.bf16.msra.mxu0 0
      %2007 = vmatprep.subr.bf16.mxu0 0
      %2008 = vmatpush1.bf16.msra.mxu0 0
      %2009 = vmatprep.subr.bf16.mxu0 0
      %2010 = vmatpush1.bf16.msra.mxu0 0
      %2011 = vmatprep.subr.bf16.mxu0 0
      %2012 = vmatpush1.bf16.msra.mxu0 0
      %2013 = vmatprep.subr.bf16.mxu0 0
      %2014 = vmatpush1.bf16.msra.mxu0 0
      %2015 = vmatprep.subr.bf16.mxu0 0
      %2016 = vmatpush1.bf16.msra.mxu0 0
      %2017 = vmatprep.subr.bf16.mxu0 0
      %2018 = vmatpush1.bf16.msra.mxu0 0
      %2019 = vmatprep.subr.bf16.mxu0 0
      %2020 = vmatpush1.bf16.msra.mxu0 0
      %2021 = vmatprep.subr.bf16.mxu0 0
      %2022 = vmatpush1.bf16.msra.mxu0 0
      %2023 = vmatprep.subr.bf16.mxu0 0
      %2024 = vmatpush1.bf16.msra.mxu0 0
      %2025 = vmatprep.subr.bf16.mxu0 0
      %2026 = vmatpush1.bf16.msra.mxu0 0
      %2027 = vmatprep.subr.bf16.mxu0 0
      %2028 = vmatpush1.bf16.msra.mxu0 0
      %2029 = vmatprep.subr.bf16.mxu0 0
      %2030 = vmatpush1.bf16.msra.mxu0 0
      %2031 = vmatprep.subr.bf16.mxu0 0
      %2032 = vmatpush1.bf16.msra.mxu0 0
      %2033 = vmatprep.subr.bf16.mxu0 0
      %2034 = vmatpush1.bf16.msra.mxu0 0
      %2035 = vmatprep.mubr.bf16.mxu0 0
      %2036 = vmatmul.mubr.bf16.gmra.mrb[0].mxu0 %v1956
      %v2037 = vpop.f32.mrb[0].mxu0
      %v2038 = vadd.f32 0.0, %v2037
      %v2039 = vpop.f32.mrb[0].mxu0
      %v2040 = vpop.f32.mrb[0].mxu0
      %v2041 = vadd.f32 0.0, %v2040
      %v2042 = vpop.f32.mrb[0].mxu0
      %2043 = vmatprep.mubr.bf16.mxu0 0
      %2044 = vmatmul.mubr.bf16.gmra.mrb[0].mxu0 %v1959
      %v2045 = vpop.f32.mrb[0].mxu0
      %v2046 = vadd.f32 0.0, %v2045
      %v2047 = vpop.f32.mrb[0].mxu0
      %v2048 = vpop.f32.mrb[0].mxu0
      %v2049 = vadd.f32 0.0, %v2048
      %v2050 = vpop.f32.mrb[0].mxu0
      %2051 = vmatprep.mubr.bf16.mxu0 0
      %2052 = vmatmul.mubr.bf16.gmra.mrb[0].mxu0 %v1962
      %v2053 = vpop.f32.mrb[0].mxu0
      %v2054 = vadd.f32 0.0, %v2053
      %v2055 = vpop.f32.mrb[0].mxu0
      %v2056 = vpop.f32.mrb[0].mxu0
      %v2057 = vadd.f32 0.0, %v2056
      %v2058 = vpop.f32.mrb[0].mxu0
      %2059 = vmatprep.mubr.bf16.mxu0 0
      %2060 = vmatmul.mubr.bf16.gmra.mrb[0].mxu0 %v1965
      %v2061 = vpop.f32.mrb[0].mxu0
      %v2062 = vadd.f32 0.0, %v2061
      %v2063 = vpop.f32.mrb[0].mxu0
      %v2064 = vpop.f32.mrb[0].mxu0
      %v2065 = vadd.f32 0.0, %v2064
      %v2066 = vpop.f32.mrb[0].mxu0
      %2067 = vmatprep.mubr.bf16.mxu0 0
      %2068 = vmatmul.mubr.bf16.gmra.mrb[0].mxu0 %v1968
      %v2069 = vpop.f32.mrb[0].mxu0
      %v2070 = vadd.f32 0.0, %v2069
      %v2071 = vpop.f32.mrb[0].mxu0
      %v2072 = vpop.f32.mrb[0].mxu0
      %v2073 = vadd.f32 0.0, %v2072
      %v2074 = vpop.f32.mrb[0].mxu0
      %2075 = vmatprep.mubr.bf16.mxu0 0
      %2076 = vmatmul.mubr.bf16.gmra.mrb[0].mxu0 %v1971
      %v2077 = vpop.f32.mrb[0].mxu0
      %v2078 = vadd.f32 0.0, %v2077
      %v2079 = vpop.f32.mrb[0].mxu0
      %v2080 = vpop.f32.mrb[0].mxu0
      %v2081 = vadd.f32 0.0, %v2080
      %v2082 = vpop.f32.mrb[0].mxu0
      %2083 = vmatprep.mubr.bf16.mxu0 0
      %2084 = vmatmul.mubr.bf16.gmra.mrb[0].mxu0 %v1974
      %v2085 = vpop.f32.mrb[0].mxu0
      %v2086 = vadd.f32 0.0, %v2085
      %v2087 = vpop.f32.mrb[0].mxu0
      %v2088 = vpop.f32.mrb[0].mxu0
      %v2089 = vadd.f32 0.0, %v2088
      %v2090 = vpop.f32.mrb[0].mxu0
      %2091 = vmatprep.mubr.bf16.mxu0 0
      %2092 = vmatmul.mubr.bf16.gmra.mrb[0].mxu0 %v1977
      %v2093 = vpop.f32.mrb[0].mxu0
      %v2094 = vadd.f32 0.0, %v2093
      %v2095 = vpop.f32.mrb[0].mxu0
      %v2096 = vpop.f32.mrb[0].mxu0
      %v2097 = vadd.f32 0.0, %v2096
      %v2098 = vpop.f32.mrb[0].mxu0
      %2099 = vmatprep.mubr.bf16.mxu0 0
      %2100 = vmatmul.mubr.bf16.gmra.mrb[0].mxu0 %v1980
      %v2101 = vpop.f32.mrb[0].mxu0
      %v2102 = vadd.f32 0.0, %v2101
      %v2103 = vpop.f32.mrb[0].mxu0
      %v2104 = vpop.f32.mrb[0].mxu0
      %v2105 = vadd.f32 0.0, %v2104
      %v2106 = vpop.f32.mrb[0].mxu0
      %2107 = vmatprep.mubr.bf16.mxu0 0
      %2108 = vmatmul.mubr.bf16.gmra.mrb[0].mxu0 %v1983
      %v2109 = vpop.f32.mrb[0].mxu0
      %v2110 = vadd.f32 0.0, %v2109
      %v2111 = vpop.f32.mrb[0].mxu0
      %v2112 = vpop.f32.mrb[0].mxu0
      %v2113 = vadd.f32 0.0, %v2112
      %v2114 = vpop.f32.mrb[0].mxu0
      %2115 = vmatprep.mubr.bf16.mxu0 0
      %2116 = vmatmul.mubr.bf16.gmra.mrb[0].mxu0 %v1986
      %v2117 = vpop.f32.mrb[0].mxu0
      %v2118 = vadd.f32 0.0, %v2117
      %v2119 = vpop.f32.mrb[0].mxu0
      %v2120 = vpop.f32.mrb[0].mxu0
      %v2121 = vadd.f32 0.0, %v2120
      %v2122 = vpop.f32.mrb[0].mxu0
      %2123 = vmatprep.mubr.bf16.mxu0 0
      %2124 = vmatmul.mubr.bf16.gmra.mrb[0].mxu0 %v1989
      %v2125 = vpop.f32.mrb[0].mxu0
      %v2126 = vadd.f32 0.0, %v2125
      %v2127 = vpop.f32.mrb[0].mxu0
      %v2128 = vpop.f32.mrb[0].mxu0
      %v2129 = vadd.f32 0.0, %v2128
      %v2130 = vpop.f32.mrb[0].mxu0
      %2131 = vmatprep.mubr.bf16.mxu0 0
      %2132 = vmatmul.mubr.bf16.gmra.mrb[0].mxu0 %v1992
      %v2133 = vpop.f32.mrb[0].mxu0
      %v2134 = vadd.f32 0.0, %v2133
      %v2135 = vpop.f32.mrb[0].mxu0
      %v2136 = vpop.f32.mrb[0].mxu0
      %v2137 = vadd.f32 0.0, %v2136
      %v2138 = vpop.f32.mrb[0].mxu0
      %2139 = vmatprep.mubr.bf16.mxu0 0
      %2140 = vmatmul.mubr.bf16.gmra.mrb[0].mxu0 %v1995
      %v2141 = vpop.f32.mrb[0].mxu0
      %v2142 = vadd.f32 0.0, %v2141
      %v2143 = vpop.f32.mrb[0].mxu0
      %v2144 = vpop.f32.mrb[0].mxu0
      %v2145 = vadd.f32 0.0, %v2144
      %v2146 = vpop.f32.mrb[0].mxu0
      %2147 = vmatprep.mubr.bf16.mxu0 0
      %2148 = vmatmul.mubr.bf16.gmra.mrb[0].mxu0 %v1998
      %v2149 = vpop.f32.mrb[0].mxu0
      %v2150 = vadd.f32 0.0, %v2149
      %v2151 = vpop.f32.mrb[0].mxu0
      %v2152 = vpop.f32.mrb[0].mxu0
      %v2153 = vadd.f32 0.0, %v2152
      %v2154 = vpop.f32.mrb[0].mxu0
      %2155 = vmatprep.mubr.bf16.mxu0 0
      %2156 = vmatmul.mubr.bf16.gmra.mrb[0].mxu0 %v2001
      %v2157 = vpop.f32.mrb[0].mxu0
      %v2158 = vadd.f32 0.0, %v2157
      %v2159 = vpop.f32.mrb[0].mxu0
      %v2160 = vpop.f32.mrb[0].mxu0
      %v2161 = vadd.f32 0.0, %v2160
      %v2162 = vpop.f32.mrb[0].mxu0
      %2163 = vdwg.mxu0
      %v2164 = vadd.f32 %v1865, %v2038
      %v2165 = vadd.f32 %v1866, %v2041
      %v2166 = vadd.f32 %v1867, %v2046
      %v2167 = vadd.f32 %v1868, %v2049
      %v2168 = vadd.f32 %v1869, %v2054
      %v2169 = vadd.f32 %v1870, %v2057
      %v2170 = vadd.f32 %v1871, %v2062
      %v2171 = vadd.f32 %v1872, %v2065
      %v2172 = vadd.f32 %v1873, %v2070
      %v2173 = vadd.f32 %v1874, %v2073
      %v2174 = vadd.f32 %v1875, %v2078
      %v2175 = vadd.f32 %v1876, %v2081
      %v2176 = vadd.f32 %v1877, %v2086
      %v2177 = vadd.f32 %v1878, %v2089
      %v2178 = vadd.f32 %v1879, %v2094
      %v2179 = vadd.f32 %v1880, %v2097
      %v2180 = vadd.f32 %v1881, %v2102
      %v2181 = vadd.f32 %v1882, %v2105
      %v2182 = vadd.f32 %v1883, %v2110
      %v2183 = vadd.f32 %v1884, %v2113
      %v2184 = vadd.f32 %v1885, %v2118
      %v2185 = vadd.f32 %v1886, %v2121
      %v2186 = vadd.f32 %v1887, %v2126
      %v2187 = vadd.f32 %v1888, %v2129
      %v2188 = vadd.f32 %v1889, %v2134
      %v2189 = vadd.f32 %v1890, %v2137
      %v2190 = vadd.f32 %v1891, %v2142
      %v2191 = vadd.f32 %v1892, %v2145
      %v2192 = vadd.f32 %v1893, %v2150
      %v2193 = vadd.f32 %v1894, %v2153
      %v2194 = vadd.f32 %v1895, %v2158
      %v2195 = vadd.f32 %v1896, %v2161
      %v2196 = vld [vmem:[%s1897 + $0x1] sm:$0xff]
      %v2197 = vld [vmem:[%s1897 + $0x9] sm:$0xff]
      %v2198 = vld [vmem:[%s1897 + $0x19] sm:$0xff]
      %v2199 = vld [vmem:[%s1897 + $0x21] sm:$0xff]
      %v2200 = vld [vmem:[%s1897 + $0x31] sm:$0xff]
      %v2201 = vld [vmem:[%s1897 + $0x39] sm:$0xff]
      %v2202 = vld [vmem:[%s1897 + $0x49] sm:$0xff]
      %v2203 = vld [vmem:[%s1897 + $0x51] sm:$0xff]
      %v2204 = vld [vmem:[%s1897 + $0x61] sm:$0xff]
      %v2205 = vld [vmem:[%s1897 + $0x69] sm:$0xff]
      %v2206 = vld [vmem:[%s1897 + $0x79] sm:$0xff]
      %v2207 = vld [vmem:[%s1897 + $0x81] sm:$0xff]
      %v2208 = vld [vmem:[%s1897 + $0x91] sm:$0xff]
      %v2209 = vld [vmem:[%s1897 + $0x99] sm:$0xff]
      %v2210 = vld [vmem:[%s1897 + $0xa9] sm:$0xff]
      %v2211 = vld [vmem:[%s1897 + $0xb1] sm:$0xff]
      %v2212 = vld [vmem:[%s1897 + $0xc1] sm:$0xff]
      %v2213 = vld [vmem:[%s1897 + $0xc9] sm:$0xff]
      %v2214 = vld [vmem:[%s1897 + $0xd9] sm:$0xff]
      %v2215 = vld [vmem:[%s1897 + $0xe1] sm:$0xff]
      %v2216 = vld [vmem:[%s1897 + $0xf1] sm:$0xff]
      %v2217 = vld [vmem:[%s1897 + $0xf9] sm:$0xff]
      %v2218 = vld [vmem:[%s1897 + $0x109] sm:$0xff]
      %v2219 = vld [vmem:[%s1897 + $0x111] sm:$0xff]
      %v2220 = vld [vmem:[%s1897 + $0x121] sm:$0xff]
      %v2221 = vld [vmem:[%s1897 + $0x129] sm:$0xff]
      %v2222 = vld [vmem:[%s1897 + $0x139] sm:$0xff]
      %v2223 = vld [vmem:[%s1897 + $0x141] sm:$0xff]
      %v2224 = vld [vmem:[%s1897 + $0x151] sm:$0xff]
      %v2225 = vld [vmem:[%s1897 + $0x159] sm:$0xff]
      %v2226 = vld [vmem:[%s1897 + $0x169] sm:$0xff]
      %v2227 = vld [vmem:[%s1897 + $0x171] sm:$0xff]
      %v2228 = vpack.c.bf16 %v2197, %v2196
      %v2229 = vpack.c.bf16 %v2199, %v2198
      %v2230 = vpack.c.bf16 %v2201, %v2200
      %v2231 = vpack.c.bf16 %v2203, %v2202
      %v2232 = vpack.c.bf16 %v2205, %v2204
      %v2233 = vpack.c.bf16 %v2207, %v2206
      %v2234 = vpack.c.bf16 %v2209, %v2208
      %v2235 = vpack.c.bf16 %v2211, %v2210
      %v2236 = vpack.c.bf16 %v2213, %v2212
      %v2237 = vpack.c.bf16 %v2215, %v2214
      %v2238 = vpack.c.bf16 %v2217, %v2216
      %v2239 = vpack.c.bf16 %v2219, %v2218
      %v2240 = vpack.c.bf16 %v2221, %v2220
      %v2241 = vpack.c.bf16 %v2223, %v2222
      %v2242 = vpack.c.bf16 %v2225, %v2224
      %v2243 = vpack.c.bf16 %v2227, %v2226
      %s2244 = scalar_lea.vmem %s1, 56
      %v2245 = vld [vmem:[%s2244] sm:$0xf]
      %v2246 = vld [vmem:[%s2244 + $0x4] sm:$0xf]
      %v2249 = vunpack.c.l.b16 %v2245
      %v2250 = vunpack.c.l.b16 %v2246
      %v2251 = vpack.c.b16 %v2250, %v2249
      %v2254 = vsel %vm279, %v2228, 0
      %v2257 = vsel %vm279, %v2229, 0
      %v2260 = vsel %vm279, %v2230, 0
      %v2263 = vsel %vm279, %v2231, 0
      %v2266 = vsel %vm279, %v2232, 0
      %v2269 = vsel %vm279, %v2233, 0
      %v2272 = vsel %vm279, %v2234, 0
      %v2275 = vsel %vm279, %v2235, 0
      %v2278 = vsel %vm279, %v2236, 0
      %v2281 = vsel %vm279, %v2237, 0
      %v2284 = vsel %vm279, %v2238, 0
      %v2287 = vsel %vm279, %v2239, 0
      %v2290 = vsel %vm279, %v2240, 0
      %v2293 = vsel %vm279, %v2241, 0
      %v2296 = vsel %vm279, %v2242, 0
      %v2299 = vsel %vm279, %v2243, 0
      %2301 = vmatprep.subr.bf16.mxu0 0
      %2302 = vmatpush1.bf16.msra.mxu0 %v2251
      %2303 = vmatprep.subr.bf16.mxu0 0
      %2304 = vmatpush1.bf16.msra.mxu0 0
      %2305 = vmatprep.subr.bf16.mxu0 0
      %2306 = vmatpush1.bf16.msra.mxu0 0
      %2307 = vmatprep.subr.bf16.mxu0 0
      %2308 = vmatpush1.bf16.msra.mxu0 0
      %2309 = vmatprep.subr.bf16.mxu0 0
      %2310 = vmatpush1.bf16.msra.mxu0 0
      %2311 = vmatprep.subr.bf16.mxu0 0
      %2312 = vmatpush1.bf16.msra.mxu0 0
      %2313 = vmatprep.subr.bf16.mxu0 0
      %2314 = vmatpush1.bf16.msra.mxu0 0
      %2315 = vmatprep.subr.bf16.mxu0 0
      %2316 = vmatpush1.bf16.msra.mxu0 0
      %2317 = vmatprep.subr.bf16.mxu0 0
      %2318 = vmatpush1.bf16.msra.mxu0 0
      %2319 = vmatprep.subr.bf16.mxu0 0
      %2320 = vmatpush1.bf16.msra.mxu0 0
      %2321 = vmatprep.subr.bf16.mxu0 0
      %2322 = vmatpush1.bf16.msra.mxu0 0
      %2323 = vmatprep.subr.bf16.mxu0 0
      %2324 = vmatpush1.bf16.msra.mxu0 0
      %2325 = vmatprep.subr.bf16.mxu0 0
      %2326 = vmatpush1.bf16.msra.mxu0 0
      %2327 = vmatprep.subr.bf16.mxu0 0
      %2328 = vmatpush1.bf16.msra.mxu0 0
      %2329 = vmatprep.subr.bf16.mxu0 0
      %2330 = vmatpush1.bf16.msra.mxu0 0
      %2331 = vmatprep.subr.bf16.mxu0 0
      %2332 = vmatpush1.bf16.msra.mxu0 0
      %2333 = vmatprep.mubr.bf16.mxu0 0
      %2334 = vmatmul.mubr.bf16.gmra.mrb[0].mxu0 %v2254
      %v2335 = vpop.f32.mrb[0].mxu0
      %v2336 = vadd.f32 0.0, %v2335
      %v2337 = vpop.f32.mrb[0].mxu0
      %v2338 = vpop.f32.mrb[0].mxu0
      %v2339 = vadd.f32 0.0, %v2338
      %v2340 = vpop.f32.mrb[0].mxu0
      %2341 = vmatprep.mubr.bf16.mxu0 0
      %2342 = vmatmul.mubr.bf16.gmra.mrb[0].mxu0 %v2257
      %v2343 = vpop.f32.mrb[0].mxu0
      %v2344 = vadd.f32 0.0, %v2343
      %v2345 = vpop.f32.mrb[0].mxu0
      %v2346 = vpop.f32.mrb[0].mxu0
      %v2347 = vadd.f32 0.0, %v2346
      %v2348 = vpop.f32.mrb[0].mxu0
      %2349 = vmatprep.mubr.bf16.mxu0 0
      %2350 = vmatmul.mubr.bf16.gmra.mrb[0].mxu0 %v2260
      %v2351 = vpop.f32.mrb[0].mxu0
      %v2352 = vadd.f32 0.0, %v2351
      %v2353 = vpop.f32.mrb[0].mxu0
      %v2354 = vpop.f32.mrb[0].mxu0
      %v2355 = vadd.f32 0.0, %v2354
      %v2356 = vpop.f32.mrb[0].mxu0
      %2357 = vmatprep.mubr.bf16.mxu0 0
      %2358 = vmatmul.mubr.bf16.gmra.mrb[0].mxu0 %v2263
      %v2359 = vpop.f32.mrb[0].mxu0
      %v2360 = vadd.f32 0.0, %v2359
      %v2361 = vpop.f32.mrb[0].mxu0
      %v2362 = vpop.f32.mrb[0].mxu0
      %v2363 = vadd.f32 0.0, %v2362
      %v2364 = vpop.f32.mrb[0].mxu0
      %2365 = vmatprep.mubr.bf16.mxu0 0
      %2366 = vmatmul.mubr.bf16.gmra.mrb[0].mxu0 %v2266
      %v2367 = vpop.f32.mrb[0].mxu0
      %v2368 = vadd.f32 0.0, %v2367
      %v2369 = vpop.f32.mrb[0].mxu0
      %v2370 = vpop.f32.mrb[0].mxu0
      %v2371 = vadd.f32 0.0, %v2370
      %v2372 = vpop.f32.mrb[0].mxu0
      %2373 = vmatprep.mubr.bf16.mxu0 0
      %2374 = vmatmul.mubr.bf16.gmra.mrb[0].mxu0 %v2269
      %v2375 = vpop.f32.mrb[0].mxu0
      %v2376 = vadd.f32 0.0, %v2375
      %v2377 = vpop.f32.mrb[0].mxu0
      %v2378 = vpop.f32.mrb[0].mxu0
      %v2379 = vadd.f32 0.0, %v2378
      %v2380 = vpop.f32.mrb[0].mxu0
      %2381 = vmatprep.mubr.bf16.mxu0 0
      %2382 = vmatmul.mubr.bf16.gmra.mrb[0].mxu0 %v2272
      %v2383 = vpop.f32.mrb[0].mxu0
      %v2384 = vadd.f32 0.0, %v2383
      %v2385 = vpop.f32.mrb[0].mxu0
      %v2386 = vpop.f32.mrb[0].mxu0
      %v2387 = vadd.f32 0.0, %v2386
      %v2388 = vpop.f32.mrb[0].mxu0
      %2389 = vmatprep.mubr.bf16.mxu0 0
      %2390 = vmatmul.mubr.bf16.gmra.mrb[0].mxu0 %v2275
      %v2391 = vpop.f32.mrb[0].mxu0
      %v2392 = vadd.f32 0.0, %v2391
      %v2393 = vpop.f32.mrb[0].mxu0
      %v2394 = vpop.f32.mrb[0].mxu0
      %v2395 = vadd.f32 0.0, %v2394
      %v2396 = vpop.f32.mrb[0].mxu0
      %2397 = vmatprep.mubr.bf16.mxu0 0
      %2398 = vmatmul.mubr.bf16.gmra.mrb[0].mxu0 %v2278
      %v2399 = vpop.f32.mrb[0].mxu0
      %v2400 = vadd.f32 0.0, %v2399
      %v2401 = vpop.f32.mrb[0].mxu0
      %v2402 = vpop.f32.mrb[0].mxu0
      %v2403 = vadd.f32 0.0, %v2402
      %v2404 = vpop.f32.mrb[0].mxu0
      %2405 = vmatprep.mubr.bf16.mxu0 0
      %2406 = vmatmul.mubr.bf16.gmra.mrb[0].mxu0 %v2281
      %v2407 = vpop.f32.mrb[0].mxu0
      %v2408 = vadd.f32 0.0, %v2407
      %v2409 = vpop.f32.mrb[0].mxu0
      %v2410 = vpop.f32.mrb[0].mxu0
      %v2411 = vadd.f32 0.0, %v2410
      %v2412 = vpop.f32.mrb[0].mxu0
      %2413 = vmatprep.mubr.bf16.mxu0 0
      %2414 = vmatmul.mubr.bf16.gmra.mrb[0].mxu0 %v2284
      %v2415 = vpop.f32.mrb[0].mxu0
      %v2416 = vadd.f32 0.0, %v2415
      %v2417 = vpop.f32.mrb[0].mxu0
      %v2418 = vpop.f32.mrb[0].mxu0
      %v2419 = vadd.f32 0.0, %v2418
      %v2420 = vpop.f32.mrb[0].mxu0
      %2421 = vmatprep.mubr.bf16.mxu0 0
      %2422 = vmatmul.mubr.bf16.gmra.mrb[0].mxu0 %v2287
      %v2423 = vpop.f32.mrb[0].mxu0
      %v2424 = vadd.f32 0.0, %v2423
      %v2425 = vpop.f32.mrb[0].mxu0
      %v2426 = vpop.f32.mrb[0].mxu0
      %v2427 = vadd.f32 0.0, %v2426
      %v2428 = vpop.f32.mrb[0].mxu0
      %2429 = vmatprep.mubr.bf16.mxu0 0
      %2430 = vmatmul.mubr.bf16.gmra.mrb[0].mxu0 %v2290
      %v2431 = vpop.f32.mrb[0].mxu0
      %v2432 = vadd.f32 0.0, %v2431
      %v2433 = vpop.f32.mrb[0].mxu0
      %v2434 = vpop.f32.mrb[0].mxu0
      %v2435 = vadd.f32 0.0, %v2434
      %v2436 = vpop.f32.mrb[0].mxu0
      %2437 = vmatprep.mubr.bf16.mxu0 0
      %2438 = vmatmul.mubr.bf16.gmra.mrb[0].mxu0 %v2293
      %v2439 = vpop.f32.mrb[0].mxu0
      %v2440 = vadd.f32 0.0, %v2439
      %v2441 = vpop.f32.mrb[0].mxu0
      %v2442 = vpop.f32.mrb[0].mxu0
      %v2443 = vadd.f32 0.0, %v2442
      %v2444 = vpop.f32.mrb[0].mxu0
      %2445 = vmatprep.mubr.bf16.mxu0 0
      %2446 = vmatmul.mubr.bf16.gmra.mrb[0].mxu0 %v2296
      %v2447 = vpop.f32.mrb[0].mxu0
      %v2448 = vadd.f32 0.0, %v2447
      %v2449 = vpop.f32.mrb[0].mxu0
      %v2450 = vpop.f32.mrb[0].mxu0
      %v2451 = vadd.f32 0.0, %v2450
      %v2452 = vpop.f32.mrb[0].mxu0
      %2453 = vmatprep.mubr.bf16.mxu0 0
      %2454 = vmatmul.mubr.bf16.gmra.mrb[0].mxu0 %v2299
      %v2455 = vpop.f32.mrb[0].mxu0
      %v2456 = vadd.f32 0.0, %v2455
      %v2457 = vpop.f32.mrb[0].mxu0
      %v2458 = vpop.f32.mrb[0].mxu0
      %v2459 = vadd.f32 0.0, %v2458
      %v2460 = vpop.f32.mrb[0].mxu0
      %2461 = vdwg.mxu0
      %v2462 = vadd.f32 %v2164, %v2336
      %v2463 = vadd.f32 %v2165, %v2339
      %v2464 = vadd.f32 %v2166, %v2344
      %v2465 = vadd.f32 %v2167, %v2347
      %v2466 = vadd.f32 %v2168, %v2352
      %v2467 = vadd.f32 %v2169, %v2355
      %v2468 = vadd.f32 %v2170, %v2360
      %v2469 = vadd.f32 %v2171, %v2363
      %v2470 = vadd.f32 %v2172, %v2368
      %v2471 = vadd.f32 %v2173, %v2371
      %v2472 = vadd.f32 %v2174, %v2376
      %v2473 = vadd.f32 %v2175, %v2379
      %v2474 = vadd.f32 %v2176, %v2384
      %v2475 = vadd.f32 %v2177, %v2387
      %v2476 = vadd.f32 %v2178, %v2392
      %v2477 = vadd.f32 %v2179, %v2395
      %v2478 = vadd.f32 %v2180, %v2400
      %v2479 = vadd.f32 %v2181, %v2403
      %v2480 = vadd.f32 %v2182, %v2408
      %v2481 = vadd.f32 %v2183, %v2411
      %v2482 = vadd.f32 %v2184, %v2416
      %v2483 = vadd.f32 %v2185, %v2419
      %v2484 = vadd.f32 %v2186, %v2424
      %v2485 = vadd.f32 %v2187, %v2427
      %v2486 = vadd.f32 %v2188, %v2432
      %v2487 = vadd.f32 %v2189, %v2435
      %v2488 = vadd.f32 %v2190, %v2440
      %v2489 = vadd.f32 %v2191, %v2443
      %v2490 = vadd.f32 %v2192, %v2448
      %v2491 = vadd.f32 %v2193, %v2451
      %v2492 = vadd.f32 %v2194, %v2456
      %v2493 = vadd.f32 %v2195, %v2459
      %v2494 = vld [vmem:[%s1897 + $0x2] sm:$0xff]
      %v2495 = vld [vmem:[%s1897 + $0xa] sm:$0xff]
      %v2496 = vld [vmem:[%s1897 + $0x1a] sm:$0xff]
      %v2497 = vld [vmem:[%s1897 + $0x22] sm:$0xff]
      %v2498 = vld [vmem:[%s1897 + $0x32] sm:$0xff]
      %v2499 = vld [vmem:[%s1897 + $0x3a] sm:$0xff]
      %v2500 = vld [vmem:[%s1897 + $0x4a] sm:$0xff]
      %v2501 = vld [vmem:[%s1897 + $0x52] sm:$0xff]
      %v2502 = vld [vmem:[%s1897 + $0x62] sm:$0xff]
      %v2503 = vld [vmem:[%s1897 + $0x6a] sm:$0xff]
      %v2504 = vld [vmem:[%s1897 + $0x7a] sm:$0xff]
      %v2505 = vld [vmem:[%s1897 + $0x82] sm:$0xff]
      %v2506 = vld [vmem:[%s1897 + $0x92] sm:$0xff]
      %v2507 = vld [vmem:[%s1897 + $0x9a] sm:$0xff]
      %v2508 = vld [vmem:[%s1897 + $0xaa] sm:$0xff]
      %v2509 = vld [vmem:[%s1897 + $0xb2] sm:$0xff]
      %v2510 = vld [vmem:[%s1897 + $0xc2] sm:$0xff]
      %v2511 = vld [vmem:[%s1897 + $0xca] sm:$0xff]
      %v2512 = vld [vmem:[%s1897 + $0xda] sm:$0xff]
      %v2513 = vld [vmem:[%s1897 + $0xe2] sm:$0xff]
      %v2514 = vld [vmem:[%s1897 + $0xf2] sm:$0xff]
      %v2515 = vld [vmem:[%s1897 + $0xfa] sm:$0xff]
      %v2516 = vld [vmem:[%s1897 + $0x10a] sm:$0xff]
      %v2517 = vld [vmem:[%s1897 + $0x112] sm:$0xff]
      %v2518 = vld [vmem:[%s1897 + $0x122] sm:$0xff]
      %v2519 = vld [vmem:[%s1897 + $0x12a] sm:$0xff]
      %v2520 = vld [vmem:[%s1897 + $0x13a] sm:$0xff]
      %v2521 = vld [vmem:[%s1897 + $0x142] sm:$0xff]
      %v2522 = vld [vmem:[%s1897 + $0x152] sm:$0xff]
      %v2523 = vld [vmem:[%s1897 + $0x15a] sm:$0xff]
      %v2524 = vld [vmem:[%s1897 + $0x16a] sm:$0xff]
      %v2525 = vld [vmem:[%s1897 + $0x172] sm:$0xff]
      %v2526 = vpack.c.bf16 %v2495, %v2494
      %v2527 = vpack.c.bf16 %v2497, %v2496
      %v2528 = vpack.c.bf16 %v2499, %v2498
      %v2529 = vpack.c.bf16 %v2501, %v2500
      %v2530 = vpack.c.bf16 %v2503, %v2502
      %v2531 = vpack.c.bf16 %v2505, %v2504
      %v2532 = vpack.c.bf16 %v2507, %v2506
      %v2533 = vpack.c.bf16 %v2509, %v2508
      %v2534 = vpack.c.bf16 %v2511, %v2510
      %v2535 = vpack.c.bf16 %v2513, %v2512
      %v2536 = vpack.c.bf16 %v2515, %v2514
      %v2537 = vpack.c.bf16 %v2517, %v2516
      %v2538 = vpack.c.bf16 %v2519, %v2518
      %v2539 = vpack.c.bf16 %v2521, %v2520
      %v2540 = vpack.c.bf16 %v2523, %v2522
      %v2541 = vpack.c.bf16 %v2525, %v2524
      %s2542 = scalar_lea.vmem %s1, 64
      %v2543 = vld [vmem:[%s2542] sm:$0xf]
      %v2544 = vld [vmem:[%s2542 + $0x4] sm:$0xf]
      %v2547 = vunpack.c.l.b16 %v2543
      %v2548 = vunpack.c.l.b16 %v2544
      %v2549 = vpack.c.b16 %v2548, %v2547
      %v2552 = vsel %vm279, %v2526, 0
      %v2555 = vsel %vm279, %v2527, 0
      %v2558 = vsel %vm279, %v2528, 0
      %v2561 = vsel %vm279, %v2529, 0
      %v2564 = vsel %vm279, %v2530, 0
      %v2567 = vsel %vm279, %v2531, 0
      %v2570 = vsel %vm279, %v2532, 0
      %v2573 = vsel %vm279, %v2533, 0
      %v2576 = vsel %vm279, %v2534, 0
      %v2579 = vsel %vm279, %v2535, 0
      %v2582 = vsel %vm279, %v2536, 0
      %v2585 = vsel %vm279, %v2537, 0
      %v2588 = vsel %vm279, %v2538, 0
      %v2591 = vsel %vm279, %v2539, 0
      %v2594 = vsel %vm279, %v2540, 0
      %v2597 = vsel %vm279, %v2541, 0
      %2599 = vmatprep.subr.bf16.mxu0 0
      %2600 = vmatpush1.bf16.msra.mxu0 %v2549
      %2601 = vmatprep.subr.bf16.mxu0 0
      %2602 = vmatpush1.bf16.msra.mxu0 0
      %2603 = vmatprep.subr.bf16.mxu0 0
      %2604 = vmatpush1.bf16.msra.mxu0 0
      %2605 = vmatprep.subr.bf16.mxu0 0
      %2606 = vmatpush1.bf16.msra.mxu0 0
      %2607 = vmatprep.subr.bf16.mxu0 0
      %2608 = vmatpush1.bf16.msra.mxu0 0
      %2609 = vmatprep.subr.bf16.mxu0 0
      %2610 = vmatpush1.bf16.msra.mxu0 0
      %2611 = vmatprep.subr.bf16.mxu0 0
      %2612 = vmatpush1.bf16.msra.mxu0 0
      %2613 = vmatprep.subr.bf16.mxu0 0
      %2614 = vmatpush1.bf16.msra.mxu0 0
      %2615 = vmatprep.subr.bf16.mxu0 0
      %2616 = vmatpush1.bf16.msra.mxu0 0
      %2617 = vmatprep.subr.bf16.mxu0 0
      %2618 = vmatpush1.bf16.msra.mxu0 0
      %2619 = vmatprep.subr.bf16.mxu0 0
      %2620 = vmatpush1.bf16.msra.mxu0 0
      %2621 = vmatprep.subr.bf16.mxu0 0
      %2622 = vmatpush1.bf16.msra.mxu0 0
      %2623 = vmatprep.subr.bf16.mxu0 0
      %2624 = vmatpush1.bf16.msra.mxu0 0
      %2625 = vmatprep.subr.bf16.mxu0 0
      %2626 = vmatpush1.bf16.msra.mxu0 0
      %2627 = vmatprep.subr.bf16.mxu0 0
      %2628 = vmatpush1.bf16.msra.mxu0 0
      %2629 = vmatprep.subr.bf16.mxu0 0
      %2630 = vmatpush1.bf16.msra.mxu0 0
      %2631 = vmatprep.mubr.bf16.mxu0 0
      %2632 = vmatmul.mubr.bf16.gmra.mrb[0].mxu0 %v2552
      %v2633 = vpop.f32.mrb[0].mxu0
      %v2634 = vadd.f32 0.0, %v2633
      %v2635 = vpop.f32.mrb[0].mxu0
      %v2636 = vpop.f32.mrb[0].mxu0
      %v2637 = vadd.f32 0.0, %v2636
      %v2638 = vpop.f32.mrb[0].mxu0
      %2639 = vmatprep.mubr.bf16.mxu0 0
      %2640 = vmatmul.mubr.bf16.gmra.mrb[0].mxu0 %v2555
      %v2641 = vpop.f32.mrb[0].mxu0
      %v2642 = vadd.f32 0.0, %v2641
      %v2643 = vpop.f32.mrb[0].mxu0
      %v2644 = vpop.f32.mrb[0].mxu0
      %v2645 = vadd.f32 0.0, %v2644
      %v2646 = vpop.f32.mrb[0].mxu0
      %2647 = vmatprep.mubr.bf16.mxu0 0
      %2648 = vmatmul.mubr.bf16.gmra.mrb[0].mxu0 %v2558
      %v2649 = vpop.f32.mrb[0].mxu0
      %v2650 = vadd.f32 0.0, %v2649
      %v2651 = vpop.f32.mrb[0].mxu0
      %v2652 = vpop.f32.mrb[0].mxu0
      %v2653 = vadd.f32 0.0, %v2652
      %v2654 = vpop.f32.mrb[0].mxu0
      %2655 = vmatprep.mubr.bf16.mxu0 0
      %2656 = vmatmul.mubr.bf16.gmra.mrb[0].mxu0 %v2561
      %v2657 = vpop.f32.mrb[0].mxu0
      %v2658 = vadd.f32 0.0, %v2657
      %v2659 = vpop.f32.mrb[0].mxu0
      %v2660 = vpop.f32.mrb[0].mxu0
      %v2661 = vadd.f32 0.0, %v2660
      %v2662 = vpop.f32.mrb[0].mxu0
      %2663 = vmatprep.mubr.bf16.mxu0 0
      %2664 = vmatmul.mubr.bf16.gmra.mrb[0].mxu0 %v2564
      %v2665 = vpop.f32.mrb[0].mxu0
      %v2666 = vadd.f32 0.0, %v2665
      %v2667 = vpop.f32.mrb[0].mxu0
      %v2668 = vpop.f32.mrb[0].mxu0
      %v2669 = vadd.f32 0.0, %v2668
      %v2670 = vpop.f32.mrb[0].mxu0
      %2671 = vmatprep.mubr.bf16.mxu0 0
      %2672 = vmatmul.mubr.bf16.gmra.mrb[0].mxu0 %v2567
      %v2673 = vpop.f32.mrb[0].mxu0
      %v2674 = vadd.f32 0.0, %v2673
      %v2675 = vpop.f32.mrb[0].mxu0
      %v2676 = vpop.f32.mrb[0].mxu0
      %v2677 = vadd.f32 0.0, %v2676
      %v2678 = vpop.f32.mrb[0].mxu0
      %2679 = vmatprep.mubr.bf16.mxu0 0
      %2680 = vmatmul.mubr.bf16.gmra.mrb[0].mxu0 %v2570
      %v2681 = vpop.f32.mrb[0].mxu0
      %v2682 = vadd.f32 0.0, %v2681
      %v2683 = vpop.f32.mrb[0].mxu0
      %v2684 = vpop.f32.mrb[0].mxu0
      %v2685 = vadd.f32 0.0, %v2684
      %v2686 = vpop.f32.mrb[0].mxu0
      %2687 = vmatprep.mubr.bf16.mxu0 0
      %2688 = vmatmul.mubr.bf16.gmra.mrb[0].mxu0 %v2573
      %v2689 = vpop.f32.mrb[0].mxu0
      %v2690 = vadd.f32 0.0, %v2689
      %v2691 = vpop.f32.mrb[0].mxu0
      %v2692 = vpop.f32.mrb[0].mxu0
      %v2693 = vadd.f32 0.0, %v2692
      %v2694 = vpop.f32.mrb[0].mxu0
      %2695 = vmatprep.mubr.bf16.mxu0 0
      %2696 = vmatmul.mubr.bf16.gmra.mrb[0].mxu0 %v2576
      %v2697 = vpop.f32.mrb[0].mxu0
      %v2698 = vadd.f32 0.0, %v2697
      %v2699 = vpop.f32.mrb[0].mxu0
      %v2700 = vpop.f32.mrb[0].mxu0
      %v2701 = vadd.f32 0.0, %v2700
      %v2702 = vpop.f32.mrb[0].mxu0
      %2703 = vmatprep.mubr.bf16.mxu0 0
      %2704 = vmatmul.mubr.bf16.gmra.mrb[0].mxu0 %v2579
      %v2705 = vpop.f32.mrb[0].mxu0
      %v2706 = vadd.f32 0.0, %v2705
      %v2707 = vpop.f32.mrb[0].mxu0
      %v2708 = vpop.f32.mrb[0].mxu0
      %v2709 = vadd.f32 0.0, %v2708
      %v2710 = vpop.f32.mrb[0].mxu0
      %2711 = vmatprep.mubr.bf16.mxu0 0
      %2712 = vmatmul.mubr.bf16.gmra.mrb[0].mxu0 %v2582
      %v2713 = vpop.f32.mrb[0].mxu0
      %v2714 = vadd.f32 0.0, %v2713
      %v2715 = vpop.f32.mrb[0].mxu0
      %v2716 = vpop.f32.mrb[0].mxu0
      %v2717 = vadd.f32 0.0, %v2716
      %v2718 = vpop.f32.mrb[0].mxu0
      %2719 = vmatprep.mubr.bf16.mxu0 0
      %2720 = vmatmul.mubr.bf16.gmra.mrb[0].mxu0 %v2585
      %v2721 = vpop.f32.mrb[0].mxu0
      %v2722 = vadd.f32 0.0, %v2721
      %v2723 = vpop.f32.mrb[0].mxu0
      %v2724 = vpop.f32.mrb[0].mxu0
      %v2725 = vadd.f32 0.0, %v2724
      %v2726 = vpop.f32.mrb[0].mxu0
      %2727 = vmatprep.mubr.bf16.mxu0 0
      %2728 = vmatmul.mubr.bf16.gmra.mrb[0].mxu0 %v2588
      %v2729 = vpop.f32.mrb[0].mxu0
      %v2730 = vadd.f32 0.0, %v2729
      %v2731 = vpop.f32.mrb[0].mxu0
      %v2732 = vpop.f32.mrb[0].mxu0
      %v2733 = vadd.f32 0.0, %v2732
      %v2734 = vpop.f32.mrb[0].mxu0
      %2735 = vmatprep.mubr.bf16.mxu0 0
      %2736 = vmatmul.mubr.bf16.gmra.mrb[0].mxu0 %v2591
      %v2737 = vpop.f32.mrb[0].mxu0
      %v2738 = vadd.f32 0.0, %v2737
      %v2739 = vpop.f32.mrb[0].mxu0
      %v2740 = vpop.f32.mrb[0].mxu0
      %v2741 = vadd.f32 0.0, %v2740
      %v2742 = vpop.f32.mrb[0].mxu0
      %2743 = vmatprep.mubr.bf16.mxu0 0
      %2744 = vmatmul.mubr.bf16.gmra.mrb[0].mxu0 %v2594
      %v2745 = vpop.f32.mrb[0].mxu0
      %v2746 = vadd.f32 0.0, %v2745
      %v2747 = vpop.f32.mrb[0].mxu0
      %v2748 = vpop.f32.mrb[0].mxu0
      %v2749 = vadd.f32 0.0, %v2748
      %v2750 = vpop.f32.mrb[0].mxu0
      %2751 = vmatprep.mubr.bf16.mxu0 0
      %2752 = vmatmul.mubr.bf16.gmra.mrb[0].mxu0 %v2597
      %v2753 = vpop.f32.mrb[0].mxu0
      %v2754 = vadd.f32 0.0, %v2753
      %v2755 = vpop.f32.mrb[0].mxu0
      %v2756 = vpop.f32.mrb[0].mxu0
      %v2757 = vadd.f32 0.0, %v2756
      %v2758 = vpop.f32.mrb[0].mxu0
      %2759 = vdwg.mxu0
      %v2760 = vadd.f32 %v2462, %v2634
      %v2761 = vadd.f32 %v2463, %v2637
      %v2762 = vadd.f32 %v2464, %v2642
      %v2763 = vadd.f32 %v2465, %v2645
      %v2764 = vadd.f32 %v2466, %v2650
      %v2765 = vadd.f32 %v2467, %v2653
      %v2766 = vadd.f32 %v2468, %v2658
      %v2767 = vadd.f32 %v2469, %v2661
      %v2768 = vadd.f32 %v2470, %v2666
      %v2769 = vadd.f32 %v2471, %v2669
      %v2770 = vadd.f32 %v2472, %v2674
      %v2771 = vadd.f32 %v2473, %v2677
      %v2772 = vadd.f32 %v2474, %v2682
      %v2773 = vadd.f32 %v2475, %v2685
      %v2774 = vadd.f32 %v2476, %v2690
      %v2775 = vadd.f32 %v2477, %v2693
      %v2776 = vadd.f32 %v2478, %v2698
      %v2777 = vadd.f32 %v2479, %v2701
      %v2778 = vadd.f32 %v2480, %v2706
      %v2779 = vadd.f32 %v2481, %v2709
      %v2780 = vadd.f32 %v2482, %v2714
      %v2781 = vadd.f32 %v2483, %v2717
      %v2782 = vadd.f32 %v2484, %v2722
      %v2783 = vadd.f32 %v2485, %v2725
      %v2784 = vadd.f32 %v2486, %v2730
      %v2785 = vadd.f32 %v2487, %v2733
      %v2786 = vadd.f32 %v2488, %v2738
      %v2787 = vadd.f32 %v2489, %v2741
      %v2788 = vadd.f32 %v2490, %v2746
      %v2789 = vadd.f32 %v2491, %v2749
      %v2790 = vadd.f32 %v2492, %v2754
      %v2791 = vadd.f32 %v2493, %v2757
      %v2792 = vld [vmem:[%s2] sm:$0x1]
      %v2794 = vlaneseq
      %v2795 = vshrl.u32 %v2794, 7
      %v2796 = vsub.s32 0, %v2795
      %v2797 = vrot.slane %v2792, %v2796
      %v2799 = vadd.f32 %v2760, %v2797
      %v2800 = vadd.f32 %v2761, %v2797
      %v2801 = vadd.f32 %v2762, %v2797
      %v2802 = vadd.f32 %v2763, %v2797
      %v2803 = vadd.f32 %v2764, %v2797
      %v2804 = vadd.f32 %v2765, %v2797
      %v2805 = vadd.f32 %v2766, %v2797
      %v2806 = vadd.f32 %v2767, %v2797
      %v2807 = vadd.f32 %v2768, %v2797
      %v2808 = vadd.f32 %v2769, %v2797
      %v2809 = vadd.f32 %v2770, %v2797
      %v2810 = vadd.f32 %v2771, %v2797
      %v2811 = vadd.f32 %v2772, %v2797
      %v2812 = vadd.f32 %v2773, %v2797
      %v2813 = vadd.f32 %v2774, %v2797
      %v2814 = vadd.f32 %v2775, %v2797
      %v2815 = vadd.f32 %v2776, %v2797
      %v2816 = vadd.f32 %v2777, %v2797
      %v2817 = vadd.f32 %v2778, %v2797
      %v2818 = vadd.f32 %v2779, %v2797
      %v2819 = vadd.f32 %v2780, %v2797
      %v2820 = vadd.f32 %v2781, %v2797
      %v2821 = vadd.f32 %v2782, %v2797
      %v2822 = vadd.f32 %v2783, %v2797
      %v2823 = vadd.f32 %v2784, %v2797
      %v2824 = vadd.f32 %v2785, %v2797
      %v2825 = vadd.f32 %v2786, %v2797
      %v2826 = vadd.f32 %v2787, %v2797
      %v2827 = vadd.f32 %v2788, %v2797
      %v2828 = vadd.f32 %v2789, %v2797
      %v2829 = vadd.f32 %v2790, %v2797
      %v2830 = vadd.f32 %v2791, %v2797
      %v2831 = vmax.f32 %v2799, 0.0
      %v2832 = vmax.f32 %v2800, 0.0
      %v2833 = vmax.f32 %v2801, 0.0
      %v2834 = vmax.f32 %v2802, 0.0
      %v2835 = vmax.f32 %v2803, 0.0
      %v2836 = vmax.f32 %v2804, 0.0
      %v2837 = vmax.f32 %v2805, 0.0
      %v2838 = vmax.f32 %v2806, 0.0
      %v2839 = vmax.f32 %v2807, 0.0
      %v2840 = vmax.f32 %v2808, 0.0
      %v2841 = vmax.f32 %v2809, 0.0
      %v2842 = vmax.f32 %v2810, 0.0
      %v2843 = vmax.f32 %v2811, 0.0
      %v2844 = vmax.f32 %v2812, 0.0
      %v2845 = vmax.f32 %v2813, 0.0
      %v2846 = vmax.f32 %v2814, 0.0
      %v2847 = vmax.f32 %v2815, 0.0
      %v2848 = vmax.f32 %v2816, 0.0
      %v2849 = vmax.f32 %v2817, 0.0
      %v2850 = vmax.f32 %v2818, 0.0
      %v2851 = vmax.f32 %v2819, 0.0
      %v2852 = vmax.f32 %v2820, 0.0
      %v2853 = vmax.f32 %v2821, 0.0
      %v2854 = vmax.f32 %v2822, 0.0
      %v2855 = vmax.f32 %v2823, 0.0
      %v2856 = vmax.f32 %v2824, 0.0
      %v2857 = vmax.f32 %v2825, 0.0
      %v2858 = vmax.f32 %v2826, 0.0
      %v2859 = vmax.f32 %v2827, 0.0
      %v2860 = vmax.f32 %v2828, 0.0
      %v2861 = vmax.f32 %v2829, 0.0
      %v2862 = vmax.f32 %v2830, 0.0
      %2863 = vst.msk [vmem:[%s170] sm:$0xff] %vm279, %v2831
      %2864 = vst.msk [vmem:[%s170 + $0x8] sm:$0xff] %vm279, %v2832
      %2865 = vst.msk [vmem:[%s170 + $0x10] sm:$0xff] %vm279, %v2833
      %2866 = vst.msk [vmem:[%s170 + $0x18] sm:$0xff] %vm279, %v2834
      %2867 = vst.msk [vmem:[%s170 + $0x20] sm:$0xff] %vm279, %v2835
      %2868 = vst.msk [vmem:[%s170 + $0x28] sm:$0xff] %vm279, %v2836
      %2869 = vst.msk [vmem:[%s170 + $0x30] sm:$0xff] %vm279, %v2837
      %2870 = vst.msk [vmem:[%s170 + $0x38] sm:$0xff] %vm279, %v2838
      %2871 = vst.msk [vmem:[%s170 + $0x40] sm:$0xff] %vm279, %v2839
      %2872 = vst.msk [vmem:[%s170 + $0x48] sm:$0xff] %vm279, %v2840
      %2873 = vst.msk [vmem:[%s170 + $0x50] sm:$0xff] %vm279, %v2841
      %2874 = vst.msk [vmem:[%s170 + $0x58] sm:$0xff] %vm279, %v2842
      %2875 = vst.msk [vmem:[%s170 + $0x60] sm:$0xff] %vm279, %v2843
      %2876 = vst.msk [vmem:[%s170 + $0x68] sm:$0xff] %vm279, %v2844
      %2877 = vst.msk [vmem:[%s170 + $0x70] sm:$0xff] %vm279, %v2845
      %2878 = vst.msk [vmem:[%s170 + $0x78] sm:$0xff] %vm279, %v2846
      %2879 = vst.msk [vmem:[%s170 + $0x80] sm:$0xff] %vm279, %v2847
      %2880 = vst.msk [vmem:[%s170 + $0x88] sm:$0xff] %vm279, %v2848
      %2881 = vst.msk [vmem:[%s170 + $0x90] sm:$0xff] %vm279, %v2849
      %2882 = vst.msk [vmem:[%s170 + $0x98] sm:$0xff] %vm279, %v2850
      %2883 = vst.msk [vmem:[%s170 + $0xa0] sm:$0xff] %vm279, %v2851
      %2884 = vst.msk [vmem:[%s170 + $0xa8] sm:$0xff] %vm279, %v2852
      %2885 = vst.msk [vmem:[%s170 + $0xb0] sm:$0xff] %vm279, %v2853
      %2886 = vst.msk [vmem:[%s170 + $0xb8] sm:$0xff] %vm279, %v2854
      %2887 = vst.msk [vmem:[%s170 + $0xc0] sm:$0xff] %vm279, %v2855
      %2888 = vst.msk [vmem:[%s170 + $0xc8] sm:$0xff] %vm279, %v2856
      %2889 = vst.msk [vmem:[%s170 + $0xd0] sm:$0xff] %vm279, %v2857
      %2890 = vst.msk [vmem:[%s170 + $0xd8] sm:$0xff] %vm279, %v2858
      %2891 = vst.msk [vmem:[%s170 + $0xe0] sm:$0xff] %vm279, %v2859
      %2892 = vst.msk [vmem:[%s170 + $0xe8] sm:$0xff] %vm279, %v2860
      %2893 = vst.msk [vmem:[%s170 + $0xf0] sm:$0xff] %vm279, %v2861
      %2894 = vst.msk [vmem:[%s170 + $0xf8] sm:$0xff] %vm279, %v2862
      %p2895 = scmp.lt.s32.totalorder %s14, 1
      %s2896 = scalar_select %p2895, %s14, 1
      %s2897 = smul.addr %s2896, 32
      %s2898 = smul.addr %s2897, 8
      %s2899 = scalar_lea.vmem %s3, %s2898
      // Predicated region
      $region33: #{da_head_forward.9} parent=31 // pred_check
        %p2900 = pneg %p100
      $region34: #{da_head_forward.9} parent=31 // pred_check_branch
        %2902 = sbr.rel (%p2900) target = $region36
      $region35: #{da_head_forward.9} parent=31 // pred_region
        _
      $region36: #{da_head_forward.9} parent=31 // pred_fallthru
        _
    $region32: #{da_head_forward.9} parent=5 // pred_fallthru
      _
    %p2903 = scmp.le.s32.totalorder 2, %s9
    // Predicated region
    $region37: #{da_head_forward.9} parent=5 // pred_check
      %p2904 = pneg %p2903
    $region38: #{da_head_forward.9} parent=5 // pred_check_branch
      %2906 = sbr.rel (%p2904) target = $region40
    $region39: #{da_head_forward.9} parent=5 // pred_region
      %s2907 = ssub.s32 %s9, 2
      // Predicated region
      $region41: #{da_head_forward.9} parent=39 // pred_check
        %p2908 = pneg %p106
      $region42: #{da_head_forward.9} parent=39 // pred_check_branch
        %2910 = sbr.rel (%p2908) target = $region44
      $region43: #{da_head_forward.9} parent=39 // pred_region
        %p2911 = scmp.lt.s32.totalorder %s15, 1
        %s2912 = scalar_select %p2911, %s15, 1
        %s2913 = smul.addr %s2912, 32
        %s2914 = smul.addr %s2913, 8
        %s2915 = scalar_lea.vmem %s3, %s2914
      $region44: #{da_head_forward.9} parent=39 // pred_fallthru
        _
    $region40: #{da_head_forward.9} parent=5 // pred_fallthru
      _
  $region6: #{da_head_forward.9} parent=0 // loop_footer
    %s13 = sadd.s32 1, %s9
  $region7: #{da_head_forward.9} parent=0 // loop_footer_branch
    %8 = sbr.rel target = $region3
  $region8: #{da_head_forward.9} parent=0 // loop_exit
    _

// kernel: da_head_forward.13
$region0: #{da_head_forward.13}
  #allocation0 [shape = 'u32[]', space=smem, size = 0x4, offset = 0x4, fixed_abs, tag = 'smem constant byte address 0x4 - core index']
  #allocation1 [shape = 'u32[144,128]{1,0:T(1,128)}', space=vmem, size = 0x12000, scoped, tag = 'internal scratch']
  %s0 = inlined_call_operand.vmem [shape: f32[512,16], index: 0, kind: input, shape index: {}]
  %s1 = inlined_call_operand.vmem [shape: f32[512,16], index: 1, kind: input, shape index: {}]
  %s2 = inlined_call_operand.vmem [shape: bf16[16,128], index: 2, kind: input, shape index: {}]
  %s3 = inlined_call_operand.vmem [shape: f32[1,128], index: 3, kind: input, shape index: {}]
  %s4 = inlined_call_operand.vmem [shape: bf16[16,128], index: 4, kind: input, shape index: {}]
  %s5 = inlined_call_operand.vmem [shape: f32[1,128], index: 5, kind: input, shape index: {}]
  %s6 = inlined_call_operand.vmem [shape: bf16[16,128], index: 6, kind: input, shape index: {}]
  %s7 = inlined_call_operand.vmem [shape: f32[1,128], index: 7, kind: input, shape index: {}]
  %s8 = inlined_call_operand.vmem [shape: f32[512,128], index: 8, kind: output, shape index: {0}]
  %s9 = inlined_call_operand.vmem [shape: f32[512,128], index: 9, kind: output, shape index: {1}]
  %s10 = inlined_call_operand.vmem [shape: f32[512,128], index: 10, kind: output, shape index: {2}]
  %11 = xla_tuple %s8, %s9, %s10
  %s12 = sld [smem:[#allocation0]]
  $region81: #{da_head_forward.13} parent=0
    _
  %s14 = ssub.s32 1, %s12
  %s15 = scalar_select 0, %s14, %s12
  loop: start=0, step=1, limit=4
  $region2: #{da_head_forward.13} parent=0 // loop_pre_header
    _
  $region3: #{da_head_forward.13} parent=0 // loop_header
    %s17 = sphi 0, %s21
    %p18 = scmp.ge.s32.totalorder %s17, 4
    %s27 = sphi 0, %s29
    %s30 = sphi 0, %s27
    %s31 = sphi 0, %s30
    %s47 = sphi 0, %s31
    %s53 = sphi 0, %s55
    %s56 = sphi 0, %s53
    %s57 = sphi 0, %s56
    %s73 = sphi 0, %s57
    %s77 = sphi 0, %s77
    %s79 = sphi 0, %s77
    %s80 = sphi 0, %s79
    %s94 = sphi 0, %s80
    %s98 = sphi 0, %s98
    %s100 = sphi 0, %s98
    %s101 = sphi 0, %s100
    %s115 = sphi 0, %s101
    %s119 = sphi 0, %s119
    %s121 = sphi 0, %s119
    %s122 = sphi 0, %s121
    %s136 = sphi 0, %s122
    %s140 = sphi 0, %s140
    %s142 = sphi 0, %s140
    %s143 = sphi 0, %s142
    %s157 = sphi 0, %s143
    %s161 = sphi 0, %s161
    %s163 = sphi 0, %s161
    %s164 = sphi 0, %s163
    %s178 = sphi 0, %s164
    %s182 = sphi 0, %s182
    %s184 = sphi 0, %s182
    %s185 = sphi 0, %s184
    %s199 = sphi 0, %s185
    %s205 = sphi 0, %s207
    %s208 = sphi 0, %s205
    %s209 = sphi 0, %s208
    %s225 = sphi 0, %s209
    %s231 = sphi 0, %s233
    %s234 = sphi 0, %s231
    %s235 = sphi 0, %s234
    %s251 = sphi 0, %s235
    %s257 = sphi 0, %s259
    %s260 = sphi 0, %s257
    %s261 = sphi 0, %s260
    %s277 = sphi 0, %s261
  $region4: #{da_head_forward.13} parent=0 // loop_header_branch
    %20 = sbr.rel (%p18) target = $region8
  $region5: #{da_head_forward.13} parent=0 // loop_body
    %s22 = ssub.s32 %s17, 1
    %s23 = ssub.s32 %s17, 2
    %s24 = sadd.s32 %s17, 1
    %s25 = ssub.s32 %s17, %s24
    %p26 = scmp.eq.s32.totalorder %s25, 0
    %s28 = sadd.s32 %s27, 1
    %s29 = scalar_select %p26, %s27, %s28
    %p32 = pneg %p26
    %p33 = scmp.eq.s32.totalorder %s17, 1
    %p34 = por %p32, %p33
    %p35 = scmp.ne.s32.totalorder %s27, %s30
    %p36 = scmp.eq.s32.totalorder %s17, 0
    %p37 = por %p35, %p36
    %p38 = scmp.ne.s32.totalorder %s27, %s30
    %p39 = scmp.eq.s32.totalorder %s22, 1
    %p40 = por %p38, %p39
    %p41 = scmp.ne.s32.totalorder %s30, %s31
    %p42 = scmp.eq.s32.totalorder %s22, 0
    %p43 = por %p41, %p42
    %p44 = scmp.ne.s32.totalorder %s30, %s31
    %p45 = scmp.eq.s32.totalorder %s23, 1
    %p46 = por %p44, %p45
    %p48 = scmp.ne.s32.totalorder %s31, %s47
    %p49 = scmp.eq.s32.totalorder %s23, 0
    %p50 = por %p48, %p49
    %s51 = ssub.s32 %s17, %s24
    %p52 = scmp.eq.s32.totalorder %s51, 0
    %s54 = sadd.s32 %s53, 1
    %s55 = scalar_select %p52, %s53, %s54
    %p58 = pneg %p52
    %p59 = scmp.eq.s32.totalorder %s17, 1
    %p60 = por %p58, %p59
    %p61 = scmp.ne.s32.totalorder %s53, %s56
    %p62 = scmp.eq.s32.totalorder %s17, 0
    %p63 = por %p61, %p62
    %p64 = scmp.ne.s32.totalorder %s53, %s56
    %p65 = scmp.eq.s32.totalorder %s22, 1
    %p66 = por %p64, %p65
    %p67 = scmp.ne.s32.totalorder %s56, %s57
    %p68 = scmp.eq.s32.totalorder %s22, 0
    %p69 = por %p67, %p68
    %p70 = scmp.ne.s32.totalorder %s56, %s57
    %p71 = scmp.eq.s32.totalorder %s23, 1
    %p72 = por %p70, %p71
    %p74 = scmp.ne.s32.totalorder %s57, %s73
    %p75 = scmp.eq.s32.totalorder %s23, 0
    %p76 = por %p74, %p75
    %s78 = sadd.s32 %s77, 1
    %p81 = scmp.eq.s32.totalorder %s17, 1
    %p82 = scmp.ne.s32.totalorder %s77, %s79
    %p83 = scmp.eq.s32.totalorder %s17, 0
    %p84 = por %p82, %p83
    %p85 = scmp.ne.s32.totalorder %s77, %s79
    %p86 = scmp.eq.s32.totalorder %s22, 1
    %p87 = por %p85, %p86
    %p88 = scmp.ne.s32.totalorder %s79, %s80
    %p89 = scmp.eq.s32.totalorder %s22, 0
    %p90 = por %p88, %p89
    %p91 = scmp.ne.s32.totalorder %s79, %s80
    %p92 = scmp.eq.s32.totalorder %s23, 1
    %p93 = por %p91, %p92
    %p95 = scmp.ne.s32.totalorder %s80, %s94
    %p96 = scmp.eq.s32.totalorder %s23, 0
    %p97 = por %p95, %p96
    %s99 = sadd.s32 %s98, 1
    %p102 = scmp.eq.s32.totalorder %s17, 1
    %p103 = scmp.ne.s32.totalorder %s98, %s100
    %p104 = scmp.eq.s32.totalorder %s17, 0
    %p105 = por %p103, %p104
    %p106 = scmp.ne.s32.totalorder %s98, %s100
    %p107 = scmp.eq.s32.totalorder %s22, 1
    %p108 = por %p106, %p107
    %p109 = scmp.ne.s32.totalorder %s100, %s101
    %p110 = scmp.eq.s32.totalorder %s22, 0
    %p111 = por %p109, %p110
    %p112 = scmp.ne.s32.totalorder %s100, %s101
    %p113 = scmp.eq.s32.totalorder %s23, 1
    %p114 = por %p112, %p113
    %p116 = scmp.ne.s32.totalorder %s101, %s115
    %p117 = scmp.eq.s32.totalorder %s23, 0
    %p118 = por %p116, %p117
    %s120 = sadd.s32 %s119, 1
    %p123 = scmp.eq.s32.totalorder %s17, 1
    %p124 = scmp.ne.s32.totalorder %s119, %s121
    %p125 = scmp.eq.s32.totalorder %s17, 0
    %p126 = por %p124, %p125
    %p127 = scmp.ne.s32.totalorder %s119, %s121
    %p128 = scmp.eq.s32.totalorder %s22, 1
    %p129 = por %p127, %p128
    %p130 = scmp.ne.s32.totalorder %s121, %s122
    %p131 = scmp.eq.s32.totalorder %s22, 0
    %p132 = por %p130, %p131
    %p133 = scmp.ne.s32.totalorder %s121, %s122
    %p134 = scmp.eq.s32.totalorder %s23, 1
    %p135 = por %p133, %p134
    %p137 = scmp.ne.s32.totalorder %s122, %s136
    %p138 = scmp.eq.s32.totalorder %s23, 0
    %p139 = por %p137, %p138
    %s141 = sadd.s32 %s140, 1
    %p144 = scmp.eq.s32.totalorder %s17, 1
    %p145 = scmp.ne.s32.totalorder %s140, %s142
    %p146 = scmp.eq.s32.totalorder %s17, 0
    %p147 = por %p145, %p146
    %p148 = scmp.ne.s32.totalorder %s140, %s142
    %p149 = scmp.eq.s32.totalorder %s22, 1
    %p150 = por %p148, %p149
    %p151 = scmp.ne.s32.totalorder %s142, %s143
    %p152 = scmp.eq.s32.totalorder %s22, 0
    %p153 = por %p151, %p152
    %p154 = scmp.ne.s32.totalorder %s142, %s143
    %p155 = scmp.eq.s32.totalorder %s23, 1
    %p156 = por %p154, %p155
    %p158 = scmp.ne.s32.totalorder %s143, %s157
    %p159 = scmp.eq.s32.totalorder %s23, 0
    %p160 = por %p158, %p159
    %s162 = sadd.s32 %s161, 1
    %p165 = scmp.eq.s32.totalorder %s17, 1
    %p166 = scmp.ne.s32.totalorder %s161, %s163
    %p167 = scmp.eq.s32.totalorder %s17, 0
    %p168 = por %p166, %p167
    %p169 = scmp.ne.s32.totalorder %s161, %s163
    %p170 = scmp.eq.s32.totalorder %s22, 1
    %p171 = por %p169, %p170
    %p172 = scmp.ne.s32.totalorder %s163, %s164
    %p173 = scmp.eq.s32.totalorder %s22, 0
    %p174 = por %p172, %p173
    %p175 = scmp.ne.s32.totalorder %s163, %s164
    %p176 = scmp.eq.s32.totalorder %s23, 1
    %p177 = por %p175, %p176
    %p179 = scmp.ne.s32.totalorder %s164, %s178
    %p180 = scmp.eq.s32.totalorder %s23, 0
    %p181 = por %p179, %p180
    %s183 = sadd.s32 %s182, 1
    %p186 = scmp.eq.s32.totalorder %s17, 1
    %p187 = scmp.ne.s32.totalorder %s182, %s184
    %p188 = scmp.eq.s32.totalorder %s17, 0
    %p189 = por %p187, %p188
    %p190 = scmp.ne.s32.totalorder %s182, %s184
    %p191 = scmp.eq.s32.totalorder %s22, 1
    %p192 = por %p190, %p191
    %p193 = scmp.ne.s32.totalorder %s184, %s185
    %p194 = scmp.eq.s32.totalorder %s22, 0
    %p195 = por %p193, %p194
    %p196 = scmp.ne.s32.totalorder %s184, %s185
    %p197 = scmp.eq.s32.totalorder %s23, 1
    %p198 = por %p196, %p197
    %p200 = scmp.ne.s32.totalorder %s185, %s199
    %p201 = scmp.eq.s32.totalorder %s23, 0
    %p202 = por %p200, %p201
    %s203 = ssub.s32 %s17, %s24
    %p204 = scmp.eq.s32.totalorder %s203, 0
    %s206 = sadd.s32 %s205, 1
    %s207 = scalar_select %p204, %s205, %s206
    %p210 = pneg %p204
    %p211 = scmp.eq.s32.totalorder %s17, 1
    %p212 = por %p210, %p211
    %p213 = scmp.ne.s32.totalorder %s205, %s208
    %p214 = scmp.eq.s32.totalorder %s17, 0
    %p215 = por %p213, %p214
    %p216 = scmp.ne.s32.totalorder %s205, %s208
    %p217 = scmp.eq.s32.totalorder %s22, 1
    %p218 = por %p216, %p217
    %p219 = scmp.ne.s32.totalorder %s208, %s209
    %p220 = scmp.eq.s32.totalorder %s22, 0
    %p221 = por %p219, %p220
    %p222 = scmp.ne.s32.totalorder %s208, %s209
    %p223 = scmp.eq.s32.totalorder %s23, 1
    %p224 = por %p222, %p223
    %p226 = scmp.ne.s32.totalorder %s209, %s225
    %p227 = scmp.eq.s32.totalorder %s23, 0
    %p228 = por %p226, %p227
    %s229 = ssub.s32 %s17, %s24
    %p230 = scmp.eq.s32.totalorder %s229, 0
    %s232 = sadd.s32 %s231, 1
    %s233 = scalar_select %p230, %s231, %s232
    %p236 = pneg %p230
    %p237 = scmp.eq.s32.totalorder %s17, 1
    %p238 = por %p236, %p237
    %p239 = scmp.ne.s32.totalorder %s231, %s234
    %p240 = scmp.eq.s32.totalorder %s17, 0
    %p241 = por %p239, %p240
    %p242 = scmp.ne.s32.totalorder %s231, %s234
    %p243 = scmp.eq.s32.totalorder %s22, 1
    %p244 = por %p242, %p243
    %p245 = scmp.ne.s32.totalorder %s234, %s235
    %p246 = scmp.eq.s32.totalorder %s22, 0
    %p247 = por %p245, %p246
    %p248 = scmp.ne.s32.totalorder %s234, %s235
    %p249 = scmp.eq.s32.totalorder %s23, 1
    %p250 = por %p248, %p249
    %p252 = scmp.ne.s32.totalorder %s235, %s251
    %p253 = scmp.eq.s32.totalorder %s23, 0
    %p254 = por %p252, %p253
    %s255 = ssub.s32 %s17, %s24
    %p256 = scmp.eq.s32.totalorder %s255, 0
    %s258 = sadd.s32 %s257, 1
    %s259 = scalar_select %p256, %s257, %s258
    %p262 = pneg %p256
    %p263 = scmp.eq.s32.totalorder %s17, 1
    %p264 = por %p262, %p263
    %p265 = scmp.ne.s32.totalorder %s257, %s260
    %p266 = scmp.eq.s32.totalorder %s17, 0
    %p267 = por %p265, %p266
    %p268 = scmp.ne.s32.totalorder %s257, %s260
    %p269 = scmp.eq.s32.totalorder %s22, 1
    %p270 = por %p268, %p269
    %p271 = scmp.ne.s32.totalorder %s260, %s261
    %p272 = scmp.eq.s32.totalorder %s22, 0
    %p273 = por %p271, %p272
    %p274 = scmp.ne.s32.totalorder %s260, %s261
    %p275 = scmp.eq.s32.totalorder %s23, 1
    %p276 = por %p274, %p275
    %p278 = scmp.ne.s32.totalorder %s261, %s277
    %p279 = scmp.eq.s32.totalorder %s23, 0
    %p280 = por %p278, %p279
    %p281 = scmp.le.s32.totalorder 1, %s17
    %p282 = scmp.lt.s32.totalorder %s17, 3
    %p283 = pnand %p281, %p282
    %p284 = pneg %p283
    // Predicated region
    $region9: #{da_head_forward.13} parent=5 // pred_check
      _
    $region10: #{da_head_forward.13} parent=5 // pred_check_branch
      %286 = sbr.rel (%p283) target = $region12
    $region11: #{da_head_forward.13} parent=5 // pred_region
      %s287 = ssub.s32 %s17, 1
      // Predicated region
      $region13: #{da_head_forward.13} parent=11 // pred_check
        %p288 = pneg %p90
      $region14: #{da_head_forward.13} parent=11 // pred_check_branch
        %290 = sbr.rel (%p288) target = $region16
      $region15: #{da_head_forward.13} parent=11 // pred_region
        _
      $region16: #{da_head_forward.13} parent=11 // pred_fallthru
        _
      // Predicated region
      $region17: #{da_head_forward.13} parent=11 // pred_check
        %p291 = pneg %p111
      $region18: #{da_head_forward.13} parent=11 // pred_check_branch
        %293 = sbr.rel (%p291) target = $region20
      $region19: #{da_head_forward.13} parent=11 // pred_region
        _
      $region20: #{da_head_forward.13} parent=11 // pred_fallthru
        _
      // Predicated region
      $region21: #{da_head_forward.13} parent=11 // pred_check
        %p294 = pneg %p132
      $region22: #{da_head_forward.13} parent=11 // pred_check_branch
        %296 = sbr.rel (%p294) target = $region24
      $region23: #{da_head_forward.13} parent=11 // pred_region
        _
      $region24: #{da_head_forward.13} parent=11 // pred_fallthru
        _
      // Predicated region
      $region25: #{da_head_forward.13} parent=11 // pred_check
        %p297 = pneg %p153
      $region26: #{da_head_forward.13} parent=11 // pred_check_branch
        %299 = sbr.rel (%p297) target = $region28
      $region27: #{da_head_forward.13} parent=11 // pred_region
        _
      $region28: #{da_head_forward.13} parent=11 // pred_fallthru
        _
      // Predicated region
      $region29: #{da_head_forward.13} parent=11 // pred_check
        %p300 = pneg %p174
      $region30: #{da_head_forward.13} parent=11 // pred_check_branch
        %302 = sbr.rel (%p300) target = $region32
      $region31: #{da_head_forward.13} parent=11 // pred_region
        _
      $region32: #{da_head_forward.13} parent=11 // pred_fallthru
        _
      // Predicated region
      $region33: #{da_head_forward.13} parent=11 // pred_check
        %p303 = pneg %p195
      $region34: #{da_head_forward.13} parent=11 // pred_check_branch
        %305 = sbr.rel (%p303) target = $region36
      $region35: #{da_head_forward.13} parent=11 // pred_region
        _
      $region36: #{da_head_forward.13} parent=11 // pred_fallthru
        _
    $region12: #{da_head_forward.13} parent=5 // pred_fallthru
      _
    %p306 = scmp.lt.s32.totalorder %s17, 2
    // Predicated region
    $region37: #{da_head_forward.13} parent=5 // pred_check
      %p307 = pneg %p306
    $region38: #{da_head_forward.13} parent=5 // pred_check_branch
      %309 = sbr.rel (%p307) target = $region40
    $region39: #{da_head_forward.13} parent=5 // pred_region
      // Predicated region
      $region41: #{da_head_forward.13} parent=39 // pred_check
        %p310 = pneg %p37
      $region42: #{da_head_forward.13} parent=39 // pred_check_branch
        %312 = sbr.rel (%p310) target = $region44
      $region43: #{da_head_forward.13} parent=39 // pred_region
        %s313 = smul.u32 32, %s17
        %p314 = scmp.lt.s32.totalorder %s313, 63
        %s315 = scalar_select %p314, %s313, 63
        %s316 = smul.addr %s315, 8
        %s317 = scalar_lea.vmem %s0, %s316
        %s318 = smul.u32 32, %s17
      $region44: #{da_head_forward.13} parent=39 // pred_fallthru
        _
      // Predicated region
      $region45: #{da_head_forward.13} parent=39 // pred_check
        %p319 = pneg %p63
      $region46: #{da_head_forward.13} parent=39 // pred_check_branch
        %321 = sbr.rel (%p319) target = $region48
      $region47: #{da_head_forward.13} parent=39 // pred_region
        %s322 = smul.u32 32, %s17
        %p323 = scmp.lt.s32.totalorder %s322, 63
        %s324 = scalar_select %p323, %s322, 63
        %s325 = smul.addr %s324, 8
        %s326 = scalar_lea.vmem %s1, %s325
        %s327 = smul.u32 32, %s17
      $region48: #{da_head_forward.13} parent=39 // pred_fallthru
        _
    $region40: #{da_head_forward.13} parent=5 // pred_fallthru
      _
    %p328 = scmp.le.s32.totalorder 1, %s17
    %p329 = scmp.lt.s32.totalorder %s17, 3
    %p330 = pnand %p328, %p329
    %p331 = pneg %p330
    // Predicated region
    $region49: #{da_head_forward.13} parent=5 // pred_check
      _
    $region50: #{da_head_forward.13} parent=5 // pred_check_branch
      %333 = sbr.rel (%p330) target = $region52
    $region51: #{da_head_forward.13} parent=5 // pred_region
      %s334 = ssub.s32 %s17, 1
      %s335 = smul.u32 32, %s22
      %p336 = scmp.lt.s32.totalorder %s335, 63
      %s337 = scalar_select %p336, %s335, 63
      %s338 = smul.addr %s337, 8
      %s339 = scalar_lea.vmem %s0, %s338
      %p340 = pneg %p43
      %p341 = pneg %p40
      %s342 = smul.u32 32, %s22
      %p343 = scmp.lt.s32.totalorder %s342, 63
      %s344 = scalar_select %p343, %s342, 63
      %s345 = smul.addr %s344, 8
      %s346 = scalar_lea.vmem %s1, %s345
      %p347 = pneg %p69
      %p348 = pneg %p66
      %p349 = pneg %p90
      %p350 = pneg %p87
      %p351 = pneg %p111
      %p352 = pneg %p108
      %p353 = pneg %p132
      %p354 = pneg %p129
      %p355 = pneg %p153
      %p356 = pneg %p150
      %p357 = pneg %p174
      %p358 = pneg %p171
      %p359 = pneg %p195
      %p360 = pneg %p192
      %p361 = pneg %p221
      %p362 = pneg %p218
      %s363 = smul.u32 32, %s22
      %p364 = scmp.lt.s32.totalorder %s363, 63
      %s365 = scalar_select %p364, %s363, 63
      %s366 = smul.addr %s365, 8
      %s367 = scalar_lea.vmem %s8, %s366
      %p368 = pneg %p247
      %p369 = pneg %p244
      %s370 = smul.u32 32, %s22
      %p371 = scmp.lt.s32.totalorder %s370, 63
      %s372 = scalar_select %p371, %s370, 63
      %s373 = smul.addr %s372, 8
      %s374 = scalar_lea.vmem %s9, %s373
      %p375 = pneg %p273
      %p376 = pneg %p270
      %s377 = smul.u32 32, %s22
      %p378 = scmp.lt.s32.totalorder %s377, 63
      %s379 = scalar_select %p378, %s377, 63
      %s380 = smul.addr %s379, 8
      %s381 = scalar_lea.vmem %s10, %s380
      %s382 = smul.u32 32, %s22
      %p383 = scmp.lt.s32.totalorder %s382, 63
      %s384 = scalar_select %p383, %s382, 63
      %s385 = smul.addr %s384, 8
      %s386 = scalar_lea.vmem %s0, %s385
      %s387 = smul.u32 32, %s22
      %s388 = smul.u32 32, %s22
      %p389 = scmp.lt.s32.totalorder %s388, 63
      %s390 = scalar_select %p389, %s388, 63
      %s391 = smul.addr %s390, 8
      %s392 = scalar_lea.vmem %s1, %s391
      %s393 = smul.u32 32, %s22
      %s394 = smul.u32 32, %s22
      %p395 = scmp.lt.s32.totalorder %s394, 63
      %s396 = scalar_select %p395, %s394, 63
      %s397 = smul.addr %s396, 8
      %s398 = scalar_lea.vmem %s8, %s397
      %s399 = smul.u32 32, %s22
      %s400 = smul.u32 32, %s22
      %p401 = scmp.lt.s32.totalorder %s400, 63
      %s402 = scalar_select %p401, %s400, 63
      %s403 = smul.addr %s402, 8
      %s404 = scalar_lea.vmem %s9, %s403
      %s405 = smul.u32 32, %s22
      %s406 = smul.u32 32, %s22
      %p407 = scmp.lt.s32.totalorder %s406, 63
      %s408 = scalar_select %p407, %s406, 63
      %s409 = smul.addr %s408, 8
      %s410 = scalar_lea.vmem %s10, %s409
      %s411 = smul.u32 32, %s22
      %v413 = vld [vmem:[%s386] sm:$0xff]
      %v414 = vld [vmem:[%s386 + $0x8] sm:$0xff]
      %v415 = vld [vmem:[%s386 + $0x10] sm:$0xff]
      %v416 = vld [vmem:[%s386 + $0x18] sm:$0xff]
      %v417 = vld [vmem:[%s386 + $0x20] sm:$0xff]
      %v418 = vld [vmem:[%s386 + $0x28] sm:$0xff]
      %v419 = vld [vmem:[%s386 + $0x30] sm:$0xff]
      %v420 = vld [vmem:[%s386 + $0x38] sm:$0xff]
      %v421 = vld [vmem:[%s386 + $0x40] sm:$0xff]
      %v422 = vld [vmem:[%s386 + $0x48] sm:$0xff]
      %v423 = vld [vmem:[%s386 + $0x50] sm:$0xff]
      %v424 = vld [vmem:[%s386 + $0x58] sm:$0xff]
      %v425 = vld [vmem:[%s386 + $0x60] sm:$0xff]
      %v426 = vld [vmem:[%s386 + $0x68] sm:$0xff]
      %v427 = vld [vmem:[%s386 + $0x70] sm:$0xff]
      %v428 = vld [vmem:[%s386 + $0x78] sm:$0xff]
      %v429 = vld [vmem:[%s386 + $0x80] sm:$0xff]
      %v430 = vld [vmem:[%s386 + $0x88] sm:$0xff]
      %v431 = vld [vmem:[%s386 + $0x90] sm:$0xff]
      %v432 = vld [vmem:[%s386 + $0x98] sm:$0xff]
      %v433 = vld [vmem:[%s386 + $0xa0] sm:$0xff]
      %v434 = vld [vmem:[%s386 + $0xa8] sm:$0xff]
      %v435 = vld [vmem:[%s386 + $0xb0] sm:$0xff]
      %v436 = vld [vmem:[%s386 + $0xb8] sm:$0xff]
      %v437 = vld [vmem:[%s386 + $0xc0] sm:$0xff]
      %v438 = vld [vmem:[%s386 + $0xc8] sm:$0xff]
      %v439 = vld [vmem:[%s386 + $0xd0] sm:$0xff]
      %v440 = vld [vmem:[%s386 + $0xd8] sm:$0xff]
      %v441 = vld [vmem:[%s386 + $0xe0] sm:$0xff]
      %v442 = vld [vmem:[%s386 + $0xe8] sm:$0xff]
      %v443 = vld [vmem:[%s386 + $0xf0] sm:$0xff]
      %v444 = vld [vmem:[%s386 + $0xf8] sm:$0xff]
      %v445 = vld [vmem:[%s392] sm:$0xff]
      %v446 = vld [vmem:[%s392 + $0x8] sm:$0xff]
      %v447 = vld [vmem:[%s392 + $0x10] sm:$0xff]
      %v448 = vld [vmem:[%s392 + $0x18] sm:$0xff]
      %v449 = vld [vmem:[%s392 + $0x20] sm:$0xff]
      %v450 = vld [vmem:[%s392 + $0x28] sm:$0xff]
      %v451 = vld [vmem:[%s392 + $0x30] sm:$0xff]
      %v452 = vld [vmem:[%s392 + $0x38] sm:$0xff]
      %v453 = vld [vmem:[%s392 + $0x40] sm:$0xff]
      %v454 = vld [vmem:[%s392 + $0x48] sm:$0xff]
      %v455 = vld [vmem:[%s392 + $0x50] sm:$0xff]
      %v456 = vld [vmem:[%s392 + $0x58] sm:$0xff]
      %v457 = vld [vmem:[%s392 + $0x60] sm:$0xff]
      %v458 = vld [vmem:[%s392 + $0x68] sm:$0xff]
      %v459 = vld [vmem:[%s392 + $0x70] sm:$0xff]
      %v460 = vld [vmem:[%s392 + $0x78] sm:$0xff]
      %v461 = vld [vmem:[%s392 + $0x80] sm:$0xff]
      %v462 = vld [vmem:[%s392 + $0x88] sm:$0xff]
      %v463 = vld [vmem:[%s392 + $0x90] sm:$0xff]
      %v464 = vld [vmem:[%s392 + $0x98] sm:$0xff]
      %v465 = vld [vmem:[%s392 + $0xa0] sm:$0xff]
      %v466 = vld [vmem:[%s392 + $0xa8] sm:$0xff]
      %v467 = vld [vmem:[%s392 + $0xb0] sm:$0xff]
      %v468 = vld [vmem:[%s392 + $0xb8] sm:$0xff]
      %v469 = vld [vmem:[%s392 + $0xc0] sm:$0xff]
      %v470 = vld [vmem:[%s392 + $0xc8] sm:$0xff]
      %v471 = vld [vmem:[%s392 + $0xd0] sm:$0xff]
      %v472 = vld [vmem:[%s392 + $0xd8] sm:$0xff]
      %v473 = vld [vmem:[%s392 + $0xe0] sm:$0xff]
      %v474 = vld [vmem:[%s392 + $0xe8] sm:$0xff]
      %v475 = vld [vmem:[%s392 + $0xf0] sm:$0xff]
      %v476 = vld [vmem:[%s392 + $0xf8] sm:$0xff]
      %v477 = vadd.f32 %v413, %v445
      %v478 = vadd.f32 %v414, %v446
      %v479 = vadd.f32 %v415, %v447
      %v480 = vadd.f32 %v416, %v448
      %v481 = vadd.f32 %v417, %v449
      %v482 = vadd.f32 %v418, %v450
      %v483 = vadd.f32 %v419, %v451
      %v484 = vadd.f32 %v420, %v452
      %v485 = vadd.f32 %v421, %v453
      %v486 = vadd.f32 %v422, %v454
      %v487 = vadd.f32 %v423, %v455
      %v488 = vadd.f32 %v424, %v456
      %v489 = vadd.f32 %v425, %v457
      %v490 = vadd.f32 %v426, %v458
      %v491 = vadd.f32 %v427, %v459
      %v492 = vadd.f32 %v428, %v460
      %v493 = vadd.f32 %v429, %v461
      %v494 = vadd.f32 %v430, %v462
      %v495 = vadd.f32 %v431, %v463
      %v496 = vadd.f32 %v432, %v464
      %v497 = vadd.f32 %v433, %v465
      %v498 = vadd.f32 %v434, %v466
      %v499 = vadd.f32 %v435, %v467
      %v500 = vadd.f32 %v436, %v468
      %v501 = vadd.f32 %v437, %v469
      %v502 = vadd.f32 %v438, %v470
      %v503 = vadd.f32 %v439, %v471
      %v504 = vadd.f32 %v440, %v472
      %v505 = vadd.f32 %v441, %v473
      %v506 = vadd.f32 %v442, %v474
      %v507 = vadd.f32 %v443, %v475
      %v508 = vadd.f32 %v444, %v476
      %v509 = vpack.c.bf16 %v478, %v477
      %v510 = vpack.c.bf16 %v480, %v479
      %v511 = vpack.c.bf16 %v482, %v481
      %v512 = vpack.c.bf16 %v484, %v483
      %v513 = vpack.c.bf16 %v486, %v485
      %v514 = vpack.c.bf16 %v488, %v487
      %v515 = vpack.c.bf16 %v490, %v489
      %v516 = vpack.c.bf16 %v492, %v491
      %v517 = vpack.c.bf16 %v494, %v493
      %v518 = vpack.c.bf16 %v496, %v495
      %v519 = vpack.c.bf16 %v498, %v497
      %v520 = vpack.c.bf16 %v500, %v499
      %v521 = vpack.c.bf16 %v502, %v501
      %v522 = vpack.c.bf16 %v504, %v503
      %v523 = vpack.c.bf16 %v506, %v505
      %v524 = vpack.c.bf16 %v508, %v507
      %v525 = vpack.c.bf16 %v414, %v413
      %v526 = vpack.c.bf16 %v416, %v415
      %v527 = vpack.c.bf16 %v418, %v417
      %v528 = vpack.c.bf16 %v420, %v419
      %v529 = vpack.c.bf16 %v422, %v421
      %v530 = vpack.c.bf16 %v424, %v423
      %v531 = vpack.c.bf16 %v426, %v425
      %v532 = vpack.c.bf16 %v428, %v427
      %v533 = vpack.c.bf16 %v430, %v429
      %v534 = vpack.c.bf16 %v432, %v431
      %v535 = vpack.c.bf16 %v434, %v433
      %v536 = vpack.c.bf16 %v436, %v435
      %v537 = vpack.c.bf16 %v438, %v437
      %v538 = vpack.c.bf16 %v440, %v439
      %v539 = vpack.c.bf16 %v442, %v441
      %v540 = vpack.c.bf16 %v444, %v443
      %v541 = vpack.c.bf16 %v446, %v445
      %v542 = vpack.c.bf16 %v448, %v447
      %v543 = vpack.c.bf16 %v450, %v449
      %v544 = vpack.c.bf16 %v452, %v451
      %v545 = vpack.c.bf16 %v454, %v453
      %v546 = vpack.c.bf16 %v456, %v455
      %v547 = vpack.c.bf16 %v458, %v457
      %v548 = vpack.c.bf16 %v460, %v459
      %v549 = vpack.c.bf16 %v462, %v461
      %v550 = vpack.c.bf16 %v464, %v463
      %v551 = vpack.c.bf16 %v466, %v465
      %v552 = vpack.c.bf16 %v468, %v467
      %v553 = vpack.c.bf16 %v470, %v469
      %v554 = vpack.c.bf16 %v472, %v471
      %v555 = vpack.c.bf16 %v474, %v473
      %v556 = vpack.c.bf16 %v476, %v475
      %v557 = vld [vmem:[%s2] sm:$0xf]
      %v558 = vld [vmem:[%s2 + $0x4] sm:$0xf]
      %v559 = vld [vmem:[%s3] sm:$0x1]
      %v561 = vlaneseq
      %v562 = vshrl.u32 %v561, 7
      %v563 = vsub.s32 0, %v562
      %v564 = vrot.slane %v559, %v563
      %v568 = vunpack.c.l.b16 %v557
      %v569 = vunpack.c.l.b16 %v558
      %v570 = vpack.c.b16 %v569, %v568
      %vm572 = vcmask 130048
      %v574 = vsel %vm572, %v509, 0
      %v577 = vsel %vm572, %v510, 0
      %v580 = vsel %vm572, %v511, 0
      %v583 = vsel %vm572, %v512, 0
      %v586 = vsel %vm572, %v513, 0
      %v589 = vsel %vm572, %v514, 0
      %v592 = vsel %vm572, %v515, 0
      %v595 = vsel %vm572, %v516, 0
      %v598 = vsel %vm572, %v517, 0
      %v601 = vsel %vm572, %v518, 0
      %v604 = vsel %vm572, %v519, 0
      %v607 = vsel %vm572, %v520, 0
      %v610 = vsel %vm572, %v521, 0
      %v613 = vsel %vm572, %v522, 0
      %v616 = vsel %vm572, %v523, 0
      %v619 = vsel %vm572, %v524, 0
      %621 = vmatprep.subr.bf16.mxu0 0
      %622 = vmatpush1.bf16.msra.mxu0 %v570
      %623 = vmatprep.subr.bf16.mxu0 0
      %624 = vmatpush1.bf16.msra.mxu0 0
      %625 = vmatprep.subr.bf16.mxu0 0
      %626 = vmatpush1.bf16.msra.mxu0 0
      %627 = vmatprep.subr.bf16.mxu0 0
      %628 = vmatpush1.bf16.msra.mxu0 0
      %629 = vmatprep.subr.bf16.mxu0 0
      %630 = vmatpush1.bf16.msra.mxu0 0
      %631 = vmatprep.subr.bf16.mxu0 0
      %632 = vmatpush1.bf16.msra.mxu0 0
      %633 = vmatprep.subr.bf16.mxu0 0
      %634 = vmatpush1.bf16.msra.mxu0 0
      %635 = vmatprep.subr.bf16.mxu0 0
      %636 = vmatpush1.bf16.msra.mxu0 0
      %637 = vmatprep.subr.bf16.mxu0 0
      %638 = vmatpush1.bf16.msra.mxu0 0
      %639 = vmatprep.subr.bf16.mxu0 0
      %640 = vmatpush1.bf16.msra.mxu0 0
      %641 = vmatprep.subr.bf16.mxu0 0
      %642 = vmatpush1.bf16.msra.mxu0 0
      %643 = vmatprep.subr.bf16.mxu0 0
      %644 = vmatpush1.bf16.msra.mxu0 0
      %645 = vmatprep.subr.bf16.mxu0 0
      %646 = vmatpush1.bf16.msra.mxu0 0
      %647 = vmatprep.subr.bf16.mxu0 0
      %648 = vmatpush1.bf16.msra.mxu0 0
      %649 = vmatprep.subr.bf16.mxu0 0
      %650 = vmatpush1.bf16.msra.mxu0 0
      %651 = vmatprep.subr.bf16.mxu0 0
      %652 = vmatpush1.bf16.msra.mxu0 0
      %653 = vmatprep.mubr.bf16.mxu0 0
      %654 = vmatmul.mubr.bf16.gmra.mrb[0].mxu0 %v574
      %v655 = vpop.f32.mrb[0].mxu0
      %v656 = vadd.f32 %v564, %v655
      %v657 = vpop.f32.mrb[0].mxu0
      %v658 = vpop.f32.mrb[0].mxu0
      %v659 = vadd.f32 %v564, %v658
      %v660 = vpop.f32.mrb[0].mxu0
      %661 = vmatprep.mubr.bf16.mxu0 0
      %662 = vmatmul.mubr.bf16.gmra.mrb[0].mxu0 %v577
      %v663 = vpop.f32.mrb[0].mxu0
      %v664 = vadd.f32 %v564, %v663
      %v665 = vpop.f32.mrb[0].mxu0
      %v666 = vpop.f32.mrb[0].mxu0
      %v667 = vadd.f32 %v564, %v666
      %v668 = vpop.f32.mrb[0].mxu0
      %669 = vmatprep.mubr.bf16.mxu0 0
      %670 = vmatmul.mubr.bf16.gmra.mrb[0].mxu0 %v580
      %v671 = vpop.f32.mrb[0].mxu0
      %v672 = vadd.f32 %v564, %v671
      %v673 = vpop.f32.mrb[0].mxu0
      %v674 = vpop.f32.mrb[0].mxu0
      %v675 = vadd.f32 %v564, %v674
      %v676 = vpop.f32.mrb[0].mxu0
      %677 = vmatprep.mubr.bf16.mxu0 0
      %678 = vmatmul.mubr.bf16.gmra.mrb[0].mxu0 %v583
      %v679 = vpop.f32.mrb[0].mxu0
      %v680 = vadd.f32 %v564, %v679
      %v681 = vpop.f32.mrb[0].mxu0
      %v682 = vpop.f32.mrb[0].mxu0
      %v683 = vadd.f32 %v564, %v682
      %v684 = vpop.f32.mrb[0].mxu0
      %685 = vmatprep.mubr.bf16.mxu0 0
      %686 = vmatmul.mubr.bf16.gmra.mrb[0].mxu0 %v586
      %v687 = vpop.f32.mrb[0].mxu0
      %v688 = vadd.f32 %v564, %v687
      %v689 = vpop.f32.mrb[0].mxu0
      %v690 = vpop.f32.mrb[0].mxu0
      %v691 = vadd.f32 %v564, %v690
      %v692 = vpop.f32.mrb[0].mxu0
      %693 = vmatprep.mubr.bf16.mxu0 0
      %694 = vmatmul.mubr.bf16.gmra.mrb[0].mxu0 %v589
      %v695 = vpop.f32.mrb[0].mxu0
      %v696 = vadd.f32 %v564, %v695
      %v697 = vpop.f32.mrb[0].mxu0
      %v698 = vpop.f32.mrb[0].mxu0
      %v699 = vadd.f32 %v564, %v698
      %v700 = vpop.f32.mrb[0].mxu0
      %701 = vmatprep.mubr.bf16.mxu0 0
      %702 = vmatmul.mubr.bf16.gmra.mrb[0].mxu0 %v592
      %v703 = vpop.f32.mrb[0].mxu0
      %v704 = vadd.f32 %v564, %v703
      %v705 = vpop.f32.mrb[0].mxu0
      %v706 = vpop.f32.mrb[0].mxu0
      %v707 = vadd.f32 %v564, %v706
      %v708 = vpop.f32.mrb[0].mxu0
      %709 = vmatprep.mubr.bf16.mxu0 0
      %710 = vmatmul.mubr.bf16.gmra.mrb[0].mxu0 %v595
      %v711 = vpop.f32.mrb[0].mxu0
      %v712 = vadd.f32 %v564, %v711
      %v713 = vpop.f32.mrb[0].mxu0
      %v714 = vpop.f32.mrb[0].mxu0
      %v715 = vadd.f32 %v564, %v714
      %v716 = vpop.f32.mrb[0].mxu0
      %717 = vmatprep.mubr.bf16.mxu0 0
      %718 = vmatmul.mubr.bf16.gmra.mrb[0].mxu0 %v598
      %v719 = vpop.f32.mrb[0].mxu0
      %v720 = vadd.f32 %v564, %v719
      %v721 = vpop.f32.mrb[0].mxu0
      %v722 = vpop.f32.mrb[0].mxu0
      %v723 = vadd.f32 %v564, %v722
      %v724 = vpop.f32.mrb[0].mxu0
      %725 = vmatprep.mubr.bf16.mxu0 0
      %726 = vmatmul.mubr.bf16.gmra.mrb[0].mxu0 %v601
      %v727 = vpop.f32.mrb[0].mxu0
      %v728 = vadd.f32 %v564, %v727
      %v729 = vpop.f32.mrb[0].mxu0
      %v730 = vpop.f32.mrb[0].mxu0
      %v731 = vadd.f32 %v564, %v730
      %v732 = vpop.f32.mrb[0].mxu0
      %733 = vmatprep.mubr.bf16.mxu0 0
      %734 = vmatmul.mubr.bf16.gmra.mrb[0].mxu0 %v604
      %v735 = vpop.f32.mrb[0].mxu0
      %v736 = vadd.f32 %v564, %v735
      %v737 = vpop.f32.mrb[0].mxu0
      %v738 = vpop.f32.mrb[0].mxu0
      %v739 = vadd.f32 %v564, %v738
      %v740 = vpop.f32.mrb[0].mxu0
      %741 = vmatprep.mubr.bf16.mxu0 0
      %742 = vmatmul.mubr.bf16.gmra.mrb[0].mxu0 %v607
      %v743 = vpop.f32.mrb[0].mxu0
      %v744 = vadd.f32 %v564, %v743
      %v745 = vpop.f32.mrb[0].mxu0
      %v746 = vpop.f32.mrb[0].mxu0
      %v747 = vadd.f32 %v564, %v746
      %v748 = vpop.f32.mrb[0].mxu0
      %749 = vmatprep.mubr.bf16.mxu0 0
      %750 = vmatmul.mubr.bf16.gmra.mrb[0].mxu0 %v610
      %v751 = vpop.f32.mrb[0].mxu0
      %v752 = vadd.f32 %v564, %v751
      %v753 = vpop.f32.mrb[0].mxu0
      %v754 = vpop.f32.mrb[0].mxu0
      %v755 = vadd.f32 %v564, %v754
      %v756 = vpop.f32.mrb[0].mxu0
      %757 = vmatprep.mubr.bf16.mxu0 0
      %758 = vmatmul.mubr.bf16.gmra.mrb[0].mxu0 %v613
      %v759 = vpop.f32.mrb[0].mxu0
      %v760 = vadd.f32 %v564, %v759
      %v761 = vpop.f32.mrb[0].mxu0
      %v762 = vpop.f32.mrb[0].mxu0
      %v763 = vadd.f32 %v564, %v762
      %v764 = vpop.f32.mrb[0].mxu0
      %765 = vmatprep.mubr.bf16.mxu0 0
      %766 = vmatmul.mubr.bf16.gmra.mrb[0].mxu0 %v616
      %v767 = vpop.f32.mrb[0].mxu0
      %v768 = vadd.f32 %v564, %v767
      %v769 = vpop.f32.mrb[0].mxu0
      %v770 = vpop.f32.mrb[0].mxu0
      %v771 = vadd.f32 %v564, %v770
      %v772 = vpop.f32.mrb[0].mxu0
      %773 = vmatprep.mubr.bf16.mxu0 0
      %774 = vmatmul.mubr.bf16.gmra.mrb[0].mxu0 %v619
      %v775 = vpop.f32.mrb[0].mxu0
      %v776 = vadd.f32 %v564, %v775
      %v777 = vpop.f32.mrb[0].mxu0
      %v778 = vpop.f32.mrb[0].mxu0
      %v779 = vadd.f32 %v564, %v778
      %v780 = vpop.f32.mrb[0].mxu0
      %781 = vdwg.mxu0
      %782 = vst [vmem:[%s398] sm:$0xff] %v656
      %783 = vst [vmem:[%s398 + $0x8] sm:$0xff] %v659
      %784 = vst [vmem:[%s398 + $0x10] sm:$0xff] %v664
      %785 = vst [vmem:[%s398 + $0x18] sm:$0xff] %v667
      %786 = vst [vmem:[%s398 + $0x20] sm:$0xff] %v672
      %787 = vst [vmem:[%s398 + $0x28] sm:$0xff] %v675
      %788 = vst [vmem:[%s398 + $0x30] sm:$0xff] %v680
      %789 = vst [vmem:[%s398 + $0x38] sm:$0xff] %v683
      %790 = vst [vmem:[%s398 + $0x40] sm:$0xff] %v688
      %791 = vst [vmem:[%s398 + $0x48] sm:$0xff] %v691
      %792 = vst [vmem:[%s398 + $0x50] sm:$0xff] %v696
      %793 = vst [vmem:[%s398 + $0x58] sm:$0xff] %v699
      %794 = vst [vmem:[%s398 + $0x60] sm:$0xff] %v704
      %795 = vst [vmem:[%s398 + $0x68] sm:$0xff] %v707
      %796 = vst [vmem:[%s398 + $0x70] sm:$0xff] %v712
      %797 = vst [vmem:[%s398 + $0x78] sm:$0xff] %v715
      %798 = vst [vmem:[%s398 + $0x80] sm:$0xff] %v720
      %799 = vst [vmem:[%s398 + $0x88] sm:$0xff] %v723
      %800 = vst [vmem:[%s398 + $0x90] sm:$0xff] %v728
      %801 = vst [vmem:[%s398 + $0x98] sm:$0xff] %v731
      %802 = vst [vmem:[%s398 + $0xa0] sm:$0xff] %v736
      %803 = vst [vmem:[%s398 + $0xa8] sm:$0xff] %v739
      %804 = vst [vmem:[%s398 + $0xb0] sm:$0xff] %v744
      %805 = vst [vmem:[%s398 + $0xb8] sm:$0xff] %v747
      %806 = vst [vmem:[%s398 + $0xc0] sm:$0xff] %v752
      %807 = vst [vmem:[%s398 + $0xc8] sm:$0xff] %v755
      %808 = vst [vmem:[%s398 + $0xd0] sm:$0xff] %v760
      %809 = vst [vmem:[%s398 + $0xd8] sm:$0xff] %v763
      %810 = vst [vmem:[%s398 + $0xe0] sm:$0xff] %v768
      %811 = vst [vmem:[%s398 + $0xe8] sm:$0xff] %v771
      %812 = vst [vmem:[%s398 + $0xf0] sm:$0xff] %v776
      %813 = vst [vmem:[%s398 + $0xf8] sm:$0xff] %v779
      %v814 = vld [vmem:[%s4] sm:$0xf]
      %v815 = vld [vmem:[%s4 + $0x4] sm:$0xf]
      %v816 = vld [vmem:[%s5] sm:$0x1]
      %v818 = vlaneseq
      %v819 = vshrl.u32 %v818, 7
      %v820 = vsub.s32 0, %v819
      %v821 = vrot.slane %v816, %v820
      %v825 = vunpack.c.l.b16 %v814
      %v826 = vunpack.c.l.b16 %v815
      %v827 = vpack.c.b16 %v826, %v825
      %v830 = vsel %vm572, %v525, 0
      %v833 = vsel %vm572, %v526, 0
      %v836 = vsel %vm572, %v527, 0
      %v839 = vsel %vm572, %v528, 0
      %v842 = vsel %vm572, %v529, 0
      %v845 = vsel %vm572, %v530, 0
      %v848 = vsel %vm572, %v531, 0
      %v851 = vsel %vm572, %v532, 0
      %v854 = vsel %vm572, %v533, 0
      %v857 = vsel %vm572, %v534, 0
      %v860 = vsel %vm572, %v535, 0
      %v863 = vsel %vm572, %v536, 0
      %v866 = vsel %vm572, %v537, 0
      %v869 = vsel %vm572, %v538, 0
      %v872 = vsel %vm572, %v539, 0
      %v875 = vsel %vm572, %v540, 0
      %877 = vmatprep.subr.bf16.mxu0 0
      %878 = vmatpush1.bf16.msra.mxu0 %v827
      %879 = vmatprep.subr.bf16.mxu0 0
      %880 = vmatpush1.bf16.msra.mxu0 0
      %881 = vmatprep.subr.bf16.mxu0 0
      %882 = vmatpush1.bf16.msra.mxu0 0
      %883 = vmatprep.subr.bf16.mxu0 0
      %884 = vmatpush1.bf16.msra.mxu0 0
      %885 = vmatprep.subr.bf16.mxu0 0
      %886 = vmatpush1.bf16.msra.mxu0 0
      %887 = vmatprep.subr.bf16.mxu0 0
      %888 = vmatpush1.bf16.msra.mxu0 0
      %889 = vmatprep.subr.bf16.mxu0 0
      %890 = vmatpush1.bf16.msra.mxu0 0
      %891 = vmatprep.subr.bf16.mxu0 0
      %892 = vmatpush1.bf16.msra.mxu0 0
      %893 = vmatprep.subr.bf16.mxu0 0
      %894 = vmatpush1.bf16.msra.mxu0 0
      %895 = vmatprep.subr.bf16.mxu0 0
      %896 = vmatpush1.bf16.msra.mxu0 0
      %897 = vmatprep.subr.bf16.mxu0 0
      %898 = vmatpush1.bf16.msra.mxu0 0
      %899 = vmatprep.subr.bf16.mxu0 0
      %900 = vmatpush1.bf16.msra.mxu0 0
      %901 = vmatprep.subr.bf16.mxu0 0
      %902 = vmatpush1.bf16.msra.mxu0 0
      %903 = vmatprep.subr.bf16.mxu0 0
      %904 = vmatpush1.bf16.msra.mxu0 0
      %905 = vmatprep.subr.bf16.mxu0 0
      %906 = vmatpush1.bf16.msra.mxu0 0
      %907 = vmatprep.subr.bf16.mxu0 0
      %908 = vmatpush1.bf16.msra.mxu0 0
      %909 = vmatprep.mubr.bf16.mxu0 0
      %910 = vmatmul.mubr.bf16.gmra.mrb[0].mxu0 %v830
      %v911 = vpop.f32.mrb[0].mxu0
      %v912 = vadd.f32 %v821, %v911
      %v913 = vpop.f32.mrb[0].mxu0
      %v914 = vpop.f32.mrb[0].mxu0
      %v915 = vadd.f32 %v821, %v914
      %v916 = vpop.f32.mrb[0].mxu0
      %917 = vmatprep.mubr.bf16.mxu0 0
      %918 = vmatmul.mubr.bf16.gmra.mrb[0].mxu0 %v833
      %v919 = vpop.f32.mrb[0].mxu0
      %v920 = vadd.f32 %v821, %v919
      %v921 = vpop.f32.mrb[0].mxu0
      %v922 = vpop.f32.mrb[0].mxu0
      %v923 = vadd.f32 %v821, %v922
      %v924 = vpop.f32.mrb[0].mxu0
      %925 = vmatprep.mubr.bf16.mxu0 0
      %926 = vmatmul.mubr.bf16.gmra.mrb[0].mxu0 %v836
      %v927 = vpop.f32.mrb[0].mxu0
      %v928 = vadd.f32 %v821, %v927
      %v929 = vpop.f32.mrb[0].mxu0
      %v930 = vpop.f32.mrb[0].mxu0
      %v931 = vadd.f32 %v821, %v930
      %v932 = vpop.f32.mrb[0].mxu0
      %933 = vmatprep.mubr.bf16.mxu0 0
      %934 = vmatmul.mubr.bf16.gmra.mrb[0].mxu0 %v839
      %v935 = vpop.f32.mrb[0].mxu0
      %v936 = vadd.f32 %v821, %v935
      %v937 = vpop.f32.mrb[0].mxu0
      %v938 = vpop.f32.mrb[0].mxu0
      %v939 = vadd.f32 %v821, %v938
      %v940 = vpop.f32.mrb[0].mxu0
      %941 = vmatprep.mubr.bf16.mxu0 0
      %942 = vmatmul.mubr.bf16.gmra.mrb[0].mxu0 %v842
      %v943 = vpop.f32.mrb[0].mxu0
      %v944 = vadd.f32 %v821, %v943
      %v945 = vpop.f32.mrb[0].mxu0
      %v946 = vpop.f32.mrb[0].mxu0
      %v947 = vadd.f32 %v821, %v946
      %v948 = vpop.f32.mrb[0].mxu0
      %949 = vmatprep.mubr.bf16.mxu0 0
      %950 = vmatmul.mubr.bf16.gmra.mrb[0].mxu0 %v845
      %v951 = vpop.f32.mrb[0].mxu0
      %v952 = vadd.f32 %v821, %v951
      %v953 = vpop.f32.mrb[0].mxu0
      %v954 = vpop.f32.mrb[0].mxu0
      %v955 = vadd.f32 %v821, %v954
      %v956 = vpop.f32.mrb[0].mxu0
      %957 = vmatprep.mubr.bf16.mxu0 0
      %958 = vmatmul.mubr.bf16.gmra.mrb[0].mxu0 %v848
      %v959 = vpop.f32.mrb[0].mxu0
      %v960 = vadd.f32 %v821, %v959
      %v961 = vpop.f32.mrb[0].mxu0
      %v962 = vpop.f32.mrb[0].mxu0
      %v963 = vadd.f32 %v821, %v962
      %v964 = vpop.f32.mrb[0].mxu0
      %965 = vmatprep.mubr.bf16.mxu0 0
      %966 = vmatmul.mubr.bf16.gmra.mrb[0].mxu0 %v851
      %v967 = vpop.f32.mrb[0].mxu0
      %v968 = vadd.f32 %v821, %v967
      %v969 = vpop.f32.mrb[0].mxu0
      %v970 = vpop.f32.mrb[0].mxu0
      %v971 = vadd.f32 %v821, %v970
      %v972 = vpop.f32.mrb[0].mxu0
      %973 = vmatprep.mubr.bf16.mxu0 0
      %974 = vmatmul.mubr.bf16.gmra.mrb[0].mxu0 %v854
      %v975 = vpop.f32.mrb[0].mxu0
      %v976 = vadd.f32 %v821, %v975
      %v977 = vpop.f32.mrb[0].mxu0
      %v978 = vpop.f32.mrb[0].mxu0
      %v979 = vadd.f32 %v821, %v978
      %v980 = vpop.f32.mrb[0].mxu0
      %981 = vmatprep.mubr.bf16.mxu0 0
      %982 = vmatmul.mubr.bf16.gmra.mrb[0].mxu0 %v857
      %v983 = vpop.f32.mrb[0].mxu0
      %v984 = vadd.f32 %v821, %v983
      %v985 = vpop.f32.mrb[0].mxu0
      %v986 = vpop.f32.mrb[0].mxu0
      %v987 = vadd.f32 %v821, %v986
      %v988 = vpop.f32.mrb[0].mxu0
      %989 = vmatprep.mubr.bf16.mxu0 0
      %990 = vmatmul.mubr.bf16.gmra.mrb[0].mxu0 %v860
      %v991 = vpop.f32.mrb[0].mxu0
      %v992 = vadd.f32 %v821, %v991
      %v993 = vpop.f32.mrb[0].mxu0
      %v994 = vpop.f32.mrb[0].mxu0
      %v995 = vadd.f32 %v821, %v994
      %v996 = vpop.f32.mrb[0].mxu0
      %997 = vmatprep.mubr.bf16.mxu0 0
      %998 = vmatmul.mubr.bf16.gmra.mrb[0].mxu0 %v863
      %v999 = vpop.f32.mrb[0].mxu0
      %v1000 = vadd.f32 %v821, %v999
      %v1001 = vpop.f32.mrb[0].mxu0
      %v1002 = vpop.f32.mrb[0].mxu0
      %v1003 = vadd.f32 %v821, %v1002
      %v1004 = vpop.f32.mrb[0].mxu0
      %1005 = vmatprep.mubr.bf16.mxu0 0
      %1006 = vmatmul.mubr.bf16.gmra.mrb[0].mxu0 %v866
      %v1007 = vpop.f32.mrb[0].mxu0
      %v1008 = vadd.f32 %v821, %v1007
      %v1009 = vpop.f32.mrb[0].mxu0
      %v1010 = vpop.f32.mrb[0].mxu0
      %v1011 = vadd.f32 %v821, %v1010
      %v1012 = vpop.f32.mrb[0].mxu0
      %1013 = vmatprep.mubr.bf16.mxu0 0
      %1014 = vmatmul.mubr.bf16.gmra.mrb[0].mxu0 %v869
      %v1015 = vpop.f32.mrb[0].mxu0
      %v1016 = vadd.f32 %v821, %v1015
      %v1017 = vpop.f32.mrb[0].mxu0
      %v1018 = vpop.f32.mrb[0].mxu0
      %v1019 = vadd.f32 %v821, %v1018
      %v1020 = vpop.f32.mrb[0].mxu0
      %1021 = vmatprep.mubr.bf16.mxu0 0
      %1022 = vmatmul.mubr.bf16.gmra.mrb[0].mxu0 %v872
      %v1023 = vpop.f32.mrb[0].mxu0
      %v1024 = vadd.f32 %v821, %v1023
      %v1025 = vpop.f32.mrb[0].mxu0
      %v1026 = vpop.f32.mrb[0].mxu0
      %v1027 = vadd.f32 %v821, %v1026
      %v1028 = vpop.f32.mrb[0].mxu0
      %1029 = vmatprep.mubr.bf16.mxu0 0
      %1030 = vmatmul.mubr.bf16.gmra.mrb[0].mxu0 %v875
      %v1031 = vpop.f32.mrb[0].mxu0
      %v1032 = vadd.f32 %v821, %v1031
      %v1033 = vpop.f32.mrb[0].mxu0
      %v1034 = vpop.f32.mrb[0].mxu0
      %v1035 = vadd.f32 %v821, %v1034
      %v1036 = vpop.f32.mrb[0].mxu0
      %1037 = vdwg.mxu0
      %1038 = vst [vmem:[%s404] sm:$0xff] %v912
      %1039 = vst [vmem:[%s404 + $0x8] sm:$0xff] %v915
      %1040 = vst [vmem:[%s404 + $0x10] sm:$0xff] %v920
      %1041 = vst [vmem:[%s404 + $0x18] sm:$0xff] %v923
      %1042 = vst [vmem:[%s404 + $0x20] sm:$0xff] %v928
      %1043 = vst [vmem:[%s404 + $0x28] sm:$0xff] %v931
      %1044 = vst [vmem:[%s404 + $0x30] sm:$0xff] %v936
      %1045 = vst [vmem:[%s404 + $0x38] sm:$0xff] %v939
      %1046 = vst [vmem:[%s404 + $0x40] sm:$0xff] %v944
      %1047 = vst [vmem:[%s404 + $0x48] sm:$0xff] %v947
      %1048 = vst [vmem:[%s404 + $0x50] sm:$0xff] %v952
      %1049 = vst [vmem:[%s404 + $0x58] sm:$0xff] %v955
      %1050 = vst [vmem:[%s404 + $0x60] sm:$0xff] %v960
      %1051 = vst [vmem:[%s404 + $0x68] sm:$0xff] %v963
      %1052 = vst [vmem:[%s404 + $0x70] sm:$0xff] %v968
      %1053 = vst [vmem:[%s404 + $0x78] sm:$0xff] %v971
      %1054 = vst [vmem:[%s404 + $0x80] sm:$0xff] %v976
      %1055 = vst [vmem:[%s404 + $0x88] sm:$0xff] %v979
      %1056 = vst [vmem:[%s404 + $0x90] sm:$0xff] %v984
      %1057 = vst [vmem:[%s404 + $0x98] sm:$0xff] %v987
      %1058 = vst [vmem:[%s404 + $0xa0] sm:$0xff] %v992
      %1059 = vst [vmem:[%s404 + $0xa8] sm:$0xff] %v995
      %1060 = vst [vmem:[%s404 + $0xb0] sm:$0xff] %v1000
      %1061 = vst [vmem:[%s404 + $0xb8] sm:$0xff] %v1003
      %1062 = vst [vmem:[%s404 + $0xc0] sm:$0xff] %v1008
      %1063 = vst [vmem:[%s404 + $0xc8] sm:$0xff] %v1011
      %1064 = vst [vmem:[%s404 + $0xd0] sm:$0xff] %v1016
      %1065 = vst [vmem:[%s404 + $0xd8] sm:$0xff] %v1019
      %1066 = vst [vmem:[%s404 + $0xe0] sm:$0xff] %v1024
      %1067 = vst [vmem:[%s404 + $0xe8] sm:$0xff] %v1027
      %1068 = vst [vmem:[%s404 + $0xf0] sm:$0xff] %v1032
      %1069 = vst [vmem:[%s404 + $0xf8] sm:$0xff] %v1035
      %v1070 = vld [vmem:[%s6] sm:$0xf]
      %v1071 = vld [vmem:[%s6 + $0x4] sm:$0xf]
      %v1072 = vld [vmem:[%s7] sm:$0x1]
      %v1074 = vlaneseq
      %v1075 = vshrl.u32 %v1074, 7
      %v1076 = vsub.s32 0, %v1075
      %v1077 = vrot.slane %v1072, %v1076
      %v1081 = vunpack.c.l.b16 %v1070
      %v1082 = vunpack.c.l.b16 %v1071
      %v1083 = vpack.c.b16 %v1082, %v1081
      %v1086 = vsel %vm572, %v541, 0
      %v1089 = vsel %vm572, %v542, 0
      %v1092 = vsel %vm572, %v543, 0
      %v1095 = vsel %vm572, %v544, 0
      %v1098 = vsel %vm572, %v545, 0
      %v1101 = vsel %vm572, %v546, 0
      %v1104 = vsel %vm572, %v547, 0
      %v1107 = vsel %vm572, %v548, 0
      %v1110 = vsel %vm572, %v549, 0
      %v1113 = vsel %vm572, %v550, 0
      %v1116 = vsel %vm572, %v551, 0
      %v1119 = vsel %vm572, %v552, 0
      %v1122 = vsel %vm572, %v553, 0
      %v1125 = vsel %vm572, %v554, 0
      %v1128 = vsel %vm572, %v555, 0
      %v1131 = vsel %vm572, %v556, 0
      %1133 = vmatprep.subr.bf16.mxu0 0
      %1134 = vmatpush1.bf16.msra.mxu0 %v1083
      %1135 = vmatprep.subr.bf16.mxu0 0
      %1136 = vmatpush1.bf16.msra.mxu0 0
      %1137 = vmatprep.subr.bf16.mxu0 0
      %1138 = vmatpush1.bf16.msra.mxu0 0
      %1139 = vmatprep.subr.bf16.mxu0 0
      %1140 = vmatpush1.bf16.msra.mxu0 0
      %1141 = vmatprep.subr.bf16.mxu0 0
      %1142 = vmatpush1.bf16.msra.mxu0 0
      %1143 = vmatprep.subr.bf16.mxu0 0
      %1144 = vmatpush1.bf16.msra.mxu0 0
      %1145 = vmatprep.subr.bf16.mxu0 0
      %1146 = vmatpush1.bf16.msra.mxu0 0
      %1147 = vmatprep.subr.bf16.mxu0 0
      %1148 = vmatpush1.bf16.msra.mxu0 0
      %1149 = vmatprep.subr.bf16.mxu0 0
      %1150 = vmatpush1.bf16.msra.mxu0 0
      %1151 = vmatprep.subr.bf16.mxu0 0
      %1152 = vmatpush1.bf16.msra.mxu0 0
      %1153 = vmatprep.subr.bf16.mxu0 0
      %1154 = vmatpush1.bf16.msra.mxu0 0
      %1155 = vmatprep.subr.bf16.mxu0 0
      %1156 = vmatpush1.bf16.msra.mxu0 0
      %1157 = vmatprep.subr.bf16.mxu0 0
      %1158 = vmatpush1.bf16.msra.mxu0 0
      %1159 = vmatprep.subr.bf16.mxu0 0
      %1160 = vmatpush1.bf16.msra.mxu0 0
      %1161 = vmatprep.subr.bf16.mxu0 0
      %1162 = vmatpush1.bf16.msra.mxu0 0
      %1163 = vmatprep.subr.bf16.mxu0 0
      %1164 = vmatpush1.bf16.msra.mxu0 0
      %1165 = vmatprep.mubr.bf16.mxu0 0
      %1166 = vmatmul.mubr.bf16.gmra.mrb[0].mxu0 %v1086
      %v1167 = vpop.f32.mrb[0].mxu0
      %v1168 = vadd.f32 %v1077, %v1167
      %v1169 = vpop.f32.mrb[0].mxu0
      %v1170 = vpop.f32.mrb[0].mxu0
      %v1171 = vadd.f32 %v1077, %v1170
      %v1172 = vpop.f32.mrb[0].mxu0
      %1173 = vmatprep.mubr.bf16.mxu0 0
      %1174 = vmatmul.mubr.bf16.gmra.mrb[0].mxu0 %v1089
      %v1175 = vpop.f32.mrb[0].mxu0
      %v1176 = vadd.f32 %v1077, %v1175
      %v1177 = vpop.f32.mrb[0].mxu0
      %v1178 = vpop.f32.mrb[0].mxu0
      %v1179 = vadd.f32 %v1077, %v1178
      %v1180 = vpop.f32.mrb[0].mxu0
      %1181 = vmatprep.mubr.bf16.mxu0 0
      %1182 = vmatmul.mubr.bf16.gmra.mrb[0].mxu0 %v1092
      %v1183 = vpop.f32.mrb[0].mxu0
      %v1184 = vadd.f32 %v1077, %v1183
      %v1185 = vpop.f32.mrb[0].mxu0
      %v1186 = vpop.f32.mrb[0].mxu0
      %v1187 = vadd.f32 %v1077, %v1186
      %v1188 = vpop.f32.mrb[0].mxu0
      %1189 = vmatprep.mubr.bf16.mxu0 0
      %1190 = vmatmul.mubr.bf16.gmra.mrb[0].mxu0 %v1095
      %v1191 = vpop.f32.mrb[0].mxu0
      %v1192 = vadd.f32 %v1077, %v1191
      %v1193 = vpop.f32.mrb[0].mxu0
      %v1194 = vpop.f32.mrb[0].mxu0
      %v1195 = vadd.f32 %v1077, %v1194
      %v1196 = vpop.f32.mrb[0].mxu0
      %1197 = vmatprep.mubr.bf16.mxu0 0
      %1198 = vmatmul.mubr.bf16.gmra.mrb[0].mxu0 %v1098
      %v1199 = vpop.f32.mrb[0].mxu0
      %v1200 = vadd.f32 %v1077, %v1199
      %v1201 = vpop.f32.mrb[0].mxu0
      %v1202 = vpop.f32.mrb[0].mxu0
      %v1203 = vadd.f32 %v1077, %v1202
      %v1204 = vpop.f32.mrb[0].mxu0
      %1205 = vmatprep.mubr.bf16.mxu0 0
      %1206 = vmatmul.mubr.bf16.gmra.mrb[0].mxu0 %v1101
      %v1207 = vpop.f32.mrb[0].mxu0
      %v1208 = vadd.f32 %v1077, %v1207
      %v1209 = vpop.f32.mrb[0].mxu0
      %v1210 = vpop.f32.mrb[0].mxu0
      %v1211 = vadd.f32 %v1077, %v1210
      %v1212 = vpop.f32.mrb[0].mxu0
      %1213 = vmatprep.mubr.bf16.mxu0 0
      %1214 = vmatmul.mubr.bf16.gmra.mrb[0].mxu0 %v1104
      %v1215 = vpop.f32.mrb[0].mxu0
      %v1216 = vadd.f32 %v1077, %v1215
      %v1217 = vpop.f32.mrb[0].mxu0
      %v1218 = vpop.f32.mrb[0].mxu0
      %v1219 = vadd.f32 %v1077, %v1218
      %v1220 = vpop.f32.mrb[0].mxu0
      %1221 = vmatprep.mubr.bf16.mxu0 0
      %1222 = vmatmul.mubr.bf16.gmra.mrb[0].mxu0 %v1107
      %v1223 = vpop.f32.mrb[0].mxu0
      %v1224 = vadd.f32 %v1077, %v1223
      %v1225 = vpop.f32.mrb[0].mxu0
      %v1226 = vpop.f32.mrb[0].mxu0
      %v1227 = vadd.f32 %v1077, %v1226
      %v1228 = vpop.f32.mrb[0].mxu0
      %1229 = vmatprep.mubr.bf16.mxu0 0
      %1230 = vmatmul.mubr.bf16.gmra.mrb[0].mxu0 %v1110
      %v1231 = vpop.f32.mrb[0].mxu0
      %v1232 = vadd.f32 %v1077, %v1231
      %v1233 = vpop.f32.mrb[0].mxu0
      %v1234 = vpop.f32.mrb[0].mxu0
      %v1235 = vadd.f32 %v1077, %v1234
      %v1236 = vpop.f32.mrb[0].mxu0
      %1237 = vmatprep.mubr.bf16.mxu0 0
      %1238 = vmatmul.mubr.bf16.gmra.mrb[0].mxu0 %v1113
      %v1239 = vpop.f32.mrb[0].mxu0
      %v1240 = vadd.f32 %v1077, %v1239
      %v1241 = vpop.f32.mrb[0].mxu0
      %v1242 = vpop.f32.mrb[0].mxu0
      %v1243 = vadd.f32 %v1077, %v1242
      %v1244 = vpop.f32.mrb[0].mxu0
      %1245 = vmatprep.mubr.bf16.mxu0 0
      %1246 = vmatmul.mubr.bf16.gmra.mrb[0].mxu0 %v1116
      %v1247 = vpop.f32.mrb[0].mxu0
      %v1248 = vadd.f32 %v1077, %v1247
      %v1249 = vpop.f32.mrb[0].mxu0
      %v1250 = vpop.f32.mrb[0].mxu0
      %v1251 = vadd.f32 %v1077, %v1250
      %v1252 = vpop.f32.mrb[0].mxu0
      %1253 = vmatprep.mubr.bf16.mxu0 0
      %1254 = vmatmul.mubr.bf16.gmra.mrb[0].mxu0 %v1119
      %v1255 = vpop.f32.mrb[0].mxu0
      %v1256 = vadd.f32 %v1077, %v1255
      %v1257 = vpop.f32.mrb[0].mxu0
      %v1258 = vpop.f32.mrb[0].mxu0
      %v1259 = vadd.f32 %v1077, %v1258
      %v1260 = vpop.f32.mrb[0].mxu0
      %1261 = vmatprep.mubr.bf16.mxu0 0
      %1262 = vmatmul.mubr.bf16.gmra.mrb[0].mxu0 %v1122
      %v1263 = vpop.f32.mrb[0].mxu0
      %v1264 = vadd.f32 %v1077, %v1263
      %v1265 = vpop.f32.mrb[0].mxu0
      %v1266 = vpop.f32.mrb[0].mxu0
      %v1267 = vadd.f32 %v1077, %v1266
      %v1268 = vpop.f32.mrb[0].mxu0
      %1269 = vmatprep.mubr.bf16.mxu0 0
      %1270 = vmatmul.mubr.bf16.gmra.mrb[0].mxu0 %v1125
      %v1271 = vpop.f32.mrb[0].mxu0
      %v1272 = vadd.f32 %v1077, %v1271
      %v1273 = vpop.f32.mrb[0].mxu0
      %v1274 = vpop.f32.mrb[0].mxu0
      %v1275 = vadd.f32 %v1077, %v1274
      %v1276 = vpop.f32.mrb[0].mxu0
      %1277 = vmatprep.mubr.bf16.mxu0 0
      %1278 = vmatmul.mubr.bf16.gmra.mrb[0].mxu0 %v1128
      %v1279 = vpop.f32.mrb[0].mxu0
      %v1280 = vadd.f32 %v1077, %v1279
      %v1281 = vpop.f32.mrb[0].mxu0
      %v1282 = vpop.f32.mrb[0].mxu0
      %v1283 = vadd.f32 %v1077, %v1282
      %v1284 = vpop.f32.mrb[0].mxu0
      %1285 = vmatprep.mubr.bf16.mxu0 0
      %1286 = vmatmul.mubr.bf16.gmra.mrb[0].mxu0 %v1131
      %v1287 = vpop.f32.mrb[0].mxu0
      %v1288 = vadd.f32 %v1077, %v1287
      %v1289 = vpop.f32.mrb[0].mxu0
      %v1290 = vpop.f32.mrb[0].mxu0
      %v1291 = vadd.f32 %v1077, %v1290
      %v1292 = vpop.f32.mrb[0].mxu0
      %1293 = vdwg.mxu0
      %1294 = vst [vmem:[%s410] sm:$0xff] %v1168
      %1295 = vst [vmem:[%s410 + $0x8] sm:$0xff] %v1171
      %1296 = vst [vmem:[%s410 + $0x10] sm:$0xff] %v1176
      %1297 = vst [vmem:[%s410 + $0x18] sm:$0xff] %v1179
      %1298 = vst [vmem:[%s410 + $0x20] sm:$0xff] %v1184
      %1299 = vst [vmem:[%s410 + $0x28] sm:$0xff] %v1187
      %1300 = vst [vmem:[%s410 + $0x30] sm:$0xff] %v1192
      %1301 = vst [vmem:[%s410 + $0x38] sm:$0xff] %v1195
      %1302 = vst [vmem:[%s410 + $0x40] sm:$0xff] %v1200
      %1303 = vst [vmem:[%s410 + $0x48] sm:$0xff] %v1203
      %1304 = vst [vmem:[%s410 + $0x50] sm:$0xff] %v1208
      %1305 = vst [vmem:[%s410 + $0x58] sm:$0xff] %v1211
      %1306 = vst [vmem:[%s410 + $0x60] sm:$0xff] %v1216
      %1307 = vst [vmem:[%s410 + $0x68] sm:$0xff] %v1219
      %1308 = vst [vmem:[%s410 + $0x70] sm:$0xff] %v1224
      %1309 = vst [vmem:[%s410 + $0x78] sm:$0xff] %v1227
      %1310 = vst [vmem:[%s410 + $0x80] sm:$0xff] %v1232
      %1311 = vst [vmem:[%s410 + $0x88] sm:$0xff] %v1235
      %1312 = vst [vmem:[%s410 + $0x90] sm:$0xff] %v1240
      %1313 = vst [vmem:[%s410 + $0x98] sm:$0xff] %v1243
      %1314 = vst [vmem:[%s410 + $0xa0] sm:$0xff] %v1248
      %1315 = vst [vmem:[%s410 + $0xa8] sm:$0xff] %v1251
      %1316 = vst [vmem:[%s410 + $0xb0] sm:$0xff] %v1256
      %1317 = vst [vmem:[%s410 + $0xb8] sm:$0xff] %v1259
      %1318 = vst [vmem:[%s410 + $0xc0] sm:$0xff] %v1264
      %1319 = vst [vmem:[%s410 + $0xc8] sm:$0xff] %v1267
      %1320 = vst [vmem:[%s410 + $0xd0] sm:$0xff] %v1272
      %1321 = vst [vmem:[%s410 + $0xd8] sm:$0xff] %v1275
      %1322 = vst [vmem:[%s410 + $0xe0] sm:$0xff] %v1280
      %1323 = vst [vmem:[%s410 + $0xe8] sm:$0xff] %v1283
      %1324 = vst [vmem:[%s410 + $0xf0] sm:$0xff] %v1288
      %1325 = vst [vmem:[%s410 + $0xf8] sm:$0xff] %v1291
      %s1326 = smul.u32 32, %s22
      %p1327 = scmp.lt.s32.totalorder %s1326, 63
      %s1328 = scalar_select %p1327, %s1326, 63
      %s1329 = smul.addr %s1328, 8
      %s1330 = scalar_lea.vmem %s8, %s1329
      %s1331 = smul.u32 32, %s22
      %p1332 = scmp.lt.s32.totalorder %s1331, 63
      %s1333 = scalar_select %p1332, %s1331, 63
      %s1334 = smul.addr %s1333, 8
      %s1335 = scalar_lea.vmem %s9, %s1334
      %s1336 = smul.u32 32, %s22
      %p1337 = scmp.lt.s32.totalorder %s1336, 63
      %s1338 = scalar_select %p1337, %s1336, 63
      %s1339 = smul.addr %s1338, 8
      %s1340 = scalar_lea.vmem %s10, %s1339
      // Predicated region
      $region53: #{da_head_forward.13} parent=51 // pred_check
        %p1341 = pneg %p218
      $region54: #{da_head_forward.13} parent=51 // pred_check_branch
        %1343 = sbr.rel (%p1341) target = $region56
      $region55: #{da_head_forward.13} parent=51 // pred_region
        %s1344 = smul.u32 32, %s22
      $region56: #{da_head_forward.13} parent=51 // pred_fallthru
        _
      // Predicated region
      $region57: #{da_head_forward.13} parent=51 // pred_check
        %p1345 = pneg %p244
      $region58: #{da_head_forward.13} parent=51 // pred_check_branch
        %1347 = sbr.rel (%p1345) target = $region60
      $region59: #{da_head_forward.13} parent=51 // pred_region
        %s1348 = smul.u32 32, %s22
      $region60: #{da_head_forward.13} parent=51 // pred_fallthru
        _
      // Predicated region
      $region61: #{da_head_forward.13} parent=51 // pred_check
        %p1349 = pneg %p270
      $region62: #{da_head_forward.13} parent=51 // pred_check_branch
        %1351 = sbr.rel (%p1349) target = $region64
      $region63: #{da_head_forward.13} parent=51 // pred_region
        %s1352 = smul.u32 32, %s22
      $region64: #{da_head_forward.13} parent=51 // pred_fallthru
        _
    $region52: #{da_head_forward.13} parent=5 // pred_fallthru
      _
    %p1353 = scmp.le.s32.totalorder 2, %s17
    // Predicated region
    $region65: #{da_head_forward.13} parent=5 // pred_check
      %p1354 = pneg %p1353
    $region66: #{da_head_forward.13} parent=5 // pred_check_branch
      %1356 = sbr.rel (%p1354) target = $region68
    $region67: #{da_head_forward.13} parent=5 // pred_region
      %s1357 = ssub.s32 %s17, 2
      // Predicated region
      $region69: #{da_head_forward.13} parent=67 // pred_check
        %p1358 = pneg %p224
      $region70: #{da_head_forward.13} parent=67 // pred_check_branch
        %1360 = sbr.rel (%p1358) target = $region72
      $region71: #{da_head_forward.13} parent=67 // pred_region
        %s1361 = smul.u32 32, %s23
        %p1362 = scmp.lt.s32.totalorder %s1361, 63
        %s1363 = scalar_select %p1362, %s1361, 63
        %s1364 = smul.addr %s1363, 8
        %s1365 = scalar_lea.vmem %s8, %s1364
      $region72: #{da_head_forward.13} parent=67 // pred_fallthru
        _
      // Predicated region
      $region73: #{da_head_forward.13} parent=67 // pred_check
        %p1366 = pneg %p250
      $region74: #{da_head_forward.13} parent=67 // pred_check_branch
        %1368 = sbr.rel (%p1366) target = $region76
      $region75: #{da_head_forward.13} parent=67 // pred_region
        %s1369 = smul.u32 32, %s23
        %p1370 = scmp.lt.s32.totalorder %s1369, 63
        %s1371 = scalar_select %p1370, %s1369, 63
        %s1372 = smul.addr %s1371, 8
        %s1373 = scalar_lea.vmem %s9, %s1372
      $region76: #{da_head_forward.13} parent=67 // pred_fallthru
        _
      // Predicated region
      $region77: #{da_head_forward.13} parent=67 // pred_check
        %p1374 = pneg %p276
      $region78: #{da_head_forward.13} parent=67 // pred_check_branch
        %1376 = sbr.rel (%p1374) target = $region80
      $region79: #{da_head_forward.13} parent=67 // pred_region
        %s1377 = smul.u32 32, %s23
        %p1378 = scmp.lt.s32.totalorder %s1377, 63
        %s1379 = scalar_select %p1378, %s1377, 63
        %s1380 = smul.addr %s1379, 8
        %s1381 = scalar_lea.vmem %s10, %s1380
      $region80: #{da_head_forward.13} parent=67 // pred_fallthru
        _
    $region68: #{da_head_forward.13} parent=5 // pred_fallthru
      _
  $region6: #{da_head_forward.13} parent=0 // loop_footer
    %s21 = sadd.s32 1, %s17
  $region7: #{da_head_forward.13} parent=0 // loop_footer_branch
    %16 = sbr.rel target = $region3
  $region8: #{da_head_forward.13} parent=0 // loop_exit
    _

</llo_original>
